<compile_context>
chip_gen: v5e
topology: v5e:2x2
jax: 0.10.0
libtpu: 0.0.40
codegen_flags: <defaults>
</compile_context>

<pallas_src>
import functools

import jax
import jax.numpy as jnp
from jax.experimental import pallas as pl
from jax.experimental.pallas import tpu as pltpu


_VMEM_LIMIT = 32 * 1024 * 1024  # safe on v5e/v6e (128 MiB) and v7x (64 MiB)


def _pick_tile(m, max_tile):
    """Largest tile <= max_tile that divides m and is sublane (8) aligned."""
    for t in (max_tile, 2048, 1024, 512, 256, 128, 64, 32, 16, 8):
        if t <= m and m % t == 0 and t % 8 == 0:
            return t
    return m


# ---------------------------------------------------------------------------
# Kernel 1: M-tiled matmul + folded-BN bias (+ optional ReLU)  -- 1x1 convs
# ---------------------------------------------------------------------------

def _matmul_bias_kernel(x_ref, w_ref, b_ref, o_ref, *, apply_relu):
    acc = jnp.dot(x_ref[...], w_ref[...], preferred_element_type=jnp.float32)
    y = acc + b_ref[...]
    if apply_relu:
        y = jnp.maximum(y, 0.0)
    o_ref[...] = y.astype(o_ref.dtype)


def matmul_bn(x_rows, w, scale_bias, *, apply_relu=False, max_tm=512):
    """(M, K) @ (K, Cout) with BN scale folded into w and bias epilogue."""
    scale, bias = scale_bias
    M, K = x_rows.shape
    Cout = w.shape[1]
    w_s = (w * scale[None, :]).astype(jnp.bfloat16)          # fold BN scale
    b2 = bias.reshape(1, Cout).astype(jnp.float32)
    x_b = x_rows.astype(jnp.bfloat16)
    TM = _pick_tile(M, max_tm)
    return pl.pallas_call(
        functools.partial(_matmul_bias_kernel, apply_relu=apply_relu),
        out_shape=jax.ShapeDtypeStruct((M, Cout), jnp.float32),
        grid=(M // TM,),
        in_specs=[
            pl.BlockSpec((TM, K), lambda i: (i, 0)),
            pl.BlockSpec((K, Cout), lambda i: (0, 0)),
            pl.BlockSpec((1, Cout), lambda i: (0, 0)),
        ],
        out_specs=pl.BlockSpec((TM, Cout), lambda i: (i, 0)),
        compiler_params=pltpu.CompilerParams(
            dimension_semantics=("parallel",),
            vmem_limit_bytes=_VMEM_LIMIT),
    )(x_b, w_s, b2)


# ---------------------------------------------------------------------------
# Kernel 2: 3x3 / stride-2 / pad-1 conv + folded BN, 9-tap accumulation over
# parity-split rows (no materialized im2col), fused residual adds + ReLU.
# ---------------------------------------------------------------------------

def _conv3x3_s2_kernel(e0, o0, e1, o1, e2, o2, w_ref, b_ref, *rest,
                       wo, apply_relu, n_add):
    adds = rest[:n_add]
    o_ref = rest[n_add]
    cout = o_ref.shape[-1]
    # kh -> (even-column ref, odd-column ref) for the row needed by that tap.
    row_pairs = ((e0, o0), (e1, o1), (e2, o2))
    acc = jnp.zeros((wo, cout), jnp.float32)
    for kh in range(3):
        even_ref, odd_ref = row_pairs[kh]
        for kw in range(3):
            ref = even_ref if kw % 2 == 0 else odd_ref
            dw = kw // 2
            x = ref[0, 0, dw:dw + wo, :]                      # (wo, Cin) bf16
            acc = acc + jnp.dot(x, w_ref[kh * 3 + kw, :, :],
                                preferred_element_type=jnp.float32)
    y = acc + b_ref[...]
    for a in adds:
        y = y + a[0, 0, :, :].astype(jnp.float32)
    if apply_relu:
        y = jnp.maximum(y, 0.0)
    o_ref[0, 0, :, :] = y.astype(o_ref.dtype)


def conv3x3_s2_bn(x_nhwc, w, scale_bias, *, addends=(), apply_relu=False):
    """3x3/s2/p1 conv + folded BN (+ fused adds + ReLU).

    x_nhwc : (N, H, W, Cin);  w : (9, Cin, Cout) in kh*3+kw tap order.
    addends: tensors of shape (N, Ho, Wo, Cout) added before the optional ReLU.
    """
    scale, bias = scale_bias
    N, H, W, Cin = x_nhwc.shape
    Cout = w.shape[-1]
    Ho, Wo = (H - 1) // 2 + 1, (W - 1) // 2 + 1

    w_s = (w * scale[None, None, :]).astype(jnp.bfloat16)     # fold BN scale
    b2 = bias.reshape(1, Cout).astype(jnp.float32)

    # Pad once and de-stride into the four row/col parity planes (~1x input
    # bytes vs the 9x HBM inflation of materialized im2col patches).
    xp = jnp.pad(x_nhwc, ((0, 0), (1, 1), (1, 1), (0, 0))).astype(jnp.bfloat16)
    p00 = xp[:, 0::2, 0::2, :]
    p01 = xp[:, 0::2, 1::2, :]
    p10 = xp[:, 1::2, 0::2, :]
    p11 = xp[:, 1::2, 1::2, :]

    def row_spec(p, dh):
        shape = (1, 1, p.shape[2], Cin)
        if dh == 0:
            return pl.BlockSpec(shape, lambda n, ho: (n, ho, 0, 0))
        return pl.BlockSpec(shape, lambda n, ho: (n, ho + 1, 0, 0))

    in_specs = [
        row_spec(p00, 0), row_spec(p01, 0),        # kh = 0 taps
        row_spec(p10, 0), row_spec(p11, 0),        # kh = 1 taps
        row_spec(p00, 1), row_spec(p01, 1),        # kh = 2 taps
        pl.BlockSpec((9, Cin, Cout), lambda n, ho: (0, 0, 0)),
        pl.BlockSpec((1, Cout), lambda n, ho: (0, 0)),
    ]
    in_specs += [pl.BlockSpec((1, 1, Wo, Cout), lambda n, ho: (n, ho, 0, 0))
                 for _ in addends]

    return pl.pallas_call(
        functools.partial(_conv3x3_s2_kernel, wo=Wo, apply_relu=apply_relu,
                          n_add=len(addends)),
        out_shape=jax.ShapeDtypeStruct((N, Ho, Wo, Cout), jnp.float32),
        grid=(N, Ho),
        in_specs=in_specs,
        out_specs=pl.BlockSpec((1, 1, Wo, Cout), lambda n, ho: (n, ho, 0, 0)),
        compiler_params=pltpu.CompilerParams(
            dimension_semantics=("parallel", "parallel"),
            vmem_limit_bytes=_VMEM_LIMIT),
    )(p00, p01, p10, p11, p00, p01, w_s, b2, *addends)


# ---------------------------------------------------------------------------
# Kernel 3: lane-dense fused 3-way add + ReLU (for out_high)
# ---------------------------------------------------------------------------

def _add3_relu_kernel(a_ref, b_ref, c_ref, o_ref):
    o_ref[...] = jnp.maximum(a_ref[...] + b_ref[...] + c_ref[...],
                             0.0).astype(o_ref.dtype)


def fuse_relu(a, b, c, *, max_rows=1024):
    """relu(a + b + c), elementwise, presented as a lane-dense (rows, 128)."""
    shape, total, lane = a.shape, a.size, 128
    pad = (-total) % (8 * lane)
    flats = [t.reshape(-1) for t in (a, b, c)]
    if pad:
        flats = [jnp.pad(t, (0, pad)) for t in flats]
    rows = (total + pad) // lane
    ops = [t.reshape(rows, lane) for t in flats]
    tr = _pick_tile(rows, max_rows)
    out = pl.pallas_call(
        _add3_relu_kernel,
        out_shape=jax.ShapeDtypeStruct((rows, lane), a.dtype),
        grid=(rows // tr,),
        in_specs=[pl.BlockSpec((tr, lane), lambda i: (i, 0))] * 3,
        out_specs=pl.BlockSpec((tr, lane), lambda i: (i, 0)),
        compiler_params=pltpu.CompilerParams(
            dimension_semantics=("parallel",),
            vmem_limit_bytes=_VMEM_LIMIT),
    )(*ops)
    out = out.reshape(-1)
    if pad:
        out = out[:total]
    return out.reshape(shape)


# ---------------------------------------------------------------------------
# Plain-JAX glue: bilinear (align_corners=True) resize
# ---------------------------------------------------------------------------

def _interp_matrix(in_size, out_size):
    if out_size == 1:
        src = jnp.zeros((1,), jnp.float32)
    else:
        scale = (in_size - 1) / (out_size - 1)
        src = jnp.arange(out_size, dtype=jnp.float32) * scale
    i0 = jnp.clip(jnp.floor(src).astype(jnp.int32), 0, in_size - 1)
    i1 = jnp.minimum(i0 + 1, in_size - 1)
    w1 = src - i0.astype(jnp.float32)
    w0 = 1.0 - w1
    A = jnp.zeros((out_size, in_size), jnp.float32)
    A = A.at[jnp.arange(out_size), i0].add(w0)
    A = A.at[jnp.arange(out_size), i1].add(w1)
    return A


def bilinear_resize_nhwc(x, out_h, out_w):
    _, H, W, _ = x.shape
    Ah = _interp_matrix(H, out_h)
    Aw = _interp_matrix(W, out_w)
    return jnp.einsum('oh,nhwc,pw->nopc', Ah, x, Aw)


# ---------------------------------------------------------------------------
# Parameters (deterministic synthetic init, BN folded to scale/bias)
# ---------------------------------------------------------------------------

def _conv3x3_w(k, cin, cout):
    w = jax.random.normal(k, (cout, cin, 3, 3), jnp.float32) * 0.05
    # (Cout, Cin, kh, kw) -> (kh, kw, Cin, Cout) -> (9, Cin, Cout)
    return jnp.transpose(w, (2, 3, 1, 0)).reshape(9, cin, cout)


def _conv1x1_w(k, cin, cout):
    w = jax.random.normal(k, (cout, cin, 1, 1), jnp.float32) * 0.05
    return w.reshape(cout, cin).T  # (Cin, Cout)


def _bn_folded(k, c, eps=1e-5):
    k1, k2, k3, k4 = jax.random.split(k, 4)
    gamma = 1.0 + 0.1 * jax.random.normal(k1, (c,), jnp.float32)
    beta = 0.1 * jax.random.normal(k2, (c,), jnp.float32)
    mean = 0.1 * jax.random.normal(k3, (c,), jnp.float32)
    var = 0.5 + jax.random.uniform(k4, (c,), jnp.float32)
    scale = gamma / jnp.sqrt(var + eps)
    bias = beta - mean * scale
    return (scale, bias)


def init_params(key):
    ks = jax.random.split(key, 14)
    return {
        'high_to_medium': {'w': _conv3x3_w(ks[0], 48, 96), 'sb': _bn_folded(ks[1], 96)},
        'high_to_low_1':  {'w': _conv3x3_w(ks[2], 48, 48), 'sb': _bn_folded(ks[3], 48)},
        'high_to_low_2':  {'w': _conv3x3_w(ks[4], 48, 192), 'sb': _bn_folded(ks[5], 192)},
        'medium_to_low':  {'w': _conv3x3_w(ks[6], 96, 192), 'sb': _bn_folded(ks[7], 192)},
        'medium_to_high': {'w': _conv1x1_w(ks[8], 96, 48), 'sb': _bn_folded(ks[9], 48)},
        'low_to_high':    {'w': _conv1x1_w(ks[10], 192, 48), 'sb': _bn_folded(ks[11], 48)},
        'low_to_medium':  {'w': _conv1x1_w(ks[12], 192, 96), 'sb': _bn_folded(ks[13], 96)},
    }


# ---------------------------------------------------------------------------
# Forward pass (Stage03Fuse)
# ---------------------------------------------------------------------------

def stage03_fuse_forward(params, x_high, x_medium, x_low):
    N, _, Hh, Wh = x_high.shape
    _, _, Hm, Wm = x_medium.shape
    _, _, Hl, Wl = x_low.shape

    # Faithful to the PyTorch module: size=(shape[-1], shape[-2]) is handed to
    # F.interpolate -- only consistent with the residual adds for square
    # spatial dims (same quirk as the reference module).
    high_size = (Wh, Hh)
    medium_size = (Wm, Hm)

    xh = jnp.transpose(x_high, (0, 2, 3, 1))      # NHWC
    xm = jnp.transpose(x_medium, (0, 2, 3, 1))
    xl = jnp.transpose(x_low, (0, 2, 3, 1))

    # --- 1x1 conv + BN: conv at source resolution, upsample afterwards -------
    # (commutes exactly with align_corners bilinear). Batched low->high/medium.
    w_low = jnp.concatenate([params['low_to_high']['w'],
                             params['low_to_medium']['w']], axis=1)
    s_low = jnp.concatenate([params['low_to_high']['sb'][0],
                             params['low_to_medium']['sb'][0]])
    b_low = jnp.concatenate([params['low_to_high']['sb'][1],
                             params['low_to_medium']['sb'][1]])
    low_1x1 = matmul_bn(xl.reshape(N * Hl * Wl, 192), w_low, (s_low, b_low))
    low_1x1 = low_1x1.reshape(N, Hl, Wl, 144)
    l2h = bilinear_resize_nhwc(low_1x1[..., :48], high_size[0], high_size[1])
    l2m = bilinear_resize_nhwc(low_1x1[..., 48:], medium_size[0], medium_size[1])

    m2h_src = matmul_bn(xm.reshape(N * Hm * Wm, 96),
                        params['medium_to_high']['w'],
                        params['medium_to_high']['sb']).reshape(N, Hm, Wm, 48)
    m2h = bilinear_resize_nhwc(m2h_src, high_size[0], high_size[1])

    # --- 3x3 stride-2 conv + BN branches (Pallas 9-tap kernels) --------------
    m2l = conv3x3_s2_bn(xm, params['medium_to_low']['w'],
                        params['medium_to_low']['sb'])
    h2l_mid = conv3x3_s2_bn(xh, params['high_to_low_1']['w'],
                            params['high_to_low_1']['sb'], apply_relu=True)

    # out_medium = relu(x_medium + high2med + low2med) fused into high->medium.
    out_medium = conv3x3_s2_bn(xh, params['high_to_medium']['w'],
                               params['high_to_medium']['sb'],
                               addends=(xm, l2m), apply_relu=True)
    # out_low = relu(x_low + high2low + med2low) fused into 2nd high->low conv.
    out_low = conv3x3_s2_bn(h2l_mid, params['high_to_low_2']['w'],
                            params['high_to_low_2']['sb'],
                            addends=(xl, m2l), apply_relu=True)
    # out_high = relu(x_high + med2high + low2high), lane-dense elementwise.
    out_high = fuse_relu(xh, m2h, l2h)

    to_nchw = lambda t: jnp.transpose(t, (0, 3, 1, 2))
    return to_nchw(out_high), to_nchw(out_medium), to_nchw(out_low)


# ---------------------------------------------------------------------------
# Pure-JAX reference (mirrors the PyTorch module op-for-op) for validation
# ---------------------------------------------------------------------------

def _reference_forward(params, x_high, x_medium, x_low):
    def c1x1(x, w, sb):
        s, b = sb
        y = jnp.einsum('nchw,cf->nfhw', x, w)
        return y * s[None, :, None, None] + b[None, :, None, None]

    def c3x3s2(x, w, sb):
        s, b = sb
        w4 = jnp.transpose(w.reshape(3, 3, w.shape[1], w.shape[2]), (3, 2, 0, 1))
        y = jax.lax.conv_general_dilated(
            x, w4, (2, 2), ((1, 1), (1, 1)),
            dimension_numbers=('NCHW', 'OIHW', 'NCHW'))
        return y * s[None, :, None, None] + b[None, :, None, None]

    def up(x, size):
        Ah = _interp_matrix(x.shape[2], size[0])
        Aw = _interp_matrix(x.shape[3], size[1])
        return jnp.einsum('oh,nchw,pw->ncop', Ah, x, Aw)

    high_size = (x_high.shape[-1], x_high.shape[-2])
    medium_size = (x_medium.shape[-1], x_medium.shape[-2])
    l2h = c1x1(up(x_low, high_size), params['low_to_high']['w'], params['low_to_high']['sb'])
    l2m = c1x1(up(x_low, medium_size), params['low_to_medium']['w'], params['low_to_medium']['sb'])
    m2h = c1x1(up(x_medium, high_size), params['medium_to_high']['w'], params['medium_to_high']['sb'])
    m2l = c3x3s2(x_medium, params['medium_to_low']['w'], params['medium_to_low']['sb'])
    h2m = c3x3s2(x_high, params['high_to_medium']['w'], params['high_to_medium']['sb'])
    mid = jnp.maximum(c3x3s2(x_high, params['high_to_low_1']['w'], params['high_to_low_1']['sb']), 0.0)
    h2l = c3x3s2(mid, params['high_to_low_2']['w'], params['high_to_low_2']['sb'])
    oh = jnp.maximum(x_high + m2h + l2h, 0.0)
    om = jnp.maximum(x_medium + h2m + l2m, 0.0)
    ol = jnp.maximum(x_low + h2l + m2l, 0.0)
    return oh, om, ol


# ---------------------------------------------------------------------------

if __name__ == "__main__":
    key = jax.random.PRNGKey(0)
    kp, kh, km, kl = jax.random.split(key, 4)

    params = init_params(kp)

    N = 2
    x_high = jax.random.normal(kh, (N, 48, 16, 16), jnp.float32)
    x_medium = jax.random.normal(km, (N, 96, 8, 8), jnp.float32)
    x_low = jax.random.normal(kl, (N, 192, 4, 4), jnp.float32)

    fwd = jax.jit(functools.partial(stage03_fuse_forward, params))
    outs = fwd(x_high, x_medium, x_low)
    jax.block_until_ready(outs)
    out_high, out_medium, out_low = outs

    assert out_high.shape == (N, 48, 16, 16)
    assert out_medium.shape == (N, 96, 8, 8)
    assert out_low.shape == (N, 192, 4, 4)

    # Validate against the pure-JAX reference (bf16 MXU compute -> relaxed tol).
    refs = _reference_forward(params, x_high, x_medium, x_low)
    for got, ref in zip(outs, refs):
        assert jnp.allclose(got, ref, atol=0.1, rtol=0.1), \
            float(jnp.max(jnp.abs(got - ref)))

    print("KERNEL_OK")
</pallas_src>

<mosaic_0001>
module attributes {stable_mosaic.version = 11 : i64} {
  func.func @_conv3x3_s2_kernel(%arg0: i32, %arg1: i32, %arg2: memref<1x1x9x48xbf16, #tpu.memory_space<vmem>>, %arg3: memref<1x1x9x48xbf16, #tpu.memory_space<vmem>>, %arg4: memref<1x1x9x48xbf16, #tpu.memory_space<vmem>>, %arg5: memref<1x1x9x48xbf16, #tpu.memory_space<vmem>>, %arg6: memref<1x1x9x48xbf16, #tpu.memory_space<vmem>>, %arg7: memref<1x1x9x48xbf16, #tpu.memory_space<vmem>>, %arg8: memref<9x48x48xbf16, #tpu.memory_space<vmem>>, %arg9: memref<1x48xf32, #tpu.memory_space<vmem>>, %arg10: memref<1x1x8x48xf32, #tpu.memory_space<vmem>>) attributes {dimension_semantics = [#tpu.dimension_semantics<parallel>, #tpu.dimension_semantics<parallel>], iteration_bounds = array<i64: 2, 8>, scalar_prefetch = 0 : i64, scratch_operands = 0 : i64, tpu.core_type = #tpu.core_type<tc>, window_params = [{transform_indices = @transform_0, window_bounds = array<i64: 1, 1, 9, 48>}, {transform_indices = @transform_1, window_bounds = array<i64: 1, 1, 9, 48>}, {transform_indices = @transform_2, window_bounds = array<i64: 1, 1, 9, 48>}, {transform_indices = @transform_3, window_bounds = array<i64: 1, 1, 9, 48>}, {transform_indices = @transform_4, window_bounds = array<i64: 1, 1, 9, 48>}, {transform_indices = @transform_5, window_bounds = array<i64: 1, 1, 9, 48>}, {pipeline_mode = #tpu.pipeline_mode<synchronous>, transform_indices = @transform_6, window_bounds = array<i64: 9, 48, 48>}, {pipeline_mode = #tpu.pipeline_mode<synchronous>, transform_indices = @transform_7, window_bounds = array<i64: 1, 48>}, {transform_indices = @transform_8, window_bounds = array<i64: 1, 1, 8, 48>}]} {
    %cst = arith.constant 0.000000e+00 : f32
    %0 = vector.broadcast %cst : f32 to vector<8x48xf32>
    %c0 = arith.constant 0 : index
    %c0_0 = arith.constant 0 : index
    %c0_1 = arith.constant 0 : index
    %c0_2 = arith.constant 0 : index
    %1 = vector.load %arg2[%c0, %c0_0, %c0_1, %c0_2] : memref<1x1x9x48xbf16, #tpu.memory_space<vmem>>, vector<1x1x8x48xbf16>
    %2 = vector.shape_cast %1 : vector<1x1x8x48xbf16> to vector<8x48xbf16>
    %c0_3 = arith.constant 0 : index
    %c0_4 = arith.constant 0 : index
    %c0_5 = arith.constant 0 : index
    %3 = vector.load %arg8[%c0_3, %c0_4, %c0_5] : memref<9x48x48xbf16, #tpu.memory_space<vmem>>, vector<1x48x48xbf16>
    %4 = vector.shape_cast %3 : vector<1x48x48xbf16> to vector<48x48xbf16>
    %cst_6 = arith.constant dense<0.000000e+00> : vector<8x48xf32>
    %5 = tpu.matmul %2, %4, %cst_6 {dimension_numbers = #tpu.dot_dimension_numbers<[1], [0], [0], [1], [0, 0, 1, 1], [], []>} : vector<8x48xbf16>, vector<48x48xbf16>, vector<8x48xf32> -> vector<8x48xf32>
    %6 = arith.addf %0, %5 : vector<8x48xf32>
    %c0_7 = arith.constant 0 : index
    %c0_8 = arith.constant 0 : index
    %c0_9 = arith.constant 0 : index
    %c0_10 = arith.constant 0 : index
    %7 = vector.load %arg3[%c0_7, %c0_8, %c0_9, %c0_10] : memref<1x1x9x48xbf16, #tpu.memory_space<vmem>>, vector<1x1x8x48xbf16>
    %8 = vector.shape_cast %7 : vector<1x1x8x48xbf16> to vector<8x48xbf16>
    %c1 = arith.constant 1 : index
    %c0_11 = arith.constant 0 : index
    %c0_12 = arith.constant 0 : index
    %9 = vector.load %arg8[%c1, %c0_11, %c0_12] : memref<9x48x48xbf16, #tpu.memory_space<vmem>>, vector<1x48x48xbf16>
    %10 = vector.shape_cast %9 : vector<1x48x48xbf16> to vector<48x48xbf16>
    %cst_13 = arith.constant dense<0.000000e+00> : vector<8x48xf32>
    %11 = tpu.matmul %8, %10, %cst_13 {dimension_numbers = #tpu.dot_dimension_numbers<[1], [0], [0], [1], [0, 0, 1, 1], [], []>} : vector<8x48xbf16>, vector<48x48xbf16>, vector<8x48xf32> -> vector<8x48xf32>
    %12 = arith.addf %6, %11 : vector<8x48xf32>
    %c0_14 = arith.constant 0 : index
    %c0_15 = arith.constant 0 : index
    %c1_16 = arith.constant 1 : index
    %c0_17 = arith.constant 0 : index
    %13 = vector.load %arg2[%c0_14, %c0_15, %c1_16, %c0_17] : memref<1x1x9x48xbf16, #tpu.memory_space<vmem>>, vector<1x1x8x48xbf16>
    %14 = vector.shape_cast %13 : vector<1x1x8x48xbf16> to vector<8x48xbf16>
    %c2 = arith.constant 2 : index
    %c0_18 = arith.constant 0 : index
    %c0_19 = arith.constant 0 : index
    %15 = vector.load %arg8[%c2, %c0_18, %c0_19] : memref<9x48x48xbf16, #tpu.memory_space<vmem>>, vector<1x48x48xbf16>
    %16 = vector.shape_cast %15 : vector<1x48x48xbf16> to vector<48x48xbf16>
    %cst_20 = arith.constant dense<0.000000e+00> : vector<8x48xf32>
    %17 = tpu.matmul %14, %16, %cst_20 {dimension_numbers = #tpu.dot_dimension_numbers<[1], [0], [0], [1], [0, 0, 1, 1], [], []>} : vector<8x48xbf16>, vector<48x48xbf16>, vector<8x48xf32> -> vector<8x48xf32>
    %18 = arith.addf %12, %17 : vector<8x48xf32>
    %c0_21 = arith.constant 0 : index
    %c0_22 = arith.constant 0 : index
    %c0_23 = arith.constant 0 : index
    %c0_24 = arith.constant 0 : index
    %19 = vector.load %arg4[%c0_21, %c0_22, %c0_23, %c0_24] : memref<1x1x9x48xbf16, #tpu.memory_space<vmem>>, vector<1x1x8x48xbf16>
    %20 = vector.shape_cast %19 : vector<1x1x8x48xbf16> to vector<8x48xbf16>
    %c3 = arith.constant 3 : index
    %c0_25 = arith.constant 0 : index
    %c0_26 = arith.constant 0 : index
    %21 = vector.load %arg8[%c3, %c0_25, %c0_26] : memref<9x48x48xbf16, #tpu.memory_space<vmem>>, vector<1x48x48xbf16>
    %22 = vector.shape_cast %21 : vector<1x48x48xbf16> to vector<48x48xbf16>
    %cst_27 = arith.constant dense<0.000000e+00> : vector<8x48xf32>
    %23 = tpu.matmul %20, %22, %cst_27 {dimension_numbers = #tpu.dot_dimension_numbers<[1], [0], [0], [1], [0, 0, 1, 1], [], []>} : vector<8x48xbf16>, vector<48x48xbf16>, vector<8x48xf32> -> vector<8x48xf32>
    %24 = arith.addf %18, %23 : vector<8x48xf32>
    %c0_28 = arith.constant 0 : index
    %c0_29 = arith.constant 0 : index
    %c0_30 = arith.constant 0 : index
    %c0_31 = arith.constant 0 : index
    %25 = vector.load %arg5[%c0_28, %c0_29, %c0_30, %c0_31] : memref<1x1x9x48xbf16, #tpu.memory_space<vmem>>, vector<1x1x8x48xbf16>
    %26 = vector.shape_cast %25 : vector<1x1x8x48xbf16> to vector<8x48xbf16>
    %c4 = arith.constant 4 : index
    %c0_32 = arith.constant 0 : index
    %c0_33 = arith.constant 0 : index
    %27 = vector.load %arg8[%c4, %c0_32, %c0_33] : memref<9x48x48xbf16, #tpu.memory_space<vmem>>, vector<1x48x48xbf16>
    %28 = vector.shape_cast %27 : vector<1x48x48xbf16> to vector<48x48xbf16>
    %cst_34 = arith.constant dense<0.000000e+00> : vector<8x48xf32>
    %29 = tpu.matmul %26, %28, %cst_34 {dimension_numbers = #tpu.dot_dimension_numbers<[1], [0], [0], [1], [0, 0, 1, 1], [], []>} : vector<8x48xbf16>, vector<48x48xbf16>, vector<8x48xf32> -> vector<8x48xf32>
    %30 = arith.addf %24, %29 : vector<8x48xf32>
    %c0_35 = arith.constant 0 : index
    %c0_36 = arith.constant 0 : index
    %c1_37 = arith.constant 1 : index
    %c0_38 = arith.constant 0 : index
    %31 = vector.load %arg4[%c0_35, %c0_36, %c1_37, %c0_38] : memref<1x1x9x48xbf16, #tpu.memory_space<vmem>>, vector<1x1x8x48xbf16>
    %32 = vector.shape_cast %31 : vector<1x1x8x48xbf16> to vector<8x48xbf16>
    %c5 = arith.constant 5 : index
    %c0_39 = arith.constant 0 : index
    %c0_40 = arith.constant 0 : index
    %33 = vector.load %arg8[%c5, %c0_39, %c0_40] : memref<9x48x48xbf16, #tpu.memory_space<vmem>>, vector<1x48x48xbf16>
    %34 = vector.shape_cast %33 : vector<1x48x48xbf16> to vector<48x48xbf16>
    %cst_41 = arith.constant dense<0.000000e+00> : vector<8x48xf32>
    %35 = tpu.matmul %32, %34, %cst_41 {dimension_numbers = #tpu.dot_dimension_numbers<[1], [0], [0], [1], [0, 0, 1, 1], [], []>} : vector<8x48xbf16>, vector<48x48xbf16>, vector<8x48xf32> -> vector<8x48xf32>
    %36 = arith.addf %30, %35 : vector<8x48xf32>
    %c0_42 = arith.constant 0 : index
    %c0_43 = arith.constant 0 : index
    %c0_44 = arith.constant 0 : index
    %c0_45 = arith.constant 0 : index
    %37 = vector.load %arg6[%c0_42, %c0_43, %c0_44, %c0_45] : memref<1x1x9x48xbf16, #tpu.memory_space<vmem>>, vector<1x1x8x48xbf16>
    %38 = vector.shape_cast %37 : vector<1x1x8x48xbf16> to vector<8x48xbf16>
    %c6 = arith.constant 6 : index
    %c0_46 = arith.constant 0 : index
    %c0_47 = arith.constant 0 : index
    %39 = vector.load %arg8[%c6, %c0_46, %c0_47] : memref<9x48x48xbf16, #tpu.memory_space<vmem>>, vector<1x48x48xbf16>
    %40 = vector.shape_cast %39 : vector<1x48x48xbf16> to vector<48x48xbf16>
    %cst_48 = arith.constant dense<0.000000e+00> : vector<8x48xf32>
    %41 = tpu.matmul %38, %40, %cst_48 {dimension_numbers = #tpu.dot_dimension_numbers<[1], [0], [0], [1], [0, 0, 1, 1], [], []>} : vector<8x48xbf16>, vector<48x48xbf16>, vector<8x48xf32> -> vector<8x48xf32>
    %42 = arith.addf %36, %41 : vector<8x48xf32>
    %c0_49 = arith.constant 0 : index
    %c0_50 = arith.constant 0 : index
    %c0_51 = arith.constant 0 : index
    %c0_52 = arith.constant 0 : index
    %43 = vector.load %arg7[%c0_49, %c0_50, %c0_51, %c0_52] : memref<1x1x9x48xbf16, #tpu.memory_space<vmem>>, vector<1x1x8x48xbf16>
    %44 = vector.shape_cast %43 : vector<1x1x8x48xbf16> to vector<8x48xbf16>
    %c7 = arith.constant 7 : index
    %c0_53 = arith.constant 0 : index
    %c0_54 = arith.constant 0 : index
    %45 = vector.load %arg8[%c7, %c0_53, %c0_54] : memref<9x48x48xbf16, #tpu.memory_space<vmem>>, vector<1x48x48xbf16>
    %46 = vector.shape_cast %45 : vector<1x48x48xbf16> to vector<48x48xbf16>
    %cst_55 = arith.constant dense<0.000000e+00> : vector<8x48xf32>
    %47 = tpu.matmul %44, %46, %cst_55 {dimension_numbers = #tpu.dot_dimension_numbers<[1], [0], [0], [1], [0, 0, 1, 1], [], []>} : vector<8x48xbf16>, vector<48x48xbf16>, vector<8x48xf32> -> vector<8x48xf32>
    %48 = arith.addf %42, %47 : vector<8x48xf32>
    %c0_56 = arith.constant 0 : index
    %c0_57 = arith.constant 0 : index
    %c1_58 = arith.constant 1 : index
    %c0_59 = arith.constant 0 : index
    %49 = vector.load %arg6[%c0_56, %c0_57, %c1_58, %c0_59] : memref<1x1x9x48xbf16, #tpu.memory_space<vmem>>, vector<1x1x8x48xbf16>
    %50 = vector.shape_cast %49 : vector<1x1x8x48xbf16> to vector<8x48xbf16>
    %c8 = arith.constant 8 : index
    %c0_60 = arith.constant 0 : index
    %c0_61 = arith.constant 0 : index
    %51 = vector.load %arg8[%c8, %c0_60, %c0_61] : memref<9x48x48xbf16, #tpu.memory_space<vmem>>, vector<1x48x48xbf16>
    %52 = vector.shape_cast %51 : vector<1x48x48xbf16> to vector<48x48xbf16>
    %cst_62 = arith.constant dense<0.000000e+00> : vector<8x48xf32>
    %53 = tpu.matmul %50, %52, %cst_62 {dimension_numbers = #tpu.dot_dimension_numbers<[1], [0], [0], [1], [0, 0, 1, 1], [], []>} : vector<8x48xbf16>, vector<48x48xbf16>, vector<8x48xf32> -> vector<8x48xf32>
    %54 = arith.addf %48, %53 : vector<8x48xf32>
    %c0_63 = arith.constant 0 : index
    %c0_64 = arith.constant 0 : index
    %55 = vector.load %arg9[%c0_63, %c0_64] : memref<1x48xf32, #tpu.memory_space<vmem>>, vector<1x48xf32>
    %56 = vector.broadcast %55 : vector<1x48xf32> to vector<8x48xf32>
    %57 = arith.addf %54, %56 : vector<8x48xf32>
    %cst_65 = arith.constant 0.000000e+00 : f32
    %58 = vector.broadcast %cst_65 : f32 to vector<8x48xf32>
    %59 = arith.maximumf %57, %58 : vector<8x48xf32>
    %c0_66 = arith.constant 0 : index
    %c0_67 = arith.constant 0 : index
    %c0_68 = arith.constant 0 : index
    %c0_69 = arith.constant 0 : index
    %60 = vector.load %arg10[%c0_66, %c0_67, %c0_68, %c0_69] : memref<1x1x8x48xf32, #tpu.memory_space<vmem>>, vector<1x1x8x48xf32>
    %61 = vector.shape_cast %60 : vector<1x1x8x48xf32> to vector<8x48xf32>
    %62 = vector.shape_cast %59 : vector<8x48xf32> to vector<1x1x8x48xf32>
    tpu.vector_store %arg10[%c0_66, %c0_67, %c0_68, %c0_69], %62 {strides = array<i32>} : memref<1x1x8x48xf32, #tpu.memory_space<vmem>>, vector<1x1x8x48xf32>,
    return
  }
  func.func @transform_0(%arg0: i32, %arg1: i32) -> (i32, i32, i32, i32) {
    %c0_i32 = arith.constant 0 : i32
    %c0_i32_0 = arith.constant 0 : i32
    %c0_i32_1 = arith.constant 0 : i32
    return %arg0, %arg1, %c0_i32, %c0_i32_0 : i32, i32, i32, i32
  }
  func.func @transform_1(%arg0: i32, %arg1: i32) -> (i32, i32, i32, i32) {
    %c0_i32 = arith.constant 0 : i32
    %c0_i32_0 = arith.constant 0 : i32
    %c0_i32_1 = arith.constant 0 : i32
    return %arg0, %arg1, %c0_i32, %c0_i32_0 : i32, i32, i32, i32
  }
  func.func @transform_2(%arg0: i32, %arg1: i32) -> (i32, i32, i32, i32) {
    %c0_i32 = arith.constant 0 : i32
    %c0_i32_0 = arith.constant 0 : i32
    %c0_i32_1 = arith.constant 0 : i32
    return %arg0, %arg1, %c0_i32, %c0_i32_0 : i32, i32, i32, i32
  }
  func.func @transform_3(%arg0: i32, %arg1: i32) -> (i32, i32, i32, i32) {
    %c0_i32 = arith.constant 0 : i32
    %c0_i32_0 = arith.constant 0 : i32
    %c0_i32_1 = arith.constant 0 : i32
    return %arg0, %arg1, %c0_i32, %c0_i32_0 : i32, i32, i32, i32
  }
  func.func @transform_4(%arg0: i32, %arg1: i32) -> (i32, i32, i32, i32) {
    %c1_i32 = arith.constant 1 : i32
    %0 = arith.addi %arg1, %c1_i32 : i32
    %c0_i32 = arith.constant 0 : i32
    %c0_i32_0 = arith.constant 0 : i32
    %c0_i32_1 = arith.constant 0 : i32
    return %arg0, %0, %c0_i32, %c0_i32_0 : i32, i32, i32, i32
  }
  func.func @transform_5(%arg0: i32, %arg1: i32) -> (i32, i32, i32, i32) {
    %c1_i32 = arith.constant 1 : i32
    %0 = arith.addi %arg1, %c1_i32 : i32
    %c0_i32 = arith.constant 0 : i32
    %c0_i32_0 = arith.constant 0 : i32
    %c0_i32_1 = arith.constant 0 : i32
    return %arg0, %0, %c0_i32, %c0_i32_0 : i32, i32, i32, i32
  }
  func.func @transform_6(%arg0: i32, %arg1: i32) -> (i32, i32, i32) {
    %c0_i32 = arith.constant 0 : i32
    %c0_i32_0 = arith.constant 0 : i32
    %c0_i32_1 = arith.constant 0 : i32
    %c0_i32_2 = arith.constant 0 : i32
    return %c0_i32, %c0_i32_0, %c0_i32_1 : i32, i32, i32
  }
  func.func @transform_7(%arg0: i32, %arg1: i32) -> (i32, i32) {
    %c0_i32 = arith.constant 0 : i32
    %c0_i32_0 = arith.constant 0 : i32
    %c0_i32_1 = arith.constant 0 : i32
    return %c0_i32, %c0_i32_0 : i32, i32
  }
  func.func @transform_8(%arg0: i32, %arg1: i32) -> (i32, i32, i32, i32) {
    %c0_i32 = arith.constant 0 : i32
    %c0_i32_0 = arith.constant 0 : i32
    %c0_i32_1 = arith.constant 0 : i32
    return %arg0, %arg1, %c0_i32, %c0_i32_0 : i32, i32, i32, i32
  }
}

module attributes {stable_mosaic.version = 11 : i64} {
  func.func @_conv3x3_s2_kernel(%arg0: i32, %arg1: i32, %arg2: memref<1x1x5x96xbf16, #tpu.memory_space<vmem>>, %arg3: memref<1x1x5x96xbf16, #tpu.memory_space<vmem>>, %arg4: memref<1x1x5x96xbf16, #tpu.memory_space<vmem>>, %arg5: memref<1x1x5x96xbf16, #tpu.memory_space<vmem>>, %arg6: memref<1x1x5x96xbf16, #tpu.memory_space<vmem>>, %arg7: memref<1x1x5x96xbf16, #tpu.memory_space<vmem>>, %arg8: memref<9x96x192xbf16, #tpu.memory_space<vmem>>, %arg9: memref<1x192xf32, #tpu.memory_space<vmem>>, %arg10: memref<1x1x4x192xf32, #tpu.memory_space<vmem>>) attributes {dimension_semantics = [#tpu.dimension_semantics<parallel>, #tpu.dimension_semantics<parallel>], iteration_bounds = array<i64: 2, 4>, scalar_prefetch = 0 : i64, scratch_operands = 0 : i64, tpu.core_type = #tpu.core_type<tc>, window_params = [{transform_indices = @transform_0, window_bounds = array<i64: 1, 1, 5, 96>}, {transform_indices = @transform_1, window_bounds = array<i64: 1, 1, 5, 96>}, {transform_indices = @transform_2, window_bounds = array<i64: 1, 1, 5, 96>}, {transform_indices = @transform_3, window_bounds = array<i64: 1, 1, 5, 96>}, {transform_indices = @transform_4, window_bounds = array<i64: 1, 1, 5, 96>}, {transform_indices = @transform_5, window_bounds = array<i64: 1, 1, 5, 96>}, {pipeline_mode = #tpu.pipeline_mode<synchronous>, transform_indices = @transform_6, window_bounds = array<i64: 9, 96, 192>}, {pipeline_mode = #tpu.pipeline_mode<synchronous>, transform_indices = @transform_7, window_bounds = array<i64: 1, 192>}, {transform_indices = @transform_8, window_bounds = array<i64: 1, 1, 4, 192>}]} {
    %cst = arith.constant 0.000000e+00 : f32
    %0 = vector.broadcast %cst : f32 to vector<4x192xf32>
    %c0 = arith.constant 0 : index
    %c0_0 = arith.constant 0 : index
    %c0_1 = arith.constant 0 : index
    %c0_2 = arith.constant 0 : index
    %1 = vector.load %arg2[%c0, %c0_0, %c0_1, %c0_2] : memref<1x1x5x96xbf16, #tpu.memory_space<vmem>>, vector<1x1x4x96xbf16>
    %2 = vector.shape_cast %1 : vector<1x1x4x96xbf16> to vector<4x96xbf16>
    %c0_3 = arith.constant 0 : index
    %c0_4 = arith.constant 0 : index
    %c0_5 = arith.constant 0 : index
    %3 = vector.load %arg8[%c0_3, %c0_4, %c0_5] : memref<9x96x192xbf16, #tpu.memory_space<vmem>>, vector<1x96x192xbf16>
    %4 = vector.shape_cast %3 : vector<1x96x192xbf16> to vector<96x192xbf16>
    %cst_6 = arith.constant dense<0.000000e+00> : vector<4x192xf32>
    %5 = tpu.matmul %2, %4, %cst_6 {dimension_numbers = #tpu.dot_dimension_numbers<[1], [0], [0], [1], [0, 0, 1, 1], [], []>} : vector<4x96xbf16>, vector<96x192xbf16>, vector<4x192xf32> -> vector<4x192xf32>
    %6 = arith.addf %0, %5 : vector<4x192xf32>
    %c0_7 = arith.constant 0 : index
    %c0_8 = arith.constant 0 : index
    %c0_9 = arith.constant 0 : index
    %c0_10 = arith.constant 0 : index
    %7 = vector.load %arg3[%c0_7, %c0_8, %c0_9, %c0_10] : memref<1x1x5x96xbf16, #tpu.memory_space<vmem>>, vector<1x1x4x96xbf16>
    %8 = vector.shape_cast %7 : vector<1x1x4x96xbf16> to vector<4x96xbf16>
    %c1 = arith.constant 1 : index
    %c0_11 = arith.constant 0 : index
    %c0_12 = arith.constant 0 : index
    %9 = vector.load %arg8[%c1, %c0_11, %c0_12] : memref<9x96x192xbf16, #tpu.memory_space<vmem>>, vector<1x96x192xbf16>
    %10 = vector.shape_cast %9 : vector<1x96x192xbf16> to vector<96x192xbf16>
    %cst_13 = arith.constant dense<0.000000e+00> : vector<4x192xf32>
    %11 = tpu.matmul %8, %10, %cst_13 {dimension_numbers = #tpu.dot_dimension_numbers<[1], [0], [0], [1], [0, 0, 1, 1], [], []>} : vector<4x96xbf16>, vector<96x192xbf16>, vector<4x192xf32> -> vector<4x192xf32>
    %12 = arith.addf %6, %11 : vector<4x192xf32>
    %c0_14 = arith.constant 0 : index
    %c0_15 = arith.constant 0 : index
    %c1_16 = arith.constant 1 : index
    %c0_17 = arith.constant 0 : index
    %13 = vector.load %arg2[%c0_14, %c0_15, %c1_16, %c0_17] : memref<1x1x5x96xbf16, #tpu.memory_space<vmem>>, vector<1x1x4x96xbf16>
    %14 = vector.shape_cast %13 : vector<1x1x4x96xbf16> to vector<4x96xbf16>
    %c2 = arith.constant 2 : index
    %c0_18 = arith.constant 0 : index
    %c0_19 = arith.constant 0 : index
    %15 = vector.load %arg8[%c2, %c0_18, %c0_19] : memref<9x96x192xbf16, #tpu.memory_space<vmem>>, vector<1x96x192xbf16>
    %16 = vector.shape_cast %15 : vector<1x96x192xbf16> to vector<96x192xbf16>
    %cst_20 = arith.constant dense<0.000000e+00> : vector<4x192xf32>
    %17 = tpu.matmul %14, %16, %cst_20 {dimension_numbers = #tpu.dot_dimension_numbers<[1], [0], [0], [1], [0, 0, 1, 1], [], []>} : vector<4x96xbf16>, vector<96x192xbf16>, vector<4x192xf32> -> vector<4x192xf32>
    %18 = arith.addf %12, %17 : vector<4x192xf32>
    %c0_21 = arith.constant 0 : index
    %c0_22 = arith.constant 0 : index
    %c0_23 = arith.constant 0 : index
    %c0_24 = arith.constant 0 : index
    %19 = vector.load %arg4[%c0_21, %c0_22, %c0_23, %c0_24] : memref<1x1x5x96xbf16, #tpu.memory_space<vmem>>, vector<1x1x4x96xbf16>
    %20 = vector.shape_cast %19 : vector<1x1x4x96xbf16> to vector<4x96xbf16>
    %c3 = arith.constant 3 : index
    %c0_25 = arith.constant 0 : index
    %c0_26 = arith.constant 0 : index
    %21 = vector.load %arg8[%c3, %c0_25, %c0_26] : memref<9x96x192xbf16, #tpu.memory_space<vmem>>, vector<1x96x192xbf16>
    %22 = vector.shape_cast %21 : vector<1x96x192xbf16> to vector<96x192xbf16>
    %cst_27 = arith.constant dense<0.000000e+00> : vector<4x192xf32>
    %23 = tpu.matmul %20, %22, %cst_27 {dimension_numbers = #tpu.dot_dimension_numbers<[1], [0], [0], [1], [0, 0, 1, 1], [], []>} : vector<4x96xbf16>, vector<96x192xbf16>, vector<4x192xf32> -> vector<4x192xf32>
    %24 = arith.addf %18, %23 : vector<4x192xf32>
    %c0_28 = arith.constant 0 : index
    %c0_29 = arith.constant 0 : index
    %c0_30 = arith.constant 0 : index
    %c0_31 = arith.constant 0 : index
    %25 = vector.load %arg5[%c0_28, %c0_29, %c0_30, %c0_31] : memref<1x1x5x96xbf16, #tpu.memory_space<vmem>>, vector<1x1x4x96xbf16>
    %26 = vector.shape_cast %25 : vector<1x1x4x96xbf16> to vector<4x96xbf16>
    %c4 = arith.constant 4 : index
    %c0_32 = arith.constant 0 : index
    %c0_33 = arith.constant 0 : index
    %27 = vector.load %arg8[%c4, %c0_32, %c0_33] : memref<9x96x192xbf16, #tpu.memory_space<vmem>>, vector<1x96x192xbf16>
    %28 = vector.shape_cast %27 : vector<1x96x192xbf16> to vector<96x192xbf16>
    %cst_34 = arith.constant dense<0.000000e+00> : vector<4x192xf32>
    %29 = tpu.matmul %26, %28, %cst_34 {dimension_numbers = #tpu.dot_dimension_numbers<[1], [0], [0], [1], [0, 0, 1, 1], [], []>} : vector<4x96xbf16>, vector<96x192xbf16>, vector<4x192xf32> -> vector<4x192xf32>
    %30 = arith.addf %24, %29 : vector<4x192xf32>
    %c0_35 = arith.constant 0 : index
    %c0_36 = arith.constant 0 : index
    %c1_37 = arith.constant 1 : index
    %c0_38 = arith.constant 0 : index
    %31 = vector.load %arg4[%c0_35, %c0_36, %c1_37, %c0_38] : memref<1x1x5x96xbf16, #tpu.memory_space<vmem>>, vector<1x1x4x96xbf16>
    %32 = vector.shape_cast %31 : vector<1x1x4x96xbf16> to vector<4x96xbf16>
    %c5 = arith.constant 5 : index
    %c0_39 = arith.constant 0 : index
    %c0_40 = arith.constant 0 : index
    %33 = vector.load %arg8[%c5, %c0_39, %c0_40] : memref<9x96x192xbf16, #tpu.memory_space<vmem>>, vector<1x96x192xbf16>
    %34 = vector.shape_cast %33 : vector<1x96x192xbf16> to vector<96x192xbf16>
    %cst_41 = arith.constant dense<0.000000e+00> : vector<4x192xf32>
    %35 = tpu.matmul %32, %34, %cst_41 {dimension_numbers = #tpu.dot_dimension_numbers<[1], [0], [0], [1], [0, 0, 1, 1], [], []>} : vector<4x96xbf16>, vector<96x192xbf16>, vector<4x192xf32> -> vector<4x192xf32>
    %36 = arith.addf %30, %35 : vector<4x192xf32>
    %c0_42 = arith.constant 0 : index
    %c0_43 = arith.constant 0 : index
    %c0_44 = arith.constant 0 : index
    %c0_45 = arith.constant 0 : index
    %37 = vector.load %arg6[%c0_42, %c0_43, %c0_44, %c0_45] : memref<1x1x5x96xbf16, #tpu.memory_space<vmem>>, vector<1x1x4x96xbf16>
    %38 = vector.shape_cast %37 : vector<1x1x4x96xbf16> to vector<4x96xbf16>
    %c6 = arith.constant 6 : index
    %c0_46 = arith.constant 0 : index
    %c0_47 = arith.constant 0 : index
    %39 = vector.load %arg8[%c6, %c0_46, %c0_47] : memref<9x96x192xbf16, #tpu.memory_space<vmem>>, vector<1x96x192xbf16>
    %40 = vector.shape_cast %39 : vector<1x96x192xbf16> to vector<96x192xbf16>
    %cst_48 = arith.constant dense<0.000000e+00> : vector<4x192xf32>
    %41 = tpu.matmul %38, %40, %cst_48 {dimension_numbers = #tpu.dot_dimension_numbers<[1], [0], [0], [1], [0, 0, 1, 1], [], []>} : vector<4x96xbf16>, vector<96x192xbf16>, vector<4x192xf32> -> vector<4x192xf32>
    %42 = arith.addf %36, %41 : vector<4x192xf32>
    %c0_49 = arith.constant 0 : index
    %c0_50 = arith.constant 0 : index
    %c0_51 = arith.constant 0 : index
    %c0_52 = arith.constant 0 : index
    %43 = vector.load %arg7[%c0_49, %c0_50, %c0_51, %c0_52] : memref<1x1x5x96xbf16, #tpu.memory_space<vmem>>, vector<1x1x4x96xbf16>
    %44 = vector.shape_cast %43 : vector<1x1x4x96xbf16> to vector<4x96xbf16>
    %c7 = arith.constant 7 : index
    %c0_53 = arith.constant 0 : index
    %c0_54 = arith.constant 0 : index
    %45 = vector.load %arg8[%c7, %c0_53, %c0_54] : memref<9x96x192xbf16, #tpu.memory_space<vmem>>, vector<1x96x192xbf16>
    %46 = vector.shape_cast %45 : vector<1x96x192xbf16> to vector<96x192xbf16>
    %cst_55 = arith.constant dense<0.000000e+00> : vector<4x192xf32>
    %47 = tpu.matmul %44, %46, %cst_55 {dimension_numbers = #tpu.dot_dimension_numbers<[1], [0], [0], [1], [0, 0, 1, 1], [], []>} : vector<4x96xbf16>, vector<96x192xbf16>, vector<4x192xf32> -> vector<4x192xf32>
    %48 = arith.addf %42, %47 : vector<4x192xf32>
    %c0_56 = arith.constant 0 : index
    %c0_57 = arith.constant 0 : index
    %c1_58 = arith.constant 1 : index
    %c0_59 = arith.constant 0 : index
    %49 = vector.load %arg6[%c0_56, %c0_57, %c1_58, %c0_59] : memref<1x1x5x96xbf16, #tpu.memory_space<vmem>>, vector<1x1x4x96xbf16>
    %50 = vector.shape_cast %49 : vector<1x1x4x96xbf16> to vector<4x96xbf16>
    %c8 = arith.constant 8 : index
    %c0_60 = arith.constant 0 : index
    %c0_61 = arith.constant 0 : index
    %51 = vector.load %arg8[%c8, %c0_60, %c0_61] : memref<9x96x192xbf16, #tpu.memory_space<vmem>>, vector<1x96x192xbf16>
    %52 = vector.shape_cast %51 : vector<1x96x192xbf16> to vector<96x192xbf16>
    %cst_62 = arith.constant dense<0.000000e+00> : vector<4x192xf32>
    %53 = tpu.matmul %50, %52, %cst_62 {dimension_numbers = #tpu.dot_dimension_numbers<[1], [0], [0], [1], [0, 0, 1, 1], [], []>} : vector<4x96xbf16>, vector<96x192xbf16>, vector<4x192xf32> -> vector<4x192xf32>
    %54 = arith.addf %48, %53 : vector<4x192xf32>
    %c0_63 = arith.constant 0 : index
    %c0_64 = arith.constant 0 : index
    %55 = vector.load %arg9[%c0_63, %c0_64] : memref<1x192xf32, #tpu.memory_space<vmem>>, vector<1x192xf32>
    %56 = vector.broadcast %55 : vector<1x192xf32> to vector<4x192xf32>
    %57 = arith.addf %54, %56 : vector<4x192xf32>
    %c0_65 = arith.constant 0 : index
    %c0_66 = arith.constant 0 : index
    %c0_67 = arith.constant 0 : index
    %c0_68 = arith.constant 0 : index
    %58 = vector.load %arg10[%c0_65, %c0_66, %c0_67, %c0_68] : memref<1x1x4x192xf32, #tpu.memory_space<vmem>>, vector<1x1x4x192xf32>
    %59 = vector.shape_cast %58 : vector<1x1x4x192xf32> to vector<4x192xf32>
    %60 = vector.shape_cast %57 : vector<4x192xf32> to vector<1x1x4x192xf32>
    tpu.vector_store %arg10[%c0_65, %c0_66, %c0_67, %c0_68], %60 {strides = array<i32>} : memref<1x1x4x192xf32, #tpu.memory_space<vmem>>, vector<1x1x4x192xf32>,
    return
  }
  func.func @transform_0(%arg0: i32, %arg1: i32) -> (i32, i32, i32, i32) {
    %c0_i32 = arith.constant 0 : i32
    %c0_i32_0 = arith.constant 0 : i32
    %c0_i32_1 = arith.constant 0 : i32
    return %arg0, %arg1, %c0_i32, %c0_i32_0 : i32, i32, i32, i32
  }
  func.func @transform_1(%arg0: i32, %arg1: i32) -> (i32, i32, i32, i32) {
    %c0_i32 = arith.constant 0 : i32
    %c0_i32_0 = arith.constant 0 : i32
    %c0_i32_1 = arith.constant 0 : i32
    return %arg0, %arg1, %c0_i32, %c0_i32_0 : i32, i32, i32, i32
  }
  func.func @transform_2(%arg0: i32, %arg1: i32) -> (i32, i32, i32, i32) {
    %c0_i32 = arith.constant 0 : i32
    %c0_i32_0 = arith.constant 0 : i32
    %c0_i32_1 = arith.constant 0 : i32
    return %arg0, %arg1, %c0_i32, %c0_i32_0 : i32, i32, i32, i32
  }
  func.func @transform_3(%arg0: i32, %arg1: i32) -> (i32, i32, i32, i32) {
    %c0_i32 = arith.constant 0 : i32
    %c0_i32_0 = arith.constant 0 : i32
    %c0_i32_1 = arith.constant 0 : i32
    return %arg0, %arg1, %c0_i32, %c0_i32_0 : i32, i32, i32, i32
  }
  func.func @transform_4(%arg0: i32, %arg1: i32) -> (i32, i32, i32, i32) {
    %c1_i32 = arith.constant 1 : i32
    %0 = arith.addi %arg1, %c1_i32 : i32
    %c0_i32 = arith.constant 0 : i32
    %c0_i32_0 = arith.constant 0 : i32
    %c0_i32_1 = arith.constant 0 : i32
    return %arg0, %0, %c0_i32, %c0_i32_0 : i32, i32, i32, i32
  }
  func.func @transform_5(%arg0: i32, %arg1: i32) -> (i32, i32, i32, i32) {
    %c1_i32 = arith.constant 1 : i32
    %0 = arith.addi %arg1, %c1_i32 : i32
    %c0_i32 = arith.constant 0 : i32
    %c0_i32_0 = arith.constant 0 : i32
    %c0_i32_1 = arith.constant 0 : i32
    return %arg0, %0, %c0_i32, %c0_i32_0 : i32, i32, i32, i32
  }
  func.func @transform_6(%arg0: i32, %arg1: i32) -> (i32, i32, i32) {
    %c0_i32 = arith.constant 0 : i32
    %c0_i32_0 = arith.constant 0 : i32
    %c0_i32_1 = arith.constant 0 : i32
    %c0_i32_2 = arith.constant 0 : i32
    return %c0_i32, %c0_i32_0, %c0_i32_1 : i32, i32, i32
  }
  func.func @transform_7(%arg0: i32, %arg1: i32) -> (i32, i32) {
    %c0_i32 = arith.constant 0 : i32
    %c0_i32_0 = arith.constant 0 : i32
    %c0_i32_1 = arith.constant 0 : i32
    return %c0_i32, %c0_i32_0 : i32, i32
  }
  func.func @transform_8(%arg0: i32, %arg1: i32) -> (i32, i32, i32, i32) {
    %c0_i32 = arith.constant 0 : i32
    %c0_i32_0 = arith.constant 0 : i32
    %c0_i32_1 = arith.constant 0 : i32
    return %arg0, %arg1, %c0_i32, %c0_i32_0 : i32, i32, i32, i32
  }
}

module attributes {stable_mosaic.version = 11 : i64} {
  func.func @_conv3x3_s2_kernel(%arg0: i32, %arg1: i32, %arg2: memref<1x1x5x48xbf16, #tpu.memory_space<vmem>>, %arg3: memref<1x1x5x48xbf16, #tpu.memory_space<vmem>>, %arg4: memref<1x1x5x48xbf16, #tpu.memory_space<vmem>>, %arg5: memref<1x1x5x48xbf16, #tpu.memory_space<vmem>>, %arg6: memref<1x1x5x48xbf16, #tpu.memory_space<vmem>>, %arg7: memref<1x1x5x48xbf16, #tpu.memory_space<vmem>>, %arg8: memref<9x48x192xbf16, #tpu.memory_space<vmem>>, %arg9: memref<1x192xf32, #tpu.memory_space<vmem>>, %arg10: memref<1x1x4x192xf32, #tpu.memory_space<vmem>>, %arg11: memref<1x1x4x192xf32, #tpu.memory_space<vmem>>, %arg12: memref<1x1x4x192xf32, #tpu.memory_space<vmem>>) attributes {dimension_semantics = [#tpu.dimension_semantics<parallel>, #tpu.dimension_semantics<parallel>], iteration_bounds = array<i64: 2, 4>, scalar_prefetch = 0 : i64, scratch_operands = 0 : i64, tpu.core_type = #tpu.core_type<tc>, window_params = [{transform_indices = @transform_0, window_bounds = array<i64: 1, 1, 5, 48>}, {transform_indices = @transform_1, window_bounds = array<i64: 1, 1, 5, 48>}, {transform_indices = @transform_2, window_bounds = array<i64: 1, 1, 5, 48>}, {transform_indices = @transform_3, window_bounds = array<i64: 1, 1, 5, 48>}, {transform_indices = @transform_4, window_bounds = array<i64: 1, 1, 5, 48>}, {transform_indices = @transform_5, window_bounds = array<i64: 1, 1, 5, 48>}, {pipeline_mode = #tpu.pipeline_mode<synchronous>, transform_indices = @transform_6, window_bounds = array<i64: 9, 48, 192>}, {pipeline_mode = #tpu.pipeline_mode<synchronous>, transform_indices = @transform_7, window_bounds = array<i64: 1, 192>}, {transform_indices = @transform_8, window_bounds = array<i64: 1, 1, 4, 192>}, {transform_indices = @transform_9, window_bounds = array<i64: 1, 1, 4, 192>}, {transform_indices = @transform_10, window_bounds = array<i64: 1, 1, 4, 192>}]} {
    %cst = arith.constant 0.000000e+00 : f32
    %0 = vector.broadcast %cst : f32 to vector<4x192xf32>
    %c0 = arith.constant 0 : index
    %c0_0 = arith.constant 0 : index
    %c0_1 = arith.constant 0 : index
    %c0_2 = arith.constant 0 : index
    %1 = vector.load %arg2[%c0, %c0_0, %c0_1, %c0_2] : memref<1x1x5x48xbf16, #tpu.memory_space<vmem>>, vector<1x1x4x48xbf16>
    %2 = vector.shape_cast %1 : vector<1x1x4x48xbf16> to vector<4x48xbf16>
    %c0_3 = arith.constant 0 : index
    %c0_4 = arith.constant 0 : index
    %c0_5 = arith.constant 0 : index
    %3 = vector.load %arg8[%c0_3, %c0_4, %c0_5] : memref<9x48x192xbf16, #tpu.memory_space<vmem>>, vector<1x48x192xbf16>
    %4 = vector.shape_cast %3 : vector<1x48x192xbf16> to vector<48x192xbf16>
    %cst_6 = arith.constant dense<0.000000e+00> : vector<4x192xf32>
    %5 = tpu.matmul %2, %4, %cst_6 {dimension_numbers = #tpu.dot_dimension_numbers<[1], [0], [0], [1], [0, 0, 1, 1], [], []>} : vector<4x48xbf16>, vector<48x192xbf16>, vector<4x192xf32> -> vector<4x192xf32>
    %6 = arith.addf %0, %5 : vector<4x192xf32>
    %c0_7 = arith.constant 0 : index
    %c0_8 = arith.constant 0 : index
    %c0_9 = arith.constant 0 : index
    %c0_10 = arith.constant 0 : index
    %7 = vector.load %arg3[%c0_7, %c0_8, %c0_9, %c0_10] : memref<1x1x5x48xbf16, #tpu.memory_space<vmem>>, vector<1x1x4x48xbf16>
    %8 = vector.shape_cast %7 : vector<1x1x4x48xbf16> to vector<4x48xbf16>
    %c1 = arith.constant 1 : index
    %c0_11 = arith.constant 0 : index
    %c0_12 = arith.constant 0 : index
    %9 = vector.load %arg8[%c1, %c0_11, %c0_12] : memref<9x48x192xbf16, #tpu.memory_space<vmem>>, vector<1x48x192xbf16>
    %10 = vector.shape_cast %9 : vector<1x48x192xbf16> to vector<48x192xbf16>
    %cst_13 = arith.constant dense<0.000000e+00> : vector<4x192xf32>
    %11 = tpu.matmul %8, %10, %cst_13 {dimension_numbers = #tpu.dot_dimension_numbers<[1], [0], [0], [1], [0, 0, 1, 1], [], []>} : vector<4x48xbf16>, vector<48x192xbf16>, vector<4x192xf32> -> vector<4x192xf32>
    %12 = arith.addf %6, %11 : vector<4x192xf32>
    %c0_14 = arith.constant 0 : index
    %c0_15 = arith.constant 0 : index
    %c1_16 = arith.constant 1 : index
    %c0_17 = arith.constant 0 : index
    %13 = vector.load %arg2[%c0_14, %c0_15, %c1_16, %c0_17] : memref<1x1x5x48xbf16, #tpu.memory_space<vmem>>, vector<1x1x4x48xbf16>
    %14 = vector.shape_cast %13 : vector<1x1x4x48xbf16> to vector<4x48xbf16>
    %c2 = arith.constant 2 : index
    %c0_18 = arith.constant 0 : index
    %c0_19 = arith.constant 0 : index
    %15 = vector.load %arg8[%c2, %c0_18, %c0_19] : memref<9x48x192xbf16, #tpu.memory_space<vmem>>, vector<1x48x192xbf16>
    %16 = vector.shape_cast %15 : vector<1x48x192xbf16> to vector<48x192xbf16>
    %cst_20 = arith.constant dense<0.000000e+00> : vector<4x192xf32>
    %17 = tpu.matmul %14, %16, %cst_20 {dimension_numbers = #tpu.dot_dimension_numbers<[1], [0], [0], [1], [0, 0, 1, 1], [], []>} : vector<4x48xbf16>, vector<48x192xbf16>, vector<4x192xf32> -> vector<4x192xf32>
    %18 = arith.addf %12, %17 : vector<4x192xf32>
    %c0_21 = arith.constant 0 : index
    %c0_22 = arith.constant 0 : index
    %c0_23 = arith.constant 0 : index
    %c0_24 = arith.constant 0 : index
    %19 = vector.load %arg4[%c0_21, %c0_22, %c0_23, %c0_24] : memref<1x1x5x48xbf16, #tpu.memory_space<vmem>>, vector<1x1x4x48xbf16>
    %20 = vector.shape_cast %19 : vector<1x1x4x48xbf16> to vector<4x48xbf16>
    %c3 = arith.constant 3 : index
    %c0_25 = arith.constant 0 : index
    %c0_26 = arith.constant 0 : index
    %21 = vector.load %arg8[%c3, %c0_25, %c0_26] : memref<9x48x192xbf16, #tpu.memory_space<vmem>>, vector<1x48x192xbf16>
    %22 = vector.shape_cast %21 : vector<1x48x192xbf16> to vector<48x192xbf16>
    %cst_27 = arith.constant dense<0.000000e+00> : vector<4x192xf32>
    %23 = tpu.matmul %20, %22, %cst_27 {dimension_numbers = #tpu.dot_dimension_numbers<[1], [0], [0], [1], [0, 0, 1, 1], [], []>} : vector<4x48xbf16>, vector<48x192xbf16>, vector<4x192xf32> -> vector<4x192xf32>
    %24 = arith.addf %18, %23 : vector<4x192xf32>
    %c0_28 = arith.constant 0 : index
    %c0_29 = arith.constant 0 : index
    %c0_30 = arith.constant 0 : index
    %c0_31 = arith.constant 0 : index
    %25 = vector.load %arg5[%c0_28, %c0_29, %c0_30, %c0_31] : memref<1x1x5x48xbf16, #tpu.memory_space<vmem>>, vector<1x1x4x48xbf16>
    %26 = vector.shape_cast %25 : vector<1x1x4x48xbf16> to vector<4x48xbf16>
    %c4 = arith.constant 4 : index
    %c0_32 = arith.constant 0 : index
    %c0_33 = arith.constant 0 : index
    %27 = vector.load %arg8[%c4, %c0_32, %c0_33] : memref<9x48x192xbf16, #tpu.memory_space<vmem>>, vector<1x48x192xbf16>
    %28 = vector.shape_cast %27 : vector<1x48x192xbf16> to vector<48x192xbf16>
    %cst_34 = arith.constant dense<0.000000e+00> : vector<4x192xf32>
    %29 = tpu.matmul %26, %28, %cst_34 {dimension_numbers = #tpu.dot_dimension_numbers<[1], [0], [0], [1], [0, 0, 1, 1], [], []>} : vector<4x48xbf16>, vector<48x192xbf16>, vector<4x192xf32> -> vector<4x192xf32>
    %30 = arith.addf %24, %29 : vector<4x192xf32>
    %c0_35 = arith.constant 0 : index
    %c0_36 = arith.constant 0 : index
    %c1_37 = arith.constant 1 : index
    %c0_38 = arith.constant 0 : index
    %31 = vector.load %arg4[%c0_35, %c0_36, %c1_37, %c0_38] : memref<1x1x5x48xbf16, #tpu.memory_space<vmem>>, vector<1x1x4x48xbf16>
    %32 = vector.shape_cast %31 : vector<1x1x4x48xbf16> to vector<4x48xbf16>
    %c5 = arith.constant 5 : index
    %c0_39 = arith.constant 0 : index
    %c0_40 = arith.constant 0 : index
    %33 = vector.load %arg8[%c5, %c0_39, %c0_40] : memref<9x48x192xbf16, #tpu.memory_space<vmem>>, vector<1x48x192xbf16>
    %34 = vector.shape_cast %33 : vector<1x48x192xbf16> to vector<48x192xbf16>
    %cst_41 = arith.constant dense<0.000000e+00> : vector<4x192xf32>
    %35 = tpu.matmul %32, %34, %cst_41 {dimension_numbers = #tpu.dot_dimension_numbers<[1], [0], [0], [1], [0, 0, 1, 1], [], []>} : vector<4x48xbf16>, vector<48x192xbf16>, vector<4x192xf32> -> vector<4x192xf32>
    %36 = arith.addf %30, %35 : vector<4x192xf32>
    %c0_42 = arith.constant 0 : index
    %c0_43 = arith.constant 0 : index
    %c0_44 = arith.constant 0 : index
    %c0_45 = arith.constant 0 : index
    %37 = vector.load %arg6[%c0_42, %c0_43, %c0_44, %c0_45] : memref<1x1x5x48xbf16, #tpu.memory_space<vmem>>, vector<1x1x4x48xbf16>
    %38 = vector.shape_cast %37 : vector<1x1x4x48xbf16> to vector<4x48xbf16>
    %c6 = arith.constant 6 : index
    %c0_46 = arith.constant 0 : index
    %c0_47 = arith.constant 0 : index
    %39 = vector.load %arg8[%c6, %c0_46, %c0_47] : memref<9x48x192xbf16, #tpu.memory_space<vmem>>, vector<1x48x192xbf16>
    %40 = vector.shape_cast %39 : vector<1x48x192xbf16> to vector<48x192xbf16>
    %cst_48 = arith.constant dense<0.000000e+00> : vector<4x192xf32>
    %41 = tpu.matmul %38, %40, %cst_48 {dimension_numbers = #tpu.dot_dimension_numbers<[1], [0], [0], [1], [0, 0, 1, 1], [], []>} : vector<4x48xbf16>, vector<48x192xbf16>, vector<4x192xf32> -> vector<4x192xf32>
    %42 = arith.addf %36, %41 : vector<4x192xf32>
    %c0_49 = arith.constant 0 : index
    %c0_50 = arith.constant 0 : index
    %c0_51 = arith.constant 0 : index
    %c0_52 = arith.constant 0 : index
    %43 = vector.load %arg7[%c0_49, %c0_50, %c0_51, %c0_52] : memref<1x1x5x48xbf16, #tpu.memory_space<vmem>>, vector<1x1x4x48xbf16>
    %44 = vector.shape_cast %43 : vector<1x1x4x48xbf16> to vector<4x48xbf16>
    %c7 = arith.constant 7 : index
    %c0_53 = arith.constant 0 : index
    %c0_54 = arith.constant 0 : index
    %45 = vector.load %arg8[%c7, %c0_53, %c0_54] : memref<9x48x192xbf16, #tpu.memory_space<vmem>>, vector<1x48x192xbf16>
    %46 = vector.shape_cast %45 : vector<1x48x192xbf16> to vector<48x192xbf16>
    %cst_55 = arith.constant dense<0.000000e+00> : vector<4x192xf32>
    %47 = tpu.matmul %44, %46, %cst_55 {dimension_numbers = #tpu.dot_dimension_numbers<[1], [0], [0], [1], [0, 0, 1, 1], [], []>} : vector<4x48xbf16>, vector<48x192xbf16>, vector<4x192xf32> -> vector<4x192xf32>
    %48 = arith.addf %42, %47 : vector<4x192xf32>
    %c0_56 = arith.constant 0 : index
    %c0_57 = arith.constant 0 : index
    %c1_58 = arith.constant 1 : index
    %c0_59 = arith.constant 0 : index
    %49 = vector.load %arg6[%c0_56, %c0_57, %c1_58, %c0_59] : memref<1x1x5x48xbf16, #tpu.memory_space<vmem>>, vector<1x1x4x48xbf16>
    %50 = vector.shape_cast %49 : vector<1x1x4x48xbf16> to vector<4x48xbf16>
    %c8 = arith.constant 8 : index
    %c0_60 = arith.constant 0 : index
    %c0_61 = arith.constant 0 : index
    %51 = vector.load %arg8[%c8, %c0_60, %c0_61] : memref<9x48x192xbf16, #tpu.memory_space<vmem>>, vector<1x48x192xbf16>
    %52 = vector.shape_cast %51 : vector<1x48x192xbf16> to vector<48x192xbf16>
    %cst_62 = arith.constant dense<0.000000e+00> : vector<4x192xf32>
    %53 = tpu.matmul %50, %52, %cst_62 {dimension_numbers = #tpu.dot_dimension_numbers<[1], [0], [0], [1], [0, 0, 1, 1], [], []>} : vector<4x48xbf16>, vector<48x192xbf16>, vector<4x192xf32> -> vector<4x192xf32>
    %54 = arith.addf %48, %53 : vector<4x192xf32>
    %c0_63 = arith.constant 0 : index
    %c0_64 = arith.constant 0 : index
    %55 = vector.load %arg9[%c0_63, %c0_64] : memref<1x192xf32, #tpu.memory_space<vmem>>, vector<1x192xf32>
    %56 = vector.broadcast %55 : vector<1x192xf32> to vector<4x192xf32>
    %57 = arith.addf %54, %56 : vector<4x192xf32>
    %c0_65 = arith.constant 0 : index
    %c0_66 = arith.constant 0 : index
    %c0_67 = arith.constant 0 : index
    %c0_68 = arith.constant 0 : index
    %58 = vector.load %arg10[%c0_65, %c0_66, %c0_67, %c0_68] : memref<1x1x4x192xf32, #tpu.memory_space<vmem>>, vector<1x1x4x192xf32>
    %59 = vector.shape_cast %58 : vector<1x1x4x192xf32> to vector<4x192xf32>
    %60 = arith.addf %57, %59 : vector<4x192xf32>
    %c0_69 = arith.constant 0 : index
    %c0_70 = arith.constant 0 : index
    %c0_71 = arith.constant 0 : index
    %c0_72 = arith.constant 0 : index
    %61 = vector.load %arg11[%c0_69, %c0_70, %c0_71, %c0_72] : memref<1x1x4x192xf32, #tpu.memory_space<vmem>>, vector<1x1x4x192xf32>
    %62 = vector.shape_cast %61 : vector<1x1x4x192xf32> to vector<4x192xf32>
    %63 = arith.addf %60, %62 : vector<4x192xf32>
    %cst_73 = arith.constant 0.000000e+00 : f32
    %64 = vector.broadcast %cst_73 : f32 to vector<4x192xf32>
    %65 = arith.maximumf %63, %64 : vector<4x192xf32>
    %c0_74 = arith.constant 0 : index
    %c0_75 = arith.constant 0 : index
    %c0_76 = arith.constant 0 : index
    %c0_77 = arith.constant 0 : index
    %66 = vector.load %arg12[%c0_74, %c0_75, %c0_76, %c0_77] : memref<1x1x4x192xf32, #tpu.memory_space<vmem>>, vector<1x1x4x192xf32>
    %67 = vector.shape_cast %66 : vector<1x1x4x192xf32> to vector<4x192xf32>
    %68 = vector.shape_cast %65 : vector<4x192xf32> to vector<1x1x4x192xf32>
    tpu.vector_store %arg12[%c0_74, %c0_75, %c0_76, %c0_77], %68 {strides = array<i32>} : memref<1x1x4x192xf32, #tpu.memory_space<vmem>>, vector<1x1x4x192xf32>,
    return
  }
  func.func @transform_0(%arg0: i32, %arg1: i32) -> (i32, i32, i32, i32) {
    %c0_i32 = arith.constant 0 : i32
    %c0_i32_0 = arith.constant 0 : i32
    %c0_i32_1 = arith.constant 0 : i32
    return %arg0, %arg1, %c0_i32, %c0_i32_0 : i32, i32, i32, i32
  }
  func.func @transform_1(%arg0: i32, %arg1: i32) -> (i32, i32, i32, i32) {
    %c0_i32 = arith.constant 0 : i32
    %c0_i32_0 = arith.constant 0 : i32
    %c0_i32_1 = arith.constant 0 : i32
    return %arg0, %arg1, %c0_i32, %c0_i32_0 : i32, i32, i32, i32
  }
  func.func @transform_2(%arg0: i32, %arg1: i32) -> (i32, i32, i32, i32) {
    %c0_i32 = arith.constant 0 : i32
    %c0_i32_0 = arith.constant 0 : i32
    %c0_i32_1 = arith.constant 0 : i32
    return %arg0, %arg1, %c0_i32, %c0_i32_0 : i32, i32, i32, i32
  }
  func.func @transform_3(%arg0: i32, %arg1: i32) -> (i32, i32, i32, i32) {
    %c0_i32 = arith.constant 0 : i32
    %c0_i32_0 = arith.constant 0 : i32
    %c0_i32_1 = arith.constant 0 : i32
    return %arg0, %arg1, %c0_i32, %c0_i32_0 : i32, i32, i32, i32
  }
  func.func @transform_4(%arg0: i32, %arg1: i32) -> (i32, i32, i32, i32) {
    %c1_i32 = arith.constant 1 : i32
    %0 = arith.addi %arg1, %c1_i32 : i32
    %c0_i32 = arith.constant 0 : i32
    %c0_i32_0 = arith.constant 0 : i32
    %c0_i32_1 = arith.constant 0 : i32
    return %arg0, %0, %c0_i32, %c0_i32_0 : i32, i32, i32, i32
  }
  func.func @transform_5(%arg0: i32, %arg1: i32) -> (i32, i32, i32, i32) {
    %c1_i32 = arith.constant 1 : i32
    %0 = arith.addi %arg1, %c1_i32 : i32
    %c0_i32 = arith.constant 0 : i32
    %c0_i32_0 = arith.constant 0 : i32
    %c0_i32_1 = arith.constant 0 : i32
    return %arg0, %0, %c0_i32, %c0_i32_0 : i32, i32, i32, i32
  }
  func.func @transform_6(%arg0: i32, %arg1: i32) -> (i32, i32, i32) {
    %c0_i32 = arith.constant 0 : i32
    %c0_i32_0 = arith.constant 0 : i32
    %c0_i32_1 = arith.constant 0 : i32
    %c0_i32_2 = arith.constant 0 : i32
    return %c0_i32, %c0_i32_0, %c0_i32_1 : i32, i32, i32
  }
  func.func @transform_7(%arg0: i32, %arg1: i32) -> (i32, i32) {
    %c0_i32 = arith.constant 0 : i32
    %c0_i32_0 = arith.constant 0 : i32
    %c0_i32_1 = arith.constant 0 : i32
    return %c0_i32, %c0_i32_0 : i32, i32
  }
  func.func @transform_8(%arg0: i32, %arg1: i32) -> (i32, i32, i32, i32) {
    %c0_i32 = arith.constant 0 : i32
    %c0_i32_0 = arith.constant 0 : i32
    %c0_i32_1 = arith.constant 0 : i32
    return %arg0, %arg1, %c0_i32, %c0_i32_0 : i32, i32, i32, i32
  }
  func.func @transform_9(%arg0: i32, %arg1: i32) -> (i32, i32, i32, i32) {
    %c0_i32 = arith.constant 0 : i32
    %c0_i32_0 = arith.constant 0 : i32
    %c0_i32_1 = arith.constant 0 : i32
    return %arg0, %arg1, %c0_i32, %c0_i32_0 : i32, i32, i32, i32
  }
  func.func @transform_10(%arg0: i32, %arg1: i32) -> (i32, i32, i32, i32) {
    %c0_i32 = arith.constant 0 : i32
    %c0_i32_0 = arith.constant 0 : i32
    %c0_i32_1 = arith.constant 0 : i32
    return %arg0, %arg1, %c0_i32, %c0_i32_0 : i32, i32, i32, i32
  }
}

module attributes {stable_mosaic.version = 11 : i64} {
  func.func @_matmul_bias_kernel(%arg0: i32, %arg1: memref<32x192xbf16, #tpu.memory_space<vmem>>, %arg2: memref<192x144xbf16, #tpu.memory_space<vmem>>, %arg3: memref<1x144xf32, #tpu.memory_space<vmem>>, %arg4: memref<32x144xf32, #tpu.memory_space<vmem>>) attributes {dimension_semantics = [#tpu.dimension_semantics<parallel>], iteration_bounds = array<i64: 1>, scalar_prefetch = 0 : i64, scratch_operands = 0 : i64, tpu.core_type = #tpu.core_type<tc>, window_params = [{transform_indices = @transform_0, window_bounds = array<i64: 32, 192>}, {pipeline_mode = #tpu.pipeline_mode<synchronous>, transform_indices = @transform_1, window_bounds = array<i64: 192, 144>}, {pipeline_mode = #tpu.pipeline_mode<synchronous>, transform_indices = @transform_2, window_bounds = array<i64: 1, 144>}, {transform_indices = @transform_3, window_bounds = array<i64: 32, 144>}]} {
    %c0 = arith.constant 0 : index
    %c0_0 = arith.constant 0 : index
    %0 = vector.load %arg1[%c0, %c0_0] : memref<32x192xbf16, #tpu.memory_space<vmem>>, vector<32x192xbf16>
    %c0_1 = arith.constant 0 : index
    %c0_2 = arith.constant 0 : index
    %1 = vector.load %arg2[%c0_1, %c0_2] : memref<192x144xbf16, #tpu.memory_space<vmem>>, vector<192x144xbf16>
    %cst = arith.constant dense<0.000000e+00> : vector<32x144xf32>
    %2 = tpu.matmul %0, %1, %cst {dimension_numbers = #tpu.dot_dimension_numbers<[1], [0], [0], [1], [0, 0, 1, 1], [], []>} : vector<32x192xbf16>, vector<192x144xbf16>, vector<32x144xf32> -> vector<32x144xf32>
    %c0_3 = arith.constant 0 : index
    %c0_4 = arith.constant 0 : index
    %3 = vector.load %arg3[%c0_3, %c0_4] : memref<1x144xf32, #tpu.memory_space<vmem>>, vector<1x144xf32>
    %4 = vector.broadcast %3 : vector<1x144xf32> to vector<32x144xf32>
    %5 = arith.addf %2, %4 : vector<32x144xf32>
    %c0_5 = arith.constant 0 : index
    %c0_6 = arith.constant 0 : index
    %6 = vector.load %arg4[%c0_5, %c0_6] : memref<32x144xf32, #tpu.memory_space<vmem>>, vector<32x144xf32>
    tpu.vector_store %arg4[%c0_5, %c0_6], %5 {strides = array<i32>} : memref<32x144xf32, #tpu.memory_space<vmem>>, vector<32x144xf32>,
    return
  }
  func.func @transform_0(%arg0: i32) -> (i32, i32) {
    %c0_i32 = arith.constant 0 : i32
    %c0_i32_0 = arith.constant 0 : i32
    return %arg0, %c0_i32 : i32, i32
  }
  func.func @transform_1(%arg0: i32) -> (i32, i32) {
    %c0_i32 = arith.constant 0 : i32
    %c0_i32_0 = arith.constant 0 : i32
    %c0_i32_1 = arith.constant 0 : i32
    return %c0_i32, %c0_i32_0 : i32, i32
  }
  func.func @transform_2(%arg0: i32) -> (i32, i32) {
    %c0_i32 = arith.constant 0 : i32
    %c0_i32_0 = arith.constant 0 : i32
    %c0_i32_1 = arith.constant 0 : i32
    return %c0_i32, %c0_i32_0 : i32, i32
  }
  func.func @transform_3(%arg0: i32) -> (i32, i32) {
    %c0_i32 = arith.constant 0 : i32
    %c0_i32_0 = arith.constant 0 : i32
    return %arg0, %c0_i32 : i32, i32
  }
}

module attributes {stable_mosaic.version = 11 : i64} {
  func.func @_matmul_bias_kernel(%arg0: i32, %arg1: memref<128x96xbf16, #tpu.memory_space<vmem>>, %arg2: memref<96x48xbf16, #tpu.memory_space<vmem>>, %arg3: memref<1x48xf32, #tpu.memory_space<vmem>>, %arg4: memref<128x48xf32, #tpu.memory_space<vmem>>) attributes {dimension_semantics = [#tpu.dimension_semantics<parallel>], iteration_bounds = array<i64: 1>, scalar_prefetch = 0 : i64, scratch_operands = 0 : i64, tpu.core_type = #tpu.core_type<tc>, window_params = [{transform_indices = @transform_0, window_bounds = array<i64: 128, 96>}, {pipeline_mode = #tpu.pipeline_mode<synchronous>, transform_indices = @transform_1, window_bounds = array<i64: 96, 48>}, {pipeline_mode = #tpu.pipeline_mode<synchronous>, transform_indices = @transform_2, window_bounds = array<i64: 1, 48>}, {transform_indices = @transform_3, window_bounds = array<i64: 128, 48>}]} {
    %c0 = arith.constant 0 : index
    %c0_0 = arith.constant 0 : index
    %0 = vector.load %arg1[%c0, %c0_0] : memref<128x96xbf16, #tpu.memory_space<vmem>>, vector<128x96xbf16>
    %c0_1 = arith.constant 0 : index
    %c0_2 = arith.constant 0 : index
    %1 = vector.load %arg2[%c0_1, %c0_2] : memref<96x48xbf16, #tpu.memory_space<vmem>>, vector<96x48xbf16>
    %cst = arith.constant dense<0.000000e+00> : vector<128x48xf32>
    %2 = tpu.matmul %0, %1, %cst {dimension_numbers = #tpu.dot_dimension_numbers<[1], [0], [0], [1], [0, 0, 1, 1], [], []>} : vector<128x96xbf16>, vector<96x48xbf16>, vector<128x48xf32> -> vector<128x48xf32>
    %c0_3 = arith.constant 0 : index
    %c0_4 = arith.constant 0 : index
    %3 = vector.load %arg3[%c0_3, %c0_4] : memref<1x48xf32, #tpu.memory_space<vmem>>, vector<1x48xf32>
    %4 = vector.broadcast %3 : vector<1x48xf32> to vector<128x48xf32>
    %5 = arith.addf %2, %4 : vector<128x48xf32>
    %c0_5 = arith.constant 0 : index
    %c0_6 = arith.constant 0 : index
    %6 = vector.load %arg4[%c0_5, %c0_6] : memref<128x48xf32, #tpu.memory_space<vmem>>, vector<128x48xf32>
    tpu.vector_store %arg4[%c0_5, %c0_6], %5 {strides = array<i32>} : memref<128x48xf32, #tpu.memory_space<vmem>>, vector<128x48xf32>,
    return
  }
  func.func @transform_0(%arg0: i32) -> (i32, i32) {
    %c0_i32 = arith.constant 0 : i32
    %c0_i32_0 = arith.constant 0 : i32
    return %arg0, %c0_i32 : i32, i32
  }
  func.func @transform_1(%arg0: i32) -> (i32, i32) {
    %c0_i32 = arith.constant 0 : i32
    %c0_i32_0 = arith.constant 0 : i32
    %c0_i32_1 = arith.constant 0 : i32
    return %c0_i32, %c0_i32_0 : i32, i32
  }
  func.func @transform_2(%arg0: i32) -> (i32, i32) {
    %c0_i32 = arith.constant 0 : i32
    %c0_i32_0 = arith.constant 0 : i32
    %c0_i32_1 = arith.constant 0 : i32
    return %c0_i32, %c0_i32_0 : i32, i32
  }
  func.func @transform_3(%arg0: i32) -> (i32, i32) {
    %c0_i32 = arith.constant 0 : i32
    %c0_i32_0 = arith.constant 0 : i32
    return %arg0, %c0_i32 : i32, i32
  }
}

module attributes {stable_mosaic.version = 11 : i64} {
  func.func @_conv3x3_s2_kernel(%arg0: i32, %arg1: i32, %arg2: memref<1x1x9x48xbf16, #tpu.memory_space<vmem>>, %arg3: memref<1x1x9x48xbf16, #tpu.memory_space<vmem>>, %arg4: memref<1x1x9x48xbf16, #tpu.memory_space<vmem>>, %arg5: memref<1x1x9x48xbf16, #tpu.memory_space<vmem>>, %arg6: memref<1x1x9x48xbf16, #tpu.memory_space<vmem>>, %arg7: memref<1x1x9x48xbf16, #tpu.memory_space<vmem>>, %arg8: memref<9x48x96xbf16, #tpu.memory_space<vmem>>, %arg9: memref<1x96xf32, #tpu.memory_space<vmem>>, %arg10: memref<1x1x8x96xf32, #tpu.memory_space<vmem>>, %arg11: memref<1x1x8x96xf32, #tpu.memory_space<vmem>>, %arg12: memref<1x1x8x96xf32, #tpu.memory_space<vmem>>) attributes {dimension_semantics = [#tpu.dimension_semantics<parallel>, #tpu.dimension_semantics<parallel>], iteration_bounds = array<i64: 2, 8>, scalar_prefetch = 0 : i64, scratch_operands = 0 : i64, tpu.core_type = #tpu.core_type<tc>, window_params = [{transform_indices = @transform_0, window_bounds = array<i64: 1, 1, 9, 48>}, {transform_indices = @transform_1, window_bounds = array<i64: 1, 1, 9, 48>}, {transform_indices = @transform_2, window_bounds = array<i64: 1, 1, 9, 48>}, {transform_indices = @transform_3, window_bounds = array<i64: 1, 1, 9, 48>}, {transform_indices = @transform_4, window_bounds = array<i64: 1, 1, 9, 48>}, {transform_indices = @transform_5, window_bounds = array<i64: 1, 1, 9, 48>}, {pipeline_mode = #tpu.pipeline_mode<synchronous>, transform_indices = @transform_6, window_bounds = array<i64: 9, 48, 96>}, {pipeline_mode = #tpu.pipeline_mode<synchronous>, transform_indices = @transform_7, window_bounds = array<i64: 1, 96>}, {transform_indices = @transform_8, window_bounds = array<i64: 1, 1, 8, 96>}, {transform_indices = @transform_9, window_bounds = array<i64: 1, 1, 8, 96>}, {transform_indices = @transform_10, window_bounds = array<i64: 1, 1, 8, 96>}]} {
    %cst = arith.constant 0.000000e+00 : f32
    %0 = vector.broadcast %cst : f32 to vector<8x96xf32>
    %c0 = arith.constant 0 : index
    %c0_0 = arith.constant 0 : index
    %c0_1 = arith.constant 0 : index
    %c0_2 = arith.constant 0 : index
    %1 = vector.load %arg2[%c0, %c0_0, %c0_1, %c0_2] : memref<1x1x9x48xbf16, #tpu.memory_space<vmem>>, vector<1x1x8x48xbf16>
    %2 = vector.shape_cast %1 : vector<1x1x8x48xbf16> to vector<8x48xbf16>
    %c0_3 = arith.constant 0 : index
    %c0_4 = arith.constant 0 : index
    %c0_5 = arith.constant 0 : index
    %3 = vector.load %arg8[%c0_3, %c0_4, %c0_5] : memref<9x48x96xbf16, #tpu.memory_space<vmem>>, vector<1x48x96xbf16>
    %4 = vector.shape_cast %3 : vector<1x48x96xbf16> to vector<48x96xbf16>
    %cst_6 = arith.constant dense<0.000000e+00> : vector<8x96xf32>
    %5 = tpu.matmul %2, %4, %cst_6 {dimension_numbers = #tpu.dot_dimension_numbers<[1], [0], [0], [1], [0, 0, 1, 1], [], []>} : vector<8x48xbf16>, vector<48x96xbf16>, vector<8x96xf32> -> vector<8x96xf32>
    %6 = arith.addf %0, %5 : vector<8x96xf32>
    %c0_7 = arith.constant 0 : index
    %c0_8 = arith.constant 0 : index
    %c0_9 = arith.constant 0 : index
    %c0_10 = arith.constant 0 : index
    %7 = vector.load %arg3[%c0_7, %c0_8, %c0_9, %c0_10] : memref<1x1x9x48xbf16, #tpu.memory_space<vmem>>, vector<1x1x8x48xbf16>
    %8 = vector.shape_cast %7 : vector<1x1x8x48xbf16> to vector<8x48xbf16>
    %c1 = arith.constant 1 : index
    %c0_11 = arith.constant 0 : index
    %c0_12 = arith.constant 0 : index
    %9 = vector.load %arg8[%c1, %c0_11, %c0_12] : memref<9x48x96xbf16, #tpu.memory_space<vmem>>, vector<1x48x96xbf16>
    %10 = vector.shape_cast %9 : vector<1x48x96xbf16> to vector<48x96xbf16>
    %cst_13 = arith.constant dense<0.000000e+00> : vector<8x96xf32>
    %11 = tpu.matmul %8, %10, %cst_13 {dimension_numbers = #tpu.dot_dimension_numbers<[1], [0], [0], [1], [0, 0, 1, 1], [], []>} : vector<8x48xbf16>, vector<48x96xbf16>, vector<8x96xf32> -> vector<8x96xf32>
    %12 = arith.addf %6, %11 : vector<8x96xf32>
    %c0_14 = arith.constant 0 : index
    %c0_15 = arith.constant 0 : index
    %c1_16 = arith.constant 1 : index
    %c0_17 = arith.constant 0 : index
    %13 = vector.load %arg2[%c0_14, %c0_15, %c1_16, %c0_17] : memref<1x1x9x48xbf16, #tpu.memory_space<vmem>>, vector<1x1x8x48xbf16>
    %14 = vector.shape_cast %13 : vector<1x1x8x48xbf16> to vector<8x48xbf16>
    %c2 = arith.constant 2 : index
    %c0_18 = arith.constant 0 : index
    %c0_19 = arith.constant 0 : index
    %15 = vector.load %arg8[%c2, %c0_18, %c0_19] : memref<9x48x96xbf16, #tpu.memory_space<vmem>>, vector<1x48x96xbf16>
    %16 = vector.shape_cast %15 : vector<1x48x96xbf16> to vector<48x96xbf16>
    %cst_20 = arith.constant dense<0.000000e+00> : vector<8x96xf32>
    %17 = tpu.matmul %14, %16, %cst_20 {dimension_numbers = #tpu.dot_dimension_numbers<[1], [0], [0], [1], [0, 0, 1, 1], [], []>} : vector<8x48xbf16>, vector<48x96xbf16>, vector<8x96xf32> -> vector<8x96xf32>
    %18 = arith.addf %12, %17 : vector<8x96xf32>
    %c0_21 = arith.constant 0 : index
    %c0_22 = arith.constant 0 : index
    %c0_23 = arith.constant 0 : index
    %c0_24 = arith.constant 0 : index
    %19 = vector.load %arg4[%c0_21, %c0_22, %c0_23, %c0_24] : memref<1x1x9x48xbf16, #tpu.memory_space<vmem>>, vector<1x1x8x48xbf16>
    %20 = vector.shape_cast %19 : vector<1x1x8x48xbf16> to vector<8x48xbf16>
    %c3 = arith.constant 3 : index
    %c0_25 = arith.constant 0 : index
    %c0_26 = arith.constant 0 : index
    %21 = vector.load %arg8[%c3, %c0_25, %c0_26] : memref<9x48x96xbf16, #tpu.memory_space<vmem>>, vector<1x48x96xbf16>
    %22 = vector.shape_cast %21 : vector<1x48x96xbf16> to vector<48x96xbf16>
    %cst_27 = arith.constant dense<0.000000e+00> : vector<8x96xf32>
    %23 = tpu.matmul %20, %22, %cst_27 {dimension_numbers = #tpu.dot_dimension_numbers<[1], [0], [0], [1], [0, 0, 1, 1], [], []>} : vector<8x48xbf16>, vector<48x96xbf16>, vector<8x96xf32> -> vector<8x96xf32>
    %24 = arith.addf %18, %23 : vector<8x96xf32>
    %c0_28 = arith.constant 0 : index
    %c0_29 = arith.constant 0 : index
    %c0_30 = arith.constant 0 : index
    %c0_31 = arith.constant 0 : index
    %25 = vector.load %arg5[%c0_28, %c0_29, %c0_30, %c0_31] : memref<1x1x9x48xbf16, #tpu.memory_space<vmem>>, vector<1x1x8x48xbf16>
    %26 = vector.shape_cast %25 : vector<1x1x8x48xbf16> to vector<8x48xbf16>
    %c4 = arith.constant 4 : index
    %c0_32 = arith.constant 0 : index
    %c0_33 = arith.constant 0 : index
    %27 = vector.load %arg8[%c4, %c0_32, %c0_33] : memref<9x48x96xbf16, #tpu.memory_space<vmem>>, vector<1x48x96xbf16>
    %28 = vector.shape_cast %27 : vector<1x48x96xbf16> to vector<48x96xbf16>
    %cst_34 = arith.constant dense<0.000000e+00> : vector<8x96xf32>
    %29 = tpu.matmul %26, %28, %cst_34 {dimension_numbers = #tpu.dot_dimension_numbers<[1], [0], [0], [1], [0, 0, 1, 1], [], []>} : vector<8x48xbf16>, vector<48x96xbf16>, vector<8x96xf32> -> vector<8x96xf32>
    %30 = arith.addf %24, %29 : vector<8x96xf32>
    %c0_35 = arith.constant 0 : index
    %c0_36 = arith.constant 0 : index
    %c1_37 = arith.constant 1 : index
    %c0_38 = arith.constant 0 : index
    %31 = vector.load %arg4[%c0_35, %c0_36, %c1_37, %c0_38] : memref<1x1x9x48xbf16, #tpu.memory_space<vmem>>, vector<1x1x8x48xbf16>
    %32 = vector.shape_cast %31 : vector<1x1x8x48xbf16> to vector<8x48xbf16>
    %c5 = arith.constant 5 : index
    %c0_39 = arith.constant 0 : index
    %c0_40 = arith.constant 0 : index
    %33 = vector.load %arg8[%c5, %c0_39, %c0_40] : memref<9x48x96xbf16, #tpu.memory_space<vmem>>, vector<1x48x96xbf16>
    %34 = vector.shape_cast %33 : vector<1x48x96xbf16> to vector<48x96xbf16>
    %cst_41 = arith.constant dense<0.000000e+00> : vector<8x96xf32>
    %35 = tpu.matmul %32, %34, %cst_41 {dimension_numbers = #tpu.dot_dimension_numbers<[1], [0], [0], [1], [0, 0, 1, 1], [], []>} : vector<8x48xbf16>, vector<48x96xbf16>, vector<8x96xf32> -> vector<8x96xf32>
    %36 = arith.addf %30, %35 : vector<8x96xf32>
    %c0_42 = arith.constant 0 : index
    %c0_43 = arith.constant 0 : index
    %c0_44 = arith.constant 0 : index
    %c0_45 = arith.constant 0 : index
    %37 = vector.load %arg6[%c0_42, %c0_43, %c0_44, %c0_45] : memref<1x1x9x48xbf16, #tpu.memory_space<vmem>>, vector<1x1x8x48xbf16>
    %38 = vector.shape_cast %37 : vector<1x1x8x48xbf16> to vector<8x48xbf16>
    %c6 = arith.constant 6 : index
    %c0_46 = arith.constant 0 : index
    %c0_47 = arith.constant 0 : index
    %39 = vector.load %arg8[%c6, %c0_46, %c0_47] : memref<9x48x96xbf16, #tpu.memory_space<vmem>>, vector<1x48x96xbf16>
    %40 = vector.shape_cast %39 : vector<1x48x96xbf16> to vector<48x96xbf16>
    %cst_48 = arith.constant dense<0.000000e+00> : vector<8x96xf32>
    %41 = tpu.matmul %38, %40, %cst_48 {dimension_numbers = #tpu.dot_dimension_numbers<[1], [0], [0], [1], [0, 0, 1, 1], [], []>} : vector<8x48xbf16>, vector<48x96xbf16>, vector<8x96xf32> -> vector<8x96xf32>
    %42 = arith.addf %36, %41 : vector<8x96xf32>
    %c0_49 = arith.constant 0 : index
    %c0_50 = arith.constant 0 : index
    %c0_51 = arith.constant 0 : index
    %c0_52 = arith.constant 0 : index
    %43 = vector.load %arg7[%c0_49, %c0_50, %c0_51, %c0_52] : memref<1x1x9x48xbf16, #tpu.memory_space<vmem>>, vector<1x1x8x48xbf16>
    %44 = vector.shape_cast %43 : vector<1x1x8x48xbf16> to vector<8x48xbf16>
    %c7 = arith.constant 7 : index
    %c0_53 = arith.constant 0 : index
    %c0_54 = arith.constant 0 : index
    %45 = vector.load %arg8[%c7, %c0_53, %c0_54] : memref<9x48x96xbf16, #tpu.memory_space<vmem>>, vector<1x48x96xbf16>
    %46 = vector.shape_cast %45 : vector<1x48x96xbf16> to vector<48x96xbf16>
    %cst_55 = arith.constant dense<0.000000e+00> : vector<8x96xf32>
    %47 = tpu.matmul %44, %46, %cst_55 {dimension_numbers = #tpu.dot_dimension_numbers<[1], [0], [0], [1], [0, 0, 1, 1], [], []>} : vector<8x48xbf16>, vector<48x96xbf16>, vector<8x96xf32> -> vector<8x96xf32>
    %48 = arith.addf %42, %47 : vector<8x96xf32>
    %c0_56 = arith.constant 0 : index
    %c0_57 = arith.constant 0 : index
    %c1_58 = arith.constant 1 : index
    %c0_59 = arith.constant 0 : index
    %49 = vector.load %arg6[%c0_56, %c0_57, %c1_58, %c0_59] : memref<1x1x9x48xbf16, #tpu.memory_space<vmem>>, vector<1x1x8x48xbf16>
    %50 = vector.shape_cast %49 : vector<1x1x8x48xbf16> to vector<8x48xbf16>
    %c8 = arith.constant 8 : index
    %c0_60 = arith.constant 0 : index
    %c0_61 = arith.constant 0 : index
    %51 = vector.load %arg8[%c8, %c0_60, %c0_61] : memref<9x48x96xbf16, #tpu.memory_space<vmem>>, vector<1x48x96xbf16>
    %52 = vector.shape_cast %51 : vector<1x48x96xbf16> to vector<48x96xbf16>
    %cst_62 = arith.constant dense<0.000000e+00> : vector<8x96xf32>
    %53 = tpu.matmul %50, %52, %cst_62 {dimension_numbers = #tpu.dot_dimension_numbers<[1], [0], [0], [1], [0, 0, 1, 1], [], []>} : vector<8x48xbf16>, vector<48x96xbf16>, vector<8x96xf32> -> vector<8x96xf32>
    %54 = arith.addf %48, %53 : vector<8x96xf32>
    %c0_63 = arith.constant 0 : index
    %c0_64 = arith.constant 0 : index
    %55 = vector.load %arg9[%c0_63, %c0_64] : memref<1x96xf32, #tpu.memory_space<vmem>>, vector<1x96xf32>
    %56 = vector.broadcast %55 : vector<1x96xf32> to vector<8x96xf32>
    %57 = arith.addf %54, %56 : vector<8x96xf32>
    %c0_65 = arith.constant 0 : index
    %c0_66 = arith.constant 0 : index
    %c0_67 = arith.constant 0 : index
    %c0_68 = arith.constant 0 : index
    %58 = vector.load %arg10[%c0_65, %c0_66, %c0_67, %c0_68] : memref<1x1x8x96xf32, #tpu.memory_space<vmem>>, vector<1x1x8x96xf32>
    %59 = vector.shape_cast %58 : vector<1x1x8x96xf32> to vector<8x96xf32>
    %60 = arith.addf %57, %59 : vector<8x96xf32>
    %c0_69 = arith.constant 0 : index
    %c0_70 = arith.constant 0 : index
    %c0_71 = arith.constant 0 : index
    %c0_72 = arith.constant 0 : index
    %61 = vector.load %arg11[%c0_69, %c0_70, %c0_71, %c0_72] : memref<1x1x8x96xf32, #tpu.memory_space<vmem>>, vector<1x1x8x96xf32>
    %62 = vector.shape_cast %61 : vector<1x1x8x96xf32> to vector<8x96xf32>
    %63 = arith.addf %60, %62 : vector<8x96xf32>
    %cst_73 = arith.constant 0.000000e+00 : f32
    %64 = vector.broadcast %cst_73 : f32 to vector<8x96xf32>
    %65 = arith.maximumf %63, %64 : vector<8x96xf32>
    %c0_74 = arith.constant 0 : index
    %c0_75 = arith.constant 0 : index
    %c0_76 = arith.constant 0 : index
    %c0_77 = arith.constant 0 : index
    %66 = vector.load %arg12[%c0_74, %c0_75, %c0_76, %c0_77] : memref<1x1x8x96xf32, #tpu.memory_space<vmem>>, vector<1x1x8x96xf32>
    %67 = vector.shape_cast %66 : vector<1x1x8x96xf32> to vector<8x96xf32>
    %68 = vector.shape_cast %65 : vector<8x96xf32> to vector<1x1x8x96xf32>
    tpu.vector_store %arg12[%c0_74, %c0_75, %c0_76, %c0_77], %68 {strides = array<i32>} : memref<1x1x8x96xf32, #tpu.memory_space<vmem>>, vector<1x1x8x96xf32>,
    return
  }
  func.func @transform_0(%arg0: i32, %arg1: i32) -> (i32, i32, i32, i32) {
    %c0_i32 = arith.constant 0 : i32
    %c0_i32_0 = arith.constant 0 : i32
    %c0_i32_1 = arith.constant 0 : i32
    return %arg0, %arg1, %c0_i32, %c0_i32_0 : i32, i32, i32, i32
  }
  func.func @transform_1(%arg0: i32, %arg1: i32) -> (i32, i32, i32, i32) {
    %c0_i32 = arith.constant 0 : i32
    %c0_i32_0 = arith.constant 0 : i32
    %c0_i32_1 = arith.constant 0 : i32
    return %arg0, %arg1, %c0_i32, %c0_i32_0 : i32, i32, i32, i32
  }
  func.func @transform_2(%arg0: i32, %arg1: i32) -> (i32, i32, i32, i32) {
    %c0_i32 = arith.constant 0 : i32
    %c0_i32_0 = arith.constant 0 : i32
    %c0_i32_1 = arith.constant 0 : i32
    return %arg0, %arg1, %c0_i32, %c0_i32_0 : i32, i32, i32, i32
  }
  func.func @transform_3(%arg0: i32, %arg1: i32) -> (i32, i32, i32, i32) {
    %c0_i32 = arith.constant 0 : i32
    %c0_i32_0 = arith.constant 0 : i32
    %c0_i32_1 = arith.constant 0 : i32
    return %arg0, %arg1, %c0_i32, %c0_i32_0 : i32, i32, i32, i32
  }
  func.func @transform_4(%arg0: i32, %arg1: i32) -> (i32, i32, i32, i32) {
    %c1_i32 = arith.constant 1 : i32
    %0 = arith.addi %arg1, %c1_i32 : i32
    %c0_i32 = arith.constant 0 : i32
    %c0_i32_0 = arith.constant 0 : i32
    %c0_i32_1 = arith.constant 0 : i32
    return %arg0, %0, %c0_i32, %c0_i32_0 : i32, i32, i32, i32
  }
  func.func @transform_5(%arg0: i32, %arg1: i32) -> (i32, i32, i32, i32) {
    %c1_i32 = arith.constant 1 : i32
    %0 = arith.addi %arg1, %c1_i32 : i32
    %c0_i32 = arith.constant 0 : i32
    %c0_i32_0 = arith.constant 0 : i32
    %c0_i32_1 = arith.constant 0 : i32
    return %arg0, %0, %c0_i32, %c0_i32_0 : i32, i32, i32, i32
  }
  func.func @transform_6(%arg0: i32, %arg1: i32) -> (i32, i32, i32) {
    %c0_i32 = arith.constant 0 : i32
    %c0_i32_0 = arith.constant 0 : i32
    %c0_i32_1 = arith.constant 0 : i32
    %c0_i32_2 = arith.constant 0 : i32
    return %c0_i32, %c0_i32_0, %c0_i32_1 : i32, i32, i32
  }
  func.func @transform_7(%arg0: i32, %arg1: i32) -> (i32, i32) {
    %c0_i32 = arith.constant 0 : i32
    %c0_i32_0 = arith.constant 0 : i32
    %c0_i32_1 = arith.constant 0 : i32
    return %c0_i32, %c0_i32_0 : i32, i32
  }
  func.func @transform_8(%arg0: i32, %arg1: i32) -> (i32, i32, i32, i32) {
    %c0_i32 = arith.constant 0 : i32
    %c0_i32_0 = arith.constant 0 : i32
    %c0_i32_1 = arith.constant 0 : i32
    return %arg0, %arg1, %c0_i32, %c0_i32_0 : i32, i32, i32, i32
  }
  func.func @transform_9(%arg0: i32, %arg1: i32) -> (i32, i32, i32, i32) {
    %c0_i32 = arith.constant 0 : i32
    %c0_i32_0 = arith.constant 0 : i32
    %c0_i32_1 = arith.constant 0 : i32
    return %arg0, %arg1, %c0_i32, %c0_i32_0 : i32, i32, i32, i32
  }
  func.func @transform_10(%arg0: i32, %arg1: i32) -> (i32, i32, i32, i32) {
    %c0_i32 = arith.constant 0 : i32
    %c0_i32_0 = arith.constant 0 : i32
    %c0_i32_1 = arith.constant 0 : i32
    return %arg0, %arg1, %c0_i32, %c0_i32_0 : i32, i32, i32, i32
  }
}

module attributes {stable_mosaic.version = 11 : i64} {
  func.func @_add3_relu_kernel(%arg0: i32, %arg1: memref<64x128xf32, #tpu.memory_space<vmem>>, %arg2: memref<64x128xf32, #tpu.memory_space<vmem>>, %arg3: memref<64x128xf32, #tpu.memory_space<vmem>>, %arg4: memref<64x128xf32, #tpu.memory_space<vmem>>) attributes {dimension_semantics = [#tpu.dimension_semantics<parallel>], iteration_bounds = array<i64: 3>, scalar_prefetch = 0 : i64, scratch_operands = 0 : i64, tpu.core_type = #tpu.core_type<tc>, window_params = [{transform_indices = @transform_0, window_bounds = array<i64: 64, 128>}, {transform_indices = @transform_1, window_bounds = array<i64: 64, 128>}, {transform_indices = @transform_2, window_bounds = array<i64: 64, 128>}, {transform_indices = @transform_3, window_bounds = array<i64: 64, 128>}]} {
    %c0 = arith.constant 0 : index
    %c0_0 = arith.constant 0 : index
    %0 = vector.load %arg1[%c0, %c0_0] : memref<64x128xf32, #tpu.memory_space<vmem>>, vector<64x128xf32>
    %c0_1 = arith.constant 0 : index
    %c0_2 = arith.constant 0 : index
    %1 = vector.load %arg2[%c0_1, %c0_2] : memref<64x128xf32, #tpu.memory_space<vmem>>, vector<64x128xf32>
    %2 = arith.addf %0, %1 : vector<64x128xf32>
    %c0_3 = arith.constant 0 : index
    %c0_4 = arith.constant 0 : index
    %3 = vector.load %arg3[%c0_3, %c0_4] : memref<64x128xf32, #tpu.memory_space<vmem>>, vector<64x128xf32>
    %4 = arith.addf %2, %3 : vector<64x128xf32>
    %cst = arith.constant 0.000000e+00 : f32
    %5 = vector.broadcast %cst : f32 to vector<64x128xf32>
    %6 = arith.maximumf %4, %5 : vector<64x128xf32>
    %c0_5 = arith.constant 0 : index
    %c0_6 = arith.constant 0 : index
    %7 = vector.load %arg4[%c0_5, %c0_6] : memref<64x128xf32, #tpu.memory_space<vmem>>, vector<64x128xf32>
    tpu.vector_store %arg4[%c0_5, %c0_6], %6 {strides = array<i32>} : memref<64x128xf32, #tpu.memory_space<vmem>>, vector<64x128xf32>,
    return
  }
  func.func @transform_0(%arg0: i32) -> (i32, i32) {
    %c0_i32 = arith.constant 0 : i32
    %c0_i32_0 = arith.constant 0 : i32
    return %arg0, %c0_i32 : i32, i32
  }
  func.func @transform_1(%arg0: i32) -> (i32, i32) {
    %c0_i32 = arith.constant 0 : i32
    %c0_i32_0 = arith.constant 0 : i32
    return %arg0, %c0_i32 : i32, i32
  }
  func.func @transform_2(%arg0: i32) -> (i32, i32) {
    %c0_i32 = arith.constant 0 : i32
    %c0_i32_0 = arith.constant 0 : i32
    return %arg0, %c0_i32 : i32, i32
  }
  func.func @transform_3(%arg0: i32) -> (i32, i32) {
    %c0_i32 = arith.constant 0 : i32
    %c0_i32_0 = arith.constant 0 : i32
    return %arg0, %c0_i32 : i32, i32
  }
}

</mosaic_0001>

<llo_original>
// kernel: stage03_fuse_forward.10
$region0: #{stage03_fuse_forward.10}
  #allocation0 [shape = 'u32[]', space=smem, size = 0x4, offset = 0x4, fixed_abs, tag = 'smem constant byte address 0x4 - core index']
  #allocation1 [shape = 'u32[72,128]{1,0:T(1,128)}', space=vmem, size = 0x9000, scoped, tag = 'internal scratch']
  %s0 = inlined_call_operand.vmem [shape: bf16[2,9,9,48], index: 0, kind: input, shape index: {}, may-alias: {0,4}]
  %s1 = inlined_call_operand.vmem [shape: bf16[2,9,9,48], index: 1, kind: input, shape index: {}, may-alias: {1,5}]
  %s2 = inlined_call_operand.vmem [shape: bf16[2,9,9,48], index: 2, kind: input, shape index: {}]
  %s3 = inlined_call_operand.vmem [shape: bf16[2,9,9,48], index: 3, kind: input, shape index: {}]
  %s4 = inlined_call_operand.vmem [shape: bf16[2,9,9,48], index: 4, kind: input, shape index: {}, may-alias: {0,4}]
  %s5 = inlined_call_operand.vmem [shape: bf16[2,9,9,48], index: 5, kind: input, shape index: {}, may-alias: {1,5}]
  %s6 = inlined_call_operand.vmem [shape: bf16[9,48,48], index: 6, kind: input, shape index: {}]
  %s7 = inlined_call_operand.vmem [shape: f32[1,48], index: 7, kind: input, shape index: {}]
  %s8 = inlined_call_operand.vmem [shape: f32[2,8,8,48], index: 8, kind: output, shape index: {}]
  %s9 = sld [smem:[#allocation0]]
  $region65: #{stage03_fuse_forward.10} parent=0
    _
  %s11 = ssub.s32 1, %s9
  %s12 = scalar_select 0, %s11, %s9
  loop: start=0, step=1, limit=18
  $region2: #{stage03_fuse_forward.10} parent=0 // loop_pre_header
    _
  $region3: #{stage03_fuse_forward.10} parent=0 // loop_header
    %s14 = sphi 0, %s18
    %p15 = scmp.ge.s32.totalorder %s14, 18
    %s21 = sphi 0, %s33
    %s22 = sphi 0, %s29
    %s23 = sphi 0, %s21
    %s24 = sphi 0, %s22
    %s25 = sphi 0, %s23
    %s26 = sphi 0, %s24
    %s38 = sphi 0, %s40
    %s41 = sphi 0, %s38
    %s42 = sphi 0, %s41
    %s58 = sphi 0, %s42
    %s66 = sphi 0, %s68
    %s69 = sphi 0, %s66
    %s70 = sphi 0, %s69
    %s86 = sphi 0, %s70
    %s94 = sphi 0, %s96
    %s97 = sphi 0, %s94
    %s98 = sphi 0, %s97
    %s114 = sphi 0, %s98
    %s122 = sphi 0, %s124
    %s125 = sphi 0, %s122
    %s126 = sphi 0, %s125
    %s142 = sphi 0, %s126
    %s152 = sphi 0, %s154
    %s155 = sphi 0, %s152
    %s156 = sphi 0, %s155
    %s172 = sphi 0, %s156
    %s182 = sphi 0, %s184
    %s185 = sphi 0, %s182
    %s186 = sphi 0, %s185
    %s202 = sphi 0, %s186
    %s206 = sphi 0, %s206
    %s208 = sphi 0, %s206
    %s209 = sphi 0, %s208
    %s223 = sphi 0, %s209
    %s227 = sphi 0, %s227
    %s229 = sphi 0, %s227
    %s230 = sphi 0, %s229
    %s244 = sphi 0, %s230
    %s252 = sphi 0, %s254
    %s255 = sphi 0, %s252
    %s256 = sphi 0, %s255
    %s272 = sphi 0, %s256
  $region4: #{stage03_fuse_forward.10} parent=0 // loop_header_branch
    %17 = sbr.rel (%p15) target = $region8
  $region5: #{stage03_fuse_forward.10} parent=0 // loop_body
    %s19 = ssub.s32 %s14, 1
    %s20 = ssub.s32 %s14, 2
    %s27 = sadd.s32 1, %s22
    %p28 = scmp.ge.s32.totalorder %s27, 8
    %s29 = scalar_select %p28, 0, %s27
    %s30 = sadd.s32 1, %s21
    %s31 = scalar_select %p28, %s30, %s21
    %p32 = scmp.ge.s32.totalorder %s31, 2
    %s33 = scalar_select %p32, 0, %s31
    %s34 = ssub.s32 %s21, %s33
    %s35 = ssub.s32 %s22, %s29
    %s36 = sor.u32 %s34, %s35
    %p37 = scmp.eq.s32.totalorder %s36, 0
    %s39 = sadd.s32 %s38, 1
    %s40 = scalar_select %p37, %s38, %s39
    %p43 = pneg %p37
    %p44 = scmp.eq.s32.totalorder %s14, 15
    %p45 = por %p43, %p44
    %p46 = scmp.ne.s32.totalorder %s38, %s41
    %p47 = scmp.eq.s32.totalorder %s14, 0
    %p48 = por %p46, %p47
    %p49 = scmp.ne.s32.totalorder %s38, %s41
    %p50 = scmp.eq.s32.totalorder %s19, 15
    %p51 = por %p49, %p50
    %p52 = scmp.ne.s32.totalorder %s41, %s42
    %p53 = scmp.eq.s32.totalorder %s19, 0
    %p54 = por %p52, %p53
    %p55 = scmp.ne.s32.totalorder %s41, %s42
    %p56 = scmp.eq.s32.totalorder %s20, 15
    %p57 = por %p55, %p56
    %p59 = scmp.ne.s32.totalorder %s42, %s58
    %p60 = scmp.eq.s32.totalorder %s20, 0
    %p61 = por %p59, %p60
    %s62 = ssub.s32 %s21, %s33
    %s63 = ssub.s32 %s22, %s29
    %s64 = sor.u32 %s62, %s63
    %p65 = scmp.eq.s32.totalorder %s64, 0
    %s67 = sadd.s32 %s66, 1
    %s68 = scalar_select %p65, %s66, %s67
    %p71 = pneg %p65
    %p72 = scmp.eq.s32.totalorder %s14, 15
    %p73 = por %p71, %p72
    %p74 = scmp.ne.s32.totalorder %s66, %s69
    %p75 = scmp.eq.s32.totalorder %s14, 0
    %p76 = por %p74, %p75
    %p77 = scmp.ne.s32.totalorder %s66, %s69
    %p78 = scmp.eq.s32.totalorder %s19, 15
    %p79 = por %p77, %p78
    %p80 = scmp.ne.s32.totalorder %s69, %s70
    %p81 = scmp.eq.s32.totalorder %s19, 0
    %p82 = por %p80, %p81
    %p83 = scmp.ne.s32.totalorder %s69, %s70
    %p84 = scmp.eq.s32.totalorder %s20, 15
    %p85 = por %p83, %p84
    %p87 = scmp.ne.s32.totalorder %s70, %s86
    %p88 = scmp.eq.s32.totalorder %s20, 0
    %p89 = por %p87, %p88
    %s90 = ssub.s32 %s21, %s33
    %s91 = ssub.s32 %s22, %s29
    %s92 = sor.u32 %s90, %s91
    %p93 = scmp.eq.s32.totalorder %s92, 0
    %s95 = sadd.s32 %s94, 1
    %s96 = scalar_select %p93, %s94, %s95
    %p99 = pneg %p93
    %p100 = scmp.eq.s32.totalorder %s14, 15
    %p101 = por %p99, %p100
    %p102 = scmp.ne.s32.totalorder %s94, %s97
    %p103 = scmp.eq.s32.totalorder %s14, 0
    %p104 = por %p102, %p103
    %p105 = scmp.ne.s32.totalorder %s94, %s97
    %p106 = scmp.eq.s32.totalorder %s19, 15
    %p107 = por %p105, %p106
    %p108 = scmp.ne.s32.totalorder %s97, %s98
    %p109 = scmp.eq.s32.totalorder %s19, 0
    %p110 = por %p108, %p109
    %p111 = scmp.ne.s32.totalorder %s97, %s98
    %p112 = scmp.eq.s32.totalorder %s20, 15
    %p113 = por %p111, %p112
    %p115 = scmp.ne.s32.totalorder %s98, %s114
    %p116 = scmp.eq.s32.totalorder %s20, 0
    %p117 = por %p115, %p116
    %s118 = ssub.s32 %s21, %s33
    %s119 = ssub.s32 %s22, %s29
    %s120 = sor.u32 %s118, %s119
    %p121 = scmp.eq.s32.totalorder %s120, 0
    %s123 = sadd.s32 %s122, 1
    %s124 = scalar_select %p121, %s122, %s123
    %p127 = pneg %p121
    %p128 = scmp.eq.s32.totalorder %s14, 15
    %p129 = por %p127, %p128
    %p130 = scmp.ne.s32.totalorder %s122, %s125
    %p131 = scmp.eq.s32.totalorder %s14, 0
    %p132 = por %p130, %p131
    %p133 = scmp.ne.s32.totalorder %s122, %s125
    %p134 = scmp.eq.s32.totalorder %s19, 15
    %p135 = por %p133, %p134
    %p136 = scmp.ne.s32.totalorder %s125, %s126
    %p137 = scmp.eq.s32.totalorder %s19, 0
    %p138 = por %p136, %p137
    %p139 = scmp.ne.s32.totalorder %s125, %s126
    %p140 = scmp.eq.s32.totalorder %s20, 15
    %p141 = por %p139, %p140
    %p143 = scmp.ne.s32.totalorder %s126, %s142
    %p144 = scmp.eq.s32.totalorder %s20, 0
    %p145 = por %p143, %p144
    %s146 = sadd.s32 %s22, 1
    %s147 = sadd.s32 %s29, 1
    %s148 = ssub.s32 %s21, %s33
    %s149 = ssub.s32 %s146, %s147
    %s150 = sor.u32 %s148, %s149
    %p151 = scmp.eq.s32.totalorder %s150, 0
    %s153 = sadd.s32 %s152, 1
    %s154 = scalar_select %p151, %s152, %s153
    %p157 = pneg %p151
    %p158 = scmp.eq.s32.totalorder %s14, 15
    %p159 = por %p157, %p158
    %p160 = scmp.ne.s32.totalorder %s152, %s155
    %p161 = scmp.eq.s32.totalorder %s14, 0
    %p162 = por %p160, %p161
    %p163 = scmp.ne.s32.totalorder %s152, %s155
    %p164 = scmp.eq.s32.totalorder %s19, 15
    %p165 = por %p163, %p164
    %p166 = scmp.ne.s32.totalorder %s155, %s156
    %p167 = scmp.eq.s32.totalorder %s19, 0
    %p168 = por %p166, %p167
    %p169 = scmp.ne.s32.totalorder %s155, %s156
    %p170 = scmp.eq.s32.totalorder %s20, 15
    %p171 = por %p169, %p170
    %p173 = scmp.ne.s32.totalorder %s156, %s172
    %p174 = scmp.eq.s32.totalorder %s20, 0
    %p175 = por %p173, %p174
    %s176 = sadd.s32 %s22, 1
    %s177 = sadd.s32 %s29, 1
    %s178 = ssub.s32 %s21, %s33
    %s179 = ssub.s32 %s176, %s177
    %s180 = sor.u32 %s178, %s179
    %p181 = scmp.eq.s32.totalorder %s180, 0
    %s183 = sadd.s32 %s182, 1
    %s184 = scalar_select %p181, %s182, %s183
    %p187 = pneg %p181
    %p188 = scmp.eq.s32.totalorder %s14, 15
    %p189 = por %p187, %p188
    %p190 = scmp.ne.s32.totalorder %s182, %s185
    %p191 = scmp.eq.s32.totalorder %s14, 0
    %p192 = por %p190, %p191
    %p193 = scmp.ne.s32.totalorder %s182, %s185
    %p194 = scmp.eq.s32.totalorder %s19, 15
    %p195 = por %p193, %p194
    %p196 = scmp.ne.s32.totalorder %s185, %s186
    %p197 = scmp.eq.s32.totalorder %s19, 0
    %p198 = por %p196, %p197
    %p199 = scmp.ne.s32.totalorder %s185, %s186
    %p200 = scmp.eq.s32.totalorder %s20, 15
    %p201 = por %p199, %p200
    %p203 = scmp.ne.s32.totalorder %s186, %s202
    %p204 = scmp.eq.s32.totalorder %s20, 0
    %p205 = por %p203, %p204
    %s207 = sadd.s32 %s206, 1
    %p210 = scmp.eq.s32.totalorder %s14, 15
    %p211 = scmp.ne.s32.totalorder %s206, %s208
    %p212 = scmp.eq.s32.totalorder %s14, 0
    %p213 = por %p211, %p212
    %p214 = scmp.ne.s32.totalorder %s206, %s208
    %p215 = scmp.eq.s32.totalorder %s19, 15
    %p216 = por %p214, %p215
    %p217 = scmp.ne.s32.totalorder %s208, %s209
    %p218 = scmp.eq.s32.totalorder %s19, 0
    %p219 = por %p217, %p218
    %p220 = scmp.ne.s32.totalorder %s208, %s209
    %p221 = scmp.eq.s32.totalorder %s20, 15
    %p222 = por %p220, %p221
    %p224 = scmp.ne.s32.totalorder %s209, %s223
    %p225 = scmp.eq.s32.totalorder %s20, 0
    %p226 = por %p224, %p225
    %s228 = sadd.s32 %s227, 1
    %p231 = scmp.eq.s32.totalorder %s14, 15
    %p232 = scmp.ne.s32.totalorder %s227, %s229
    %p233 = scmp.eq.s32.totalorder %s14, 0
    %p234 = por %p232, %p233
    %p235 = scmp.ne.s32.totalorder %s227, %s229
    %p236 = scmp.eq.s32.totalorder %s19, 15
    %p237 = por %p235, %p236
    %p238 = scmp.ne.s32.totalorder %s229, %s230
    %p239 = scmp.eq.s32.totalorder %s19, 0
    %p240 = por %p238, %p239
    %p241 = scmp.ne.s32.totalorder %s229, %s230
    %p242 = scmp.eq.s32.totalorder %s20, 15
    %p243 = por %p241, %p242
    %p245 = scmp.ne.s32.totalorder %s230, %s244
    %p246 = scmp.eq.s32.totalorder %s20, 0
    %p247 = por %p245, %p246
    %s248 = ssub.s32 %s21, %s33
    %s249 = ssub.s32 %s22, %s29
    %s250 = sor.u32 %s248, %s249
    %p251 = scmp.eq.s32.totalorder %s250, 0
    %s253 = sadd.s32 %s252, 1
    %s254 = scalar_select %p251, %s252, %s253
    %p257 = pneg %p251
    %p258 = scmp.eq.s32.totalorder %s14, 15
    %p259 = por %p257, %p258
    %p260 = scmp.ne.s32.totalorder %s252, %s255
    %p261 = scmp.eq.s32.totalorder %s14, 0
    %p262 = por %p260, %p261
    %p263 = scmp.ne.s32.totalorder %s252, %s255
    %p264 = scmp.eq.s32.totalorder %s19, 15
    %p265 = por %p263, %p264
    %p266 = scmp.ne.s32.totalorder %s255, %s256
    %p267 = scmp.eq.s32.totalorder %s19, 0
    %p268 = por %p266, %p267
    %p269 = scmp.ne.s32.totalorder %s255, %s256
    %p270 = scmp.eq.s32.totalorder %s20, 15
    %p271 = por %p269, %p270
    %p273 = scmp.ne.s32.totalorder %s256, %s272
    %p274 = scmp.eq.s32.totalorder %s20, 0
    %p275 = por %p273, %p274
    %p276 = scmp.le.s32.totalorder 1, %s14
    %p277 = scmp.lt.s32.totalorder %s14, 17
    %p278 = pnand %p276, %p277
    %p279 = pneg %p278
    // Predicated region
    $region9: #{stage03_fuse_forward.10} parent=5 // pred_check
      _
    $region10: #{stage03_fuse_forward.10} parent=5 // pred_check_branch
      %281 = sbr.rel (%p278) target = $region12
    $region11: #{stage03_fuse_forward.10} parent=5 // pred_region
      %s282 = ssub.s32 %s14, 1
      // Predicated region
      $region13: #{stage03_fuse_forward.10} parent=11 // pred_check
        %p283 = pneg %p219
      $region14: #{stage03_fuse_forward.10} parent=11 // pred_check_branch
        %285 = sbr.rel (%p283) target = $region16
      $region15: #{stage03_fuse_forward.10} parent=11 // pred_region
        _
      $region16: #{stage03_fuse_forward.10} parent=11 // pred_fallthru
        _
      // Predicated region
      $region17: #{stage03_fuse_forward.10} parent=11 // pred_check
        %p286 = pneg %p240
      $region18: #{stage03_fuse_forward.10} parent=11 // pred_check_branch
        %288 = sbr.rel (%p286) target = $region20
      $region19: #{stage03_fuse_forward.10} parent=11 // pred_region
        _
      $region20: #{stage03_fuse_forward.10} parent=11 // pred_fallthru
        _
    $region12: #{stage03_fuse_forward.10} parent=5 // pred_fallthru
      _
    %p289 = scmp.lt.s32.totalorder %s14, 16
    // Predicated region
    $region21: #{stage03_fuse_forward.10} parent=5 // pred_check
      %p290 = pneg %p289
    $region22: #{stage03_fuse_forward.10} parent=5 // pred_check_branch
      %292 = sbr.rel (%p290) target = $region24
    $region23: #{stage03_fuse_forward.10} parent=5 // pred_region
      // Predicated region
      $region25: #{stage03_fuse_forward.10} parent=23 // pred_check
        %p293 = pneg %p48
      $region26: #{stage03_fuse_forward.10} parent=23 // pred_check_branch
        %295 = sbr.rel (%p293) target = $region28
      $region27: #{stage03_fuse_forward.10} parent=23 // pred_region
        %p296 = scmp.lt.s32.totalorder %s21, 1
        %s297 = scalar_select %p296, %s21, 1
        %p298 = scmp.lt.s32.totalorder %s22, 8
        %s299 = scalar_select %p298, %s22, 8
        %s300 = smul.addr %s299, 2
        %s301 = smul.addr %s297, 18
        %s302 = sadd.s32 %s300, %s301
        %s303 = smul.addr %s302, 4
        %s304 = scalar_lea.vmem %s0, %s303
      $region28: #{stage03_fuse_forward.10} parent=23 // pred_fallthru
        _
      // Predicated region
      $region29: #{stage03_fuse_forward.10} parent=23 // pred_check
        %p305 = pneg %p76
      $region30: #{stage03_fuse_forward.10} parent=23 // pred_check_branch
        %307 = sbr.rel (%p305) target = $region32
      $region31: #{stage03_fuse_forward.10} parent=23 // pred_region
        %p308 = scmp.lt.s32.totalorder %s21, 1
        %s309 = scalar_select %p308, %s21, 1
        %p310 = scmp.lt.s32.totalorder %s22, 8
        %s311 = scalar_select %p310, %s22, 8
        %s312 = smul.addr %s311, 2
        %s313 = smul.addr %s309, 18
        %s314 = sadd.s32 %s312, %s313
        %s315 = smul.addr %s314, 4
        %s316 = scalar_lea.vmem %s1, %s315
      $region32: #{stage03_fuse_forward.10} parent=23 // pred_fallthru
        _
      // Predicated region
      $region33: #{stage03_fuse_forward.10} parent=23 // pred_check
        %p317 = pneg %p104
      $region34: #{stage03_fuse_forward.10} parent=23 // pred_check_branch
        %319 = sbr.rel (%p317) target = $region36
      $region35: #{stage03_fuse_forward.10} parent=23 // pred_region
        %p320 = scmp.lt.s32.totalorder %s21, 1
        %s321 = scalar_select %p320, %s21, 1
        %p322 = scmp.lt.s32.totalorder %s22, 8
        %s323 = scalar_select %p322, %s22, 8
        %s324 = smul.addr %s323, 2
        %s325 = smul.addr %s321, 18
        %s326 = sadd.s32 %s324, %s325
        %s327 = smul.addr %s326, 4
        %s328 = scalar_lea.vmem %s2, %s327
      $region36: #{stage03_fuse_forward.10} parent=23 // pred_fallthru
        _
      // Predicated region
      $region37: #{stage03_fuse_forward.10} parent=23 // pred_check
        %p329 = pneg %p132
      $region38: #{stage03_fuse_forward.10} parent=23 // pred_check_branch
        %331 = sbr.rel (%p329) target = $region40
      $region39: #{stage03_fuse_forward.10} parent=23 // pred_region
        %p332 = scmp.lt.s32.totalorder %s21, 1
        %s333 = scalar_select %p332, %s21, 1
        %p334 = scmp.lt.s32.totalorder %s22, 8
        %s335 = scalar_select %p334, %s22, 8
        %s336 = smul.addr %s335, 2
        %s337 = smul.addr %s333, 18
        %s338 = sadd.s32 %s336, %s337
        %s339 = smul.addr %s338, 4
        %s340 = scalar_lea.vmem %s3, %s339
      $region40: #{stage03_fuse_forward.10} parent=23 // pred_fallthru
        _
      // Predicated region
      $region41: #{stage03_fuse_forward.10} parent=23 // pred_check
        %p341 = pneg %p162
      $region42: #{stage03_fuse_forward.10} parent=23 // pred_check_branch
        %343 = sbr.rel (%p341) target = $region44
      $region43: #{stage03_fuse_forward.10} parent=23 // pred_region
        %s344 = sadd.s32 %s22, 1
        %p345 = scmp.lt.s32.totalorder %s21, 1
        %s346 = scalar_select %p345, %s21, 1
        %p347 = scmp.lt.s32.totalorder %s344, 8
        %s348 = scalar_select %p347, %s344, 8
        %s349 = smul.addr %s348, 2
        %s350 = smul.addr %s346, 18
        %s351 = sadd.s32 %s349, %s350
        %s352 = smul.addr %s351, 4
        %s353 = scalar_lea.vmem %s4, %s352
        %s354 = sadd.s32 %s22, 1
      $region44: #{stage03_fuse_forward.10} parent=23 // pred_fallthru
        _
      // Predicated region
      $region45: #{stage03_fuse_forward.10} parent=23 // pred_check
        %p355 = pneg %p192
      $region46: #{stage03_fuse_forward.10} parent=23 // pred_check_branch
        %357 = sbr.rel (%p355) target = $region48
      $region47: #{stage03_fuse_forward.10} parent=23 // pred_region
        %s358 = sadd.s32 %s22, 1
        %p359 = scmp.lt.s32.totalorder %s21, 1
        %s360 = scalar_select %p359, %s21, 1
        %p361 = scmp.lt.s32.totalorder %s358, 8
        %s362 = scalar_select %p361, %s358, 8
        %s363 = smul.addr %s362, 2
        %s364 = smul.addr %s360, 18
        %s365 = sadd.s32 %s363, %s364
        %s366 = smul.addr %s365, 4
        %s367 = scalar_lea.vmem %s5, %s366
        %s368 = sadd.s32 %s22, 1
      $region48: #{stage03_fuse_forward.10} parent=23 // pred_fallthru
        _
    $region24: #{stage03_fuse_forward.10} parent=5 // pred_fallthru
      _
    %p369 = scmp.le.s32.totalorder 1, %s14
    %p370 = scmp.lt.s32.totalorder %s14, 17
    %p371 = pnand %p369, %p370
    %p372 = pneg %p371
    // Predicated region
    $region49: #{stage03_fuse_forward.10} parent=5 // pred_check
      _
    $region50: #{stage03_fuse_forward.10} parent=5 // pred_check_branch
      %374 = sbr.rel (%p371) target = $region52
    $region51: #{stage03_fuse_forward.10} parent=5 // pred_region
      %s375 = ssub.s32 %s14, 1
      %p376 = scmp.lt.s32.totalorder %s23, 1
      %s377 = scalar_select %p376, %s23, 1
      %p378 = scmp.lt.s32.totalorder %s24, 8
      %s379 = scalar_select %p378, %s24, 8
      %s380 = smul.addr %s379, 2
      %s381 = smul.addr %s377, 18
      %s382 = sadd.s32 %s380, %s381
      %s383 = smul.addr %s382, 4
      %s384 = scalar_lea.vmem %s0, %s383
      %p385 = pneg %p54
      %p386 = pneg %p51
      %p387 = scmp.lt.s32.totalorder %s23, 1
      %s388 = scalar_select %p387, %s23, 1
      %p389 = scmp.lt.s32.totalorder %s24, 8
      %s390 = scalar_select %p389, %s24, 8
      %s391 = smul.addr %s390, 2
      %s392 = smul.addr %s388, 18
      %s393 = sadd.s32 %s391, %s392
      %s394 = smul.addr %s393, 4
      %s395 = scalar_lea.vmem %s1, %s394
      %p396 = pneg %p82
      %p397 = pneg %p79
      %p398 = scmp.lt.s32.totalorder %s23, 1
      %s399 = scalar_select %p398, %s23, 1
      %p400 = scmp.lt.s32.totalorder %s24, 8
      %s401 = scalar_select %p400, %s24, 8
      %s402 = smul.addr %s401, 2
      %s403 = smul.addr %s399, 18
      %s404 = sadd.s32 %s402, %s403
      %s405 = smul.addr %s404, 4
      %s406 = scalar_lea.vmem %s2, %s405
      %p407 = pneg %p110
      %p408 = pneg %p107
      %p409 = scmp.lt.s32.totalorder %s23, 1
      %s410 = scalar_select %p409, %s23, 1
      %p411 = scmp.lt.s32.totalorder %s24, 8
      %s412 = scalar_select %p411, %s24, 8
      %s413 = smul.addr %s412, 2
      %s414 = smul.addr %s410, 18
      %s415 = sadd.s32 %s413, %s414
      %s416 = smul.addr %s415, 4
      %s417 = scalar_lea.vmem %s3, %s416
      %p418 = pneg %p138
      %p419 = pneg %p135
      %s420 = sadd.s32 %s24, 1
      %p421 = scmp.lt.s32.totalorder %s23, 1
      %s422 = scalar_select %p421, %s23, 1
      %p423 = scmp.lt.s32.totalorder %s420, 8
      %s424 = scalar_select %p423, %s420, 8
      %s425 = smul.addr %s424, 2
      %s426 = smul.addr %s422, 18
      %s427 = sadd.s32 %s425, %s426
      %s428 = smul.addr %s427, 4
      %s429 = scalar_lea.vmem %s4, %s428
      %p430 = pneg %p168
      %p431 = pneg %p165
      %s432 = sadd.s32 %s24, 1
      %p433 = scmp.lt.s32.totalorder %s23, 1
      %s434 = scalar_select %p433, %s23, 1
      %p435 = scmp.lt.s32.totalorder %s432, 8
      %s436 = scalar_select %p435, %s432, 8
      %s437 = smul.addr %s436, 2
      %s438 = smul.addr %s434, 18
      %s439 = sadd.s32 %s437, %s438
      %s440 = smul.addr %s439, 4
      %s441 = scalar_lea.vmem %s5, %s440
      %p442 = pneg %p198
      %p443 = pneg %p195
      %p444 = pneg %p219
      %p445 = pneg %p216
      %p446 = pneg %p240
      %p447 = pneg %p237
      %p448 = pneg %p268
      %p449 = pneg %p265
      %p450 = scmp.lt.s32.totalorder %s23, 1
      %s451 = scalar_select %p450, %s23, 1
      %p452 = scmp.lt.s32.totalorder %s24, 7
      %s453 = scalar_select %p452, %s24, 7
      %s454 = smul.addr %s451, 8
      %s455 = sadd.s32 %s453, %s454
      %s456 = smul.addr %s455, 8
      %s457 = scalar_lea.vmem %s8, %s456
      %p458 = scmp.lt.s32.totalorder %s23, 1
      %s459 = scalar_select %p458, %s23, 1
      %p460 = scmp.lt.s32.totalorder %s24, 8
      %s461 = scalar_select %p460, %s24, 8
      %s462 = smul.addr %s461, 2
      %s463 = smul.addr %s459, 18
      %s464 = sadd.s32 %s462, %s463
      %s465 = smul.addr %s464, 4
      %s466 = scalar_lea.vmem %s0, %s465
      %p467 = scmp.lt.s32.totalorder %s23, 1
      %s468 = scalar_select %p467, %s23, 1
      %p469 = scmp.lt.s32.totalorder %s24, 8
      %s470 = scalar_select %p469, %s24, 8
      %s471 = smul.addr %s470, 2
      %s472 = smul.addr %s468, 18
      %s473 = sadd.s32 %s471, %s472
      %s474 = smul.addr %s473, 4
      %s475 = scalar_lea.vmem %s1, %s474
      %p476 = scmp.lt.s32.totalorder %s23, 1
      %s477 = scalar_select %p476, %s23, 1
      %p478 = scmp.lt.s32.totalorder %s24, 8
      %s479 = scalar_select %p478, %s24, 8
      %s480 = smul.addr %s479, 2
      %s481 = smul.addr %s477, 18
      %s482 = sadd.s32 %s480, %s481
      %s483 = smul.addr %s482, 4
      %s484 = scalar_lea.vmem %s2, %s483
      %p485 = scmp.lt.s32.totalorder %s23, 1
      %s486 = scalar_select %p485, %s23, 1
      %p487 = scmp.lt.s32.totalorder %s24, 8
      %s488 = scalar_select %p487, %s24, 8
      %s489 = smul.addr %s488, 2
      %s490 = smul.addr %s486, 18
      %s491 = sadd.s32 %s489, %s490
      %s492 = smul.addr %s491, 4
      %s493 = scalar_lea.vmem %s3, %s492
      %s494 = sadd.s32 %s24, 1
      %p495 = scmp.lt.s32.totalorder %s23, 1
      %s496 = scalar_select %p495, %s23, 1
      %p497 = scmp.lt.s32.totalorder %s494, 8
      %s498 = scalar_select %p497, %s494, 8
      %s499 = smul.addr %s498, 2
      %s500 = smul.addr %s496, 18
      %s501 = sadd.s32 %s499, %s500
      %s502 = smul.addr %s501, 4
      %s503 = scalar_lea.vmem %s4, %s502
      %s504 = sadd.s32 %s24, 1
      %s505 = sadd.s32 %s24, 1
      %p506 = scmp.lt.s32.totalorder %s23, 1
      %s507 = scalar_select %p506, %s23, 1
      %p508 = scmp.lt.s32.totalorder %s505, 8
      %s509 = scalar_select %p508, %s505, 8
      %s510 = smul.addr %s509, 2
      %s511 = smul.addr %s507, 18
      %s512 = sadd.s32 %s510, %s511
      %s513 = smul.addr %s512, 4
      %s514 = scalar_lea.vmem %s5, %s513
      %s515 = sadd.s32 %s24, 1
      %p516 = scmp.lt.s32.totalorder %s23, 1
      %s517 = scalar_select %p516, %s23, 1
      %p518 = scmp.lt.s32.totalorder %s24, 7
      %s519 = scalar_select %p518, %s24, 7
      %s520 = smul.addr %s517, 8
      %s521 = sadd.s32 %s519, %s520
      %s522 = smul.addr %s521, 8
      %s523 = scalar_lea.vmem %s8, %s522
      %v525 = vld [vmem:[%s466] sm:$0xf]
      %v526 = vld [vmem:[%s6] sm:$0xf]
      %v527 = vld [vmem:[%s6 + $0x4] sm:$0xf]
      %v528 = vld [vmem:[%s6 + $0x8] sm:$0xf]
      %v529 = vld [vmem:[%s6 + $0xc] sm:$0xf]
      %v530 = vld [vmem:[%s6 + $0x10] sm:$0xf]
      %v531 = vld [vmem:[%s6 + $0x14] sm:$0xf]
      %v532 = vld [vmem:[%s475] sm:$0xf]
      %s533 = scalar_lea.vmem %s6, 24
      %v534 = vld [vmem:[%s533] sm:$0xf]
      %v535 = vld [vmem:[%s533 + $0x4] sm:$0xf]
      %v536 = vld [vmem:[%s533 + $0x8] sm:$0xf]
      %v537 = vld [vmem:[%s533 + $0xc] sm:$0xf]
      %v538 = vld [vmem:[%s533 + $0x10] sm:$0xf]
      %v539 = vld [vmem:[%s533 + $0x14] sm:$0xf]
      %v546 = vunpack.c.l.b16 %v534
      %v547 = vunpack.c.l.b16 %v535
      %v548 = vunpack.c.l.b16 %v536
      %v549 = vunpack.c.l.b16 %v537
      %v550 = vunpack.c.l.b16 %v538
      %v551 = vunpack.c.l.b16 %v539
      %v552 = vpack.c.b16 %v547, %v546
      %v553 = vpack.c.b16 %v549, %v548
      %v554 = vpack.c.b16 %v551, %v550
      %vm558 = vcmask 392192
      %v560 = vsel %vm558, %v532, 0
      %562 = vmatpush.bf16.msra.mxu0 0
      %563 = vmatpush.bf16.msra.mxu0 0
      %564 = vmatpush.bf16.msra.mxu0 0
      %565 = vmatpush.bf16.msra.mxu0 0
      %566 = vmatpush.bf16.msra.mxu0 0
      %567 = vmatpush.bf16.msra.mxu0 %v554
      %568 = vmatpush.bf16.msra.mxu0 %v553
      %569 = vmatpush.bf16.msra.mxu0 %v552
      %570 = vmatmul.bf16.gmra.mxu0 %v560
      %v571 = vpop.f32.mrf.mxu0
      %v572 = vadd.f32 0.0, %v571
      %v573 = vpop.f32.mrf.mxu0
      %574 = vdwg.mxu0
      %v581 = vunpack.c.l.b16 %v526
      %v582 = vunpack.c.l.b16 %v527
      %v583 = vunpack.c.l.b16 %v528
      %v584 = vunpack.c.l.b16 %v529
      %v585 = vunpack.c.l.b16 %v530
      %v586 = vunpack.c.l.b16 %v531
      %v587 = vpack.c.b16 %v582, %v581
      %v588 = vpack.c.b16 %v584, %v583
      %v589 = vpack.c.b16 %v586, %v585
      %v594 = vsel %vm558, %v525, 0
      %596 = vmatpush.bf16.msra.mxu0 0
      %597 = vmatpush.bf16.msra.mxu0 0
      %598 = vmatpush.bf16.msra.mxu0 0
      %599 = vmatpush.bf16.msra.mxu0 0
      %600 = vmatpush.bf16.msra.mxu0 0
      %601 = vmatpush.bf16.msra.mxu0 %v589
      %602 = vmatpush.bf16.msra.mxu0 %v588
      %603 = vmatpush.bf16.msra.mxu0 %v587
      %604 = vmatmul.bf16.gmra.mxu0 %v594
      %v605 = vpop.f32.mrf.mxu0
      %v606 = vadd.f32 %v572, %v605
      %v607 = vpop.f32.mrf.mxu0
      %608 = vdwg.mxu0
      %v609 = vld [vmem:[%s466] sm:$0xf]
      %v610 = vld [vmem:[%s466 + $0x4] sm:$0x1]
      %s611 = scalar_lea.vmem %s6, 48
      %v612 = vld [vmem:[%s611] sm:$0xf]
      %v613 = vld [vmem:[%s611 + $0x4] sm:$0xf]
      %v614 = vld [vmem:[%s611 + $0x8] sm:$0xf]
      %v615 = vld [vmem:[%s611 + $0xc] sm:$0xf]
      %v616 = vld [vmem:[%s611 + $0x10] sm:$0xf]
      %v617 = vld [vmem:[%s611 + $0x14] sm:$0xf]
      %v620 = vunpack.c.l.b16 %v609
      %v621 = vunpack.c.l.b16 %v610
      %v622 = vpack.c.b16 %v621, %v620
      %v624 = vshrl.u32 %v622, 16
      %v626 = vshll.u32 %v622, 16
      %v628 = vrot.slane %v626, 1
      %v629 = vor.u32 %v624, %v628
      %v636 = vunpack.c.l.b16 %v612
      %v637 = vunpack.c.l.b16 %v613
      %v638 = vunpack.c.l.b16 %v614
      %v639 = vunpack.c.l.b16 %v615
      %v640 = vunpack.c.l.b16 %v616
      %v641 = vunpack.c.l.b16 %v617
      %v642 = vpack.c.b16 %v637, %v636
      %v643 = vpack.c.b16 %v639, %v638
      %v644 = vpack.c.b16 %v641, %v640
      %v649 = vsel %vm558, %v629, 0
      %651 = vmatpush.bf16.msra.mxu0 0
      %652 = vmatpush.bf16.msra.mxu0 0
      %653 = vmatpush.bf16.msra.mxu0 0
      %654 = vmatpush.bf16.msra.mxu0 0
      %655 = vmatpush.bf16.msra.mxu0 0
      %656 = vmatpush.bf16.msra.mxu0 %v644
      %657 = vmatpush.bf16.msra.mxu0 %v643
      %658 = vmatpush.bf16.msra.mxu0 %v642
      %659 = vmatmul.bf16.gmra.mxu0 %v649
      %v660 = vpop.f32.mrf.mxu0
      %v661 = vadd.f32 0.0, %v660
      %v662 = vpop.f32.mrf.mxu0
      %663 = vdwg.mxu0
      %v664 = vadd.f32 %v606, %v661
      %v665 = vld [vmem:[%s484] sm:$0xf]
      %s666 = scalar_lea.vmem %s6, 72
      %v667 = vld [vmem:[%s666] sm:$0xf]
      %v668 = vld [vmem:[%s666 + $0x4] sm:$0xf]
      %v669 = vld [vmem:[%s666 + $0x8] sm:$0xf]
      %v670 = vld [vmem:[%s666 + $0xc] sm:$0xf]
      %v671 = vld [vmem:[%s666 + $0x10] sm:$0xf]
      %v672 = vld [vmem:[%s666 + $0x14] sm:$0xf]
      %v679 = vunpack.c.l.b16 %v667
      %v680 = vunpack.c.l.b16 %v668
      %v681 = vunpack.c.l.b16 %v669
      %v682 = vunpack.c.l.b16 %v670
      %v683 = vunpack.c.l.b16 %v671
      %v684 = vunpack.c.l.b16 %v672
      %v685 = vpack.c.b16 %v680, %v679
      %v686 = vpack.c.b16 %v682, %v681
      %v687 = vpack.c.b16 %v684, %v683
      %v692 = vsel %vm558, %v665, 0
      %694 = vmatpush.bf16.msra.mxu0 0
      %695 = vmatpush.bf16.msra.mxu0 0
      %696 = vmatpush.bf16.msra.mxu0 0
      %697 = vmatpush.bf16.msra.mxu0 0
      %698 = vmatpush.bf16.msra.mxu0 0
      %699 = vmatpush.bf16.msra.mxu0 %v687
      %700 = vmatpush.bf16.msra.mxu0 %v686
      %701 = vmatpush.bf16.msra.mxu0 %v685
      %702 = vmatmul.bf16.gmra.mxu0 %v692
      %v703 = vpop.f32.mrf.mxu0
      %v704 = vadd.f32 0.0, %v703
      %v705 = vpop.f32.mrf.mxu0
      %706 = vdwg.mxu0
      %v707 = vadd.f32 %v664, %v704
      %v708 = vld [vmem:[%s493] sm:$0xf]
      %s709 = scalar_lea.vmem %s6, 96
      %v710 = vld [vmem:[%s709] sm:$0xf]
      %v711 = vld [vmem:[%s709 + $0x4] sm:$0xf]
      %v712 = vld [vmem:[%s709 + $0x8] sm:$0xf]
      %v713 = vld [vmem:[%s709 + $0xc] sm:$0xf]
      %v714 = vld [vmem:[%s709 + $0x10] sm:$0xf]
      %v715 = vld [vmem:[%s709 + $0x14] sm:$0xf]
      %v722 = vunpack.c.l.b16 %v710
      %v723 = vunpack.c.l.b16 %v711
      %v724 = vunpack.c.l.b16 %v712
      %v725 = vunpack.c.l.b16 %v713
      %v726 = vunpack.c.l.b16 %v714
      %v727 = vunpack.c.l.b16 %v715
      %v728 = vpack.c.b16 %v723, %v722
      %v729 = vpack.c.b16 %v725, %v724
      %v730 = vpack.c.b16 %v727, %v726
      %v735 = vsel %vm558, %v708, 0
      %737 = vmatpush.bf16.msra.mxu0 0
      %738 = vmatpush.bf16.msra.mxu0 0
      %739 = vmatpush.bf16.msra.mxu0 0
      %740 = vmatpush.bf16.msra.mxu0 0
      %741 = vmatpush.bf16.msra.mxu0 0
      %742 = vmatpush.bf16.msra.mxu0 %v730
      %743 = vmatpush.bf16.msra.mxu0 %v729
      %744 = vmatpush.bf16.msra.mxu0 %v728
      %745 = vmatmul.bf16.gmra.mxu0 %v735
      %v746 = vpop.f32.mrf.mxu0
      %v747 = vadd.f32 0.0, %v746
      %v748 = vpop.f32.mrf.mxu0
      %749 = vdwg.mxu0
      %v750 = vadd.f32 %v707, %v747
      %v751 = vld [vmem:[%s484] sm:$0xf]
      %v752 = vld [vmem:[%s484 + $0x4] sm:$0x1]
      %s753 = scalar_lea.vmem %s6, 120
      %v754 = vld [vmem:[%s753] sm:$0xf]
      %v755 = vld [vmem:[%s753 + $0x4] sm:$0xf]
      %v756 = vld [vmem:[%s753 + $0x8] sm:$0xf]
      %v757 = vld [vmem:[%s753 + $0xc] sm:$0xf]
      %v758 = vld [vmem:[%s753 + $0x10] sm:$0xf]
      %v759 = vld [vmem:[%s753 + $0x14] sm:$0xf]
      %v762 = vunpack.c.l.b16 %v751
      %v763 = vunpack.c.l.b16 %v752
      %v764 = vpack.c.b16 %v763, %v762
      %v766 = vshrl.u32 %v764, 16
      %v768 = vshll.u32 %v764, 16
      %v770 = vrot.slane %v768, 1
      %v771 = vor.u32 %v766, %v770
      %v778 = vunpack.c.l.b16 %v754
      %v779 = vunpack.c.l.b16 %v755
      %v780 = vunpack.c.l.b16 %v756
      %v781 = vunpack.c.l.b16 %v757
      %v782 = vunpack.c.l.b16 %v758
      %v783 = vunpack.c.l.b16 %v759
      %v784 = vpack.c.b16 %v779, %v778
      %v785 = vpack.c.b16 %v781, %v780
      %v786 = vpack.c.b16 %v783, %v782
      %v791 = vsel %vm558, %v771, 0
      %793 = vmatpush.bf16.msra.mxu0 0
      %794 = vmatpush.bf16.msra.mxu0 0
      %795 = vmatpush.bf16.msra.mxu0 0
      %796 = vmatpush.bf16.msra.mxu0 0
      %797 = vmatpush.bf16.msra.mxu0 0
      %798 = vmatpush.bf16.msra.mxu0 %v786
      %799 = vmatpush.bf16.msra.mxu0 %v785
      %800 = vmatpush.bf16.msra.mxu0 %v784
      %801 = vmatmul.bf16.gmra.mxu0 %v791
      %v802 = vpop.f32.mrf.mxu0
      %v803 = vadd.f32 0.0, %v802
      %v804 = vpop.f32.mrf.mxu0
      %805 = vdwg.mxu0
      %v806 = vadd.f32 %v750, %v803
      %v807 = vld [vmem:[%s503] sm:$0xf]
      %s808 = scalar_lea.vmem %s6, 144
      %v809 = vld [vmem:[%s808] sm:$0xf]
      %v810 = vld [vmem:[%s808 + $0x4] sm:$0xf]
      %v811 = vld [vmem:[%s808 + $0x8] sm:$0xf]
      %v812 = vld [vmem:[%s808 + $0xc] sm:$0xf]
      %v813 = vld [vmem:[%s808 + $0x10] sm:$0xf]
      %v814 = vld [vmem:[%s808 + $0x14] sm:$0xf]
      %v821 = vunpack.c.l.b16 %v809
      %v822 = vunpack.c.l.b16 %v810
      %v823 = vunpack.c.l.b16 %v811
      %v824 = vunpack.c.l.b16 %v812
      %v825 = vunpack.c.l.b16 %v813
      %v826 = vunpack.c.l.b16 %v814
      %v827 = vpack.c.b16 %v822, %v821
      %v828 = vpack.c.b16 %v824, %v823
      %v829 = vpack.c.b16 %v826, %v825
      %v834 = vsel %vm558, %v807, 0
      %836 = vmatpush.bf16.msra.mxu0 0
      %837 = vmatpush.bf16.msra.mxu0 0
      %838 = vmatpush.bf16.msra.mxu0 0
      %839 = vmatpush.bf16.msra.mxu0 0
      %840 = vmatpush.bf16.msra.mxu0 0
      %841 = vmatpush.bf16.msra.mxu0 %v829
      %842 = vmatpush.bf16.msra.mxu0 %v828
      %843 = vmatpush.bf16.msra.mxu0 %v827
      %844 = vmatmul.bf16.gmra.mxu0 %v834
      %v845 = vpop.f32.mrf.mxu0
      %v846 = vadd.f32 0.0, %v845
      %v847 = vpop.f32.mrf.mxu0
      %848 = vdwg.mxu0
      %v849 = vadd.f32 %v806, %v846
      %v850 = vld [vmem:[%s514] sm:$0xf]
      %s851 = scalar_lea.vmem %s6, 168
      %v852 = vld [vmem:[%s851] sm:$0xf]
      %v853 = vld [vmem:[%s851 + $0x4] sm:$0xf]
      %v854 = vld [vmem:[%s851 + $0x8] sm:$0xf]
      %v855 = vld [vmem:[%s851 + $0xc] sm:$0xf]
      %v856 = vld [vmem:[%s851 + $0x10] sm:$0xf]
      %v857 = vld [vmem:[%s851 + $0x14] sm:$0xf]
      %v864 = vunpack.c.l.b16 %v852
      %v865 = vunpack.c.l.b16 %v853
      %v866 = vunpack.c.l.b16 %v854
      %v867 = vunpack.c.l.b16 %v855
      %v868 = vunpack.c.l.b16 %v856
      %v869 = vunpack.c.l.b16 %v857
      %v870 = vpack.c.b16 %v865, %v864
      %v871 = vpack.c.b16 %v867, %v866
      %v872 = vpack.c.b16 %v869, %v868
      %v877 = vsel %vm558, %v850, 0
      %879 = vmatpush.bf16.msra.mxu0 0
      %880 = vmatpush.bf16.msra.mxu0 0
      %881 = vmatpush.bf16.msra.mxu0 0
      %882 = vmatpush.bf16.msra.mxu0 0
      %883 = vmatpush.bf16.msra.mxu0 0
      %884 = vmatpush.bf16.msra.mxu0 %v872
      %885 = vmatpush.bf16.msra.mxu0 %v871
      %886 = vmatpush.bf16.msra.mxu0 %v870
      %887 = vmatmul.bf16.gmra.mxu0 %v877
      %v888 = vpop.f32.mrf.mxu0
      %v889 = vadd.f32 0.0, %v888
      %v890 = vpop.f32.mrf.mxu0
      %891 = vdwg.mxu0
      %v892 = vadd.f32 %v849, %v889
      %v893 = vld [vmem:[%s503] sm:$0xf]
      %v894 = vld [vmem:[%s503 + $0x4] sm:$0x1]
      %s895 = scalar_lea.vmem %s6, 192
      %v896 = vld [vmem:[%s895] sm:$0xf]
      %v897 = vld [vmem:[%s895 + $0x4] sm:$0xf]
      %v898 = vld [vmem:[%s895 + $0x8] sm:$0xf]
      %v899 = vld [vmem:[%s895 + $0xc] sm:$0xf]
      %v900 = vld [vmem:[%s895 + $0x10] sm:$0xf]
      %v901 = vld [vmem:[%s895 + $0x14] sm:$0xf]
      %v904 = vunpack.c.l.b16 %v893
      %v905 = vunpack.c.l.b16 %v894
      %v906 = vpack.c.b16 %v905, %v904
      %v908 = vshrl.u32 %v906, 16
      %v910 = vshll.u32 %v906, 16
      %v912 = vrot.slane %v910, 1
      %v913 = vor.u32 %v908, %v912
      %v920 = vunpack.c.l.b16 %v896
      %v921 = vunpack.c.l.b16 %v897
      %v922 = vunpack.c.l.b16 %v898
      %v923 = vunpack.c.l.b16 %v899
      %v924 = vunpack.c.l.b16 %v900
      %v925 = vunpack.c.l.b16 %v901
      %v926 = vpack.c.b16 %v921, %v920
      %v927 = vpack.c.b16 %v923, %v922
      %v928 = vpack.c.b16 %v925, %v924
      %v933 = vsel %vm558, %v913, 0
      %935 = vmatpush.bf16.msra.mxu0 0
      %936 = vmatpush.bf16.msra.mxu0 0
      %937 = vmatpush.bf16.msra.mxu0 0
      %938 = vmatpush.bf16.msra.mxu0 0
      %939 = vmatpush.bf16.msra.mxu0 0
      %940 = vmatpush.bf16.msra.mxu0 %v928
      %941 = vmatpush.bf16.msra.mxu0 %v927
      %942 = vmatpush.bf16.msra.mxu0 %v926
      %943 = vmatmul.bf16.gmra.mxu0 %v933
      %v944 = vpop.f32.mrf.mxu0
      %v945 = vadd.f32 0.0, %v944
      %v946 = vpop.f32.mrf.mxu0
      %947 = vdwg.mxu0
      %v948 = vadd.f32 %v892, %v945
      %v949 = vld [vmem:[%s7] sm:$0x1]
      %v951 = vperm.slane %v949, 0
      %v953 = vadd.f32 %v948, %v951
      %v954 = vmax.f32 %v953, 0.0
      %955 = vst.msk [vmem:[%s523] sm:$0xff] %vm558, %v954
      %p956 = scmp.lt.s32.totalorder %s23, 1
      %s957 = scalar_select %p956, %s23, 1
      %p958 = scmp.lt.s32.totalorder %s24, 7
      %s959 = scalar_select %p958, %s24, 7
      %s960 = smul.addr %s957, 8
      %s961 = sadd.s32 %s959, %s960
      %s962 = smul.addr %s961, 8
      %s963 = scalar_lea.vmem %s8, %s962
      // Predicated region
      $region53: #{stage03_fuse_forward.10} parent=51 // pred_check
        %p964 = pneg %p265
      $region54: #{stage03_fuse_forward.10} parent=51 // pred_check_branch
        %966 = sbr.rel (%p964) target = $region56
      $region55: #{stage03_fuse_forward.10} parent=51 // pred_region
        _
      $region56: #{stage03_fuse_forward.10} parent=51 // pred_fallthru
        _
    $region52: #{stage03_fuse_forward.10} parent=5 // pred_fallthru
      _
    %p967 = scmp.le.s32.totalorder 2, %s14
    // Predicated region
    $region57: #{stage03_fuse_forward.10} parent=5 // pred_check
      %p968 = pneg %p967
    $region58: #{stage03_fuse_forward.10} parent=5 // pred_check_branch
      %970 = sbr.rel (%p968) target = $region60
    $region59: #{stage03_fuse_forward.10} parent=5 // pred_region
      %s971 = ssub.s32 %s14, 2
      // Predicated region
      $region61: #{stage03_fuse_forward.10} parent=59 // pred_check
        %p972 = pneg %p271
      $region62: #{stage03_fuse_forward.10} parent=59 // pred_check_branch
        %974 = sbr.rel (%p972) target = $region64
      $region63: #{stage03_fuse_forward.10} parent=59 // pred_region
        %p975 = scmp.lt.s32.totalorder %s25, 1
        %s976 = scalar_select %p975, %s25, 1
        %p977 = scmp.lt.s32.totalorder %s26, 7
        %s978 = scalar_select %p977, %s26, 7
        %s979 = smul.addr %s976, 8
        %s980 = sadd.s32 %s978, %s979
        %s981 = smul.addr %s980, 8
        %s982 = scalar_lea.vmem %s8, %s981
      $region64: #{stage03_fuse_forward.10} parent=59 // pred_fallthru
        _
    $region60: #{stage03_fuse_forward.10} parent=5 // pred_fallthru
      _
  $region6: #{stage03_fuse_forward.10} parent=0 // loop_footer
    %s18 = sadd.s32 1, %s14
  $region7: #{stage03_fuse_forward.10} parent=0 // loop_footer_branch
    %13 = sbr.rel target = $region3
  $region8: #{stage03_fuse_forward.10} parent=0 // loop_exit
    _

// kernel: stage03_fuse_forward.7
$region0: #{stage03_fuse_forward.7}
  #allocation0 [shape = 'u32[]', space=smem, size = 0x4, offset = 0x4, fixed_abs, tag = 'smem constant byte address 0x4 - core index']
  #allocation1 [shape = 'u32[72,128]{1,0:T(1,128)}', space=vmem, size = 0x9000, scoped, tag = 'internal scratch']
  %s0 = inlined_call_operand.vmem [shape: bf16[32,192], index: 0, kind: input, shape index: {}]
  %s1 = inlined_call_operand.vmem [shape: bf16[192,144], index: 1, kind: input, shape index: {}]
  %s2 = inlined_call_operand.vmem [shape: f32[1,144], index: 2, kind: input, shape index: {}]
  %s3 = inlined_call_operand.vmem [shape: f32[32,144], index: 3, kind: output, shape index: {}]
  %s4 = sld [smem:[#allocation0]]
  $region22: #{stage03_fuse_forward.7} parent=0
    _
  %s6 = ssub.s32 1, %s4
  %s7 = scalar_select 0, %s6, %s4
  // Predicated region
  $region2: #{stage03_fuse_forward.7} parent=0 // pred_check
    _
  $region3: #{stage03_fuse_forward.7} parent=0 // pred_check_branch
    %9 = sbr.rel (0) target = $region5
  $region4: #{stage03_fuse_forward.7} parent=0 // pred_region
    _
  $region5: #{stage03_fuse_forward.7} parent=0 // pred_fallthru
    _
  // Predicated region
  $region6: #{stage03_fuse_forward.7} parent=0 // pred_check
    _
  $region7: #{stage03_fuse_forward.7} parent=0 // pred_check_branch
    %11 = sbr.rel (0) target = $region9
  $region8: #{stage03_fuse_forward.7} parent=0 // pred_region
    _
  $region9: #{stage03_fuse_forward.7} parent=0 // pred_fallthru
    _
  // Predicated region
  $region10: #{stage03_fuse_forward.7} parent=0 // pred_check
    _
  $region11: #{stage03_fuse_forward.7} parent=0 // pred_check_branch
    %13 = sbr.rel (0) target = $region13
  $region12: #{stage03_fuse_forward.7} parent=0 // pred_region
    _
  $region13: #{stage03_fuse_forward.7} parent=0 // pred_fallthru
    _
  %v15 = vld [vmem:[%s0] sm:$0xff]
  %v16 = vld [vmem:[%s0 + $0x8] sm:$0xff]
  %v17 = vld [vmem:[%s0 + $0x10] sm:$0xff]
  %v18 = vld [vmem:[%s0 + $0x18] sm:$0xff]
  %v19 = vld [vmem:[%s1] sm:$0xff]
  %v20 = vld [vmem:[%s1 + $0x8] sm:$0xff]
  %v21 = vld [vmem:[%s1 + $0x10] sm:$0xff]
  %v22 = vld [vmem:[%s1 + $0x18] sm:$0xff]
  %v23 = vld [vmem:[%s1 + $0x20] sm:$0xff]
  %v24 = vld [vmem:[%s1 + $0x28] sm:$0xff]
  %v25 = vld [vmem:[%s1 + $0x30] sm:$0xff]
  %v26 = vld [vmem:[%s1 + $0x38] sm:$0xff]
  %v27 = vld [vmem:[%s1 + $0x40] sm:$0xff]
  %v28 = vld [vmem:[%s1 + $0x48] sm:$0xff]
  %v29 = vld [vmem:[%s1 + $0x50] sm:$0xff]
  %v30 = vld [vmem:[%s1 + $0x58] sm:$0xff]
  %v31 = vld [vmem:[%s1 + $0x60] sm:$0xff]
  %v32 = vld [vmem:[%s1 + $0x68] sm:$0xff]
  %v33 = vld [vmem:[%s1 + $0x70] sm:$0xff]
  %v34 = vld [vmem:[%s1 + $0x78] sm:$0xff]
  %v35 = vld [vmem:[%s1 + $0x80] sm:$0xff]
  %v36 = vld [vmem:[%s1 + $0x88] sm:$0xff]
  %v37 = vld [vmem:[%s1 + $0x90] sm:$0xff]
  %v38 = vld [vmem:[%s1 + $0x98] sm:$0xff]
  %v39 = vld [vmem:[%s1 + $0xa0] sm:$0xff]
  %v40 = vld [vmem:[%s1 + $0xa8] sm:$0xff]
  %v41 = vld [vmem:[%s1 + $0xb0] sm:$0xff]
  %v42 = vld [vmem:[%s1 + $0xb8] sm:$0xff]
  %v43 = vld [vmem:[%s2] sm:$0x3]
  %v45 = vperm.slane %v43, 0
  %v46 = vperm.slane %v43, 1
  %v53 = vunpack.c.l.b16 %v15
  %v54 = vunpack.c.h.b16 %v15
  %v55 = vunpack.c.l.b16 %v16
  %v56 = vunpack.c.h.b16 %v16
  %v57 = vunpack.c.l.b16 %v17
  %v58 = vunpack.c.h.b16 %v17
  %v59 = vunpack.c.l.b16 %v18
  %v60 = vunpack.c.h.b16 %v18
  %v61 = vpack.c.b16 %v55, %v53
  %v62 = vpack.c.b16 %v56, %v54
  %v63 = vpack.c.b16 %v59, %v57
  %v64 = vpack.c.b16 %v60, %v58
  %v91 = vunpack.c.l.b16 %v19
  %v92 = vunpack.c.h.b16 %v19
  %v93 = vunpack.c.l.b16 %v20
  %v94 = vunpack.c.h.b16 %v20
  %v95 = vunpack.c.l.b16 %v21
  %v96 = vunpack.c.h.b16 %v21
  %v97 = vunpack.c.l.b16 %v22
  %v98 = vunpack.c.h.b16 %v22
  %v99 = vunpack.c.l.b16 %v23
  %v100 = vunpack.c.h.b16 %v23
  %v101 = vunpack.c.l.b16 %v24
  %v102 = vunpack.c.h.b16 %v24
  %v103 = vunpack.c.l.b16 %v25
  %v104 = vunpack.c.h.b16 %v25
  %v105 = vunpack.c.l.b16 %v26
  %v106 = vunpack.c.h.b16 %v26
  %v107 = vunpack.c.l.b16 %v27
  %v108 = vunpack.c.h.b16 %v27
  %v109 = vunpack.c.l.b16 %v28
  %v110 = vunpack.c.h.b16 %v28
  %v111 = vunpack.c.l.b16 %v29
  %v112 = vunpack.c.h.b16 %v29
  %v113 = vunpack.c.l.b16 %v30
  %v114 = vunpack.c.h.b16 %v30
  %v115 = vunpack.c.l.b16 %v31
  %v116 = vunpack.c.h.b16 %v31
  %v117 = vunpack.c.l.b16 %v32
  %v118 = vunpack.c.h.b16 %v32
  %v119 = vunpack.c.l.b16 %v33
  %v120 = vunpack.c.h.b16 %v33
  %v121 = vunpack.c.l.b16 %v34
  %v122 = vunpack.c.h.b16 %v34
  %v123 = vunpack.c.l.b16 %v35
  %v124 = vunpack.c.h.b16 %v35
  %v125 = vunpack.c.l.b16 %v36
  %v126 = vunpack.c.h.b16 %v36
  %v127 = vunpack.c.l.b16 %v37
  %v128 = vunpack.c.h.b16 %v37
  %v129 = vunpack.c.l.b16 %v38
  %v130 = vunpack.c.h.b16 %v38
  %v131 = vunpack.c.l.b16 %v39
  %v132 = vunpack.c.h.b16 %v39
  %v133 = vunpack.c.l.b16 %v40
  %v134 = vunpack.c.h.b16 %v40
  %v135 = vunpack.c.l.b16 %v41
  %v136 = vunpack.c.h.b16 %v41
  %v137 = vunpack.c.l.b16 %v42
  %v138 = vunpack.c.h.b16 %v42
  %v139 = vpack.c.b16 %v93, %v91
  %v140 = vpack.c.b16 %v94, %v92
  %v141 = vpack.c.b16 %v97, %v95
  %v142 = vpack.c.b16 %v98, %v96
  %v143 = vpack.c.b16 %v101, %v99
  %v144 = vpack.c.b16 %v102, %v100
  %v145 = vpack.c.b16 %v105, %v103
  %v146 = vpack.c.b16 %v106, %v104
  %v147 = vpack.c.b16 %v109, %v107
  %v148 = vpack.c.b16 %v110, %v108
  %v149 = vpack.c.b16 %v113, %v111
  %v150 = vpack.c.b16 %v114, %v112
  %v151 = vpack.c.b16 %v117, %v115
  %v152 = vpack.c.b16 %v118, %v116
  %v153 = vpack.c.b16 %v121, %v119
  %v154 = vpack.c.b16 %v122, %v120
  %v155 = vpack.c.b16 %v125, %v123
  %v156 = vpack.c.b16 %v126, %v124
  %v157 = vpack.c.b16 %v129, %v127
  %v158 = vpack.c.b16 %v130, %v128
  %v159 = vpack.c.b16 %v133, %v131
  %v160 = vpack.c.b16 %v134, %v132
  %v161 = vpack.c.b16 %v137, %v135
  %v162 = vpack.c.b16 %v138, %v136
  %vm187 = vcmask 523264
  %v189 = vsel %vm187, %v62, 0
  %v192 = vsel %vm187, %v64, 0
  %194 = vmatpush.bf16.msra.mxu0 %v153
  %195 = vmatpush.bf16.msra.mxu0 %v151
  %196 = vmatpush.bf16.msra.mxu0 %v149
  %197 = vmatpush.bf16.msra.mxu0 %v147
  %198 = vmatpush.bf16.msra.mxu0 %v145
  %199 = vmatpush.bf16.msra.mxu0 %v143
  %200 = vmatpush.bf16.msra.mxu0 %v141
  %201 = vmatpush.bf16.msra.mxu0 %v139
  %202 = vmatmul.bf16.gmra.mxu0 %v61
  %v203 = vpop.f32.mrf.mxu0
  %v204 = vadd.f32 %v45, %v203
  %v205 = vpop.f32.mrf.mxu0
  %v206 = vadd.f32 %v45, %v205
  %207 = vmatmul.bf16.gmra.mxu0 %v63
  %v208 = vpop.f32.mrf.mxu0
  %v209 = vadd.f32 %v45, %v208
  %v210 = vpop.f32.mrf.mxu0
  %v211 = vadd.f32 %v45, %v210
  %212 = vdwg.mxu0
  %213 = vmatpush.bf16.msra.mxu0 0
  %214 = vmatpush.bf16.msra.mxu0 0
  %215 = vmatpush.bf16.msra.mxu0 0
  %216 = vmatpush.bf16.msra.mxu0 0
  %217 = vmatpush.bf16.msra.mxu0 %v161
  %218 = vmatpush.bf16.msra.mxu0 %v159
  %219 = vmatpush.bf16.msra.mxu0 %v157
  %220 = vmatpush.bf16.msra.mxu0 %v155
  %221 = vmatmul.bf16.gmra.mxu0 %v189
  %v222 = vpop.f32.mrf.mxu0
  %v223 = vadd.f32 %v204, %v222
  %v224 = vpop.f32.mrf.mxu0
  %v225 = vadd.f32 %v206, %v224
  %226 = vmatmul.bf16.gmra.mxu0 %v192
  %v227 = vpop.f32.mrf.mxu0
  %v228 = vadd.f32 %v209, %v227
  %v229 = vpop.f32.mrf.mxu0
  %v230 = vadd.f32 %v211, %v229
  %231 = vdwg.mxu0
  %232 = vmatpush.bf16.msra.mxu0 %v154
  %233 = vmatpush.bf16.msra.mxu0 %v152
  %234 = vmatpush.bf16.msra.mxu0 %v150
  %235 = vmatpush.bf16.msra.mxu0 %v148
  %236 = vmatpush.bf16.msra.mxu0 %v146
  %237 = vmatpush.bf16.msra.mxu0 %v144
  %238 = vmatpush.bf16.msra.mxu0 %v142
  %239 = vmatpush.bf16.msra.mxu0 %v140
  %240 = vmatmul.bf16.gmra.mxu0 %v61
  %v241 = vpop.f32.mrf.mxu0
  %v242 = vadd.f32 %v46, %v241
  %v243 = vpop.f32.mrf.mxu0
  %v244 = vadd.f32 %v46, %v243
  %245 = vmatmul.bf16.gmra.mxu0 %v63
  %v246 = vpop.f32.mrf.mxu0
  %v247 = vadd.f32 %v46, %v246
  %v248 = vpop.f32.mrf.mxu0
  %v249 = vadd.f32 %v46, %v248
  %250 = vdwg.mxu0
  %251 = vmatpush.bf16.msra.mxu0 0
  %252 = vmatpush.bf16.msra.mxu0 0
  %253 = vmatpush.bf16.msra.mxu0 0
  %254 = vmatpush.bf16.msra.mxu0 0
  %255 = vmatpush.bf16.msra.mxu0 %v162
  %256 = vmatpush.bf16.msra.mxu0 %v160
  %257 = vmatpush.bf16.msra.mxu0 %v158
  %258 = vmatpush.bf16.msra.mxu0 %v156
  %259 = vmatmul.bf16.gmra.mxu0 %v189
  %v260 = vpop.f32.mrf.mxu0
  %v261 = vadd.f32 %v242, %v260
  %v262 = vpop.f32.mrf.mxu0
  %v263 = vadd.f32 %v244, %v262
  %264 = vmatmul.bf16.gmra.mxu0 %v192
  %v265 = vpop.f32.mrf.mxu0
  %v266 = vadd.f32 %v247, %v265
  %v267 = vpop.f32.mrf.mxu0
  %v268 = vadd.f32 %v249, %v267
  %269 = vdwg.mxu0
  %270 = vst [vmem:[%s3] sm:$0xff] %v223
  %vm271 = vcmask 130048
  %272 = vst.msk [vmem:[%s3 + $0x8] sm:$0xff] %vm271, %v261
  %273 = vst [vmem:[%s3 + $0x10] sm:$0xff] %v225
  %274 = vst.msk [vmem:[%s3 + $0x18] sm:$0xff] %vm271, %v263
  %275 = vst [vmem:[%s3 + $0x20] sm:$0xff] %v228
  %276 = vst.msk [vmem:[%s3 + $0x28] sm:$0xff] %vm271, %v266
  %277 = vst [vmem:[%s3 + $0x30] sm:$0xff] %v230
  %278 = vst.msk [vmem:[%s3 + $0x38] sm:$0xff] %vm271, %v268
  // Predicated region
  $region14: #{stage03_fuse_forward.7} parent=0 // pred_check
    _
  $region15: #{stage03_fuse_forward.7} parent=0 // pred_check_branch
    %280 = sbr.rel (0) target = $region17
  $region16: #{stage03_fuse_forward.7} parent=0 // pred_region
    _
  $region17: #{stage03_fuse_forward.7} parent=0 // pred_fallthru
    _
  // Predicated region
  $region18: #{stage03_fuse_forward.7} parent=0 // pred_check
    _
  $region19: #{stage03_fuse_forward.7} parent=0 // pred_check_branch
    %282 = sbr.rel (0) target = $region21
  $region20: #{stage03_fuse_forward.7} parent=0 // pred_region
    _
  $region21: #{stage03_fuse_forward.7} parent=0 // pred_fallthru
    _

// kernel: stage03_fuse_forward.9
$region0: #{stage03_fuse_forward.9}
  #allocation0 [shape = 'u32[]', space=smem, size = 0x4, offset = 0x4, fixed_abs, tag = 'smem constant byte address 0x4 - core index']
  #allocation1 [shape = 'u32[72,128]{1,0:T(1,128)}', space=vmem, size = 0x9000, scoped, tag = 'internal scratch']
  %s0 = inlined_call_operand.vmem [shape: bf16[2,5,5,96], index: 0, kind: input, shape index: {}, may-alias: {0,4}]
  %s1 = inlined_call_operand.vmem [shape: bf16[2,5,5,96], index: 1, kind: input, shape index: {}, may-alias: {1,5}]
  %s2 = inlined_call_operand.vmem [shape: bf16[2,5,5,96], index: 2, kind: input, shape index: {}]
  %s3 = inlined_call_operand.vmem [shape: bf16[2,5,5,96], index: 3, kind: input, shape index: {}]
  %s4 = inlined_call_operand.vmem [shape: bf16[2,5,5,96], index: 4, kind: input, shape index: {}, may-alias: {0,4}]
  %s5 = inlined_call_operand.vmem [shape: bf16[2,5,5,96], index: 5, kind: input, shape index: {}, may-alias: {1,5}]
  %s6 = inlined_call_operand.vmem [shape: bf16[9,96,192], index: 6, kind: input, shape index: {}]
  %s7 = inlined_call_operand.vmem [shape: f32[1,192], index: 7, kind: input, shape index: {}]
  %s8 = inlined_call_operand.vmem [shape: f32[2,4,4,192], index: 8, kind: output, shape index: {}]
  %s9 = sld [smem:[#allocation0]]
  $region65: #{stage03_fuse_forward.9} parent=0
    _
  %s11 = ssub.s32 1, %s9
  %s12 = scalar_select 0, %s11, %s9
  loop: start=0, step=1, limit=10
  $region2: #{stage03_fuse_forward.9} parent=0 // loop_pre_header
    _
  $region3: #{stage03_fuse_forward.9} parent=0 // loop_header
    %s14 = sphi 0, %s18
    %p15 = scmp.ge.s32.totalorder %s14, 10
    %s21 = sphi 0, %s33
    %s22 = sphi 0, %s29
    %s23 = sphi 0, %s21
    %s24 = sphi 0, %s22
    %s25 = sphi 0, %s23
    %s26 = sphi 0, %s24
    %s38 = sphi 0, %s40
    %s41 = sphi 0, %s38
    %s42 = sphi 0, %s41
    %s58 = sphi 0, %s42
    %s66 = sphi 0, %s68
    %s69 = sphi 0, %s66
    %s70 = sphi 0, %s69
    %s86 = sphi 0, %s70
    %s94 = sphi 0, %s96
    %s97 = sphi 0, %s94
    %s98 = sphi 0, %s97
    %s114 = sphi 0, %s98
    %s122 = sphi 0, %s124
    %s125 = sphi 0, %s122
    %s126 = sphi 0, %s125
    %s142 = sphi 0, %s126
    %s152 = sphi 0, %s154
    %s155 = sphi 0, %s152
    %s156 = sphi 0, %s155
    %s172 = sphi 0, %s156
    %s182 = sphi 0, %s184
    %s185 = sphi 0, %s182
    %s186 = sphi 0, %s185
    %s202 = sphi 0, %s186
    %s206 = sphi 0, %s206
    %s208 = sphi 0, %s206
    %s209 = sphi 0, %s208
    %s223 = sphi 0, %s209
    %s227 = sphi 0, %s227
    %s229 = sphi 0, %s227
    %s230 = sphi 0, %s229
    %s244 = sphi 0, %s230
    %s252 = sphi 0, %s254
    %s255 = sphi 0, %s252
    %s256 = sphi 0, %s255
    %s272 = sphi 0, %s256
  $region4: #{stage03_fuse_forward.9} parent=0 // loop_header_branch
    %17 = sbr.rel (%p15) target = $region8
  $region5: #{stage03_fuse_forward.9} parent=0 // loop_body
    %s19 = ssub.s32 %s14, 1
    %s20 = ssub.s32 %s14, 2
    %s27 = sadd.s32 1, %s22
    %p28 = scmp.ge.s32.totalorder %s27, 4
    %s29 = scalar_select %p28, 0, %s27
    %s30 = sadd.s32 1, %s21
    %s31 = scalar_select %p28, %s30, %s21
    %p32 = scmp.ge.s32.totalorder %s31, 2
    %s33 = scalar_select %p32, 0, %s31
    %s34 = ssub.s32 %s21, %s33
    %s35 = ssub.s32 %s22, %s29
    %s36 = sor.u32 %s34, %s35
    %p37 = scmp.eq.s32.totalorder %s36, 0
    %s39 = sadd.s32 %s38, 1
    %s40 = scalar_select %p37, %s38, %s39
    %p43 = pneg %p37
    %p44 = scmp.eq.s32.totalorder %s14, 7
    %p45 = por %p43, %p44
    %p46 = scmp.ne.s32.totalorder %s38, %s41
    %p47 = scmp.eq.s32.totalorder %s14, 0
    %p48 = por %p46, %p47
    %p49 = scmp.ne.s32.totalorder %s38, %s41
    %p50 = scmp.eq.s32.totalorder %s19, 7
    %p51 = por %p49, %p50
    %p52 = scmp.ne.s32.totalorder %s41, %s42
    %p53 = scmp.eq.s32.totalorder %s19, 0
    %p54 = por %p52, %p53
    %p55 = scmp.ne.s32.totalorder %s41, %s42
    %p56 = scmp.eq.s32.totalorder %s20, 7
    %p57 = por %p55, %p56
    %p59 = scmp.ne.s32.totalorder %s42, %s58
    %p60 = scmp.eq.s32.totalorder %s20, 0
    %p61 = por %p59, %p60
    %s62 = ssub.s32 %s21, %s33
    %s63 = ssub.s32 %s22, %s29
    %s64 = sor.u32 %s62, %s63
    %p65 = scmp.eq.s32.totalorder %s64, 0
    %s67 = sadd.s32 %s66, 1
    %s68 = scalar_select %p65, %s66, %s67
    %p71 = pneg %p65
    %p72 = scmp.eq.s32.totalorder %s14, 7
    %p73 = por %p71, %p72
    %p74 = scmp.ne.s32.totalorder %s66, %s69
    %p75 = scmp.eq.s32.totalorder %s14, 0
    %p76 = por %p74, %p75
    %p77 = scmp.ne.s32.totalorder %s66, %s69
    %p78 = scmp.eq.s32.totalorder %s19, 7
    %p79 = por %p77, %p78
    %p80 = scmp.ne.s32.totalorder %s69, %s70
    %p81 = scmp.eq.s32.totalorder %s19, 0
    %p82 = por %p80, %p81
    %p83 = scmp.ne.s32.totalorder %s69, %s70
    %p84 = scmp.eq.s32.totalorder %s20, 7
    %p85 = por %p83, %p84
    %p87 = scmp.ne.s32.totalorder %s70, %s86
    %p88 = scmp.eq.s32.totalorder %s20, 0
    %p89 = por %p87, %p88
    %s90 = ssub.s32 %s21, %s33
    %s91 = ssub.s32 %s22, %s29
    %s92 = sor.u32 %s90, %s91
    %p93 = scmp.eq.s32.totalorder %s92, 0
    %s95 = sadd.s32 %s94, 1
    %s96 = scalar_select %p93, %s94, %s95
    %p99 = pneg %p93
    %p100 = scmp.eq.s32.totalorder %s14, 7
    %p101 = por %p99, %p100
    %p102 = scmp.ne.s32.totalorder %s94, %s97
    %p103 = scmp.eq.s32.totalorder %s14, 0
    %p104 = por %p102, %p103
    %p105 = scmp.ne.s32.totalorder %s94, %s97
    %p106 = scmp.eq.s32.totalorder %s19, 7
    %p107 = por %p105, %p106
    %p108 = scmp.ne.s32.totalorder %s97, %s98
    %p109 = scmp.eq.s32.totalorder %s19, 0
    %p110 = por %p108, %p109
    %p111 = scmp.ne.s32.totalorder %s97, %s98
    %p112 = scmp.eq.s32.totalorder %s20, 7
    %p113 = por %p111, %p112
    %p115 = scmp.ne.s32.totalorder %s98, %s114
    %p116 = scmp.eq.s32.totalorder %s20, 0
    %p117 = por %p115, %p116
    %s118 = ssub.s32 %s21, %s33
    %s119 = ssub.s32 %s22, %s29
    %s120 = sor.u32 %s118, %s119
    %p121 = scmp.eq.s32.totalorder %s120, 0
    %s123 = sadd.s32 %s122, 1
    %s124 = scalar_select %p121, %s122, %s123
    %p127 = pneg %p121
    %p128 = scmp.eq.s32.totalorder %s14, 7
    %p129 = por %p127, %p128
    %p130 = scmp.ne.s32.totalorder %s122, %s125
    %p131 = scmp.eq.s32.totalorder %s14, 0
    %p132 = por %p130, %p131
    %p133 = scmp.ne.s32.totalorder %s122, %s125
    %p134 = scmp.eq.s32.totalorder %s19, 7
    %p135 = por %p133, %p134
    %p136 = scmp.ne.s32.totalorder %s125, %s126
    %p137 = scmp.eq.s32.totalorder %s19, 0
    %p138 = por %p136, %p137
    %p139 = scmp.ne.s32.totalorder %s125, %s126
    %p140 = scmp.eq.s32.totalorder %s20, 7
    %p141 = por %p139, %p140
    %p143 = scmp.ne.s32.totalorder %s126, %s142
    %p144 = scmp.eq.s32.totalorder %s20, 0
    %p145 = por %p143, %p144
    %s146 = sadd.s32 %s22, 1
    %s147 = sadd.s32 %s29, 1
    %s148 = ssub.s32 %s21, %s33
    %s149 = ssub.s32 %s146, %s147
    %s150 = sor.u32 %s148, %s149
    %p151 = scmp.eq.s32.totalorder %s150, 0
    %s153 = sadd.s32 %s152, 1
    %s154 = scalar_select %p151, %s152, %s153
    %p157 = pneg %p151
    %p158 = scmp.eq.s32.totalorder %s14, 7
    %p159 = por %p157, %p158
    %p160 = scmp.ne.s32.totalorder %s152, %s155
    %p161 = scmp.eq.s32.totalorder %s14, 0
    %p162 = por %p160, %p161
    %p163 = scmp.ne.s32.totalorder %s152, %s155
    %p164 = scmp.eq.s32.totalorder %s19, 7
    %p165 = por %p163, %p164
    %p166 = scmp.ne.s32.totalorder %s155, %s156
    %p167 = scmp.eq.s32.totalorder %s19, 0
    %p168 = por %p166, %p167
    %p169 = scmp.ne.s32.totalorder %s155, %s156
    %p170 = scmp.eq.s32.totalorder %s20, 7
    %p171 = por %p169, %p170
    %p173 = scmp.ne.s32.totalorder %s156, %s172
    %p174 = scmp.eq.s32.totalorder %s20, 0
    %p175 = por %p173, %p174
    %s176 = sadd.s32 %s22, 1
    %s177 = sadd.s32 %s29, 1
    %s178 = ssub.s32 %s21, %s33
    %s179 = ssub.s32 %s176, %s177
    %s180 = sor.u32 %s178, %s179
    %p181 = scmp.eq.s32.totalorder %s180, 0
    %s183 = sadd.s32 %s182, 1
    %s184 = scalar_select %p181, %s182, %s183
    %p187 = pneg %p181
    %p188 = scmp.eq.s32.totalorder %s14, 7
    %p189 = por %p187, %p188
    %p190 = scmp.ne.s32.totalorder %s182, %s185
    %p191 = scmp.eq.s32.totalorder %s14, 0
    %p192 = por %p190, %p191
    %p193 = scmp.ne.s32.totalorder %s182, %s185
    %p194 = scmp.eq.s32.totalorder %s19, 7
    %p195 = por %p193, %p194
    %p196 = scmp.ne.s32.totalorder %s185, %s186
    %p197 = scmp.eq.s32.totalorder %s19, 0
    %p198 = por %p196, %p197
    %p199 = scmp.ne.s32.totalorder %s185, %s186
    %p200 = scmp.eq.s32.totalorder %s20, 7
    %p201 = por %p199, %p200
    %p203 = scmp.ne.s32.totalorder %s186, %s202
    %p204 = scmp.eq.s32.totalorder %s20, 0
    %p205 = por %p203, %p204
    %s207 = sadd.s32 %s206, 1
    %p210 = scmp.eq.s32.totalorder %s14, 7
    %p211 = scmp.ne.s32.totalorder %s206, %s208
    %p212 = scmp.eq.s32.totalorder %s14, 0
    %p213 = por %p211, %p212
    %p214 = scmp.ne.s32.totalorder %s206, %s208
    %p215 = scmp.eq.s32.totalorder %s19, 7
    %p216 = por %p214, %p215
    %p217 = scmp.ne.s32.totalorder %s208, %s209
    %p218 = scmp.eq.s32.totalorder %s19, 0
    %p219 = por %p217, %p218
    %p220 = scmp.ne.s32.totalorder %s208, %s209
    %p221 = scmp.eq.s32.totalorder %s20, 7
    %p222 = por %p220, %p221
    %p224 = scmp.ne.s32.totalorder %s209, %s223
    %p225 = scmp.eq.s32.totalorder %s20, 0
    %p226 = por %p224, %p225
    %s228 = sadd.s32 %s227, 1
    %p231 = scmp.eq.s32.totalorder %s14, 7
    %p232 = scmp.ne.s32.totalorder %s227, %s229
    %p233 = scmp.eq.s32.totalorder %s14, 0
    %p234 = por %p232, %p233
    %p235 = scmp.ne.s32.totalorder %s227, %s229
    %p236 = scmp.eq.s32.totalorder %s19, 7
    %p237 = por %p235, %p236
    %p238 = scmp.ne.s32.totalorder %s229, %s230
    %p239 = scmp.eq.s32.totalorder %s19, 0
    %p240 = por %p238, %p239
    %p241 = scmp.ne.s32.totalorder %s229, %s230
    %p242 = scmp.eq.s32.totalorder %s20, 7
    %p243 = por %p241, %p242
    %p245 = scmp.ne.s32.totalorder %s230, %s244
    %p246 = scmp.eq.s32.totalorder %s20, 0
    %p247 = por %p245, %p246
    %s248 = ssub.s32 %s21, %s33
    %s249 = ssub.s32 %s22, %s29
    %s250 = sor.u32 %s248, %s249
    %p251 = scmp.eq.s32.totalorder %s250, 0
    %s253 = sadd.s32 %s252, 1
    %s254 = scalar_select %p251, %s252, %s253
    %p257 = pneg %p251
    %p258 = scmp.eq.s32.totalorder %s14, 7
    %p259 = por %p257, %p258
    %p260 = scmp.ne.s32.totalorder %s252, %s255
    %p261 = scmp.eq.s32.totalorder %s14, 0
    %p262 = por %p260, %p261
    %p263 = scmp.ne.s32.totalorder %s252, %s255
    %p264 = scmp.eq.s32.totalorder %s19, 7
    %p265 = por %p263, %p264
    %p266 = scmp.ne.s32.totalorder %s255, %s256
    %p267 = scmp.eq.s32.totalorder %s19, 0
    %p268 = por %p266, %p267
    %p269 = scmp.ne.s32.totalorder %s255, %s256
    %p270 = scmp.eq.s32.totalorder %s20, 7
    %p271 = por %p269, %p270
    %p273 = scmp.ne.s32.totalorder %s256, %s272
    %p274 = scmp.eq.s32.totalorder %s20, 0
    %p275 = por %p273, %p274
    %p276 = scmp.le.s32.totalorder 1, %s14
    %p277 = scmp.lt.s32.totalorder %s14, 9
    %p278 = pnand %p276, %p277
    %p279 = pneg %p278
    // Predicated region
    $region9: #{stage03_fuse_forward.9} parent=5 // pred_check
      _
    $region10: #{stage03_fuse_forward.9} parent=5 // pred_check_branch
      %281 = sbr.rel (%p278) target = $region12
    $region11: #{stage03_fuse_forward.9} parent=5 // pred_region
      %s282 = ssub.s32 %s14, 1
      // Predicated region
      $region13: #{stage03_fuse_forward.9} parent=11 // pred_check
        %p283 = pneg %p219
      $region14: #{stage03_fuse_forward.9} parent=11 // pred_check_branch
        %285 = sbr.rel (%p283) target = $region16
      $region15: #{stage03_fuse_forward.9} parent=11 // pred_region
        _
      $region16: #{stage03_fuse_forward.9} parent=11 // pred_fallthru
        _
      // Predicated region
      $region17: #{stage03_fuse_forward.9} parent=11 // pred_check
        %p286 = pneg %p240
      $region18: #{stage03_fuse_forward.9} parent=11 // pred_check_branch
        %288 = sbr.rel (%p286) target = $region20
      $region19: #{stage03_fuse_forward.9} parent=11 // pred_region
        _
      $region20: #{stage03_fuse_forward.9} parent=11 // pred_fallthru
        _
    $region12: #{stage03_fuse_forward.9} parent=5 // pred_fallthru
      _
    %p289 = scmp.lt.s32.totalorder %s14, 8
    // Predicated region
    $region21: #{stage03_fuse_forward.9} parent=5 // pred_check
      %p290 = pneg %p289
    $region22: #{stage03_fuse_forward.9} parent=5 // pred_check_branch
      %292 = sbr.rel (%p290) target = $region24
    $region23: #{stage03_fuse_forward.9} parent=5 // pred_region
      // Predicated region
      $region25: #{stage03_fuse_forward.9} parent=23 // pred_check
        %p293 = pneg %p48
      $region26: #{stage03_fuse_forward.9} parent=23 // pred_check_branch
        %295 = sbr.rel (%p293) target = $region28
      $region27: #{stage03_fuse_forward.9} parent=23 // pred_region
        %p296 = scmp.lt.s32.totalorder %s21, 1
        %s297 = scalar_select %p296, %s21, 1
        %p298 = scmp.lt.s32.totalorder %s22, 4
        %s299 = scalar_select %p298, %s22, 4
        %s300 = smul.addr %s297, 5
        %s301 = sadd.s32 %s299, %s300
        %s302 = smul.addr %s301, 4
        %s303 = scalar_lea.vmem %s0, %s302
      $region28: #{stage03_fuse_forward.9} parent=23 // pred_fallthru
        _
      // Predicated region
      $region29: #{stage03_fuse_forward.9} parent=23 // pred_check
        %p304 = pneg %p76
      $region30: #{stage03_fuse_forward.9} parent=23 // pred_check_branch
        %306 = sbr.rel (%p304) target = $region32
      $region31: #{stage03_fuse_forward.9} parent=23 // pred_region
        %p307 = scmp.lt.s32.totalorder %s21, 1
        %s308 = scalar_select %p307, %s21, 1
        %p309 = scmp.lt.s32.totalorder %s22, 4
        %s310 = scalar_select %p309, %s22, 4
        %s311 = smul.addr %s308, 5
        %s312 = sadd.s32 %s310, %s311
        %s313 = smul.addr %s312, 4
        %s314 = scalar_lea.vmem %s1, %s313
      $region32: #{stage03_fuse_forward.9} parent=23 // pred_fallthru
        _
      // Predicated region
      $region33: #{stage03_fuse_forward.9} parent=23 // pred_check
        %p315 = pneg %p104
      $region34: #{stage03_fuse_forward.9} parent=23 // pred_check_branch
        %317 = sbr.rel (%p315) target = $region36
      $region35: #{stage03_fuse_forward.9} parent=23 // pred_region
        %p318 = scmp.lt.s32.totalorder %s21, 1
        %s319 = scalar_select %p318, %s21, 1
        %p320 = scmp.lt.s32.totalorder %s22, 4
        %s321 = scalar_select %p320, %s22, 4
        %s322 = smul.addr %s319, 5
        %s323 = sadd.s32 %s321, %s322
        %s324 = smul.addr %s323, 4
        %s325 = scalar_lea.vmem %s2, %s324
      $region36: #{stage03_fuse_forward.9} parent=23 // pred_fallthru
        _
      // Predicated region
      $region37: #{stage03_fuse_forward.9} parent=23 // pred_check
        %p326 = pneg %p132
      $region38: #{stage03_fuse_forward.9} parent=23 // pred_check_branch
        %328 = sbr.rel (%p326) target = $region40
      $region39: #{stage03_fuse_forward.9} parent=23 // pred_region
        %p329 = scmp.lt.s32.totalorder %s21, 1
        %s330 = scalar_select %p329, %s21, 1
        %p331 = scmp.lt.s32.totalorder %s22, 4
        %s332 = scalar_select %p331, %s22, 4
        %s333 = smul.addr %s330, 5
        %s334 = sadd.s32 %s332, %s333
        %s335 = smul.addr %s334, 4
        %s336 = scalar_lea.vmem %s3, %s335
      $region40: #{stage03_fuse_forward.9} parent=23 // pred_fallthru
        _
      // Predicated region
      $region41: #{stage03_fuse_forward.9} parent=23 // pred_check
        %p337 = pneg %p162
      $region42: #{stage03_fuse_forward.9} parent=23 // pred_check_branch
        %339 = sbr.rel (%p337) target = $region44
      $region43: #{stage03_fuse_forward.9} parent=23 // pred_region
        %s340 = sadd.s32 %s22, 1
        %p341 = scmp.lt.s32.totalorder %s21, 1
        %s342 = scalar_select %p341, %s21, 1
        %p343 = scmp.lt.s32.totalorder %s340, 4
        %s344 = scalar_select %p343, %s340, 4
        %s345 = smul.addr %s342, 5
        %s346 = sadd.s32 %s344, %s345
        %s347 = smul.addr %s346, 4
        %s348 = scalar_lea.vmem %s4, %s347
        %s349 = sadd.s32 %s22, 1
      $region44: #{stage03_fuse_forward.9} parent=23 // pred_fallthru
        _
      // Predicated region
      $region45: #{stage03_fuse_forward.9} parent=23 // pred_check
        %p350 = pneg %p192
      $region46: #{stage03_fuse_forward.9} parent=23 // pred_check_branch
        %352 = sbr.rel (%p350) target = $region48
      $region47: #{stage03_fuse_forward.9} parent=23 // pred_region
        %s353 = sadd.s32 %s22, 1
        %p354 = scmp.lt.s32.totalorder %s21, 1
        %s355 = scalar_select %p354, %s21, 1
        %p356 = scmp.lt.s32.totalorder %s353, 4
        %s357 = scalar_select %p356, %s353, 4
        %s358 = smul.addr %s355, 5
        %s359 = sadd.s32 %s357, %s358
        %s360 = smul.addr %s359, 4
        %s361 = scalar_lea.vmem %s5, %s360
        %s362 = sadd.s32 %s22, 1
      $region48: #{stage03_fuse_forward.9} parent=23 // pred_fallthru
        _
    $region24: #{stage03_fuse_forward.9} parent=5 // pred_fallthru
      _
    %p363 = scmp.le.s32.totalorder 1, %s14
    %p364 = scmp.lt.s32.totalorder %s14, 9
    %p365 = pnand %p363, %p364
    %p366 = pneg %p365
    // Predicated region
    $region49: #{stage03_fuse_forward.9} parent=5 // pred_check
      _
    $region50: #{stage03_fuse_forward.9} parent=5 // pred_check_branch
      %368 = sbr.rel (%p365) target = $region52
    $region51: #{stage03_fuse_forward.9} parent=5 // pred_region
      %s369 = ssub.s32 %s14, 1
      %p370 = scmp.lt.s32.totalorder %s23, 1
      %s371 = scalar_select %p370, %s23, 1
      %p372 = scmp.lt.s32.totalorder %s24, 4
      %s373 = scalar_select %p372, %s24, 4
      %s374 = smul.addr %s371, 5
      %s375 = sadd.s32 %s373, %s374
      %s376 = smul.addr %s375, 4
      %s377 = scalar_lea.vmem %s0, %s376
      %p378 = pneg %p54
      %p379 = pneg %p51
      %p380 = scmp.lt.s32.totalorder %s23, 1
      %s381 = scalar_select %p380, %s23, 1
      %p382 = scmp.lt.s32.totalorder %s24, 4
      %s383 = scalar_select %p382, %s24, 4
      %s384 = smul.addr %s381, 5
      %s385 = sadd.s32 %s383, %s384
      %s386 = smul.addr %s385, 4
      %s387 = scalar_lea.vmem %s1, %s386
      %p388 = pneg %p82
      %p389 = pneg %p79
      %p390 = scmp.lt.s32.totalorder %s23, 1
      %s391 = scalar_select %p390, %s23, 1
      %p392 = scmp.lt.s32.totalorder %s24, 4
      %s393 = scalar_select %p392, %s24, 4
      %s394 = smul.addr %s391, 5
      %s395 = sadd.s32 %s393, %s394
      %s396 = smul.addr %s395, 4
      %s397 = scalar_lea.vmem %s2, %s396
      %p398 = pneg %p110
      %p399 = pneg %p107
      %p400 = scmp.lt.s32.totalorder %s23, 1
      %s401 = scalar_select %p400, %s23, 1
      %p402 = scmp.lt.s32.totalorder %s24, 4
      %s403 = scalar_select %p402, %s24, 4
      %s404 = smul.addr %s401, 5
      %s405 = sadd.s32 %s403, %s404
      %s406 = smul.addr %s405, 4
      %s407 = scalar_lea.vmem %s3, %s406
      %p408 = pneg %p138
      %p409 = pneg %p135
      %s410 = sadd.s32 %s24, 1
      %p411 = scmp.lt.s32.totalorder %s23, 1
      %s412 = scalar_select %p411, %s23, 1
      %p413 = scmp.lt.s32.totalorder %s410, 4
      %s414 = scalar_select %p413, %s410, 4
      %s415 = smul.addr %s412, 5
      %s416 = sadd.s32 %s414, %s415
      %s417 = smul.addr %s416, 4
      %s418 = scalar_lea.vmem %s4, %s417
      %p419 = pneg %p168
      %p420 = pneg %p165
      %s421 = sadd.s32 %s24, 1
      %p422 = scmp.lt.s32.totalorder %s23, 1
      %s423 = scalar_select %p422, %s23, 1
      %p424 = scmp.lt.s32.totalorder %s421, 4
      %s425 = scalar_select %p424, %s421, 4
      %s426 = smul.addr %s423, 5
      %s427 = sadd.s32 %s425, %s426
      %s428 = smul.addr %s427, 4
      %s429 = scalar_lea.vmem %s5, %s428
      %p430 = pneg %p198
      %p431 = pneg %p195
      %p432 = pneg %p219
      %p433 = pneg %p216
      %p434 = pneg %p240
      %p435 = pneg %p237
      %p436 = pneg %p268
      %p437 = pneg %p265
      %p438 = scmp.lt.s32.totalorder %s23, 1
      %s439 = scalar_select %p438, %s23, 1
      %p440 = scmp.lt.s32.totalorder %s24, 3
      %s441 = scalar_select %p440, %s24, 3
      %s442 = smul.addr %s441, 2
      %s443 = smul.addr %s439, 8
      %s444 = sadd.s32 %s442, %s443
      %s445 = smul.addr %s444, 4
      %s446 = scalar_lea.vmem %s8, %s445
      %p447 = scmp.lt.s32.totalorder %s23, 1
      %s448 = scalar_select %p447, %s23, 1
      %p449 = scmp.lt.s32.totalorder %s24, 4
      %s450 = scalar_select %p449, %s24, 4
      %s451 = smul.addr %s448, 5
      %s452 = sadd.s32 %s450, %s451
      %s453 = smul.addr %s452, 4
      %s454 = scalar_lea.vmem %s0, %s453
      %p455 = scmp.lt.s32.totalorder %s23, 1
      %s456 = scalar_select %p455, %s23, 1
      %p457 = scmp.lt.s32.totalorder %s24, 4
      %s458 = scalar_select %p457, %s24, 4
      %s459 = smul.addr %s456, 5
      %s460 = sadd.s32 %s458, %s459
      %s461 = smul.addr %s460, 4
      %s462 = scalar_lea.vmem %s1, %s461
      %p463 = scmp.lt.s32.totalorder %s23, 1
      %s464 = scalar_select %p463, %s23, 1
      %p465 = scmp.lt.s32.totalorder %s24, 4
      %s466 = scalar_select %p465, %s24, 4
      %s467 = smul.addr %s464, 5
      %s468 = sadd.s32 %s466, %s467
      %s469 = smul.addr %s468, 4
      %s470 = scalar_lea.vmem %s2, %s469
      %p471 = scmp.lt.s32.totalorder %s23, 1
      %s472 = scalar_select %p471, %s23, 1
      %p473 = scmp.lt.s32.totalorder %s24, 4
      %s474 = scalar_select %p473, %s24, 4
      %s475 = smul.addr %s472, 5
      %s476 = sadd.s32 %s474, %s475
      %s477 = smul.addr %s476, 4
      %s478 = scalar_lea.vmem %s3, %s477
      %s479 = sadd.s32 %s24, 1
      %p480 = scmp.lt.s32.totalorder %s23, 1
      %s481 = scalar_select %p480, %s23, 1
      %p482 = scmp.lt.s32.totalorder %s479, 4
      %s483 = scalar_select %p482, %s479, 4
      %s484 = smul.addr %s481, 5
      %s485 = sadd.s32 %s483, %s484
      %s486 = smul.addr %s485, 4
      %s487 = scalar_lea.vmem %s4, %s486
      %s488 = sadd.s32 %s24, 1
      %s489 = sadd.s32 %s24, 1
      %p490 = scmp.lt.s32.totalorder %s23, 1
      %s491 = scalar_select %p490, %s23, 1
      %p492 = scmp.lt.s32.totalorder %s489, 4
      %s493 = scalar_select %p492, %s489, 4
      %s494 = smul.addr %s491, 5
      %s495 = sadd.s32 %s493, %s494
      %s496 = smul.addr %s495, 4
      %s497 = scalar_lea.vmem %s5, %s496
      %s498 = sadd.s32 %s24, 1
      %p499 = scmp.lt.s32.totalorder %s23, 1
      %s500 = scalar_select %p499, %s23, 1
      %p501 = scmp.lt.s32.totalorder %s24, 3
      %s502 = scalar_select %p501, %s24, 3
      %s503 = smul.addr %s502, 2
      %s504 = smul.addr %s500, 8
      %s505 = sadd.s32 %s503, %s504
      %s506 = smul.addr %s505, 4
      %s507 = scalar_lea.vmem %s8, %s506
      %v509 = vld [vmem:[%s454] sm:$0x3]
      %v510 = vld [vmem:[%s6] sm:$0xff]
      %v511 = vld [vmem:[%s6 + $0x8] sm:$0xff]
      %v512 = vld [vmem:[%s6 + $0x10] sm:$0xff]
      %v513 = vld [vmem:[%s6 + $0x18] sm:$0xff]
      %v514 = vld [vmem:[%s6 + $0x20] sm:$0xff]
      %v515 = vld [vmem:[%s6 + $0x28] sm:$0xff]
      %v516 = vld [vmem:[%s6 + $0x30] sm:$0xff]
      %v517 = vld [vmem:[%s6 + $0x38] sm:$0xff]
      %v518 = vld [vmem:[%s6 + $0x40] sm:$0xff]
      %v519 = vld [vmem:[%s6 + $0x48] sm:$0xff]
      %v520 = vld [vmem:[%s6 + $0x50] sm:$0xff]
      %v521 = vld [vmem:[%s6 + $0x58] sm:$0xff]
      %v522 = vld [vmem:[%s462] sm:$0x3]
      %s523 = scalar_lea.vmem %s6, 96
      %v524 = vld [vmem:[%s523] sm:$0xff]
      %v525 = vld [vmem:[%s523 + $0x8] sm:$0xff]
      %v526 = vld [vmem:[%s523 + $0x10] sm:$0xff]
      %v527 = vld [vmem:[%s523 + $0x18] sm:$0xff]
      %v528 = vld [vmem:[%s523 + $0x20] sm:$0xff]
      %v529 = vld [vmem:[%s523 + $0x28] sm:$0xff]
      %v530 = vld [vmem:[%s523 + $0x30] sm:$0xff]
      %v531 = vld [vmem:[%s523 + $0x38] sm:$0xff]
      %v532 = vld [vmem:[%s523 + $0x40] sm:$0xff]
      %v533 = vld [vmem:[%s523 + $0x48] sm:$0xff]
      %v534 = vld [vmem:[%s523 + $0x50] sm:$0xff]
      %v535 = vld [vmem:[%s523 + $0x58] sm:$0xff]
      %v548 = vunpack.c.l.b16 %v524
      %v549 = vunpack.c.h.b16 %v524
      %v550 = vunpack.c.l.b16 %v525
      %v551 = vunpack.c.h.b16 %v525
      %v552 = vunpack.c.l.b16 %v526
      %v553 = vunpack.c.h.b16 %v526
      %v554 = vunpack.c.l.b16 %v527
      %v555 = vunpack.c.h.b16 %v527
      %v556 = vunpack.c.l.b16 %v528
      %v557 = vunpack.c.h.b16 %v528
      %v558 = vunpack.c.l.b16 %v529
      %v559 = vunpack.c.h.b16 %v529
      %v560 = vunpack.c.l.b16 %v530
      %v561 = vunpack.c.h.b16 %v530
      %v562 = vunpack.c.l.b16 %v531
      %v563 = vunpack.c.h.b16 %v531
      %v564 = vunpack.c.l.b16 %v532
      %v565 = vunpack.c.h.b16 %v532
      %v566 = vunpack.c.l.b16 %v533
      %v567 = vunpack.c.h.b16 %v533
      %v568 = vunpack.c.l.b16 %v534
      %v569 = vunpack.c.h.b16 %v534
      %v570 = vunpack.c.l.b16 %v535
      %v571 = vunpack.c.h.b16 %v535
      %v572 = vpack.c.b16 %v550, %v548
      %v573 = vpack.c.b16 %v551, %v549
      %v574 = vpack.c.b16 %v554, %v552
      %v575 = vpack.c.b16 %v555, %v553
      %v576 = vpack.c.b16 %v558, %v556
      %v577 = vpack.c.b16 %v559, %v557
      %v578 = vpack.c.b16 %v562, %v560
      %v579 = vpack.c.b16 %v563, %v561
      %v580 = vpack.c.b16 %v566, %v564
      %v581 = vpack.c.b16 %v567, %v565
      %v582 = vpack.c.b16 %v570, %v568
      %v583 = vpack.c.b16 %v571, %v569
      %vm596 = vcmask 785408
      %v598 = vsel %vm596, %v522, 0
      %600 = vmatpush.bf16.msra.mxu0 0
      %601 = vmatpush.bf16.msra.mxu0 0
      %602 = vmatpush.bf16.msra.mxu0 %v582
      %603 = vmatpush.bf16.msra.mxu0 %v580
      %604 = vmatpush.bf16.msra.mxu0 %v578
      %605 = vmatpush.bf16.msra.mxu0 %v576
      %606 = vmatpush.bf16.msra.mxu0 %v574
      %607 = vmatpush.bf16.msra.mxu0 %v572
      %608 = vmatmul.bf16.gmra.mxu0 %v598
      %v609 = vpop.f32.mrf.mxu0
      %v610 = vadd.f32 0.0, %v609
      %v611 = vpop.f32.mrf.mxu0
      %612 = vdwg.mxu0
      %613 = vmatpush.bf16.msra.mxu0 0
      %614 = vmatpush.bf16.msra.mxu0 0
      %615 = vmatpush.bf16.msra.mxu0 %v583
      %616 = vmatpush.bf16.msra.mxu0 %v581
      %617 = vmatpush.bf16.msra.mxu0 %v579
      %618 = vmatpush.bf16.msra.mxu0 %v577
      %619 = vmatpush.bf16.msra.mxu0 %v575
      %620 = vmatpush.bf16.msra.mxu0 %v573
      %621 = vmatmul.bf16.gmra.mxu0 %v598
      %v622 = vpop.f32.mrf.mxu0
      %v623 = vadd.f32 0.0, %v622
      %v624 = vpop.f32.mrf.mxu0
      %625 = vdwg.mxu0
      %v638 = vunpack.c.l.b16 %v510
      %v639 = vunpack.c.h.b16 %v510
      %v640 = vunpack.c.l.b16 %v511
      %v641 = vunpack.c.h.b16 %v511
      %v642 = vunpack.c.l.b16 %v512
      %v643 = vunpack.c.h.b16 %v512
      %v644 = vunpack.c.l.b16 %v513
      %v645 = vunpack.c.h.b16 %v513
      %v646 = vunpack.c.l.b16 %v514
      %v647 = vunpack.c.h.b16 %v514
      %v648 = vunpack.c.l.b16 %v515
      %v649 = vunpack.c.h.b16 %v515
      %v650 = vunpack.c.l.b16 %v516
      %v651 = vunpack.c.h.b16 %v516
      %v652 = vunpack.c.l.b16 %v517
      %v653 = vunpack.c.h.b16 %v517
      %v654 = vunpack.c.l.b16 %v518
      %v655 = vunpack.c.h.b16 %v518
      %v656 = vunpack.c.l.b16 %v519
      %v657 = vunpack.c.h.b16 %v519
      %v658 = vunpack.c.l.b16 %v520
      %v659 = vunpack.c.h.b16 %v520
      %v660 = vunpack.c.l.b16 %v521
      %v661 = vunpack.c.h.b16 %v521
      %v662 = vpack.c.b16 %v640, %v638
      %v663 = vpack.c.b16 %v641, %v639
      %v664 = vpack.c.b16 %v644, %v642
      %v665 = vpack.c.b16 %v645, %v643
      %v666 = vpack.c.b16 %v648, %v646
      %v667 = vpack.c.b16 %v649, %v647
      %v668 = vpack.c.b16 %v652, %v650
      %v669 = vpack.c.b16 %v653, %v651
      %v670 = vpack.c.b16 %v656, %v654
      %v671 = vpack.c.b16 %v657, %v655
      %v672 = vpack.c.b16 %v660, %v658
      %v673 = vpack.c.b16 %v661, %v659
      %v687 = vsel %vm596, %v509, 0
      %689 = vmatpush.bf16.msra.mxu0 0
      %690 = vmatpush.bf16.msra.mxu0 0
      %691 = vmatpush.bf16.msra.mxu0 %v672
      %692 = vmatpush.bf16.msra.mxu0 %v670
      %693 = vmatpush.bf16.msra.mxu0 %v668
      %694 = vmatpush.bf16.msra.mxu0 %v666
      %695 = vmatpush.bf16.msra.mxu0 %v664
      %696 = vmatpush.bf16.msra.mxu0 %v662
      %697 = vmatmul.bf16.gmra.mxu0 %v687
      %v698 = vpop.f32.mrf.mxu0
      %v699 = vadd.f32 %v610, %v698
      %v700 = vpop.f32.mrf.mxu0
      %701 = vdwg.mxu0
      %702 = vmatpush.bf16.msra.mxu0 0
      %703 = vmatpush.bf16.msra.mxu0 0
      %704 = vmatpush.bf16.msra.mxu0 %v673
      %705 = vmatpush.bf16.msra.mxu0 %v671
      %706 = vmatpush.bf16.msra.mxu0 %v669
      %707 = vmatpush.bf16.msra.mxu0 %v667
      %708 = vmatpush.bf16.msra.mxu0 %v665
      %709 = vmatpush.bf16.msra.mxu0 %v663
      %710 = vmatmul.bf16.gmra.mxu0 %v687
      %v711 = vpop.f32.mrf.mxu0
      %v712 = vadd.f32 %v623, %v711
      %v713 = vpop.f32.mrf.mxu0
      %714 = vdwg.mxu0
      %v715 = vld [vmem:[%s454] sm:$0x7]
      %s716 = scalar_lea.vmem %s6, 192
      %v717 = vld [vmem:[%s716] sm:$0xff]
      %v718 = vld [vmem:[%s716 + $0x8] sm:$0xff]
      %v719 = vld [vmem:[%s716 + $0x10] sm:$0xff]
      %v720 = vld [vmem:[%s716 + $0x18] sm:$0xff]
      %v721 = vld [vmem:[%s716 + $0x20] sm:$0xff]
      %v722 = vld [vmem:[%s716 + $0x28] sm:$0xff]
      %v723 = vld [vmem:[%s716 + $0x30] sm:$0xff]
      %v724 = vld [vmem:[%s716 + $0x38] sm:$0xff]
      %v725 = vld [vmem:[%s716 + $0x40] sm:$0xff]
      %v726 = vld [vmem:[%s716 + $0x48] sm:$0xff]
      %v727 = vld [vmem:[%s716 + $0x50] sm:$0xff]
      %v728 = vld [vmem:[%s716 + $0x58] sm:$0xff]
      %v730 = vunpack.c.l.b16 %v715
      %v731 = vpack.c.b16 %v730, %v730
      %v733 = vshrl.u32 %v731, 16
      %v735 = vshll.u32 %v731, 16
      %v737 = vrot.slane %v735, 1
      %v738 = vor.u32 %v733, %v737
      %v751 = vunpack.c.l.b16 %v717
      %v752 = vunpack.c.h.b16 %v717
      %v753 = vunpack.c.l.b16 %v718
      %v754 = vunpack.c.h.b16 %v718
      %v755 = vunpack.c.l.b16 %v719
      %v756 = vunpack.c.h.b16 %v719
      %v757 = vunpack.c.l.b16 %v720
      %v758 = vunpack.c.h.b16 %v720
      %v759 = vunpack.c.l.b16 %v721
      %v760 = vunpack.c.h.b16 %v721
      %v761 = vunpack.c.l.b16 %v722
      %v762 = vunpack.c.h.b16 %v722
      %v763 = vunpack.c.l.b16 %v723
      %v764 = vunpack.c.h.b16 %v723
      %v765 = vunpack.c.l.b16 %v724
      %v766 = vunpack.c.h.b16 %v724
      %v767 = vunpack.c.l.b16 %v725
      %v768 = vunpack.c.h.b16 %v725
      %v769 = vunpack.c.l.b16 %v726
      %v770 = vunpack.c.h.b16 %v726
      %v771 = vunpack.c.l.b16 %v727
      %v772 = vunpack.c.h.b16 %v727
      %v773 = vunpack.c.l.b16 %v728
      %v774 = vunpack.c.h.b16 %v728
      %v775 = vpack.c.b16 %v753, %v751
      %v776 = vpack.c.b16 %v754, %v752
      %v777 = vpack.c.b16 %v757, %v755
      %v778 = vpack.c.b16 %v758, %v756
      %v779 = vpack.c.b16 %v761, %v759
      %v780 = vpack.c.b16 %v762, %v760
      %v781 = vpack.c.b16 %v765, %v763
      %v782 = vpack.c.b16 %v766, %v764
      %v783 = vpack.c.b16 %v769, %v767
      %v784 = vpack.c.b16 %v770, %v768
      %v785 = vpack.c.b16 %v773, %v771
      %v786 = vpack.c.b16 %v774, %v772
      %v800 = vsel %vm596, %v738, 0
      %802 = vmatpush.bf16.msra.mxu0 0
      %803 = vmatpush.bf16.msra.mxu0 0
      %804 = vmatpush.bf16.msra.mxu0 %v785
      %805 = vmatpush.bf16.msra.mxu0 %v783
      %806 = vmatpush.bf16.msra.mxu0 %v781
      %807 = vmatpush.bf16.msra.mxu0 %v779
      %808 = vmatpush.bf16.msra.mxu0 %v777
      %809 = vmatpush.bf16.msra.mxu0 %v775
      %810 = vmatmul.bf16.gmra.mxu0 %v800
      %v811 = vpop.f32.mrf.mxu0
      %v812 = vadd.f32 0.0, %v811
      %v813 = vpop.f32.mrf.mxu0
      %814 = vdwg.mxu0
      %815 = vmatpush.bf16.msra.mxu0 0
      %816 = vmatpush.bf16.msra.mxu0 0
      %817 = vmatpush.bf16.msra.mxu0 %v786
      %818 = vmatpush.bf16.msra.mxu0 %v784
      %819 = vmatpush.bf16.msra.mxu0 %v782
      %820 = vmatpush.bf16.msra.mxu0 %v780
      %821 = vmatpush.bf16.msra.mxu0 %v778
      %822 = vmatpush.bf16.msra.mxu0 %v776
      %823 = vmatmul.bf16.gmra.mxu0 %v800
      %v824 = vpop.f32.mrf.mxu0
      %v825 = vadd.f32 0.0, %v824
      %v826 = vpop.f32.mrf.mxu0
      %827 = vdwg.mxu0
      %v828 = vadd.f32 %v699, %v812
      %v829 = vadd.f32 %v712, %v825
      %v830 = vld [vmem:[%s470] sm:$0x3]
      %s831 = scalar_lea.vmem %s6, 288
      %v832 = vld [vmem:[%s831] sm:$0xff]
      %v833 = vld [vmem:[%s831 + $0x8] sm:$0xff]
      %v834 = vld [vmem:[%s831 + $0x10] sm:$0xff]
      %v835 = vld [vmem:[%s831 + $0x18] sm:$0xff]
      %v836 = vld [vmem:[%s831 + $0x20] sm:$0xff]
      %v837 = vld [vmem:[%s831 + $0x28] sm:$0xff]
      %v838 = vld [vmem:[%s831 + $0x30] sm:$0xff]
      %v839 = vld [vmem:[%s831 + $0x38] sm:$0xff]
      %v840 = vld [vmem:[%s831 + $0x40] sm:$0xff]
      %v841 = vld [vmem:[%s831 + $0x48] sm:$0xff]
      %v842 = vld [vmem:[%s831 + $0x50] sm:$0xff]
      %v843 = vld [vmem:[%s831 + $0x58] sm:$0xff]
      %v856 = vunpack.c.l.b16 %v832
      %v857 = vunpack.c.h.b16 %v832
      %v858 = vunpack.c.l.b16 %v833
      %v859 = vunpack.c.h.b16 %v833
      %v860 = vunpack.c.l.b16 %v834
      %v861 = vunpack.c.h.b16 %v834
      %v862 = vunpack.c.l.b16 %v835
      %v863 = vunpack.c.h.b16 %v835
      %v864 = vunpack.c.l.b16 %v836
      %v865 = vunpack.c.h.b16 %v836
      %v866 = vunpack.c.l.b16 %v837
      %v867 = vunpack.c.h.b16 %v837
      %v868 = vunpack.c.l.b16 %v838
      %v869 = vunpack.c.h.b16 %v838
      %v870 = vunpack.c.l.b16 %v839
      %v871 = vunpack.c.h.b16 %v839
      %v872 = vunpack.c.l.b16 %v840
      %v873 = vunpack.c.h.b16 %v840
      %v874 = vunpack.c.l.b16 %v841
      %v875 = vunpack.c.h.b16 %v841
      %v876 = vunpack.c.l.b16 %v842
      %v877 = vunpack.c.h.b16 %v842
      %v878 = vunpack.c.l.b16 %v843
      %v879 = vunpack.c.h.b16 %v843
      %v880 = vpack.c.b16 %v858, %v856
      %v881 = vpack.c.b16 %v859, %v857
      %v882 = vpack.c.b16 %v862, %v860
      %v883 = vpack.c.b16 %v863, %v861
      %v884 = vpack.c.b16 %v866, %v864
      %v885 = vpack.c.b16 %v867, %v865
      %v886 = vpack.c.b16 %v870, %v868
      %v887 = vpack.c.b16 %v871, %v869
      %v888 = vpack.c.b16 %v874, %v872
      %v889 = vpack.c.b16 %v875, %v873
      %v890 = vpack.c.b16 %v878, %v876
      %v891 = vpack.c.b16 %v879, %v877
      %v905 = vsel %vm596, %v830, 0
      %907 = vmatpush.bf16.msra.mxu0 0
      %908 = vmatpush.bf16.msra.mxu0 0
      %909 = vmatpush.bf16.msra.mxu0 %v890
      %910 = vmatpush.bf16.msra.mxu0 %v888
      %911 = vmatpush.bf16.msra.mxu0 %v886
      %912 = vmatpush.bf16.msra.mxu0 %v884
      %913 = vmatpush.bf16.msra.mxu0 %v882
      %914 = vmatpush.bf16.msra.mxu0 %v880
      %915 = vmatmul.bf16.gmra.mxu0 %v905
      %v916 = vpop.f32.mrf.mxu0
      %v917 = vadd.f32 0.0, %v916
      %v918 = vpop.f32.mrf.mxu0
      %919 = vdwg.mxu0
      %920 = vmatpush.bf16.msra.mxu0 0
      %921 = vmatpush.bf16.msra.mxu0 0
      %922 = vmatpush.bf16.msra.mxu0 %v891
      %923 = vmatpush.bf16.msra.mxu0 %v889
      %924 = vmatpush.bf16.msra.mxu0 %v887
      %925 = vmatpush.bf16.msra.mxu0 %v885
      %926 = vmatpush.bf16.msra.mxu0 %v883
      %927 = vmatpush.bf16.msra.mxu0 %v881
      %928 = vmatmul.bf16.gmra.mxu0 %v905
      %v929 = vpop.f32.mrf.mxu0
      %v930 = vadd.f32 0.0, %v929
      %v931 = vpop.f32.mrf.mxu0
      %932 = vdwg.mxu0
      %v933 = vadd.f32 %v828, %v917
      %v934 = vadd.f32 %v829, %v930
      %v935 = vld [vmem:[%s478] sm:$0x3]
      %s936 = scalar_lea.vmem %s6, 384
      %v937 = vld [vmem:[%s936] sm:$0xff]
      %v938 = vld [vmem:[%s936 + $0x8] sm:$0xff]
      %v939 = vld [vmem:[%s936 + $0x10] sm:$0xff]
      %v940 = vld [vmem:[%s936 + $0x18] sm:$0xff]
      %v941 = vld [vmem:[%s936 + $0x20] sm:$0xff]
      %v942 = vld [vmem:[%s936 + $0x28] sm:$0xff]
      %v943 = vld [vmem:[%s936 + $0x30] sm:$0xff]
      %v944 = vld [vmem:[%s936 + $0x38] sm:$0xff]
      %v945 = vld [vmem:[%s936 + $0x40] sm:$0xff]
      %v946 = vld [vmem:[%s936 + $0x48] sm:$0xff]
      %v947 = vld [vmem:[%s936 + $0x50] sm:$0xff]
      %v948 = vld [vmem:[%s936 + $0x58] sm:$0xff]
      %v961 = vunpack.c.l.b16 %v937
      %v962 = vunpack.c.h.b16 %v937
      %v963 = vunpack.c.l.b16 %v938
      %v964 = vunpack.c.h.b16 %v938
      %v965 = vunpack.c.l.b16 %v939
      %v966 = vunpack.c.h.b16 %v939
      %v967 = vunpack.c.l.b16 %v940
      %v968 = vunpack.c.h.b16 %v940
      %v969 = vunpack.c.l.b16 %v941
      %v970 = vunpack.c.h.b16 %v941
      %v971 = vunpack.c.l.b16 %v942
      %v972 = vunpack.c.h.b16 %v942
      %v973 = vunpack.c.l.b16 %v943
      %v974 = vunpack.c.h.b16 %v943
      %v975 = vunpack.c.l.b16 %v944
      %v976 = vunpack.c.h.b16 %v944
      %v977 = vunpack.c.l.b16 %v945
      %v978 = vunpack.c.h.b16 %v945
      %v979 = vunpack.c.l.b16 %v946
      %v980 = vunpack.c.h.b16 %v946
      %v981 = vunpack.c.l.b16 %v947
      %v982 = vunpack.c.h.b16 %v947
      %v983 = vunpack.c.l.b16 %v948
      %v984 = vunpack.c.h.b16 %v948
      %v985 = vpack.c.b16 %v963, %v961
      %v986 = vpack.c.b16 %v964, %v962
      %v987 = vpack.c.b16 %v967, %v965
      %v988 = vpack.c.b16 %v968, %v966
      %v989 = vpack.c.b16 %v971, %v969
      %v990 = vpack.c.b16 %v972, %v970
      %v991 = vpack.c.b16 %v975, %v973
      %v992 = vpack.c.b16 %v976, %v974
      %v993 = vpack.c.b16 %v979, %v977
      %v994 = vpack.c.b16 %v980, %v978
      %v995 = vpack.c.b16 %v983, %v981
      %v996 = vpack.c.b16 %v984, %v982
      %v1010 = vsel %vm596, %v935, 0
      %1012 = vmatpush.bf16.msra.mxu0 0
      %1013 = vmatpush.bf16.msra.mxu0 0
      %1014 = vmatpush.bf16.msra.mxu0 %v995
      %1015 = vmatpush.bf16.msra.mxu0 %v993
      %1016 = vmatpush.bf16.msra.mxu0 %v991
      %1017 = vmatpush.bf16.msra.mxu0 %v989
      %1018 = vmatpush.bf16.msra.mxu0 %v987
      %1019 = vmatpush.bf16.msra.mxu0 %v985
      %1020 = vmatmul.bf16.gmra.mxu0 %v1010
      %v1021 = vpop.f32.mrf.mxu0
      %v1022 = vadd.f32 0.0, %v1021
      %v1023 = vpop.f32.mrf.mxu0
      %1024 = vdwg.mxu0
      %1025 = vmatpush.bf16.msra.mxu0 0
      %1026 = vmatpush.bf16.msra.mxu0 0
      %1027 = vmatpush.bf16.msra.mxu0 %v996
      %1028 = vmatpush.bf16.msra.mxu0 %v994
      %1029 = vmatpush.bf16.msra.mxu0 %v992
      %1030 = vmatpush.bf16.msra.mxu0 %v990
      %1031 = vmatpush.bf16.msra.mxu0 %v988
      %1032 = vmatpush.bf16.msra.mxu0 %v986
      %1033 = vmatmul.bf16.gmra.mxu0 %v1010
      %v1034 = vpop.f32.mrf.mxu0
      %v1035 = vadd.f32 0.0, %v1034
      %v1036 = vpop.f32.mrf.mxu0
      %1037 = vdwg.mxu0
      %v1038 = vadd.f32 %v933, %v1022
      %v1039 = vadd.f32 %v934, %v1035
      %v1040 = vld [vmem:[%s470] sm:$0x7]
      %s1041 = scalar_lea.vmem %s6, 480
      %v1042 = vld [vmem:[%s1041] sm:$0xff]
      %v1043 = vld [vmem:[%s1041 + $0x8] sm:$0xff]
      %v1044 = vld [vmem:[%s1041 + $0x10] sm:$0xff]
      %v1045 = vld [vmem:[%s1041 + $0x18] sm:$0xff]
      %v1046 = vld [vmem:[%s1041 + $0x20] sm:$0xff]
      %v1047 = vld [vmem:[%s1041 + $0x28] sm:$0xff]
      %v1048 = vld [vmem:[%s1041 + $0x30] sm:$0xff]
      %v1049 = vld [vmem:[%s1041 + $0x38] sm:$0xff]
      %v1050 = vld [vmem:[%s1041 + $0x40] sm:$0xff]
      %v1051 = vld [vmem:[%s1041 + $0x48] sm:$0xff]
      %v1052 = vld [vmem:[%s1041 + $0x50] sm:$0xff]
      %v1053 = vld [vmem:[%s1041 + $0x58] sm:$0xff]
      %v1055 = vunpack.c.l.b16 %v1040
      %v1056 = vpack.c.b16 %v1055, %v1055
      %v1058 = vshrl.u32 %v1056, 16
      %v1060 = vshll.u32 %v1056, 16
      %v1062 = vrot.slane %v1060, 1
      %v1063 = vor.u32 %v1058, %v1062
      %v1076 = vunpack.c.l.b16 %v1042
      %v1077 = vunpack.c.h.b16 %v1042
      %v1078 = vunpack.c.l.b16 %v1043
      %v1079 = vunpack.c.h.b16 %v1043
      %v1080 = vunpack.c.l.b16 %v1044
      %v1081 = vunpack.c.h.b16 %v1044
      %v1082 = vunpack.c.l.b16 %v1045
      %v1083 = vunpack.c.h.b16 %v1045
      %v1084 = vunpack.c.l.b16 %v1046
      %v1085 = vunpack.c.h.b16 %v1046
      %v1086 = vunpack.c.l.b16 %v1047
      %v1087 = vunpack.c.h.b16 %v1047
      %v1088 = vunpack.c.l.b16 %v1048
      %v1089 = vunpack.c.h.b16 %v1048
      %v1090 = vunpack.c.l.b16 %v1049
      %v1091 = vunpack.c.h.b16 %v1049
      %v1092 = vunpack.c.l.b16 %v1050
      %v1093 = vunpack.c.h.b16 %v1050
      %v1094 = vunpack.c.l.b16 %v1051
      %v1095 = vunpack.c.h.b16 %v1051
      %v1096 = vunpack.c.l.b16 %v1052
      %v1097 = vunpack.c.h.b16 %v1052
      %v1098 = vunpack.c.l.b16 %v1053
      %v1099 = vunpack.c.h.b16 %v1053
      %v1100 = vpack.c.b16 %v1078, %v1076
      %v1101 = vpack.c.b16 %v1079, %v1077
      %v1102 = vpack.c.b16 %v1082, %v1080
      %v1103 = vpack.c.b16 %v1083, %v1081
      %v1104 = vpack.c.b16 %v1086, %v1084
      %v1105 = vpack.c.b16 %v1087, %v1085
      %v1106 = vpack.c.b16 %v1090, %v1088
      %v1107 = vpack.c.b16 %v1091, %v1089
      %v1108 = vpack.c.b16 %v1094, %v1092
      %v1109 = vpack.c.b16 %v1095, %v1093
      %v1110 = vpack.c.b16 %v1098, %v1096
      %v1111 = vpack.c.b16 %v1099, %v1097
      %v1125 = vsel %vm596, %v1063, 0
      %1127 = vmatpush.bf16.msra.mxu0 0
      %1128 = vmatpush.bf16.msra.mxu0 0
      %1129 = vmatpush.bf16.msra.mxu0 %v1110
      %1130 = vmatpush.bf16.msra.mxu0 %v1108
      %1131 = vmatpush.bf16.msra.mxu0 %v1106
      %1132 = vmatpush.bf16.msra.mxu0 %v1104
      %1133 = vmatpush.bf16.msra.mxu0 %v1102
      %1134 = vmatpush.bf16.msra.mxu0 %v1100
      %1135 = vmatmul.bf16.gmra.mxu0 %v1125
      %v1136 = vpop.f32.mrf.mxu0
      %v1137 = vadd.f32 0.0, %v1136
      %v1138 = vpop.f32.mrf.mxu0
      %1139 = vdwg.mxu0
      %1140 = vmatpush.bf16.msra.mxu0 0
      %1141 = vmatpush.bf16.msra.mxu0 0
      %1142 = vmatpush.bf16.msra.mxu0 %v1111
      %1143 = vmatpush.bf16.msra.mxu0 %v1109
      %1144 = vmatpush.bf16.msra.mxu0 %v1107
      %1145 = vmatpush.bf16.msra.mxu0 %v1105
      %1146 = vmatpush.bf16.msra.mxu0 %v1103
      %1147 = vmatpush.bf16.msra.mxu0 %v1101
      %1148 = vmatmul.bf16.gmra.mxu0 %v1125
      %v1149 = vpop.f32.mrf.mxu0
      %v1150 = vadd.f32 0.0, %v1149
      %v1151 = vpop.f32.mrf.mxu0
      %1152 = vdwg.mxu0
      %v1153 = vadd.f32 %v1038, %v1137
      %v1154 = vadd.f32 %v1039, %v1150
      %v1155 = vld [vmem:[%s487] sm:$0x3]
      %s1156 = scalar_lea.vmem %s6, 576
      %v1157 = vld [vmem:[%s1156] sm:$0xff]
      %v1158 = vld [vmem:[%s1156 + $0x8] sm:$0xff]
      %v1159 = vld [vmem:[%s1156 + $0x10] sm:$0xff]
      %v1160 = vld [vmem:[%s1156 + $0x18] sm:$0xff]
      %v1161 = vld [vmem:[%s1156 + $0x20] sm:$0xff]
      %v1162 = vld [vmem:[%s1156 + $0x28] sm:$0xff]
      %v1163 = vld [vmem:[%s1156 + $0x30] sm:$0xff]
      %v1164 = vld [vmem:[%s1156 + $0x38] sm:$0xff]
      %v1165 = vld [vmem:[%s1156 + $0x40] sm:$0xff]
      %v1166 = vld [vmem:[%s1156 + $0x48] sm:$0xff]
      %v1167 = vld [vmem:[%s1156 + $0x50] sm:$0xff]
      %v1168 = vld [vmem:[%s1156 + $0x58] sm:$0xff]
      %v1181 = vunpack.c.l.b16 %v1157
      %v1182 = vunpack.c.h.b16 %v1157
      %v1183 = vunpack.c.l.b16 %v1158
      %v1184 = vunpack.c.h.b16 %v1158
      %v1185 = vunpack.c.l.b16 %v1159
      %v1186 = vunpack.c.h.b16 %v1159
      %v1187 = vunpack.c.l.b16 %v1160
      %v1188 = vunpack.c.h.b16 %v1160
      %v1189 = vunpack.c.l.b16 %v1161
      %v1190 = vunpack.c.h.b16 %v1161
      %v1191 = vunpack.c.l.b16 %v1162
      %v1192 = vunpack.c.h.b16 %v1162
      %v1193 = vunpack.c.l.b16 %v1163
      %v1194 = vunpack.c.h.b16 %v1163
      %v1195 = vunpack.c.l.b16 %v1164
      %v1196 = vunpack.c.h.b16 %v1164
      %v1197 = vunpack.c.l.b16 %v1165
      %v1198 = vunpack.c.h.b16 %v1165
      %v1199 = vunpack.c.l.b16 %v1166
      %v1200 = vunpack.c.h.b16 %v1166
      %v1201 = vunpack.c.l.b16 %v1167
      %v1202 = vunpack.c.h.b16 %v1167
      %v1203 = vunpack.c.l.b16 %v1168
      %v1204 = vunpack.c.h.b16 %v1168
      %v1205 = vpack.c.b16 %v1183, %v1181
      %v1206 = vpack.c.b16 %v1184, %v1182
      %v1207 = vpack.c.b16 %v1187, %v1185
      %v1208 = vpack.c.b16 %v1188, %v1186
      %v1209 = vpack.c.b16 %v1191, %v1189
      %v1210 = vpack.c.b16 %v1192, %v1190
      %v1211 = vpack.c.b16 %v1195, %v1193
      %v1212 = vpack.c.b16 %v1196, %v1194
      %v1213 = vpack.c.b16 %v1199, %v1197
      %v1214 = vpack.c.b16 %v1200, %v1198
      %v1215 = vpack.c.b16 %v1203, %v1201
      %v1216 = vpack.c.b16 %v1204, %v1202
      %v1230 = vsel %vm596, %v1155, 0
      %1232 = vmatpush.bf16.msra.mxu0 0
      %1233 = vmatpush.bf16.msra.mxu0 0
      %1234 = vmatpush.bf16.msra.mxu0 %v1215
      %1235 = vmatpush.bf16.msra.mxu0 %v1213
      %1236 = vmatpush.bf16.msra.mxu0 %v1211
      %1237 = vmatpush.bf16.msra.mxu0 %v1209
      %1238 = vmatpush.bf16.msra.mxu0 %v1207
      %1239 = vmatpush.bf16.msra.mxu0 %v1205
      %1240 = vmatmul.bf16.gmra.mxu0 %v1230
      %v1241 = vpop.f32.mrf.mxu0
      %v1242 = vadd.f32 0.0, %v1241
      %v1243 = vpop.f32.mrf.mxu0
      %1244 = vdwg.mxu0
      %1245 = vmatpush.bf16.msra.mxu0 0
      %1246 = vmatpush.bf16.msra.mxu0 0
      %1247 = vmatpush.bf16.msra.mxu0 %v1216
      %1248 = vmatpush.bf16.msra.mxu0 %v1214
      %1249 = vmatpush.bf16.msra.mxu0 %v1212
      %1250 = vmatpush.bf16.msra.mxu0 %v1210
      %1251 = vmatpush.bf16.msra.mxu0 %v1208
      %1252 = vmatpush.bf16.msra.mxu0 %v1206
      %1253 = vmatmul.bf16.gmra.mxu0 %v1230
      %v1254 = vpop.f32.mrf.mxu0
      %v1255 = vadd.f32 0.0, %v1254
      %v1256 = vpop.f32.mrf.mxu0
      %1257 = vdwg.mxu0
      %v1258 = vadd.f32 %v1153, %v1242
      %v1259 = vadd.f32 %v1154, %v1255
      %v1260 = vld [vmem:[%s497] sm:$0x3]
      %s1261 = scalar_lea.vmem %s6, 672
      %v1262 = vld [vmem:[%s1261] sm:$0xff]
      %v1263 = vld [vmem:[%s1261 + $0x8] sm:$0xff]
      %v1264 = vld [vmem:[%s1261 + $0x10] sm:$0xff]
      %v1265 = vld [vmem:[%s1261 + $0x18] sm:$0xff]
      %v1266 = vld [vmem:[%s1261 + $0x20] sm:$0xff]
      %v1267 = vld [vmem:[%s1261 + $0x28] sm:$0xff]
      %v1268 = vld [vmem:[%s1261 + $0x30] sm:$0xff]
      %v1269 = vld [vmem:[%s1261 + $0x38] sm:$0xff]
      %v1270 = vld [vmem:[%s1261 + $0x40] sm:$0xff]
      %v1271 = vld [vmem:[%s1261 + $0x48] sm:$0xff]
      %v1272 = vld [vmem:[%s1261 + $0x50] sm:$0xff]
      %v1273 = vld [vmem:[%s1261 + $0x58] sm:$0xff]
      %v1286 = vunpack.c.l.b16 %v1262
      %v1287 = vunpack.c.h.b16 %v1262
      %v1288 = vunpack.c.l.b16 %v1263
      %v1289 = vunpack.c.h.b16 %v1263
      %v1290 = vunpack.c.l.b16 %v1264
      %v1291 = vunpack.c.h.b16 %v1264
      %v1292 = vunpack.c.l.b16 %v1265
      %v1293 = vunpack.c.h.b16 %v1265
      %v1294 = vunpack.c.l.b16 %v1266
      %v1295 = vunpack.c.h.b16 %v1266
      %v1296 = vunpack.c.l.b16 %v1267
      %v1297 = vunpack.c.h.b16 %v1267
      %v1298 = vunpack.c.l.b16 %v1268
      %v1299 = vunpack.c.h.b16 %v1268
      %v1300 = vunpack.c.l.b16 %v1269
      %v1301 = vunpack.c.h.b16 %v1269
      %v1302 = vunpack.c.l.b16 %v1270
      %v1303 = vunpack.c.h.b16 %v1270
      %v1304 = vunpack.c.l.b16 %v1271
      %v1305 = vunpack.c.h.b16 %v1271
      %v1306 = vunpack.c.l.b16 %v1272
      %v1307 = vunpack.c.h.b16 %v1272
      %v1308 = vunpack.c.l.b16 %v1273
      %v1309 = vunpack.c.h.b16 %v1273
      %v1310 = vpack.c.b16 %v1288, %v1286
      %v1311 = vpack.c.b16 %v1289, %v1287
      %v1312 = vpack.c.b16 %v1292, %v1290
      %v1313 = vpack.c.b16 %v1293, %v1291
      %v1314 = vpack.c.b16 %v1296, %v1294
      %v1315 = vpack.c.b16 %v1297, %v1295
      %v1316 = vpack.c.b16 %v1300, %v1298
      %v1317 = vpack.c.b16 %v1301, %v1299
      %v1318 = vpack.c.b16 %v1304, %v1302
      %v1319 = vpack.c.b16 %v1305, %v1303
      %v1320 = vpack.c.b16 %v1308, %v1306
      %v1321 = vpack.c.b16 %v1309, %v1307
      %v1335 = vsel %vm596, %v1260, 0
      %1337 = vmatpush.bf16.msra.mxu0 0
      %1338 = vmatpush.bf16.msra.mxu0 0
      %1339 = vmatpush.bf16.msra.mxu0 %v1320
      %1340 = vmatpush.bf16.msra.mxu0 %v1318
      %1341 = vmatpush.bf16.msra.mxu0 %v1316
      %1342 = vmatpush.bf16.msra.mxu0 %v1314
      %1343 = vmatpush.bf16.msra.mxu0 %v1312
      %1344 = vmatpush.bf16.msra.mxu0 %v1310
      %1345 = vmatmul.bf16.gmra.mxu0 %v1335
      %v1346 = vpop.f32.mrf.mxu0
      %v1347 = vadd.f32 0.0, %v1346
      %v1348 = vpop.f32.mrf.mxu0
      %1349 = vdwg.mxu0
      %1350 = vmatpush.bf16.msra.mxu0 0
      %1351 = vmatpush.bf16.msra.mxu0 0
      %1352 = vmatpush.bf16.msra.mxu0 %v1321
      %1353 = vmatpush.bf16.msra.mxu0 %v1319
      %1354 = vmatpush.bf16.msra.mxu0 %v1317
      %1355 = vmatpush.bf16.msra.mxu0 %v1315
      %1356 = vmatpush.bf16.msra.mxu0 %v1313
      %1357 = vmatpush.bf16.msra.mxu0 %v1311
      %1358 = vmatmul.bf16.gmra.mxu0 %v1335
      %v1359 = vpop.f32.mrf.mxu0
      %v1360 = vadd.f32 0.0, %v1359
      %v1361 = vpop.f32.mrf.mxu0
      %1362 = vdwg.mxu0
      %v1363 = vadd.f32 %v1258, %v1347
      %v1364 = vadd.f32 %v1259, %v1360
      %v1365 = vld [vmem:[%s487] sm:$0x7]
      %s1366 = scalar_lea.vmem %s6, 768
      %v1367 = vld [vmem:[%s1366] sm:$0xff]
      %v1368 = vld [vmem:[%s1366 + $0x8] sm:$0xff]
      %v1369 = vld [vmem:[%s1366 + $0x10] sm:$0xff]
      %v1370 = vld [vmem:[%s1366 + $0x18] sm:$0xff]
      %v1371 = vld [vmem:[%s1366 + $0x20] sm:$0xff]
      %v1372 = vld [vmem:[%s1366 + $0x28] sm:$0xff]
      %v1373 = vld [vmem:[%s1366 + $0x30] sm:$0xff]
      %v1374 = vld [vmem:[%s1366 + $0x38] sm:$0xff]
      %v1375 = vld [vmem:[%s1366 + $0x40] sm:$0xff]
      %v1376 = vld [vmem:[%s1366 + $0x48] sm:$0xff]
      %v1377 = vld [vmem:[%s1366 + $0x50] sm:$0xff]
      %v1378 = vld [vmem:[%s1366 + $0x58] sm:$0xff]
      %v1380 = vunpack.c.l.b16 %v1365
      %v1381 = vpack.c.b16 %v1380, %v1380
      %v1383 = vshrl.u32 %v1381, 16
      %v1385 = vshll.u32 %v1381, 16
      %v1387 = vrot.slane %v1385, 1
      %v1388 = vor.u32 %v1383, %v1387
      %v1401 = vunpack.c.l.b16 %v1367
      %v1402 = vunpack.c.h.b16 %v1367
      %v1403 = vunpack.c.l.b16 %v1368
      %v1404 = vunpack.c.h.b16 %v1368
      %v1405 = vunpack.c.l.b16 %v1369
      %v1406 = vunpack.c.h.b16 %v1369
      %v1407 = vunpack.c.l.b16 %v1370
      %v1408 = vunpack.c.h.b16 %v1370
      %v1409 = vunpack.c.l.b16 %v1371
      %v1410 = vunpack.c.h.b16 %v1371
      %v1411 = vunpack.c.l.b16 %v1372
      %v1412 = vunpack.c.h.b16 %v1372
      %v1413 = vunpack.c.l.b16 %v1373
      %v1414 = vunpack.c.h.b16 %v1373
      %v1415 = vunpack.c.l.b16 %v1374
      %v1416 = vunpack.c.h.b16 %v1374
      %v1417 = vunpack.c.l.b16 %v1375
      %v1418 = vunpack.c.h.b16 %v1375
      %v1419 = vunpack.c.l.b16 %v1376
      %v1420 = vunpack.c.h.b16 %v1376
      %v1421 = vunpack.c.l.b16 %v1377
      %v1422 = vunpack.c.h.b16 %v1377
      %v1423 = vunpack.c.l.b16 %v1378
      %v1424 = vunpack.c.h.b16 %v1378
      %v1425 = vpack.c.b16 %v1403, %v1401
      %v1426 = vpack.c.b16 %v1404, %v1402
      %v1427 = vpack.c.b16 %v1407, %v1405
      %v1428 = vpack.c.b16 %v1408, %v1406
      %v1429 = vpack.c.b16 %v1411, %v1409
      %v1430 = vpack.c.b16 %v1412, %v1410
      %v1431 = vpack.c.b16 %v1415, %v1413
      %v1432 = vpack.c.b16 %v1416, %v1414
      %v1433 = vpack.c.b16 %v1419, %v1417
      %v1434 = vpack.c.b16 %v1420, %v1418
      %v1435 = vpack.c.b16 %v1423, %v1421
      %v1436 = vpack.c.b16 %v1424, %v1422
      %v1450 = vsel %vm596, %v1388, 0
      %1452 = vmatpush.bf16.msra.mxu0 0
      %1453 = vmatpush.bf16.msra.mxu0 0
      %1454 = vmatpush.bf16.msra.mxu0 %v1435
      %1455 = vmatpush.bf16.msra.mxu0 %v1433
      %1456 = vmatpush.bf16.msra.mxu0 %v1431
      %1457 = vmatpush.bf16.msra.mxu0 %v1429
      %1458 = vmatpush.bf16.msra.mxu0 %v1427
      %1459 = vmatpush.bf16.msra.mxu0 %v1425
      %1460 = vmatmul.bf16.gmra.mxu0 %v1450
      %v1461 = vpop.f32.mrf.mxu0
      %v1462 = vadd.f32 0.0, %v1461
      %v1463 = vpop.f32.mrf.mxu0
      %1464 = vdwg.mxu0
      %1465 = vmatpush.bf16.msra.mxu0 0
      %1466 = vmatpush.bf16.msra.mxu0 0
      %1467 = vmatpush.bf16.msra.mxu0 %v1436
      %1468 = vmatpush.bf16.msra.mxu0 %v1434
      %1469 = vmatpush.bf16.msra.mxu0 %v1432
      %1470 = vmatpush.bf16.msra.mxu0 %v1430
      %1471 = vmatpush.bf16.msra.mxu0 %v1428
      %1472 = vmatpush.bf16.msra.mxu0 %v1426
      %1473 = vmatmul.bf16.gmra.mxu0 %v1450
      %v1474 = vpop.f32.mrf.mxu0
      %v1475 = vadd.f32 0.0, %v1474
      %v1476 = vpop.f32.mrf.mxu0
      %1477 = vdwg.mxu0
      %v1478 = vadd.f32 %v1363, %v1462
      %v1479 = vadd.f32 %v1364, %v1475
      %v1480 = vld [vmem:[%s7] sm:$0x3]
      %v1482 = vperm.slane %v1480, 0
      %v1483 = vperm.slane %v1480, 1
      %v1486 = vadd.f32 %v1478, %v1482
      %v1487 = vadd.f32 %v1479, %v1483
      %v1490 = vrot.slane %v1487, 4
      %vm1491 = vcmask 1043456
      %v1492 = vsel %vm1491, %v1486, %v1490
      %vm1494 = vcmask 523268
      %vm1495 = vmor %vm1494, %vm1491
      %1496 = vst.msk [vmem:[%s507] sm:$0xff] %vm1495, %v1492
      %p1497 = scmp.lt.s32.totalorder %s23, 1
      %s1498 = scalar_select %p1497, %s23, 1
      %p1499 = scmp.lt.s32.totalorder %s24, 3
      %s1500 = scalar_select %p1499, %s24, 3
      %s1501 = smul.addr %s1500, 2
      %s1502 = smul.addr %s1498, 8
      %s1503 = sadd.s32 %s1501, %s1502
      %s1504 = smul.addr %s1503, 4
      %s1505 = scalar_lea.vmem %s8, %s1504
      // Predicated region
      $region53: #{stage03_fuse_forward.9} parent=51 // pred_check
        %p1506 = pneg %p265
      $region54: #{stage03_fuse_forward.9} parent=51 // pred_check_branch
        %1508 = sbr.rel (%p1506) target = $region56
      $region55: #{stage03_fuse_forward.9} parent=51 // pred_region
        _
      $region56: #{stage03_fuse_forward.9} parent=51 // pred_fallthru
        _
    $region52: #{stage03_fuse_forward.9} parent=5 // pred_fallthru
      _
    %p1509 = scmp.le.s32.totalorder 2, %s14
    // Predicated region
    $region57: #{stage03_fuse_forward.9} parent=5 // pred_check
      %p1510 = pneg %p1509
    $region58: #{stage03_fuse_forward.9} parent=5 // pred_check_branch
      %1512 = sbr.rel (%p1510) target = $region60
    $region59: #{stage03_fuse_forward.9} parent=5 // pred_region
      %s1513 = ssub.s32 %s14, 2
      // Predicated region
      $region61: #{stage03_fuse_forward.9} parent=59 // pred_check
        %p1514 = pneg %p271
      $region62: #{stage03_fuse_forward.9} parent=59 // pred_check_branch
        %1516 = sbr.rel (%p1514) target = $region64
      $region63: #{stage03_fuse_forward.9} parent=59 // pred_region
        %p1517 = scmp.lt.s32.totalorder %s25, 1
        %s1518 = scalar_select %p1517, %s25, 1
        %p1519 = scmp.lt.s32.totalorder %s26, 3
        %s1520 = scalar_select %p1519, %s26, 3
        %s1521 = smul.addr %s1520, 2
        %s1522 = smul.addr %s1518, 8
        %s1523 = sadd.s32 %s1521, %s1522
        %s1524 = smul.addr %s1523, 4
        %s1525 = scalar_lea.vmem %s8, %s1524
      $region64: #{stage03_fuse_forward.9} parent=59 // pred_fallthru
        _
    $region60: #{stage03_fuse_forward.9} parent=5 // pred_fallthru
      _
  $region6: #{stage03_fuse_forward.9} parent=0 // loop_footer
    %s18 = sadd.s32 1, %s14
  $region7: #{stage03_fuse_forward.9} parent=0 // loop_footer_branch
    %13 = sbr.rel target = $region3
  $region8: #{stage03_fuse_forward.9} parent=0 // loop_exit
    _

// kernel: stage03_fuse_forward.12
$region0: #{stage03_fuse_forward.12}
  #allocation0 [shape = 'u32[]', space=smem, size = 0x4, offset = 0x4, fixed_abs, tag = 'smem constant byte address 0x4 - core index']
  #allocation1 [shape = 'u32[72,128]{1,0:T(1,128)}', space=vmem, size = 0x9000, scoped, tag = 'internal scratch']
  %s0 = inlined_call_operand.vmem [shape: bf16[2,5,5,48], index: 0, kind: input, shape index: {}, may-alias: {0,4}]
  %s1 = inlined_call_operand.vmem [shape: bf16[2,5,5,48], index: 1, kind: input, shape index: {}, may-alias: {1,5}]
  %s2 = inlined_call_operand.vmem [shape: bf16[2,5,5,48], index: 2, kind: input, shape index: {}]
  %s3 = inlined_call_operand.vmem [shape: bf16[2,5,5,48], index: 3, kind: input, shape index: {}]
  %s4 = inlined_call_operand.vmem [shape: bf16[2,5,5,48], index: 4, kind: input, shape index: {}, may-alias: {0,4}]
  %s5 = inlined_call_operand.vmem [shape: bf16[2,5,5,48], index: 5, kind: input, shape index: {}, may-alias: {1,5}]
  %s6 = inlined_call_operand.vmem [shape: bf16[9,48,192], index: 6, kind: input, shape index: {}]
  %s7 = inlined_call_operand.vmem [shape: f32[1,192], index: 7, kind: input, shape index: {}]
  %s8 = inlined_call_operand.vmem [shape: f32[2,4,4,192], index: 8, kind: input, shape index: {}]
  %s9 = inlined_call_operand.vmem [shape: f32[2,4,4,192], index: 9, kind: input, shape index: {}]
  %s10 = inlined_call_operand.hbm [shape: f32[2,4,4,192], index: 10, kind: output, shape index: {}]
  %s11 = sld [smem:[#allocation0]]
  $region73: #{stage03_fuse_forward.12} parent=0
    _
  %s13 = ssub.s32 1, %s11
  %s14 = scalar_select 0, %s13, %s11
  $region1: #{stage03_fuse_forward.12} parent=0
    #allocation2 [shape = 'u8[8192]{0}', space=vmem, size = 0x2000, scoped, tag = 'output window, operand 0']
    #allocation3 [shape = 's32[2]{0}', space=sflag, size = 0x8, scoped, tag = 'scoped memory for stage03_fuse_forward.12']
    %15 = vsyncpa [#allocation3], 0
    %s16 = scalar_lea.sflag [#allocation3], 1
    %17 = vsyncpa %s16, 0
    loop: start=0, step=1, limit=10
    $region2: #{stage03_fuse_forward.12} parent=1 // loop_pre_header
      _
    $region3: #{stage03_fuse_forward.12} parent=1 // loop_header
      %s19 = sphi 0, %s23
      %p20 = scmp.ge.s32.totalorder %s19, 10
      %s26 = sphi 0, %s38
      %s27 = sphi 0, %s34
      %s28 = sphi 0, %s26
      %s29 = sphi 0, %s27
      %s30 = sphi 0, %s28
      %s31 = sphi 0, %s29
      %s43 = sphi 0, %s45
      %s46 = sphi 0, %s43
      %s47 = sphi 0, %s46
      %s63 = sphi 0, %s47
      %s71 = sphi 0, %s73
      %s74 = sphi 0, %s71
      %s75 = sphi 0, %s74
      %s91 = sphi 0, %s75
      %s99 = sphi 0, %s101
      %s102 = sphi 0, %s99
      %s103 = sphi 0, %s102
      %s119 = sphi 0, %s103
      %s127 = sphi 0, %s129
      %s130 = sphi 0, %s127
      %s131 = sphi 0, %s130
      %s147 = sphi 0, %s131
      %s157 = sphi 0, %s159
      %s160 = sphi 0, %s157
      %s161 = sphi 0, %s160
      %s177 = sphi 0, %s161
      %s187 = sphi 0, %s189
      %s190 = sphi 0, %s187
      %s191 = sphi 0, %s190
      %s207 = sphi 0, %s191
      %s211 = sphi 0, %s211
      %s213 = sphi 0, %s211
      %s214 = sphi 0, %s213
      %s228 = sphi 0, %s214
      %s232 = sphi 0, %s232
      %s234 = sphi 0, %s232
      %s235 = sphi 0, %s234
      %s249 = sphi 0, %s235
      %s257 = sphi 0, %s259
      %s260 = sphi 0, %s257
      %s261 = sphi 0, %s260
      %s277 = sphi 0, %s261
      %s285 = sphi 0, %s287
      %s288 = sphi 0, %s285
      %s289 = sphi 0, %s288
      %s305 = sphi 0, %s289
      %s313 = sphi 0, %s315
      %s316 = sphi 0, %s313
      %s317 = sphi 0, %s316
      %s333 = sphi 0, %s317
    $region4: #{stage03_fuse_forward.12} parent=1 // loop_header_branch
      %22 = sbr.rel (%p20) target = $region8
    $region5: #{stage03_fuse_forward.12} parent=1 // loop_body
      %s24 = ssub.s32 %s19, 1
      %s25 = ssub.s32 %s19, 2
      %s32 = sadd.s32 1, %s27
      %p33 = scmp.ge.s32.totalorder %s32, 4
      %s34 = scalar_select %p33, 0, %s32
      %s35 = sadd.s32 1, %s26
      %s36 = scalar_select %p33, %s35, %s26
      %p37 = scmp.ge.s32.totalorder %s36, 2
      %s38 = scalar_select %p37, 0, %s36
      %s39 = ssub.s32 %s26, %s38
      %s40 = ssub.s32 %s27, %s34
      %s41 = sor.u32 %s39, %s40
      %p42 = scmp.eq.s32.totalorder %s41, 0
      %s44 = sadd.s32 %s43, 1
      %s45 = scalar_select %p42, %s43, %s44
      %p48 = pneg %p42
      %p49 = scmp.eq.s32.totalorder %s19, 7
      %p50 = por %p48, %p49
      %p51 = scmp.ne.s32.totalorder %s43, %s46
      %p52 = scmp.eq.s32.totalorder %s19, 0
      %p53 = por %p51, %p52
      %p54 = scmp.ne.s32.totalorder %s43, %s46
      %p55 = scmp.eq.s32.totalorder %s24, 7
      %p56 = por %p54, %p55
      %p57 = scmp.ne.s32.totalorder %s46, %s47
      %p58 = scmp.eq.s32.totalorder %s24, 0
      %p59 = por %p57, %p58
      %p60 = scmp.ne.s32.totalorder %s46, %s47
      %p61 = scmp.eq.s32.totalorder %s25, 7
      %p62 = por %p60, %p61
      %p64 = scmp.ne.s32.totalorder %s47, %s63
      %p65 = scmp.eq.s32.totalorder %s25, 0
      %p66 = por %p64, %p65
      %s67 = ssub.s32 %s26, %s38
      %s68 = ssub.s32 %s27, %s34
      %s69 = sor.u32 %s67, %s68
      %p70 = scmp.eq.s32.totalorder %s69, 0
      %s72 = sadd.s32 %s71, 1
      %s73 = scalar_select %p70, %s71, %s72
      %p76 = pneg %p70
      %p77 = scmp.eq.s32.totalorder %s19, 7
      %p78 = por %p76, %p77
      %p79 = scmp.ne.s32.totalorder %s71, %s74
      %p80 = scmp.eq.s32.totalorder %s19, 0
      %p81 = por %p79, %p80
      %p82 = scmp.ne.s32.totalorder %s71, %s74
      %p83 = scmp.eq.s32.totalorder %s24, 7
      %p84 = por %p82, %p83
      %p85 = scmp.ne.s32.totalorder %s74, %s75
      %p86 = scmp.eq.s32.totalorder %s24, 0
      %p87 = por %p85, %p86
      %p88 = scmp.ne.s32.totalorder %s74, %s75
      %p89 = scmp.eq.s32.totalorder %s25, 7
      %p90 = por %p88, %p89
      %p92 = scmp.ne.s32.totalorder %s75, %s91
      %p93 = scmp.eq.s32.totalorder %s25, 0
      %p94 = por %p92, %p93
      %s95 = ssub.s32 %s26, %s38
      %s96 = ssub.s32 %s27, %s34
      %s97 = sor.u32 %s95, %s96
      %p98 = scmp.eq.s32.totalorder %s97, 0
      %s100 = sadd.s32 %s99, 1
      %s101 = scalar_select %p98, %s99, %s100
      %p104 = pneg %p98
      %p105 = scmp.eq.s32.totalorder %s19, 7
      %p106 = por %p104, %p105
      %p107 = scmp.ne.s32.totalorder %s99, %s102
      %p108 = scmp.eq.s32.totalorder %s19, 0
      %p109 = por %p107, %p108
      %p110 = scmp.ne.s32.totalorder %s99, %s102
      %p111 = scmp.eq.s32.totalorder %s24, 7
      %p112 = por %p110, %p111
      %p113 = scmp.ne.s32.totalorder %s102, %s103
      %p114 = scmp.eq.s32.totalorder %s24, 0
      %p115 = por %p113, %p114
      %p116 = scmp.ne.s32.totalorder %s102, %s103
      %p117 = scmp.eq.s32.totalorder %s25, 7
      %p118 = por %p116, %p117
      %p120 = scmp.ne.s32.totalorder %s103, %s119
      %p121 = scmp.eq.s32.totalorder %s25, 0
      %p122 = por %p120, %p121
      %s123 = ssub.s32 %s26, %s38
      %s124 = ssub.s32 %s27, %s34
      %s125 = sor.u32 %s123, %s124
      %p126 = scmp.eq.s32.totalorder %s125, 0
      %s128 = sadd.s32 %s127, 1
      %s129 = scalar_select %p126, %s127, %s128
      %p132 = pneg %p126
      %p133 = scmp.eq.s32.totalorder %s19, 7
      %p134 = por %p132, %p133
      %p135 = scmp.ne.s32.totalorder %s127, %s130
      %p136 = scmp.eq.s32.totalorder %s19, 0
      %p137 = por %p135, %p136
      %p138 = scmp.ne.s32.totalorder %s127, %s130
      %p139 = scmp.eq.s32.totalorder %s24, 7
      %p140 = por %p138, %p139
      %p141 = scmp.ne.s32.totalorder %s130, %s131
      %p142 = scmp.eq.s32.totalorder %s24, 0
      %p143 = por %p141, %p142
      %p144 = scmp.ne.s32.totalorder %s130, %s131
      %p145 = scmp.eq.s32.totalorder %s25, 7
      %p146 = por %p144, %p145
      %p148 = scmp.ne.s32.totalorder %s131, %s147
      %p149 = scmp.eq.s32.totalorder %s25, 0
      %p150 = por %p148, %p149
      %s151 = sadd.s32 %s27, 1
      %s152 = sadd.s32 %s34, 1
      %s153 = ssub.s32 %s26, %s38
      %s154 = ssub.s32 %s151, %s152
      %s155 = sor.u32 %s153, %s154
      %p156 = scmp.eq.s32.totalorder %s155, 0
      %s158 = sadd.s32 %s157, 1
      %s159 = scalar_select %p156, %s157, %s158
      %p162 = pneg %p156
      %p163 = scmp.eq.s32.totalorder %s19, 7
      %p164 = por %p162, %p163
      %p165 = scmp.ne.s32.totalorder %s157, %s160
      %p166 = scmp.eq.s32.totalorder %s19, 0
      %p167 = por %p165, %p166
      %p168 = scmp.ne.s32.totalorder %s157, %s160
      %p169 = scmp.eq.s32.totalorder %s24, 7
      %p170 = por %p168, %p169
      %p171 = scmp.ne.s32.totalorder %s160, %s161
      %p172 = scmp.eq.s32.totalorder %s24, 0
      %p173 = por %p171, %p172
      %p174 = scmp.ne.s32.totalorder %s160, %s161
      %p175 = scmp.eq.s32.totalorder %s25, 7
      %p176 = por %p174, %p175
      %p178 = scmp.ne.s32.totalorder %s161, %s177
      %p179 = scmp.eq.s32.totalorder %s25, 0
      %p180 = por %p178, %p179
      %s181 = sadd.s32 %s27, 1
      %s182 = sadd.s32 %s34, 1
      %s183 = ssub.s32 %s26, %s38
      %s184 = ssub.s32 %s181, %s182
      %s185 = sor.u32 %s183, %s184
      %p186 = scmp.eq.s32.totalorder %s185, 0
      %s188 = sadd.s32 %s187, 1
      %s189 = scalar_select %p186, %s187, %s188
      %p192 = pneg %p186
      %p193 = scmp.eq.s32.totalorder %s19, 7
      %p194 = por %p192, %p193
      %p195 = scmp.ne.s32.totalorder %s187, %s190
      %p196 = scmp.eq.s32.totalorder %s19, 0
      %p197 = por %p195, %p196
      %p198 = scmp.ne.s32.totalorder %s187, %s190
      %p199 = scmp.eq.s32.totalorder %s24, 7
      %p200 = por %p198, %p199
      %p201 = scmp.ne.s32.totalorder %s190, %s191
      %p202 = scmp.eq.s32.totalorder %s24, 0
      %p203 = por %p201, %p202
      %p204 = scmp.ne.s32.totalorder %s190, %s191
      %p205 = scmp.eq.s32.totalorder %s25, 7
      %p206 = por %p204, %p205
      %p208 = scmp.ne.s32.totalorder %s191, %s207
      %p209 = scmp.eq.s32.totalorder %s25, 0
      %p210 = por %p208, %p209
      %s212 = sadd.s32 %s211, 1
      %p215 = scmp.eq.s32.totalorder %s19, 7
      %p216 = scmp.ne.s32.totalorder %s211, %s213
      %p217 = scmp.eq.s32.totalorder %s19, 0
      %p218 = por %p216, %p217
      %p219 = scmp.ne.s32.totalorder %s211, %s213
      %p220 = scmp.eq.s32.totalorder %s24, 7
      %p221 = por %p219, %p220
      %p222 = scmp.ne.s32.totalorder %s213, %s214
      %p223 = scmp.eq.s32.totalorder %s24, 0
      %p224 = por %p222, %p223
      %p225 = scmp.ne.s32.totalorder %s213, %s214
      %p226 = scmp.eq.s32.totalorder %s25, 7
      %p227 = por %p225, %p226
      %p229 = scmp.ne.s32.totalorder %s214, %s228
      %p230 = scmp.eq.s32.totalorder %s25, 0
      %p231 = por %p229, %p230
      %s233 = sadd.s32 %s232, 1
      %p236 = scmp.eq.s32.totalorder %s19, 7
      %p237 = scmp.ne.s32.totalorder %s232, %s234
      %p238 = scmp.eq.s32.totalorder %s19, 0
      %p239 = por %p237, %p238
      %p240 = scmp.ne.s32.totalorder %s232, %s234
      %p241 = scmp.eq.s32.totalorder %s24, 7
      %p242 = por %p240, %p241
      %p243 = scmp.ne.s32.totalorder %s234, %s235
      %p244 = scmp.eq.s32.totalorder %s24, 0
      %p245 = por %p243, %p244
      %p246 = scmp.ne.s32.totalorder %s234, %s235
      %p247 = scmp.eq.s32.totalorder %s25, 7
      %p248 = por %p246, %p247
      %p250 = scmp.ne.s32.totalorder %s235, %s249
      %p251 = scmp.eq.s32.totalorder %s25, 0
      %p252 = por %p250, %p251
      %s253 = ssub.s32 %s26, %s38
      %s254 = ssub.s32 %s27, %s34
      %s255 = sor.u32 %s253, %s254
      %p256 = scmp.eq.s32.totalorder %s255, 0
      %s258 = sadd.s32 %s257, 1
      %s259 = scalar_select %p256, %s257, %s258
      %p262 = pneg %p256
      %p263 = scmp.eq.s32.totalorder %s19, 7
      %p264 = por %p262, %p263
      %p265 = scmp.ne.s32.totalorder %s257, %s260
      %p266 = scmp.eq.s32.totalorder %s19, 0
      %p267 = por %p265, %p266
      %p268 = scmp.ne.s32.totalorder %s257, %s260
      %p269 = scmp.eq.s32.totalorder %s24, 7
      %p270 = por %p268, %p269
      %p271 = scmp.ne.s32.totalorder %s260, %s261
      %p272 = scmp.eq.s32.totalorder %s24, 0
      %p273 = por %p271, %p272
      %p274 = scmp.ne.s32.totalorder %s260, %s261
      %p275 = scmp.eq.s32.totalorder %s25, 7
      %p276 = por %p274, %p275
      %p278 = scmp.ne.s32.totalorder %s261, %s277
      %p279 = scmp.eq.s32.totalorder %s25, 0
      %p280 = por %p278, %p279
      %s281 = ssub.s32 %s26, %s38
      %s282 = ssub.s32 %s27, %s34
      %s283 = sor.u32 %s281, %s282
      %p284 = scmp.eq.s32.totalorder %s283, 0
      %s286 = sadd.s32 %s285, 1
      %s287 = scalar_select %p284, %s285, %s286
      %p290 = pneg %p284
      %p291 = scmp.eq.s32.totalorder %s19, 7
      %p292 = por %p290, %p291
      %p293 = scmp.ne.s32.totalorder %s285, %s288
      %p294 = scmp.eq.s32.totalorder %s19, 0
      %p295 = por %p293, %p294
      %p296 = scmp.ne.s32.totalorder %s285, %s288
      %p297 = scmp.eq.s32.totalorder %s24, 7
      %p298 = por %p296, %p297
      %p299 = scmp.ne.s32.totalorder %s288, %s289
      %p300 = scmp.eq.s32.totalorder %s24, 0
      %p301 = por %p299, %p300
      %p302 = scmp.ne.s32.totalorder %s288, %s289
      %p303 = scmp.eq.s32.totalorder %s25, 7
      %p304 = por %p302, %p303
      %p306 = scmp.ne.s32.totalorder %s289, %s305
      %p307 = scmp.eq.s32.totalorder %s25, 0
      %p308 = por %p306, %p307
      %s309 = ssub.s32 %s26, %s38
      %s310 = ssub.s32 %s27, %s34
      %s311 = sor.u32 %s309, %s310
      %p312 = scmp.eq.s32.totalorder %s311, 0
      %s314 = sadd.s32 %s313, 1
      %s315 = scalar_select %p312, %s313, %s314
      %p318 = pneg %p312
      %p319 = scmp.eq.s32.totalorder %s19, 7
      %p320 = por %p318, %p319
      %p321 = scmp.ne.s32.totalorder %s313, %s316
      %p322 = scmp.eq.s32.totalorder %s19, 0
      %p323 = por %p321, %p322
      %p324 = scmp.ne.s32.totalorder %s313, %s316
      %p325 = scmp.eq.s32.totalorder %s24, 7
      %p326 = por %p324, %p325
      %p327 = scmp.ne.s32.totalorder %s316, %s317
      %p328 = scmp.eq.s32.totalorder %s24, 0
      %p329 = por %p327, %p328
      %p330 = scmp.ne.s32.totalorder %s316, %s317
      %p331 = scmp.eq.s32.totalorder %s25, 7
      %p332 = por %p330, %p331
      %p334 = scmp.ne.s32.totalorder %s317, %s333
      %p335 = scmp.eq.s32.totalorder %s25, 0
      %p336 = por %p334, %p335
      %p337 = scmp.le.s32.totalorder 1, %s19
      %p338 = scmp.lt.s32.totalorder %s19, 9
      %p339 = pnand %p337, %p338
      %p340 = pneg %p339
      // Predicated region
      $region9: #{stage03_fuse_forward.12} parent=5 // pred_check
        _
      $region10: #{stage03_fuse_forward.12} parent=5 // pred_check_branch
        %342 = sbr.rel (%p339) target = $region12
      $region11: #{stage03_fuse_forward.12} parent=5 // pred_region
        %s343 = ssub.s32 %s19, 1
        // Predicated region
        $region13: #{stage03_fuse_forward.12} parent=11 // pred_check
          %p344 = pneg %p224
        $region14: #{stage03_fuse_forward.12} parent=11 // pred_check_branch
          %346 = sbr.rel (%p344) target = $region16
        $region15: #{stage03_fuse_forward.12} parent=11 // pred_region
          _
        $region16: #{stage03_fuse_forward.12} parent=11 // pred_fallthru
          _
        // Predicated region
        $region17: #{stage03_fuse_forward.12} parent=11 // pred_check
          %p347 = pneg %p245
        $region18: #{stage03_fuse_forward.12} parent=11 // pred_check_branch
          %349 = sbr.rel (%p347) target = $region20
        $region19: #{stage03_fuse_forward.12} parent=11 // pred_region
          _
        $region20: #{stage03_fuse_forward.12} parent=11 // pred_fallthru
          _
      $region12: #{stage03_fuse_forward.12} parent=5 // pred_fallthru
        _
      %p350 = scmp.lt.s32.totalorder %s19, 8
      // Predicated region
      $region21: #{stage03_fuse_forward.12} parent=5 // pred_check
        %p351 = pneg %p350
      $region22: #{stage03_fuse_forward.12} parent=5 // pred_check_branch
        %353 = sbr.rel (%p351) target = $region24
      $region23: #{stage03_fuse_forward.12} parent=5 // pred_region
        // Predicated region
        $region25: #{stage03_fuse_forward.12} parent=23 // pred_check
          %p354 = pneg %p53
        $region26: #{stage03_fuse_forward.12} parent=23 // pred_check_branch
          %356 = sbr.rel (%p354) target = $region28
        $region27: #{stage03_fuse_forward.12} parent=23 // pred_region
          %p357 = scmp.lt.s32.totalorder %s26, 1
          %s358 = scalar_select %p357, %s26, 1
          %p359 = scmp.lt.s32.totalorder %s27, 4
          %s360 = scalar_select %p359, %s27, 4
          %s361 = smul.addr %s358, 5
          %s362 = sadd.s32 %s360, %s361
          %s363 = smul.addr %s362, 4
          %s364 = scalar_lea.vmem %s0, %s363
        $region28: #{stage03_fuse_forward.12} parent=23 // pred_fallthru
          _
        // Predicated region
        $region29: #{stage03_fuse_forward.12} parent=23 // pred_check
          %p365 = pneg %p81
        $region30: #{stage03_fuse_forward.12} parent=23 // pred_check_branch
          %367 = sbr.rel (%p365) target = $region32
        $region31: #{stage03_fuse_forward.12} parent=23 // pred_region
          %p368 = scmp.lt.s32.totalorder %s26, 1
          %s369 = scalar_select %p368, %s26, 1
          %p370 = scmp.lt.s32.totalorder %s27, 4
          %s371 = scalar_select %p370, %s27, 4
          %s372 = smul.addr %s369, 5
          %s373 = sadd.s32 %s371, %s372
          %s374 = smul.addr %s373, 4
          %s375 = scalar_lea.vmem %s1, %s374
        $region32: #{stage03_fuse_forward.12} parent=23 // pred_fallthru
          _
        // Predicated region
        $region33: #{stage03_fuse_forward.12} parent=23 // pred_check
          %p376 = pneg %p109
        $region34: #{stage03_fuse_forward.12} parent=23 // pred_check_branch
          %378 = sbr.rel (%p376) target = $region36
        $region35: #{stage03_fuse_forward.12} parent=23 // pred_region
          %p379 = scmp.lt.s32.totalorder %s26, 1
          %s380 = scalar_select %p379, %s26, 1
          %p381 = scmp.lt.s32.totalorder %s27, 4
          %s382 = scalar_select %p381, %s27, 4
          %s383 = smul.addr %s380, 5
          %s384 = sadd.s32 %s382, %s383
          %s385 = smul.addr %s384, 4
          %s386 = scalar_lea.vmem %s2, %s385
        $region36: #{stage03_fuse_forward.12} parent=23 // pred_fallthru
          _
        // Predicated region
        $region37: #{stage03_fuse_forward.12} parent=23 // pred_check
          %p387 = pneg %p137
        $region38: #{stage03_fuse_forward.12} parent=23 // pred_check_branch
          %389 = sbr.rel (%p387) target = $region40
        $region39: #{stage03_fuse_forward.12} parent=23 // pred_region
          %p390 = scmp.lt.s32.totalorder %s26, 1
          %s391 = scalar_select %p390, %s26, 1
          %p392 = scmp.lt.s32.totalorder %s27, 4
          %s393 = scalar_select %p392, %s27, 4
          %s394 = smul.addr %s391, 5
          %s395 = sadd.s32 %s393, %s394
          %s396 = smul.addr %s395, 4
          %s397 = scalar_lea.vmem %s3, %s396
        $region40: #{stage03_fuse_forward.12} parent=23 // pred_fallthru
          _
        // Predicated region
        $region41: #{stage03_fuse_forward.12} parent=23 // pred_check
          %p398 = pneg %p167
        $region42: #{stage03_fuse_forward.12} parent=23 // pred_check_branch
          %400 = sbr.rel (%p398) target = $region44
        $region43: #{stage03_fuse_forward.12} parent=23 // pred_region
          %s401 = sadd.s32 %s27, 1
          %p402 = scmp.lt.s32.totalorder %s26, 1
          %s403 = scalar_select %p402, %s26, 1
          %p404 = scmp.lt.s32.totalorder %s401, 4
          %s405 = scalar_select %p404, %s401, 4
          %s406 = smul.addr %s403, 5
          %s407 = sadd.s32 %s405, %s406
          %s408 = smul.addr %s407, 4
          %s409 = scalar_lea.vmem %s4, %s408
          %s410 = sadd.s32 %s27, 1
        $region44: #{stage03_fuse_forward.12} parent=23 // pred_fallthru
          _
        // Predicated region
        $region45: #{stage03_fuse_forward.12} parent=23 // pred_check
          %p411 = pneg %p197
        $region46: #{stage03_fuse_forward.12} parent=23 // pred_check_branch
          %413 = sbr.rel (%p411) target = $region48
        $region47: #{stage03_fuse_forward.12} parent=23 // pred_region
          %s414 = sadd.s32 %s27, 1
          %p415 = scmp.lt.s32.totalorder %s26, 1
          %s416 = scalar_select %p415, %s26, 1
          %p417 = scmp.lt.s32.totalorder %s414, 4
          %s418 = scalar_select %p417, %s414, 4
          %s419 = smul.addr %s416, 5
          %s420 = sadd.s32 %s418, %s419
          %s421 = smul.addr %s420, 4
          %s422 = scalar_lea.vmem %s5, %s421
          %s423 = sadd.s32 %s27, 1
        $region48: #{stage03_fuse_forward.12} parent=23 // pred_fallthru
          _
        // Predicated region
        $region49: #{stage03_fuse_forward.12} parent=23 // pred_check
          %p424 = pneg %p267
        $region50: #{stage03_fuse_forward.12} parent=23 // pred_check_branch
          %426 = sbr.rel (%p424) target = $region52
        $region51: #{stage03_fuse_forward.12} parent=23 // pred_region
          %p427 = scmp.lt.s32.totalorder %s26, 1
          %s428 = scalar_select %p427, %s26, 1
          %p429 = scmp.lt.s32.totalorder %s27, 3
          %s430 = scalar_select %p429, %s27, 3
          %s431 = smul.addr %s430, 2
          %s432 = smul.addr %s428, 8
          %s433 = sadd.s32 %s431, %s432
          %s434 = smul.addr %s433, 4
          %s435 = scalar_lea.vmem %s8, %s434
        $region52: #{stage03_fuse_forward.12} parent=23 // pred_fallthru
          _
        // Predicated region
        $region53: #{stage03_fuse_forward.12} parent=23 // pred_check
          %p436 = pneg %p295
        $region54: #{stage03_fuse_forward.12} parent=23 // pred_check_branch
          %438 = sbr.rel (%p436) target = $region56
        $region55: #{stage03_fuse_forward.12} parent=23 // pred_region
          %p439 = scmp.lt.s32.totalorder %s26, 1
          %s440 = scalar_select %p439, %s26, 1
          %p441 = scmp.lt.s32.totalorder %s27, 3
          %s442 = scalar_select %p441, %s27, 3
          %s443 = smul.addr %s442, 2
          %s444 = smul.addr %s440, 8
          %s445 = sadd.s32 %s443, %s444
          %s446 = smul.addr %s445, 4
          %s447 = scalar_lea.vmem %s9, %s446
        $region56: #{stage03_fuse_forward.12} parent=23 // pred_fallthru
          _
      $region24: #{stage03_fuse_forward.12} parent=5 // pred_fallthru
        _
      %p448 = scmp.le.s32.totalorder 1, %s19
      %p449 = scmp.lt.s32.totalorder %s19, 9
      %p450 = pnand %p448, %p449
      %p451 = pneg %p450
      // Predicated region
      $region57: #{stage03_fuse_forward.12} parent=5 // pred_check
        _
      $region58: #{stage03_fuse_forward.12} parent=5 // pred_check_branch
        %453 = sbr.rel (%p450) target = $region60
      $region59: #{stage03_fuse_forward.12} parent=5 // pred_region
        %s454 = ssub.s32 %s19, 1
        %p455 = scmp.lt.s32.totalorder %s28, 1
        %s456 = scalar_select %p455, %s28, 1
        %p457 = scmp.lt.s32.totalorder %s29, 4
        %s458 = scalar_select %p457, %s29, 4
        %s459 = smul.addr %s456, 5
        %s460 = sadd.s32 %s458, %s459
        %s461 = smul.addr %s460, 4
        %s462 = scalar_lea.vmem %s0, %s461
        %p463 = pneg %p59
        %p464 = pneg %p56
        %p465 = scmp.lt.s32.totalorder %s28, 1
        %s466 = scalar_select %p465, %s28, 1
        %p467 = scmp.lt.s32.totalorder %s29, 4
        %s468 = scalar_select %p467, %s29, 4
        %s469 = smul.addr %s466, 5
        %s470 = sadd.s32 %s468, %s469
        %s471 = smul.addr %s470, 4
        %s472 = scalar_lea.vmem %s1, %s471
        %p473 = pneg %p87
        %p474 = pneg %p84
        %p475 = scmp.lt.s32.totalorder %s28, 1
        %s476 = scalar_select %p475, %s28, 1
        %p477 = scmp.lt.s32.totalorder %s29, 4
        %s478 = scalar_select %p477, %s29, 4
        %s479 = smul.addr %s476, 5
        %s480 = sadd.s32 %s478, %s479
        %s481 = smul.addr %s480, 4
        %s482 = scalar_lea.vmem %s2, %s481
        %p483 = pneg %p115
        %p484 = pneg %p112
        %p485 = scmp.lt.s32.totalorder %s28, 1
        %s486 = scalar_select %p485, %s28, 1
        %p487 = scmp.lt.s32.totalorder %s29, 4
        %s488 = scalar_select %p487, %s29, 4
        %s489 = smul.addr %s486, 5
        %s490 = sadd.s32 %s488, %s489
        %s491 = smul.addr %s490, 4
        %s492 = scalar_lea.vmem %s3, %s491
        %p493 = pneg %p143
        %p494 = pneg %p140
        %s495 = sadd.s32 %s29, 1
        %p496 = scmp.lt.s32.totalorder %s28, 1
        %s497 = scalar_select %p496, %s28, 1
        %p498 = scmp.lt.s32.totalorder %s495, 4
        %s499 = scalar_select %p498, %s495, 4
        %s500 = smul.addr %s497, 5
        %s501 = sadd.s32 %s499, %s500
        %s502 = smul.addr %s501, 4
        %s503 = scalar_lea.vmem %s4, %s502
        %p504 = pneg %p173
        %p505 = pneg %p170
        %s506 = sadd.s32 %s29, 1
        %p507 = scmp.lt.s32.totalorder %s28, 1
        %s508 = scalar_select %p507, %s28, 1
        %p509 = scmp.lt.s32.totalorder %s506, 4
        %s510 = scalar_select %p509, %s506, 4
        %s511 = smul.addr %s508, 5
        %s512 = sadd.s32 %s510, %s511
        %s513 = smul.addr %s512, 4
        %s514 = scalar_lea.vmem %s5, %s513
        %p515 = pneg %p203
        %p516 = pneg %p200
        %p517 = pneg %p224
        %p518 = pneg %p221
        %p519 = pneg %p245
        %p520 = pneg %p242
        %p521 = scmp.lt.s32.totalorder %s28, 1
        %s522 = scalar_select %p521, %s28, 1
        %p523 = scmp.lt.s32.totalorder %s29, 3
        %s524 = scalar_select %p523, %s29, 3
        %s525 = smul.addr %s524, 2
        %s526 = smul.addr %s522, 8
        %s527 = sadd.s32 %s525, %s526
        %s528 = smul.addr %s527, 4
        %s529 = scalar_lea.vmem %s8, %s528
        %p530 = pneg %p273
        %p531 = pneg %p270
        %p532 = scmp.lt.s32.totalorder %s28, 1
        %s533 = scalar_select %p532, %s28, 1
        %p534 = scmp.lt.s32.totalorder %s29, 3
        %s535 = scalar_select %p534, %s29, 3
        %s536 = smul.addr %s535, 2
        %s537 = smul.addr %s533, 8
        %s538 = sadd.s32 %s536, %s537
        %s539 = smul.addr %s538, 4
        %s540 = scalar_lea.vmem %s9, %s539
        %p541 = pneg %p301
        %p542 = pneg %p298
        %p543 = pneg %p329
        %p544 = pneg %p326
        %s545 = sand.u32 %s316, 1
        %s546 = scalar_lea.sflag [#allocation3], %s545
        %s547 = sand.u32 %s316, 1
        %s548 = smul.addr %s547, 8
        %s549 = scalar_lea.vmem [#allocation2], %s548
        %p550 = scmp.lt.s32.totalorder %s28, 1
        %s551 = scalar_select %p550, %s28, 1
        %p552 = scmp.lt.s32.totalorder %s29, 4
        %s553 = scalar_select %p552, %s29, 4
        %s554 = smul.addr %s551, 5
        %s555 = sadd.s32 %s553, %s554
        %s556 = smul.addr %s555, 4
        %s557 = scalar_lea.vmem %s0, %s556
        %p558 = scmp.lt.s32.totalorder %s28, 1
        %s559 = scalar_select %p558, %s28, 1
        %p560 = scmp.lt.s32.totalorder %s29, 4
        %s561 = scalar_select %p560, %s29, 4
        %s562 = smul.addr %s559, 5
        %s563 = sadd.s32 %s561, %s562
        %s564 = smul.addr %s563, 4
        %s565 = scalar_lea.vmem %s1, %s564
        %p566 = scmp.lt.s32.totalorder %s28, 1
        %s567 = scalar_select %p566, %s28, 1
        %p568 = scmp.lt.s32.totalorder %s29, 4
        %s569 = scalar_select %p568, %s29, 4
        %s570 = smul.addr %s567, 5
        %s571 = sadd.s32 %s569, %s570
        %s572 = smul.addr %s571, 4
        %s573 = scalar_lea.vmem %s2, %s572
        %p574 = scmp.lt.s32.totalorder %s28, 1
        %s575 = scalar_select %p574, %s28, 1
        %p576 = scmp.lt.s32.totalorder %s29, 4
        %s577 = scalar_select %p576, %s29, 4
        %s578 = smul.addr %s575, 5
        %s579 = sadd.s32 %s577, %s578
        %s580 = smul.addr %s579, 4
        %s581 = scalar_lea.vmem %s3, %s580
        %s582 = sadd.s32 %s29, 1
        %p583 = scmp.lt.s32.totalorder %s28, 1
        %s584 = scalar_select %p583, %s28, 1
        %p585 = scmp.lt.s32.totalorder %s582, 4
        %s586 = scalar_select %p585, %s582, 4
        %s587 = smul.addr %s584, 5
        %s588 = sadd.s32 %s586, %s587
        %s589 = smul.addr %s588, 4
        %s590 = scalar_lea.vmem %s4, %s589
        %s591 = sadd.s32 %s29, 1
        %s592 = sadd.s32 %s29, 1
        %p593 = scmp.lt.s32.totalorder %s28, 1
        %s594 = scalar_select %p593, %s28, 1
        %p595 = scmp.lt.s32.totalorder %s592, 4
        %s596 = scalar_select %p595, %s592, 4
        %s597 = smul.addr %s594, 5
        %s598 = sadd.s32 %s596, %s597
        %s599 = smul.addr %s598, 4
        %s600 = scalar_lea.vmem %s5, %s599
        %s601 = sadd.s32 %s29, 1
        %p602 = scmp.lt.s32.totalorder %s28, 1
        %s603 = scalar_select %p602, %s28, 1
        %p604 = scmp.lt.s32.totalorder %s29, 3
        %s605 = scalar_select %p604, %s29, 3
        %s606 = smul.addr %s605, 2
        %s607 = smul.addr %s603, 8
        %s608 = sadd.s32 %s606, %s607
        %s609 = smul.addr %s608, 4
        %s610 = scalar_lea.vmem %s8, %s609
        %p611 = scmp.lt.s32.totalorder %s28, 1
        %s612 = scalar_select %p611, %s28, 1
        %p613 = scmp.lt.s32.totalorder %s29, 3
        %s614 = scalar_select %p613, %s29, 3
        %s615 = smul.addr %s614, 2
        %s616 = smul.addr %s612, 8
        %s617 = sadd.s32 %s615, %s616
        %s618 = smul.addr %s617, 4
        %s619 = scalar_lea.vmem %s9, %s618
        %v621 = vld [vmem:[%s557] sm:$0x3]
        %v622 = vld [vmem:[%s6] sm:$0xff]
        %v623 = vld [vmem:[%s6 + $0x8] sm:$0xff]
        %v624 = vld [vmem:[%s6 + $0x10] sm:$0xff]
        %v625 = vld [vmem:[%s6 + $0x18] sm:$0xff]
        %v626 = vld [vmem:[%s6 + $0x20] sm:$0xff]
        %v627 = vld [vmem:[%s6 + $0x28] sm:$0xff]
        %v628 = vld [vmem:[%s565] sm:$0x3]
        %s629 = scalar_lea.vmem %s6, 48
        %v630 = vld [vmem:[%s629] sm:$0xff]
        %v631 = vld [vmem:[%s629 + $0x8] sm:$0xff]
        %v632 = vld [vmem:[%s629 + $0x10] sm:$0xff]
        %v633 = vld [vmem:[%s629 + $0x18] sm:$0xff]
        %v634 = vld [vmem:[%s629 + $0x20] sm:$0xff]
        %v635 = vld [vmem:[%s629 + $0x28] sm:$0xff]
        %v642 = vunpack.c.l.b16 %v630
        %v643 = vunpack.c.h.b16 %v630
        %v644 = vunpack.c.l.b16 %v631
        %v645 = vunpack.c.h.b16 %v631
        %v646 = vunpack.c.l.b16 %v632
        %v647 = vunpack.c.h.b16 %v632
        %v648 = vunpack.c.l.b16 %v633
        %v649 = vunpack.c.h.b16 %v633
        %v650 = vunpack.c.l.b16 %v634
        %v651 = vunpack.c.h.b16 %v634
        %v652 = vunpack.c.l.b16 %v635
        %v653 = vunpack.c.h.b16 %v635
        %v654 = vpack.c.b16 %v644, %v642
        %v655 = vpack.c.b16 %v645, %v643
        %v656 = vpack.c.b16 %v648, %v646
        %v657 = vpack.c.b16 %v649, %v647
        %v658 = vpack.c.b16 %v652, %v650
        %v659 = vpack.c.b16 %v653, %v651
        %vm666 = vcmask 392192
        %v668 = vsel %vm666, %v628, 0
        %670 = vmatpush.bf16.msra.mxu0 0
        %671 = vmatpush.bf16.msra.mxu0 0
        %672 = vmatpush.bf16.msra.mxu0 0
        %673 = vmatpush.bf16.msra.mxu0 0
        %674 = vmatpush.bf16.msra.mxu0 0
        %675 = vmatpush.bf16.msra.mxu0 %v658
        %676 = vmatpush.bf16.msra.mxu0 %v656
        %677 = vmatpush.bf16.msra.mxu0 %v654
        %678 = vmatmul.bf16.gmra.mxu0 %v668
        %v679 = vpop.f32.mrf.mxu0
        %v680 = vadd.f32 0.0, %v679
        %v681 = vpop.f32.mrf.mxu0
        %682 = vdwg.mxu0
        %683 = vmatpush.bf16.msra.mxu0 0
        %684 = vmatpush.bf16.msra.mxu0 0
        %685 = vmatpush.bf16.msra.mxu0 0
        %686 = vmatpush.bf16.msra.mxu0 0
        %687 = vmatpush.bf16.msra.mxu0 0
        %688 = vmatpush.bf16.msra.mxu0 %v659
        %689 = vmatpush.bf16.msra.mxu0 %v657
        %690 = vmatpush.bf16.msra.mxu0 %v655
        %691 = vmatmul.bf16.gmra.mxu0 %v668
        %v692 = vpop.f32.mrf.mxu0
        %v693 = vadd.f32 0.0, %v692
        %v694 = vpop.f32.mrf.mxu0
        %695 = vdwg.mxu0
        %v702 = vunpack.c.l.b16 %v622
        %v703 = vunpack.c.h.b16 %v622
        %v704 = vunpack.c.l.b16 %v623
        %v705 = vunpack.c.h.b16 %v623
        %v706 = vunpack.c.l.b16 %v624
        %v707 = vunpack.c.h.b16 %v624
        %v708 = vunpack.c.l.b16 %v625
        %v709 = vunpack.c.h.b16 %v625
        %v710 = vunpack.c.l.b16 %v626
        %v711 = vunpack.c.h.b16 %v626
        %v712 = vunpack.c.l.b16 %v627
        %v713 = vunpack.c.h.b16 %v627
        %v714 = vpack.c.b16 %v704, %v702
        %v715 = vpack.c.b16 %v705, %v703
        %v716 = vpack.c.b16 %v708, %v706
        %v717 = vpack.c.b16 %v709, %v707
        %v718 = vpack.c.b16 %v712, %v710
        %v719 = vpack.c.b16 %v713, %v711
        %v727 = vsel %vm666, %v621, 0
        %729 = vmatpush.bf16.msra.mxu0 0
        %730 = vmatpush.bf16.msra.mxu0 0
        %731 = vmatpush.bf16.msra.mxu0 0
        %732 = vmatpush.bf16.msra.mxu0 0
        %733 = vmatpush.bf16.msra.mxu0 0
        %734 = vmatpush.bf16.msra.mxu0 %v718
        %735 = vmatpush.bf16.msra.mxu0 %v716
        %736 = vmatpush.bf16.msra.mxu0 %v714
        %737 = vmatmul.bf16.gmra.mxu0 %v727
        %v738 = vpop.f32.mrf.mxu0
        %v739 = vadd.f32 %v680, %v738
        %v740 = vpop.f32.mrf.mxu0
        %741 = vdwg.mxu0
        %742 = vmatpush.bf16.msra.mxu0 0
        %743 = vmatpush.bf16.msra.mxu0 0
        %744 = vmatpush.bf16.msra.mxu0 0
        %745 = vmatpush.bf16.msra.mxu0 0
        %746 = vmatpush.bf16.msra.mxu0 0
        %747 = vmatpush.bf16.msra.mxu0 %v719
        %748 = vmatpush.bf16.msra.mxu0 %v717
        %749 = vmatpush.bf16.msra.mxu0 %v715
        %750 = vmatmul.bf16.gmra.mxu0 %v727
        %v751 = vpop.f32.mrf.mxu0
        %v752 = vadd.f32 %v693, %v751
        %v753 = vpop.f32.mrf.mxu0
        %754 = vdwg.mxu0
        %v755 = vld [vmem:[%s557] sm:$0x7]
        %s756 = scalar_lea.vmem %s6, 96
        %v757 = vld [vmem:[%s756] sm:$0xff]
        %v758 = vld [vmem:[%s756 + $0x8] sm:$0xff]
        %v759 = vld [vmem:[%s756 + $0x10] sm:$0xff]
        %v760 = vld [vmem:[%s756 + $0x18] sm:$0xff]
        %v761 = vld [vmem:[%s756 + $0x20] sm:$0xff]
        %v762 = vld [vmem:[%s756 + $0x28] sm:$0xff]
        %v764 = vunpack.c.l.b16 %v755
        %v765 = vpack.c.b16 %v764, %v764
        %v767 = vshrl.u32 %v765, 16
        %v769 = vshll.u32 %v765, 16
        %v771 = vrot.slane %v769, 1
        %v772 = vor.u32 %v767, %v771
        %v779 = vunpack.c.l.b16 %v757
        %v780 = vunpack.c.h.b16 %v757
        %v781 = vunpack.c.l.b16 %v758
        %v782 = vunpack.c.h.b16 %v758
        %v783 = vunpack.c.l.b16 %v759
        %v784 = vunpack.c.h.b16 %v759
        %v785 = vunpack.c.l.b16 %v760
        %v786 = vunpack.c.h.b16 %v760
        %v787 = vunpack.c.l.b16 %v761
        %v788 = vunpack.c.h.b16 %v761
        %v789 = vunpack.c.l.b16 %v762
        %v790 = vunpack.c.h.b16 %v762
        %v791 = vpack.c.b16 %v781, %v779
        %v792 = vpack.c.b16 %v782, %v780
        %v793 = vpack.c.b16 %v785, %v783
        %v794 = vpack.c.b16 %v786, %v784
        %v795 = vpack.c.b16 %v789, %v787
        %v796 = vpack.c.b16 %v790, %v788
        %v804 = vsel %vm666, %v772, 0
        %806 = vmatpush.bf16.msra.mxu0 0
        %807 = vmatpush.bf16.msra.mxu0 0
        %808 = vmatpush.bf16.msra.mxu0 0
        %809 = vmatpush.bf16.msra.mxu0 0
        %810 = vmatpush.bf16.msra.mxu0 0
        %811 = vmatpush.bf16.msra.mxu0 %v795
        %812 = vmatpush.bf16.msra.mxu0 %v793
        %813 = vmatpush.bf16.msra.mxu0 %v791
        %814 = vmatmul.bf16.gmra.mxu0 %v804
        %v815 = vpop.f32.mrf.mxu0
        %v816 = vadd.f32 0.0, %v815
        %v817 = vpop.f32.mrf.mxu0
        %818 = vdwg.mxu0
        %819 = vmatpush.bf16.msra.mxu0 0
        %820 = vmatpush.bf16.msra.mxu0 0
        %821 = vmatpush.bf16.msra.mxu0 0
        %822 = vmatpush.bf16.msra.mxu0 0
        %823 = vmatpush.bf16.msra.mxu0 0
        %824 = vmatpush.bf16.msra.mxu0 %v796
        %825 = vmatpush.bf16.msra.mxu0 %v794
        %826 = vmatpush.bf16.msra.mxu0 %v792
        %827 = vmatmul.bf16.gmra.mxu0 %v804
        %v828 = vpop.f32.mrf.mxu0
        %v829 = vadd.f32 0.0, %v828
        %v830 = vpop.f32.mrf.mxu0
        %831 = vdwg.mxu0
        %v832 = vadd.f32 %v739, %v816
        %v833 = vadd.f32 %v752, %v829
        %v834 = vld [vmem:[%s573] sm:$0x3]
        %s835 = scalar_lea.vmem %s6, 144
        %v836 = vld [vmem:[%s835] sm:$0xff]
        %v837 = vld [vmem:[%s835 + $0x8] sm:$0xff]
        %v838 = vld [vmem:[%s835 + $0x10] sm:$0xff]
        %v839 = vld [vmem:[%s835 + $0x18] sm:$0xff]
        %v840 = vld [vmem:[%s835 + $0x20] sm:$0xff]
        %v841 = vld [vmem:[%s835 + $0x28] sm:$0xff]
        %v848 = vunpack.c.l.b16 %v836
        %v849 = vunpack.c.h.b16 %v836
        %v850 = vunpack.c.l.b16 %v837
        %v851 = vunpack.c.h.b16 %v837
        %v852 = vunpack.c.l.b16 %v838
        %v853 = vunpack.c.h.b16 %v838
        %v854 = vunpack.c.l.b16 %v839
        %v855 = vunpack.c.h.b16 %v839
        %v856 = vunpack.c.l.b16 %v840
        %v857 = vunpack.c.h.b16 %v840
        %v858 = vunpack.c.l.b16 %v841
        %v859 = vunpack.c.h.b16 %v841
        %v860 = vpack.c.b16 %v850, %v848
        %v861 = vpack.c.b16 %v851, %v849
        %v862 = vpack.c.b16 %v854, %v852
        %v863 = vpack.c.b16 %v855, %v853
        %v864 = vpack.c.b16 %v858, %v856
        %v865 = vpack.c.b16 %v859, %v857
        %v873 = vsel %vm666, %v834, 0
        %875 = vmatpush.bf16.msra.mxu0 0
        %876 = vmatpush.bf16.msra.mxu0 0
        %877 = vmatpush.bf16.msra.mxu0 0
        %878 = vmatpush.bf16.msra.mxu0 0
        %879 = vmatpush.bf16.msra.mxu0 0
        %880 = vmatpush.bf16.msra.mxu0 %v864
        %881 = vmatpush.bf16.msra.mxu0 %v862
        %882 = vmatpush.bf16.msra.mxu0 %v860
        %883 = vmatmul.bf16.gmra.mxu0 %v873
        %v884 = vpop.f32.mrf.mxu0
        %v885 = vadd.f32 0.0, %v884
        %v886 = vpop.f32.mrf.mxu0
        %887 = vdwg.mxu0
        %888 = vmatpush.bf16.msra.mxu0 0
        %889 = vmatpush.bf16.msra.mxu0 0
        %890 = vmatpush.bf16.msra.mxu0 0
        %891 = vmatpush.bf16.msra.mxu0 0
        %892 = vmatpush.bf16.msra.mxu0 0
        %893 = vmatpush.bf16.msra.mxu0 %v865
        %894 = vmatpush.bf16.msra.mxu0 %v863
        %895 = vmatpush.bf16.msra.mxu0 %v861
        %896 = vmatmul.bf16.gmra.mxu0 %v873
        %v897 = vpop.f32.mrf.mxu0
        %v898 = vadd.f32 0.0, %v897
        %v899 = vpop.f32.mrf.mxu0
        %900 = vdwg.mxu0
        %v901 = vadd.f32 %v832, %v885
        %v902 = vadd.f32 %v833, %v898
        %v903 = vld [vmem:[%s581] sm:$0x3]
        %s904 = scalar_lea.vmem %s6, 192
        %v905 = vld [vmem:[%s904] sm:$0xff]
        %v906 = vld [vmem:[%s904 + $0x8] sm:$0xff]
        %v907 = vld [vmem:[%s904 + $0x10] sm:$0xff]
        %v908 = vld [vmem:[%s904 + $0x18] sm:$0xff]
        %v909 = vld [vmem:[%s904 + $0x20] sm:$0xff]
        %v910 = vld [vmem:[%s904 + $0x28] sm:$0xff]
        %v917 = vunpack.c.l.b16 %v905
        %v918 = vunpack.c.h.b16 %v905
        %v919 = vunpack.c.l.b16 %v906
        %v920 = vunpack.c.h.b16 %v906
        %v921 = vunpack.c.l.b16 %v907
        %v922 = vunpack.c.h.b16 %v907
        %v923 = vunpack.c.l.b16 %v908
        %v924 = vunpack.c.h.b16 %v908
        %v925 = vunpack.c.l.b16 %v909
        %v926 = vunpack.c.h.b16 %v909
        %v927 = vunpack.c.l.b16 %v910
        %v928 = vunpack.c.h.b16 %v910
        %v929 = vpack.c.b16 %v919, %v917
        %v930 = vpack.c.b16 %v920, %v918
        %v931 = vpack.c.b16 %v923, %v921
        %v932 = vpack.c.b16 %v924, %v922
        %v933 = vpack.c.b16 %v927, %v925
        %v934 = vpack.c.b16 %v928, %v926
        %v942 = vsel %vm666, %v903, 0
        %944 = vmatpush.bf16.msra.mxu0 0
        %945 = vmatpush.bf16.msra.mxu0 0
        %946 = vmatpush.bf16.msra.mxu0 0
        %947 = vmatpush.bf16.msra.mxu0 0
        %948 = vmatpush.bf16.msra.mxu0 0
        %949 = vmatpush.bf16.msra.mxu0 %v933
        %950 = vmatpush.bf16.msra.mxu0 %v931
        %951 = vmatpush.bf16.msra.mxu0 %v929
        %952 = vmatmul.bf16.gmra.mxu0 %v942
        %v953 = vpop.f32.mrf.mxu0
        %v954 = vadd.f32 0.0, %v953
        %v955 = vpop.f32.mrf.mxu0
        %956 = vdwg.mxu0
        %957 = vmatpush.bf16.msra.mxu0 0
        %958 = vmatpush.bf16.msra.mxu0 0
        %959 = vmatpush.bf16.msra.mxu0 0
        %960 = vmatpush.bf16.msra.mxu0 0
        %961 = vmatpush.bf16.msra.mxu0 0
        %962 = vmatpush.bf16.msra.mxu0 %v934
        %963 = vmatpush.bf16.msra.mxu0 %v932
        %964 = vmatpush.bf16.msra.mxu0 %v930
        %965 = vmatmul.bf16.gmra.mxu0 %v942
        %v966 = vpop.f32.mrf.mxu0
        %v967 = vadd.f32 0.0, %v966
        %v968 = vpop.f32.mrf.mxu0
        %969 = vdwg.mxu0
        %v970 = vadd.f32 %v901, %v954
        %v971 = vadd.f32 %v902, %v967
        %v972 = vld [vmem:[%s573] sm:$0x7]
        %s973 = scalar_lea.vmem %s6, 240
        %v974 = vld [vmem:[%s973] sm:$0xff]
        %v975 = vld [vmem:[%s973 + $0x8] sm:$0xff]
        %v976 = vld [vmem:[%s973 + $0x10] sm:$0xff]
        %v977 = vld [vmem:[%s973 + $0x18] sm:$0xff]
        %v978 = vld [vmem:[%s973 + $0x20] sm:$0xff]
        %v979 = vld [vmem:[%s973 + $0x28] sm:$0xff]
        %v981 = vunpack.c.l.b16 %v972
        %v982 = vpack.c.b16 %v981, %v981
        %v984 = vshrl.u32 %v982, 16
        %v986 = vshll.u32 %v982, 16
        %v988 = vrot.slane %v986, 1
        %v989 = vor.u32 %v984, %v988
        %v996 = vunpack.c.l.b16 %v974
        %v997 = vunpack.c.h.b16 %v974
        %v998 = vunpack.c.l.b16 %v975
        %v999 = vunpack.c.h.b16 %v975
        %v1000 = vunpack.c.l.b16 %v976
        %v1001 = vunpack.c.h.b16 %v976
        %v1002 = vunpack.c.l.b16 %v977
        %v1003 = vunpack.c.h.b16 %v977
        %v1004 = vunpack.c.l.b16 %v978
        %v1005 = vunpack.c.h.b16 %v978
        %v1006 = vunpack.c.l.b16 %v979
        %v1007 = vunpack.c.h.b16 %v979
        %v1008 = vpack.c.b16 %v998, %v996
        %v1009 = vpack.c.b16 %v999, %v997
        %v1010 = vpack.c.b16 %v1002, %v1000
        %v1011 = vpack.c.b16 %v1003, %v1001
        %v1012 = vpack.c.b16 %v1006, %v1004
        %v1013 = vpack.c.b16 %v1007, %v1005
        %v1021 = vsel %vm666, %v989, 0
        %1023 = vmatpush.bf16.msra.mxu0 0
        %1024 = vmatpush.bf16.msra.mxu0 0
        %1025 = vmatpush.bf16.msra.mxu0 0
        %1026 = vmatpush.bf16.msra.mxu0 0
        %1027 = vmatpush.bf16.msra.mxu0 0
        %1028 = vmatpush.bf16.msra.mxu0 %v1012
        %1029 = vmatpush.bf16.msra.mxu0 %v1010
        %1030 = vmatpush.bf16.msra.mxu0 %v1008
        %1031 = vmatmul.bf16.gmra.mxu0 %v1021
        %v1032 = vpop.f32.mrf.mxu0
        %v1033 = vadd.f32 0.0, %v1032
        %v1034 = vpop.f32.mrf.mxu0
        %1035 = vdwg.mxu0
        %1036 = vmatpush.bf16.msra.mxu0 0
        %1037 = vmatpush.bf16.msra.mxu0 0
        %1038 = vmatpush.bf16.msra.mxu0 0
        %1039 = vmatpush.bf16.msra.mxu0 0
        %1040 = vmatpush.bf16.msra.mxu0 0
        %1041 = vmatpush.bf16.msra.mxu0 %v1013
        %1042 = vmatpush.bf16.msra.mxu0 %v1011
        %1043 = vmatpush.bf16.msra.mxu0 %v1009
        %1044 = vmatmul.bf16.gmra.mxu0 %v1021
        %v1045 = vpop.f32.mrf.mxu0
        %v1046 = vadd.f32 0.0, %v1045
        %v1047 = vpop.f32.mrf.mxu0
        %1048 = vdwg.mxu0
        %v1049 = vadd.f32 %v970, %v1033
        %v1050 = vadd.f32 %v971, %v1046
        %v1051 = vld [vmem:[%s590] sm:$0x3]
        %s1052 = scalar_lea.vmem %s6, 288
        %v1053 = vld [vmem:[%s1052] sm:$0xff]
        %v1054 = vld [vmem:[%s1052 + $0x8] sm:$0xff]
        %v1055 = vld [vmem:[%s1052 + $0x10] sm:$0xff]
        %v1056 = vld [vmem:[%s1052 + $0x18] sm:$0xff]
        %v1057 = vld [vmem:[%s1052 + $0x20] sm:$0xff]
        %v1058 = vld [vmem:[%s1052 + $0x28] sm:$0xff]
        %v1065 = vunpack.c.l.b16 %v1053
        %v1066 = vunpack.c.h.b16 %v1053
        %v1067 = vunpack.c.l.b16 %v1054
        %v1068 = vunpack.c.h.b16 %v1054
        %v1069 = vunpack.c.l.b16 %v1055
        %v1070 = vunpack.c.h.b16 %v1055
        %v1071 = vunpack.c.l.b16 %v1056
        %v1072 = vunpack.c.h.b16 %v1056
        %v1073 = vunpack.c.l.b16 %v1057
        %v1074 = vunpack.c.h.b16 %v1057
        %v1075 = vunpack.c.l.b16 %v1058
        %v1076 = vunpack.c.h.b16 %v1058
        %v1077 = vpack.c.b16 %v1067, %v1065
        %v1078 = vpack.c.b16 %v1068, %v1066
        %v1079 = vpack.c.b16 %v1071, %v1069
        %v1080 = vpack.c.b16 %v1072, %v1070
        %v1081 = vpack.c.b16 %v1075, %v1073
        %v1082 = vpack.c.b16 %v1076, %v1074
        %v1090 = vsel %vm666, %v1051, 0
        %1092 = vmatpush.bf16.msra.mxu0 0
        %1093 = vmatpush.bf16.msra.mxu0 0
        %1094 = vmatpush.bf16.msra.mxu0 0
        %1095 = vmatpush.bf16.msra.mxu0 0
        %1096 = vmatpush.bf16.msra.mxu0 0
        %1097 = vmatpush.bf16.msra.mxu0 %v1081
        %1098 = vmatpush.bf16.msra.mxu0 %v1079
        %1099 = vmatpush.bf16.msra.mxu0 %v1077
        %1100 = vmatmul.bf16.gmra.mxu0 %v1090
        %v1101 = vpop.f32.mrf.mxu0
        %v1102 = vadd.f32 0.0, %v1101
        %v1103 = vpop.f32.mrf.mxu0
        %1104 = vdwg.mxu0
        %1105 = vmatpush.bf16.msra.mxu0 0
        %1106 = vmatpush.bf16.msra.mxu0 0
        %1107 = vmatpush.bf16.msra.mxu0 0
        %1108 = vmatpush.bf16.msra.mxu0 0
        %1109 = vmatpush.bf16.msra.mxu0 0
        %1110 = vmatpush.bf16.msra.mxu0 %v1082
        %1111 = vmatpush.bf16.msra.mxu0 %v1080
        %1112 = vmatpush.bf16.msra.mxu0 %v1078
        %1113 = vmatmul.bf16.gmra.mxu0 %v1090
        %v1114 = vpop.f32.mrf.mxu0
        %v1115 = vadd.f32 0.0, %v1114
        %v1116 = vpop.f32.mrf.mxu0
        %1117 = vdwg.mxu0
        %v1118 = vadd.f32 %v1049, %v1102
        %v1119 = vadd.f32 %v1050, %v1115
        %v1120 = vld [vmem:[%s600] sm:$0x3]
        %s1121 = scalar_lea.vmem %s6, 336
        %v1122 = vld [vmem:[%s1121] sm:$0xff]
        %v1123 = vld [vmem:[%s1121 + $0x8] sm:$0xff]
        %v1124 = vld [vmem:[%s1121 + $0x10] sm:$0xff]
        %v1125 = vld [vmem:[%s1121 + $0x18] sm:$0xff]
        %v1126 = vld [vmem:[%s1121 + $0x20] sm:$0xff]
        %v1127 = vld [vmem:[%s1121 + $0x28] sm:$0xff]
        %v1134 = vunpack.c.l.b16 %v1122
        %v1135 = vunpack.c.h.b16 %v1122
        %v1136 = vunpack.c.l.b16 %v1123
        %v1137 = vunpack.c.h.b16 %v1123
        %v1138 = vunpack.c.l.b16 %v1124
        %v1139 = vunpack.c.h.b16 %v1124
        %v1140 = vunpack.c.l.b16 %v1125
        %v1141 = vunpack.c.h.b16 %v1125
        %v1142 = vunpack.c.l.b16 %v1126
        %v1143 = vunpack.c.h.b16 %v1126
        %v1144 = vunpack.c.l.b16 %v1127
        %v1145 = vunpack.c.h.b16 %v1127
        %v1146 = vpack.c.b16 %v1136, %v1134
        %v1147 = vpack.c.b16 %v1137, %v1135
        %v1148 = vpack.c.b16 %v1140, %v1138
        %v1149 = vpack.c.b16 %v1141, %v1139
        %v1150 = vpack.c.b16 %v1144, %v1142
        %v1151 = vpack.c.b16 %v1145, %v1143
        %v1159 = vsel %vm666, %v1120, 0
        %1161 = vmatpush.bf16.msra.mxu0 0
        %1162 = vmatpush.bf16.msra.mxu0 0
        %1163 = vmatpush.bf16.msra.mxu0 0
        %1164 = vmatpush.bf16.msra.mxu0 0
        %1165 = vmatpush.bf16.msra.mxu0 0
        %1166 = vmatpush.bf16.msra.mxu0 %v1150
        %1167 = vmatpush.bf16.msra.mxu0 %v1148
        %1168 = vmatpush.bf16.msra.mxu0 %v1146
        %1169 = vmatmul.bf16.gmra.mxu0 %v1159
        %v1170 = vpop.f32.mrf.mxu0
        %v1171 = vadd.f32 0.0, %v1170
        %v1172 = vpop.f32.mrf.mxu0
        %1173 = vdwg.mxu0
        %1174 = vmatpush.bf16.msra.mxu0 0
        %1175 = vmatpush.bf16.msra.mxu0 0
        %1176 = vmatpush.bf16.msra.mxu0 0
        %1177 = vmatpush.bf16.msra.mxu0 0
        %1178 = vmatpush.bf16.msra.mxu0 0
        %1179 = vmatpush.bf16.msra.mxu0 %v1151
        %1180 = vmatpush.bf16.msra.mxu0 %v1149
        %1181 = vmatpush.bf16.msra.mxu0 %v1147
        %1182 = vmatmul.bf16.gmra.mxu0 %v1159
        %v1183 = vpop.f32.mrf.mxu0
        %v1184 = vadd.f32 0.0, %v1183
        %v1185 = vpop.f32.mrf.mxu0
        %1186 = vdwg.mxu0
        %v1187 = vadd.f32 %v1118, %v1171
        %v1188 = vadd.f32 %v1119, %v1184
        %v1189 = vld [vmem:[%s590] sm:$0x7]
        %s1190 = scalar_lea.vmem %s6, 384
        %v1191 = vld [vmem:[%s1190] sm:$0xff]
        %v1192 = vld [vmem:[%s1190 + $0x8] sm:$0xff]
        %v1193 = vld [vmem:[%s1190 + $0x10] sm:$0xff]
        %v1194 = vld [vmem:[%s1190 + $0x18] sm:$0xff]
        %v1195 = vld [vmem:[%s1190 + $0x20] sm:$0xff]
        %v1196 = vld [vmem:[%s1190 + $0x28] sm:$0xff]
        %v1198 = vunpack.c.l.b16 %v1189
        %v1199 = vpack.c.b16 %v1198, %v1198
        %v1201 = vshrl.u32 %v1199, 16
        %v1203 = vshll.u32 %v1199, 16
        %v1205 = vrot.slane %v1203, 1
        %v1206 = vor.u32 %v1201, %v1205
        %v1213 = vunpack.c.l.b16 %v1191
        %v1214 = vunpack.c.h.b16 %v1191
        %v1215 = vunpack.c.l.b16 %v1192
        %v1216 = vunpack.c.h.b16 %v1192
        %v1217 = vunpack.c.l.b16 %v1193
        %v1218 = vunpack.c.h.b16 %v1193
        %v1219 = vunpack.c.l.b16 %v1194
        %v1220 = vunpack.c.h.b16 %v1194
        %v1221 = vunpack.c.l.b16 %v1195
        %v1222 = vunpack.c.h.b16 %v1195
        %v1223 = vunpack.c.l.b16 %v1196
        %v1224 = vunpack.c.h.b16 %v1196
        %v1225 = vpack.c.b16 %v1215, %v1213
        %v1226 = vpack.c.b16 %v1216, %v1214
        %v1227 = vpack.c.b16 %v1219, %v1217
        %v1228 = vpack.c.b16 %v1220, %v1218
        %v1229 = vpack.c.b16 %v1223, %v1221
        %v1230 = vpack.c.b16 %v1224, %v1222
        %v1238 = vsel %vm666, %v1206, 0
        %1240 = vmatpush.bf16.msra.mxu0 0
        %1241 = vmatpush.bf16.msra.mxu0 0
        %1242 = vmatpush.bf16.msra.mxu0 0
        %1243 = vmatpush.bf16.msra.mxu0 0
        %1244 = vmatpush.bf16.msra.mxu0 0
        %1245 = vmatpush.bf16.msra.mxu0 %v1229
        %1246 = vmatpush.bf16.msra.mxu0 %v1227
        %1247 = vmatpush.bf16.msra.mxu0 %v1225
        %1248 = vmatmul.bf16.gmra.mxu0 %v1238
        %v1249 = vpop.f32.mrf.mxu0
        %v1250 = vadd.f32 0.0, %v1249
        %v1251 = vpop.f32.mrf.mxu0
        %1252 = vdwg.mxu0
        %1253 = vmatpush.bf16.msra.mxu0 0
        %1254 = vmatpush.bf16.msra.mxu0 0
        %1255 = vmatpush.bf16.msra.mxu0 0
        %1256 = vmatpush.bf16.msra.mxu0 0
        %1257 = vmatpush.bf16.msra.mxu0 0
        %1258 = vmatpush.bf16.msra.mxu0 %v1230
        %1259 = vmatpush.bf16.msra.mxu0 %v1228
        %1260 = vmatpush.bf16.msra.mxu0 %v1226
        %1261 = vmatmul.bf16.gmra.mxu0 %v1238
        %v1262 = vpop.f32.mrf.mxu0
        %v1263 = vadd.f32 0.0, %v1262
        %v1264 = vpop.f32.mrf.mxu0
        %1265 = vdwg.mxu0
        %v1266 = vadd.f32 %v1187, %v1250
        %v1267 = vadd.f32 %v1188, %v1263
        %v1268 = vld [vmem:[%s7] sm:$0x3]
        %v1270 = vperm.slane %v1268, 0
        %v1271 = vperm.slane %v1268, 1
        %v1274 = vadd.f32 %v1266, %v1270
        %v1275 = vadd.f32 %v1267, %v1271
        %v1276 = vld [vmem:[%s610] sm:$0xff]
        %1278 = vst [vmem:[#allocation1] ss:$2 sm:$0xff] %v1276
        %v1279 = vld.sshfl [vmem:[#allocation1] sm:$0xff pattern:$0x75316420]
        %v1280 = vld.sshfl [vmem:[#allocation1 + $0x8] sm:$0xff pattern:$0x75316420]
        %v1283 = vadd.f32 %v1274, %v1279
        %v1284 = vadd.f32 %v1275, %v1280
        %v1285 = vld [vmem:[%s619] sm:$0xff]
        %1287 = vst [vmem:[#allocation1] ss:$2 sm:$0xff] %v1285
        %v1288 = vld.sshfl [vmem:[#allocation1] sm:$0xff pattern:$0x75316420]
        %v1289 = vld.sshfl [vmem:[#allocation1 + $0x8] sm:$0xff pattern:$0x75316420]
        %v1292 = vadd.f32 %v1283, %v1288
        %v1293 = vadd.f32 %v1284, %v1289
        %v1294 = vmax.f32 %v1292, 0.0
        %v1295 = vmax.f32 %v1293, 0.0
        %v1298 = vrot.slane %v1295, 4
        %vm1299 = vcmask 1043456
        %v1300 = vsel %vm1299, %v1294, %v1298
        %vm1302 = vcmask 523268
        %vm1303 = vmor %vm1302, %vm1299
        %1304 = vst.msk [vmem:[%s549] sm:$0xff] %vm1303, %v1300
        %s1305 = sand.u32 %s316, 1
        %s1306 = scalar_lea.sflag [#allocation3], %s1305
        %s1307 = sand.u32 %s316, 1
        %s1308 = smul.addr %s1307, 8
        %s1309 = scalar_lea.vmem [#allocation2], %s1308
        // Predicated region
        $region61: #{stage03_fuse_forward.12} parent=59 // pred_check
          %p1310 = pneg %p326
        $region62: #{stage03_fuse_forward.12} parent=59 // pred_check_branch
          %1312 = sbr.rel (%p1310) target = $region64
        $region63: #{stage03_fuse_forward.12} parent=59 // pred_region
          %1314 = vsyncadd %s1306, 0
          %s1315 = smul.addr %s29, 2
          %s1316 = smul.addr %s28, 8
          %s1317 = sadd.s32 %s1315, %s1316
          %s1318 = smul.addr %s1317, 4
          %s1319 = scalar_lea.hbm %s10, %s1318
          %s1321 = sshll.u32 %s1309, 4
          %s1322 = int_to_ptr.vmem [resolvable:$true] %s1321
          %s1323 = sshll.u32 %s1319, 4
          %s1324 = int_to_ptr.hbm [resolvable:$true] %s1323
          %1326 = dma.vmem_to_hbm [thread:$0]  %s1322, 128, %s1324, %s1306
        $region64: #{stage03_fuse_forward.12} parent=59 // pred_fallthru
          _
      $region60: #{stage03_fuse_forward.12} parent=5 // pred_fallthru
        _
      %p1327 = scmp.le.s32.totalorder 2, %s19
      // Predicated region
      $region65: #{stage03_fuse_forward.12} parent=5 // pred_check
        %p1328 = pneg %p1327
      $region66: #{stage03_fuse_forward.12} parent=5 // pred_check_branch
        %1330 = sbr.rel (%p1328) target = $region68
      $region67: #{stage03_fuse_forward.12} parent=5 // pred_region
        %s1331 = ssub.s32 %s19, 2
        // Predicated region
        $region69: #{stage03_fuse_forward.12} parent=67 // pred_check
          %p1332 = pneg %p332
        $region70: #{stage03_fuse_forward.12} parent=67 // pred_check_branch
          %1334 = sbr.rel (%p1332) target = $region72
        $region71: #{stage03_fuse_forward.12} parent=67 // pred_region
          %s1335 = sand.u32 %s317, 1
          %s1336 = scalar_lea.sflag [#allocation3], %s1335
          %s1337 = sand.u32 %s317, 1
          %s1338 = smul.addr %s1337, 8
          %s1339 = scalar_lea.vmem [#allocation2], %s1338
          %1341 = dma.done %s1336, 128
        $region72: #{stage03_fuse_forward.12} parent=67 // pred_fallthru
          _
      $region68: #{stage03_fuse_forward.12} parent=5 // pred_fallthru
        _
    $region6: #{stage03_fuse_forward.12} parent=1 // loop_footer
      %s23 = sadd.s32 1, %s19
    $region7: #{stage03_fuse_forward.12} parent=1 // loop_footer_branch
      %18 = sbr.rel target = $region3
    $region8: #{stage03_fuse_forward.12} parent=1 // loop_exit
      _
    %1342 = vsyncpa [#allocation3], 1
    %s1343 = scalar_lea.sflag [#allocation3], 1
    %1344 = vsyncpa %s1343, 1

// kernel: stage03_fuse_forward.8
$region0: #{stage03_fuse_forward.8}
  #allocation0 [shape = 'u32[]', space=smem, size = 0x4, offset = 0x4, fixed_abs, tag = 'smem constant byte address 0x4 - core index']
  #allocation1 [shape = 'u32[72,128]{1,0:T(1,128)}', space=vmem, size = 0x9000, scoped, tag = 'internal scratch']
  %s0 = inlined_call_operand.vmem [shape: bf16[128,96], index: 0, kind: input, shape index: {}]
  %s1 = inlined_call_operand.vmem [shape: bf16[96,48], index: 1, kind: input, shape index: {}]
  %s2 = inlined_call_operand.vmem [shape: f32[1,48], index: 2, kind: input, shape index: {}]
  %s3 = inlined_call_operand.vmem [shape: f32[128,48], index: 3, kind: output, shape index: {}]
  %s4 = sld [smem:[#allocation0]]
  $region22: #{stage03_fuse_forward.8} parent=0
    _
  %s6 = ssub.s32 1, %s4
  %s7 = scalar_select 0, %s6, %s4
  // Predicated region
  $region2: #{stage03_fuse_forward.8} parent=0 // pred_check
    _
  $region3: #{stage03_fuse_forward.8} parent=0 // pred_check_branch
    %9 = sbr.rel (0) target = $region5
  $region4: #{stage03_fuse_forward.8} parent=0 // pred_region
    _
  $region5: #{stage03_fuse_forward.8} parent=0 // pred_fallthru
    _
  // Predicated region
  $region6: #{stage03_fuse_forward.8} parent=0 // pred_check
    _
  $region7: #{stage03_fuse_forward.8} parent=0 // pred_check_branch
    %11 = sbr.rel (0) target = $region9
  $region8: #{stage03_fuse_forward.8} parent=0 // pred_region
    _
  $region9: #{stage03_fuse_forward.8} parent=0 // pred_fallthru
    _
  // Predicated region
  $region10: #{stage03_fuse_forward.8} parent=0 // pred_check
    _
  $region11: #{stage03_fuse_forward.8} parent=0 // pred_check_branch
    %13 = sbr.rel (0) target = $region13
  $region12: #{stage03_fuse_forward.8} parent=0 // pred_region
    _
  $region13: #{stage03_fuse_forward.8} parent=0 // pred_fallthru
    _
  %v15 = vld [vmem:[%s0] sm:$0xf]
  %v16 = vld [vmem:[%s0 + $0x4] sm:$0xf]
  %v17 = vld [vmem:[%s0 + $0x8] sm:$0xf]
  %v18 = vld [vmem:[%s0 + $0xc] sm:$0xf]
  %v19 = vld [vmem:[%s0 + $0x10] sm:$0xf]
  %v20 = vld [vmem:[%s0 + $0x14] sm:$0xf]
  %v21 = vld [vmem:[%s0 + $0x18] sm:$0xf]
  %v22 = vld [vmem:[%s0 + $0x1c] sm:$0xf]
  %v23 = vld [vmem:[%s0 + $0x20] sm:$0xf]
  %v24 = vld [vmem:[%s0 + $0x24] sm:$0xf]
  %v25 = vld [vmem:[%s0 + $0x28] sm:$0xf]
  %v26 = vld [vmem:[%s0 + $0x2c] sm:$0xf]
  %v27 = vld [vmem:[%s0 + $0x30] sm:$0xf]
  %v28 = vld [vmem:[%s0 + $0x34] sm:$0xf]
  %v29 = vld [vmem:[%s0 + $0x38] sm:$0xf]
  %v30 = vld [vmem:[%s0 + $0x3c] sm:$0xf]
  %v31 = vld [vmem:[%s1] sm:$0xf]
  %v32 = vld [vmem:[%s1 + $0x4] sm:$0xf]
  %v33 = vld [vmem:[%s1 + $0x8] sm:$0xf]
  %v34 = vld [vmem:[%s1 + $0xc] sm:$0xf]
  %v35 = vld [vmem:[%s1 + $0x10] sm:$0xf]
  %v36 = vld [vmem:[%s1 + $0x14] sm:$0xf]
  %v37 = vld [vmem:[%s1 + $0x18] sm:$0xf]
  %v38 = vld [vmem:[%s1 + $0x1c] sm:$0xf]
  %v39 = vld [vmem:[%s1 + $0x20] sm:$0xf]
  %v40 = vld [vmem:[%s1 + $0x24] sm:$0xf]
  %v41 = vld [vmem:[%s1 + $0x28] sm:$0xf]
  %v42 = vld [vmem:[%s1 + $0x2c] sm:$0xf]
  %v43 = vld [vmem:[%s2] sm:$0x1]
  %v45 = vperm.slane %v43, 0
  %v63 = vunpack.c.l.b16 %v15
  %v64 = vunpack.c.l.b16 %v16
  %v65 = vunpack.c.l.b16 %v17
  %v66 = vunpack.c.l.b16 %v18
  %v67 = vunpack.c.l.b16 %v19
  %v68 = vunpack.c.l.b16 %v20
  %v69 = vunpack.c.l.b16 %v21
  %v70 = vunpack.c.l.b16 %v22
  %v71 = vunpack.c.l.b16 %v23
  %v72 = vunpack.c.l.b16 %v24
  %v73 = vunpack.c.l.b16 %v25
  %v74 = vunpack.c.l.b16 %v26
  %v75 = vunpack.c.l.b16 %v27
  %v76 = vunpack.c.l.b16 %v28
  %v77 = vunpack.c.l.b16 %v29
  %v78 = vunpack.c.l.b16 %v30
  %v79 = vpack.c.b16 %v64, %v63
  %v80 = vpack.c.b16 %v66, %v65
  %v81 = vpack.c.b16 %v68, %v67
  %v82 = vpack.c.b16 %v70, %v69
  %v83 = vpack.c.b16 %v72, %v71
  %v84 = vpack.c.b16 %v74, %v73
  %v85 = vpack.c.b16 %v76, %v75
  %v86 = vpack.c.b16 %v78, %v77
  %v99 = vunpack.c.l.b16 %v31
  %v100 = vunpack.c.l.b16 %v32
  %v101 = vunpack.c.l.b16 %v33
  %v102 = vunpack.c.l.b16 %v34
  %v103 = vunpack.c.l.b16 %v35
  %v104 = vunpack.c.l.b16 %v36
  %v105 = vunpack.c.l.b16 %v37
  %v106 = vunpack.c.l.b16 %v38
  %v107 = vunpack.c.l.b16 %v39
  %v108 = vunpack.c.l.b16 %v40
  %v109 = vunpack.c.l.b16 %v41
  %v110 = vunpack.c.l.b16 %v42
  %v111 = vpack.c.b16 %v100, %v99
  %v112 = vpack.c.b16 %v102, %v101
  %v113 = vpack.c.b16 %v104, %v103
  %v114 = vpack.c.b16 %v106, %v105
  %v115 = vpack.c.b16 %v108, %v107
  %v116 = vpack.c.b16 %v110, %v109
  %vm123 = vcmask 785408
  %v125 = vsel %vm123, %v79, 0
  %v128 = vsel %vm123, %v80, 0
  %v131 = vsel %vm123, %v81, 0
  %v134 = vsel %vm123, %v82, 0
  %v137 = vsel %vm123, %v83, 0
  %v140 = vsel %vm123, %v84, 0
  %v143 = vsel %vm123, %v85, 0
  %v146 = vsel %vm123, %v86, 0
  %148 = vmatpush.bf16.msra.mxu0 0
  %149 = vmatpush.bf16.msra.mxu0 0
  %150 = vmatpush.bf16.msra.mxu0 %v116
  %151 = vmatpush.bf16.msra.mxu0 %v115
  %152 = vmatpush.bf16.msra.mxu0 %v114
  %153 = vmatpush.bf16.msra.mxu0 %v113
  %154 = vmatpush.bf16.msra.mxu0 %v112
  %155 = vmatpush.bf16.msra.mxu0 %v111
  %156 = vmatmul.bf16.gmra.mxu0 %v125
  %v157 = vpop.f32.mrf.mxu0
  %v158 = vadd.f32 %v45, %v157
  %v159 = vpop.f32.mrf.mxu0
  %v160 = vadd.f32 %v45, %v159
  %161 = vmatmul.bf16.gmra.mxu0 %v128
  %v162 = vpop.f32.mrf.mxu0
  %v163 = vadd.f32 %v45, %v162
  %v164 = vpop.f32.mrf.mxu0
  %v165 = vadd.f32 %v45, %v164
  %166 = vmatmul.bf16.gmra.mxu0 %v131
  %v167 = vpop.f32.mrf.mxu0
  %v168 = vadd.f32 %v45, %v167
  %v169 = vpop.f32.mrf.mxu0
  %v170 = vadd.f32 %v45, %v169
  %171 = vmatmul.bf16.gmra.mxu0 %v134
  %v172 = vpop.f32.mrf.mxu0
  %v173 = vadd.f32 %v45, %v172
  %v174 = vpop.f32.mrf.mxu0
  %v175 = vadd.f32 %v45, %v174
  %176 = vmatmul.bf16.gmra.mxu0 %v137
  %v177 = vpop.f32.mrf.mxu0
  %v178 = vadd.f32 %v45, %v177
  %v179 = vpop.f32.mrf.mxu0
  %v180 = vadd.f32 %v45, %v179
  %181 = vmatmul.bf16.gmra.mxu0 %v140
  %v182 = vpop.f32.mrf.mxu0
  %v183 = vadd.f32 %v45, %v182
  %v184 = vpop.f32.mrf.mxu0
  %v185 = vadd.f32 %v45, %v184
  %186 = vmatmul.bf16.gmra.mxu0 %v143
  %v187 = vpop.f32.mrf.mxu0
  %v188 = vadd.f32 %v45, %v187
  %v189 = vpop.f32.mrf.mxu0
  %v190 = vadd.f32 %v45, %v189
  %191 = vmatmul.bf16.gmra.mxu0 %v146
  %v192 = vpop.f32.mrf.mxu0
  %v193 = vadd.f32 %v45, %v192
  %v194 = vpop.f32.mrf.mxu0
  %v195 = vadd.f32 %v45, %v194
  %196 = vdwg.mxu0
  %vm197 = vcmask 392192
  %198 = vst.msk [vmem:[%s3] sm:$0xff] %vm197, %v158
  %199 = vst.msk [vmem:[%s3 + $0x8] sm:$0xff] %vm197, %v160
  %200 = vst.msk [vmem:[%s3 + $0x10] sm:$0xff] %vm197, %v163
  %201 = vst.msk [vmem:[%s3 + $0x18] sm:$0xff] %vm197, %v165
  %202 = vst.msk [vmem:[%s3 + $0x20] sm:$0xff] %vm197, %v168
  %203 = vst.msk [vmem:[%s3 + $0x28] sm:$0xff] %vm197, %v170
  %204 = vst.msk [vmem:[%s3 + $0x30] sm:$0xff] %vm197, %v173
  %205 = vst.msk [vmem:[%s3 + $0x38] sm:$0xff] %vm197, %v175
  %206 = vst.msk [vmem:[%s3 + $0x40] sm:$0xff] %vm197, %v178
  %207 = vst.msk [vmem:[%s3 + $0x48] sm:$0xff] %vm197, %v180
  %208 = vst.msk [vmem:[%s3 + $0x50] sm:$0xff] %vm197, %v183
  %209 = vst.msk [vmem:[%s3 + $0x58] sm:$0xff] %vm197, %v185
  %210 = vst.msk [vmem:[%s3 + $0x60] sm:$0xff] %vm197, %v188
  %211 = vst.msk [vmem:[%s3 + $0x68] sm:$0xff] %vm197, %v190
  %212 = vst.msk [vmem:[%s3 + $0x70] sm:$0xff] %vm197, %v193
  %213 = vst.msk [vmem:[%s3 + $0x78] sm:$0xff] %vm197, %v195
  // Predicated region
  $region14: #{stage03_fuse_forward.8} parent=0 // pred_check
    _
  $region15: #{stage03_fuse_forward.8} parent=0 // pred_check_branch
    %215 = sbr.rel (0) target = $region17
  $region16: #{stage03_fuse_forward.8} parent=0 // pred_region
    _
  $region17: #{stage03_fuse_forward.8} parent=0 // pred_fallthru
    _
  // Predicated region
  $region18: #{stage03_fuse_forward.8} parent=0 // pred_check
    _
  $region19: #{stage03_fuse_forward.8} parent=0 // pred_check_branch
    %217 = sbr.rel (0) target = $region21
  $region20: #{stage03_fuse_forward.8} parent=0 // pred_region
    _
  $region21: #{stage03_fuse_forward.8} parent=0 // pred_fallthru
    _

// kernel: stage03_fuse_forward.11
$region0: #{stage03_fuse_forward.11}
  #allocation0 [shape = 'u32[]', space=smem, size = 0x4, offset = 0x4, fixed_abs, tag = 'smem constant byte address 0x4 - core index']
  #allocation1 [shape = 'u32[72,128]{1,0:T(1,128)}', space=vmem, size = 0x9000, scoped, tag = 'internal scratch']
  %s0 = inlined_call_operand.vmem [shape: bf16[2,9,9,48], index: 0, kind: input, shape index: {}, may-alias: {0,4}]
  %s1 = inlined_call_operand.vmem [shape: bf16[2,9,9,48], index: 1, kind: input, shape index: {}, may-alias: {1,5}]
  %s2 = inlined_call_operand.vmem [shape: bf16[2,9,9,48], index: 2, kind: input, shape index: {}]
  %s3 = inlined_call_operand.vmem [shape: bf16[2,9,9,48], index: 3, kind: input, shape index: {}]
  %s4 = inlined_call_operand.vmem [shape: bf16[2,9,9,48], index: 4, kind: input, shape index: {}, may-alias: {0,4}]
  %s5 = inlined_call_operand.vmem [shape: bf16[2,9,9,48], index: 5, kind: input, shape index: {}, may-alias: {1,5}]
  %s6 = inlined_call_operand.vmem [shape: bf16[9,48,96], index: 6, kind: input, shape index: {}]
  %s7 = inlined_call_operand.vmem [shape: f32[1,96], index: 7, kind: input, shape index: {}]
  %s8 = inlined_call_operand.vmem [shape: f32[2,8,8,96], index: 8, kind: input, shape index: {}]
  %s9 = inlined_call_operand.vmem [shape: f32[2,8,8,96], index: 9, kind: input, shape index: {}]
  %s10 = inlined_call_operand.hbm [shape: f32[2,8,8,96], index: 10, kind: output, shape index: {}]
  %s11 = sld [smem:[#allocation0]]
  $region73: #{stage03_fuse_forward.11} parent=0
    _
  %s13 = ssub.s32 1, %s11
  %s14 = scalar_select 0, %s13, %s11
  $region1: #{stage03_fuse_forward.11} parent=0
    #allocation2 [shape = 'u8[8192]{0}', space=vmem, size = 0x2000, scoped, tag = 'output window, operand 0']
    #allocation3 [shape = 's32[2]{0}', space=sflag, size = 0x8, scoped, tag = 'scoped memory for stage03_fuse_forward.11']
    %15 = vsyncpa [#allocation3], 0
    %s16 = scalar_lea.sflag [#allocation3], 1
    %17 = vsyncpa %s16, 0
    loop: start=0, step=1, limit=18
    $region2: #{stage03_fuse_forward.11} parent=1 // loop_pre_header
      _
    $region3: #{stage03_fuse_forward.11} parent=1 // loop_header
      %s19 = sphi 0, %s23
      %p20 = scmp.ge.s32.totalorder %s19, 18
      %s26 = sphi 0, %s38
      %s27 = sphi 0, %s34
      %s28 = sphi 0, %s26
      %s29 = sphi 0, %s27
      %s30 = sphi 0, %s28
      %s31 = sphi 0, %s29
      %s43 = sphi 0, %s45
      %s46 = sphi 0, %s43
      %s47 = sphi 0, %s46
      %s63 = sphi 0, %s47
      %s71 = sphi 0, %s73
      %s74 = sphi 0, %s71
      %s75 = sphi 0, %s74
      %s91 = sphi 0, %s75
      %s99 = sphi 0, %s101
      %s102 = sphi 0, %s99
      %s103 = sphi 0, %s102
      %s119 = sphi 0, %s103
      %s127 = sphi 0, %s129
      %s130 = sphi 0, %s127
      %s131 = sphi 0, %s130
      %s147 = sphi 0, %s131
      %s157 = sphi 0, %s159
      %s160 = sphi 0, %s157
      %s161 = sphi 0, %s160
      %s177 = sphi 0, %s161
      %s187 = sphi 0, %s189
      %s190 = sphi 0, %s187
      %s191 = sphi 0, %s190
      %s207 = sphi 0, %s191
      %s211 = sphi 0, %s211
      %s213 = sphi 0, %s211
      %s214 = sphi 0, %s213
      %s228 = sphi 0, %s214
      %s232 = sphi 0, %s232
      %s234 = sphi 0, %s232
      %s235 = sphi 0, %s234
      %s249 = sphi 0, %s235
      %s257 = sphi 0, %s259
      %s260 = sphi 0, %s257
      %s261 = sphi 0, %s260
      %s277 = sphi 0, %s261
      %s285 = sphi 0, %s287
      %s288 = sphi 0, %s285
      %s289 = sphi 0, %s288
      %s305 = sphi 0, %s289
      %s313 = sphi 0, %s315
      %s316 = sphi 0, %s313
      %s317 = sphi 0, %s316
      %s333 = sphi 0, %s317
    $region4: #{stage03_fuse_forward.11} parent=1 // loop_header_branch
      %22 = sbr.rel (%p20) target = $region8
    $region5: #{stage03_fuse_forward.11} parent=1 // loop_body
      %s24 = ssub.s32 %s19, 1
      %s25 = ssub.s32 %s19, 2
      %s32 = sadd.s32 1, %s27
      %p33 = scmp.ge.s32.totalorder %s32, 8
      %s34 = scalar_select %p33, 0, %s32
      %s35 = sadd.s32 1, %s26
      %s36 = scalar_select %p33, %s35, %s26
      %p37 = scmp.ge.s32.totalorder %s36, 2
      %s38 = scalar_select %p37, 0, %s36
      %s39 = ssub.s32 %s26, %s38
      %s40 = ssub.s32 %s27, %s34
      %s41 = sor.u32 %s39, %s40
      %p42 = scmp.eq.s32.totalorder %s41, 0
      %s44 = sadd.s32 %s43, 1
      %s45 = scalar_select %p42, %s43, %s44
      %p48 = pneg %p42
      %p49 = scmp.eq.s32.totalorder %s19, 15
      %p50 = por %p48, %p49
      %p51 = scmp.ne.s32.totalorder %s43, %s46
      %p52 = scmp.eq.s32.totalorder %s19, 0
      %p53 = por %p51, %p52
      %p54 = scmp.ne.s32.totalorder %s43, %s46
      %p55 = scmp.eq.s32.totalorder %s24, 15
      %p56 = por %p54, %p55
      %p57 = scmp.ne.s32.totalorder %s46, %s47
      %p58 = scmp.eq.s32.totalorder %s24, 0
      %p59 = por %p57, %p58
      %p60 = scmp.ne.s32.totalorder %s46, %s47
      %p61 = scmp.eq.s32.totalorder %s25, 15
      %p62 = por %p60, %p61
      %p64 = scmp.ne.s32.totalorder %s47, %s63
      %p65 = scmp.eq.s32.totalorder %s25, 0
      %p66 = por %p64, %p65
      %s67 = ssub.s32 %s26, %s38
      %s68 = ssub.s32 %s27, %s34
      %s69 = sor.u32 %s67, %s68
      %p70 = scmp.eq.s32.totalorder %s69, 0
      %s72 = sadd.s32 %s71, 1
      %s73 = scalar_select %p70, %s71, %s72
      %p76 = pneg %p70
      %p77 = scmp.eq.s32.totalorder %s19, 15
      %p78 = por %p76, %p77
      %p79 = scmp.ne.s32.totalorder %s71, %s74
      %p80 = scmp.eq.s32.totalorder %s19, 0
      %p81 = por %p79, %p80
      %p82 = scmp.ne.s32.totalorder %s71, %s74
      %p83 = scmp.eq.s32.totalorder %s24, 15
      %p84 = por %p82, %p83
      %p85 = scmp.ne.s32.totalorder %s74, %s75
      %p86 = scmp.eq.s32.totalorder %s24, 0
      %p87 = por %p85, %p86
      %p88 = scmp.ne.s32.totalorder %s74, %s75
      %p89 = scmp.eq.s32.totalorder %s25, 15
      %p90 = por %p88, %p89
      %p92 = scmp.ne.s32.totalorder %s75, %s91
      %p93 = scmp.eq.s32.totalorder %s25, 0
      %p94 = por %p92, %p93
      %s95 = ssub.s32 %s26, %s38
      %s96 = ssub.s32 %s27, %s34
      %s97 = sor.u32 %s95, %s96
      %p98 = scmp.eq.s32.totalorder %s97, 0
      %s100 = sadd.s32 %s99, 1
      %s101 = scalar_select %p98, %s99, %s100
      %p104 = pneg %p98
      %p105 = scmp.eq.s32.totalorder %s19, 15
      %p106 = por %p104, %p105
      %p107 = scmp.ne.s32.totalorder %s99, %s102
      %p108 = scmp.eq.s32.totalorder %s19, 0
      %p109 = por %p107, %p108
      %p110 = scmp.ne.s32.totalorder %s99, %s102
      %p111 = scmp.eq.s32.totalorder %s24, 15
      %p112 = por %p110, %p111
      %p113 = scmp.ne.s32.totalorder %s102, %s103
      %p114 = scmp.eq.s32.totalorder %s24, 0
      %p115 = por %p113, %p114
      %p116 = scmp.ne.s32.totalorder %s102, %s103
      %p117 = scmp.eq.s32.totalorder %s25, 15
      %p118 = por %p116, %p117
      %p120 = scmp.ne.s32.totalorder %s103, %s119
      %p121 = scmp.eq.s32.totalorder %s25, 0
      %p122 = por %p120, %p121
      %s123 = ssub.s32 %s26, %s38
      %s124 = ssub.s32 %s27, %s34
      %s125 = sor.u32 %s123, %s124
      %p126 = scmp.eq.s32.totalorder %s125, 0
      %s128 = sadd.s32 %s127, 1
      %s129 = scalar_select %p126, %s127, %s128
      %p132 = pneg %p126
      %p133 = scmp.eq.s32.totalorder %s19, 15
      %p134 = por %p132, %p133
      %p135 = scmp.ne.s32.totalorder %s127, %s130
      %p136 = scmp.eq.s32.totalorder %s19, 0
      %p137 = por %p135, %p136
      %p138 = scmp.ne.s32.totalorder %s127, %s130
      %p139 = scmp.eq.s32.totalorder %s24, 15
      %p140 = por %p138, %p139
      %p141 = scmp.ne.s32.totalorder %s130, %s131
      %p142 = scmp.eq.s32.totalorder %s24, 0
      %p143 = por %p141, %p142
      %p144 = scmp.ne.s32.totalorder %s130, %s131
      %p145 = scmp.eq.s32.totalorder %s25, 15
      %p146 = por %p144, %p145
      %p148 = scmp.ne.s32.totalorder %s131, %s147
      %p149 = scmp.eq.s32.totalorder %s25, 0
      %p150 = por %p148, %p149
      %s151 = sadd.s32 %s27, 1
      %s152 = sadd.s32 %s34, 1
      %s153 = ssub.s32 %s26, %s38
      %s154 = ssub.s32 %s151, %s152
      %s155 = sor.u32 %s153, %s154
      %p156 = scmp.eq.s32.totalorder %s155, 0
      %s158 = sadd.s32 %s157, 1
      %s159 = scalar_select %p156, %s157, %s158
      %p162 = pneg %p156
      %p163 = scmp.eq.s32.totalorder %s19, 15
      %p164 = por %p162, %p163
      %p165 = scmp.ne.s32.totalorder %s157, %s160
      %p166 = scmp.eq.s32.totalorder %s19, 0
      %p167 = por %p165, %p166
      %p168 = scmp.ne.s32.totalorder %s157, %s160
      %p169 = scmp.eq.s32.totalorder %s24, 15
      %p170 = por %p168, %p169
      %p171 = scmp.ne.s32.totalorder %s160, %s161
      %p172 = scmp.eq.s32.totalorder %s24, 0
      %p173 = por %p171, %p172
      %p174 = scmp.ne.s32.totalorder %s160, %s161
      %p175 = scmp.eq.s32.totalorder %s25, 15
      %p176 = por %p174, %p175
      %p178 = scmp.ne.s32.totalorder %s161, %s177
      %p179 = scmp.eq.s32.totalorder %s25, 0
      %p180 = por %p178, %p179
      %s181 = sadd.s32 %s27, 1
      %s182 = sadd.s32 %s34, 1
      %s183 = ssub.s32 %s26, %s38
      %s184 = ssub.s32 %s181, %s182
      %s185 = sor.u32 %s183, %s184
      %p186 = scmp.eq.s32.totalorder %s185, 0
      %s188 = sadd.s32 %s187, 1
      %s189 = scalar_select %p186, %s187, %s188
      %p192 = pneg %p186
      %p193 = scmp.eq.s32.totalorder %s19, 15
      %p194 = por %p192, %p193
      %p195 = scmp.ne.s32.totalorder %s187, %s190
      %p196 = scmp.eq.s32.totalorder %s19, 0
      %p197 = por %p195, %p196
      %p198 = scmp.ne.s32.totalorder %s187, %s190
      %p199 = scmp.eq.s32.totalorder %s24, 15
      %p200 = por %p198, %p199
      %p201 = scmp.ne.s32.totalorder %s190, %s191
      %p202 = scmp.eq.s32.totalorder %s24, 0
      %p203 = por %p201, %p202
      %p204 = scmp.ne.s32.totalorder %s190, %s191
      %p205 = scmp.eq.s32.totalorder %s25, 15
      %p206 = por %p204, %p205
      %p208 = scmp.ne.s32.totalorder %s191, %s207
      %p209 = scmp.eq.s32.totalorder %s25, 0
      %p210 = por %p208, %p209
      %s212 = sadd.s32 %s211, 1
      %p215 = scmp.eq.s32.totalorder %s19, 15
      %p216 = scmp.ne.s32.totalorder %s211, %s213
      %p217 = scmp.eq.s32.totalorder %s19, 0
      %p218 = por %p216, %p217
      %p219 = scmp.ne.s32.totalorder %s211, %s213
      %p220 = scmp.eq.s32.totalorder %s24, 15
      %p221 = por %p219, %p220
      %p222 = scmp.ne.s32.totalorder %s213, %s214
      %p223 = scmp.eq.s32.totalorder %s24, 0
      %p224 = por %p222, %p223
      %p225 = scmp.ne.s32.totalorder %s213, %s214
      %p226 = scmp.eq.s32.totalorder %s25, 15
      %p227 = por %p225, %p226
      %p229 = scmp.ne.s32.totalorder %s214, %s228
      %p230 = scmp.eq.s32.totalorder %s25, 0
      %p231 = por %p229, %p230
      %s233 = sadd.s32 %s232, 1
      %p236 = scmp.eq.s32.totalorder %s19, 15
      %p237 = scmp.ne.s32.totalorder %s232, %s234
      %p238 = scmp.eq.s32.totalorder %s19, 0
      %p239 = por %p237, %p238
      %p240 = scmp.ne.s32.totalorder %s232, %s234
      %p241 = scmp.eq.s32.totalorder %s24, 15
      %p242 = por %p240, %p241
      %p243 = scmp.ne.s32.totalorder %s234, %s235
      %p244 = scmp.eq.s32.totalorder %s24, 0
      %p245 = por %p243, %p244
      %p246 = scmp.ne.s32.totalorder %s234, %s235
      %p247 = scmp.eq.s32.totalorder %s25, 15
      %p248 = por %p246, %p247
      %p250 = scmp.ne.s32.totalorder %s235, %s249
      %p251 = scmp.eq.s32.totalorder %s25, 0
      %p252 = por %p250, %p251
      %s253 = ssub.s32 %s26, %s38
      %s254 = ssub.s32 %s27, %s34
      %s255 = sor.u32 %s253, %s254
      %p256 = scmp.eq.s32.totalorder %s255, 0
      %s258 = sadd.s32 %s257, 1
      %s259 = scalar_select %p256, %s257, %s258
      %p262 = pneg %p256
      %p263 = scmp.eq.s32.totalorder %s19, 15
      %p264 = por %p262, %p263
      %p265 = scmp.ne.s32.totalorder %s257, %s260
      %p266 = scmp.eq.s32.totalorder %s19, 0
      %p267 = por %p265, %p266
      %p268 = scmp.ne.s32.totalorder %s257, %s260
      %p269 = scmp.eq.s32.totalorder %s24, 15
      %p270 = por %p268, %p269
      %p271 = scmp.ne.s32.totalorder %s260, %s261
      %p272 = scmp.eq.s32.totalorder %s24, 0
      %p273 = por %p271, %p272
      %p274 = scmp.ne.s32.totalorder %s260, %s261
      %p275 = scmp.eq.s32.totalorder %s25, 15
      %p276 = por %p274, %p275
      %p278 = scmp.ne.s32.totalorder %s261, %s277
      %p279 = scmp.eq.s32.totalorder %s25, 0
      %p280 = por %p278, %p279
      %s281 = ssub.s32 %s26, %s38
      %s282 = ssub.s32 %s27, %s34
      %s283 = sor.u32 %s281, %s282
      %p284 = scmp.eq.s32.totalorder %s283, 0
      %s286 = sadd.s32 %s285, 1
      %s287 = scalar_select %p284, %s285, %s286
      %p290 = pneg %p284
      %p291 = scmp.eq.s32.totalorder %s19, 15
      %p292 = por %p290, %p291
      %p293 = scmp.ne.s32.totalorder %s285, %s288
      %p294 = scmp.eq.s32.totalorder %s19, 0
      %p295 = por %p293, %p294
      %p296 = scmp.ne.s32.totalorder %s285, %s288
      %p297 = scmp.eq.s32.totalorder %s24, 15
      %p298 = por %p296, %p297
      %p299 = scmp.ne.s32.totalorder %s288, %s289
      %p300 = scmp.eq.s32.totalorder %s24, 0
      %p301 = por %p299, %p300
      %p302 = scmp.ne.s32.totalorder %s288, %s289
      %p303 = scmp.eq.s32.totalorder %s25, 15
      %p304 = por %p302, %p303
      %p306 = scmp.ne.s32.totalorder %s289, %s305
      %p307 = scmp.eq.s32.totalorder %s25, 0
      %p308 = por %p306, %p307
      %s309 = ssub.s32 %s26, %s38
      %s310 = ssub.s32 %s27, %s34
      %s311 = sor.u32 %s309, %s310
      %p312 = scmp.eq.s32.totalorder %s311, 0
      %s314 = sadd.s32 %s313, 1
      %s315 = scalar_select %p312, %s313, %s314
      %p318 = pneg %p312
      %p319 = scmp.eq.s32.totalorder %s19, 15
      %p320 = por %p318, %p319
      %p321 = scmp.ne.s32.totalorder %s313, %s316
      %p322 = scmp.eq.s32.totalorder %s19, 0
      %p323 = por %p321, %p322
      %p324 = scmp.ne.s32.totalorder %s313, %s316
      %p325 = scmp.eq.s32.totalorder %s24, 15
      %p326 = por %p324, %p325
      %p327 = scmp.ne.s32.totalorder %s316, %s317
      %p328 = scmp.eq.s32.totalorder %s24, 0
      %p329 = por %p327, %p328
      %p330 = scmp.ne.s32.totalorder %s316, %s317
      %p331 = scmp.eq.s32.totalorder %s25, 15
      %p332 = por %p330, %p331
      %p334 = scmp.ne.s32.totalorder %s317, %s333
      %p335 = scmp.eq.s32.totalorder %s25, 0
      %p336 = por %p334, %p335
      %p337 = scmp.le.s32.totalorder 1, %s19
      %p338 = scmp.lt.s32.totalorder %s19, 17
      %p339 = pnand %p337, %p338
      %p340 = pneg %p339
      // Predicated region
      $region9: #{stage03_fuse_forward.11} parent=5 // pred_check
        _
      $region10: #{stage03_fuse_forward.11} parent=5 // pred_check_branch
        %342 = sbr.rel (%p339) target = $region12
      $region11: #{stage03_fuse_forward.11} parent=5 // pred_region
        %s343 = ssub.s32 %s19, 1
        // Predicated region
        $region13: #{stage03_fuse_forward.11} parent=11 // pred_check
          %p344 = pneg %p224
        $region14: #{stage03_fuse_forward.11} parent=11 // pred_check_branch
          %346 = sbr.rel (%p344) target = $region16
        $region15: #{stage03_fuse_forward.11} parent=11 // pred_region
          _
        $region16: #{stage03_fuse_forward.11} parent=11 // pred_fallthru
          _
        // Predicated region
        $region17: #{stage03_fuse_forward.11} parent=11 // pred_check
          %p347 = pneg %p245
        $region18: #{stage03_fuse_forward.11} parent=11 // pred_check_branch
          %349 = sbr.rel (%p347) target = $region20
        $region19: #{stage03_fuse_forward.11} parent=11 // pred_region
          _
        $region20: #{stage03_fuse_forward.11} parent=11 // pred_fallthru
          _
      $region12: #{stage03_fuse_forward.11} parent=5 // pred_fallthru
        _
      %p350 = scmp.lt.s32.totalorder %s19, 16
      // Predicated region
      $region21: #{stage03_fuse_forward.11} parent=5 // pred_check
        %p351 = pneg %p350
      $region22: #{stage03_fuse_forward.11} parent=5 // pred_check_branch
        %353 = sbr.rel (%p351) target = $region24
      $region23: #{stage03_fuse_forward.11} parent=5 // pred_region
        // Predicated region
        $region25: #{stage03_fuse_forward.11} parent=23 // pred_check
          %p354 = pneg %p53
        $region26: #{stage03_fuse_forward.11} parent=23 // pred_check_branch
          %356 = sbr.rel (%p354) target = $region28
        $region27: #{stage03_fuse_forward.11} parent=23 // pred_region
          %p357 = scmp.lt.s32.totalorder %s26, 1
          %s358 = scalar_select %p357, %s26, 1
          %p359 = scmp.lt.s32.totalorder %s27, 8
          %s360 = scalar_select %p359, %s27, 8
          %s361 = smul.addr %s360, 2
          %s362 = smul.addr %s358, 18
          %s363 = sadd.s32 %s361, %s362
          %s364 = smul.addr %s363, 4
          %s365 = scalar_lea.vmem %s0, %s364
        $region28: #{stage03_fuse_forward.11} parent=23 // pred_fallthru
          _
        // Predicated region
        $region29: #{stage03_fuse_forward.11} parent=23 // pred_check
          %p366 = pneg %p81
        $region30: #{stage03_fuse_forward.11} parent=23 // pred_check_branch
          %368 = sbr.rel (%p366) target = $region32
        $region31: #{stage03_fuse_forward.11} parent=23 // pred_region
          %p369 = scmp.lt.s32.totalorder %s26, 1
          %s370 = scalar_select %p369, %s26, 1
          %p371 = scmp.lt.s32.totalorder %s27, 8
          %s372 = scalar_select %p371, %s27, 8
          %s373 = smul.addr %s372, 2
          %s374 = smul.addr %s370, 18
          %s375 = sadd.s32 %s373, %s374
          %s376 = smul.addr %s375, 4
          %s377 = scalar_lea.vmem %s1, %s376
        $region32: #{stage03_fuse_forward.11} parent=23 // pred_fallthru
          _
        // Predicated region
        $region33: #{stage03_fuse_forward.11} parent=23 // pred_check
          %p378 = pneg %p109
        $region34: #{stage03_fuse_forward.11} parent=23 // pred_check_branch
          %380 = sbr.rel (%p378) target = $region36
        $region35: #{stage03_fuse_forward.11} parent=23 // pred_region
          %p381 = scmp.lt.s32.totalorder %s26, 1
          %s382 = scalar_select %p381, %s26, 1
          %p383 = scmp.lt.s32.totalorder %s27, 8
          %s384 = scalar_select %p383, %s27, 8
          %s385 = smul.addr %s384, 2
          %s386 = smul.addr %s382, 18
          %s387 = sadd.s32 %s385, %s386
          %s388 = smul.addr %s387, 4
          %s389 = scalar_lea.vmem %s2, %s388
        $region36: #{stage03_fuse_forward.11} parent=23 // pred_fallthru
          _
        // Predicated region
        $region37: #{stage03_fuse_forward.11} parent=23 // pred_check
          %p390 = pneg %p137
        $region38: #{stage03_fuse_forward.11} parent=23 // pred_check_branch
          %392 = sbr.rel (%p390) target = $region40
        $region39: #{stage03_fuse_forward.11} parent=23 // pred_region
          %p393 = scmp.lt.s32.totalorder %s26, 1
          %s394 = scalar_select %p393, %s26, 1
          %p395 = scmp.lt.s32.totalorder %s27, 8
          %s396 = scalar_select %p395, %s27, 8
          %s397 = smul.addr %s396, 2
          %s398 = smul.addr %s394, 18
          %s399 = sadd.s32 %s397, %s398
          %s400 = smul.addr %s399, 4
          %s401 = scalar_lea.vmem %s3, %s400
        $region40: #{stage03_fuse_forward.11} parent=23 // pred_fallthru
          _
        // Predicated region
        $region41: #{stage03_fuse_forward.11} parent=23 // pred_check
          %p402 = pneg %p167
        $region42: #{stage03_fuse_forward.11} parent=23 // pred_check_branch
          %404 = sbr.rel (%p402) target = $region44
        $region43: #{stage03_fuse_forward.11} parent=23 // pred_region
          %s405 = sadd.s32 %s27, 1
          %p406 = scmp.lt.s32.totalorder %s26, 1
          %s407 = scalar_select %p406, %s26, 1
          %p408 = scmp.lt.s32.totalorder %s405, 8
          %s409 = scalar_select %p408, %s405, 8
          %s410 = smul.addr %s409, 2
          %s411 = smul.addr %s407, 18
          %s412 = sadd.s32 %s410, %s411
          %s413 = smul.addr %s412, 4
          %s414 = scalar_lea.vmem %s4, %s413
          %s415 = sadd.s32 %s27, 1
        $region44: #{stage03_fuse_forward.11} parent=23 // pred_fallthru
          _
        // Predicated region
        $region45: #{stage03_fuse_forward.11} parent=23 // pred_check
          %p416 = pneg %p197
        $region46: #{stage03_fuse_forward.11} parent=23 // pred_check_branch
          %418 = sbr.rel (%p416) target = $region48
        $region47: #{stage03_fuse_forward.11} parent=23 // pred_region
          %s419 = sadd.s32 %s27, 1
          %p420 = scmp.lt.s32.totalorder %s26, 1
          %s421 = scalar_select %p420, %s26, 1
          %p422 = scmp.lt.s32.totalorder %s419, 8
          %s423 = scalar_select %p422, %s419, 8
          %s424 = smul.addr %s423, 2
          %s425 = smul.addr %s421, 18
          %s426 = sadd.s32 %s424, %s425
          %s427 = smul.addr %s426, 4
          %s428 = scalar_lea.vmem %s5, %s427
          %s429 = sadd.s32 %s27, 1
        $region48: #{stage03_fuse_forward.11} parent=23 // pred_fallthru
          _
        // Predicated region
        $region49: #{stage03_fuse_forward.11} parent=23 // pred_check
          %p430 = pneg %p267
        $region50: #{stage03_fuse_forward.11} parent=23 // pred_check_branch
          %432 = sbr.rel (%p430) target = $region52
        $region51: #{stage03_fuse_forward.11} parent=23 // pred_region
          %p433 = scmp.lt.s32.totalorder %s26, 1
          %s434 = scalar_select %p433, %s26, 1
          %p435 = scmp.lt.s32.totalorder %s27, 7
          %s436 = scalar_select %p435, %s27, 7
          %s437 = smul.addr %s434, 8
          %s438 = sadd.s32 %s436, %s437
          %s439 = smul.addr %s438, 8
          %s440 = scalar_lea.vmem %s8, %s439
        $region52: #{stage03_fuse_forward.11} parent=23 // pred_fallthru
          _
        // Predicated region
        $region53: #{stage03_fuse_forward.11} parent=23 // pred_check
          %p441 = pneg %p295
        $region54: #{stage03_fuse_forward.11} parent=23 // pred_check_branch
          %443 = sbr.rel (%p441) target = $region56
        $region55: #{stage03_fuse_forward.11} parent=23 // pred_region
          %p444 = scmp.lt.s32.totalorder %s26, 1
          %s445 = scalar_select %p444, %s26, 1
          %p446 = scmp.lt.s32.totalorder %s27, 7
          %s447 = scalar_select %p446, %s27, 7
          %s448 = smul.addr %s445, 8
          %s449 = sadd.s32 %s447, %s448
          %s450 = smul.addr %s449, 8
          %s451 = scalar_lea.vmem %s9, %s450
        $region56: #{stage03_fuse_forward.11} parent=23 // pred_fallthru
          _
      $region24: #{stage03_fuse_forward.11} parent=5 // pred_fallthru
        _
      %p452 = scmp.le.s32.totalorder 1, %s19
      %p453 = scmp.lt.s32.totalorder %s19, 17
      %p454 = pnand %p452, %p453
      %p455 = pneg %p454
      // Predicated region
      $region57: #{stage03_fuse_forward.11} parent=5 // pred_check
        _
      $region58: #{stage03_fuse_forward.11} parent=5 // pred_check_branch
        %457 = sbr.rel (%p454) target = $region60
      $region59: #{stage03_fuse_forward.11} parent=5 // pred_region
        %s458 = ssub.s32 %s19, 1
        %p459 = scmp.lt.s32.totalorder %s28, 1
        %s460 = scalar_select %p459, %s28, 1
        %p461 = scmp.lt.s32.totalorder %s29, 8
        %s462 = scalar_select %p461, %s29, 8
        %s463 = smul.addr %s462, 2
        %s464 = smul.addr %s460, 18
        %s465 = sadd.s32 %s463, %s464
        %s466 = smul.addr %s465, 4
        %s467 = scalar_lea.vmem %s0, %s466
        %p468 = pneg %p59
        %p469 = pneg %p56
        %p470 = scmp.lt.s32.totalorder %s28, 1
        %s471 = scalar_select %p470, %s28, 1
        %p472 = scmp.lt.s32.totalorder %s29, 8
        %s473 = scalar_select %p472, %s29, 8
        %s474 = smul.addr %s473, 2
        %s475 = smul.addr %s471, 18
        %s476 = sadd.s32 %s474, %s475
        %s477 = smul.addr %s476, 4
        %s478 = scalar_lea.vmem %s1, %s477
        %p479 = pneg %p87
        %p480 = pneg %p84
        %p481 = scmp.lt.s32.totalorder %s28, 1
        %s482 = scalar_select %p481, %s28, 1
        %p483 = scmp.lt.s32.totalorder %s29, 8
        %s484 = scalar_select %p483, %s29, 8
        %s485 = smul.addr %s484, 2
        %s486 = smul.addr %s482, 18
        %s487 = sadd.s32 %s485, %s486
        %s488 = smul.addr %s487, 4
        %s489 = scalar_lea.vmem %s2, %s488
        %p490 = pneg %p115
        %p491 = pneg %p112
        %p492 = scmp.lt.s32.totalorder %s28, 1
        %s493 = scalar_select %p492, %s28, 1
        %p494 = scmp.lt.s32.totalorder %s29, 8
        %s495 = scalar_select %p494, %s29, 8
        %s496 = smul.addr %s495, 2
        %s497 = smul.addr %s493, 18
        %s498 = sadd.s32 %s496, %s497
        %s499 = smul.addr %s498, 4
        %s500 = scalar_lea.vmem %s3, %s499
        %p501 = pneg %p143
        %p502 = pneg %p140
        %s503 = sadd.s32 %s29, 1
        %p504 = scmp.lt.s32.totalorder %s28, 1
        %s505 = scalar_select %p504, %s28, 1
        %p506 = scmp.lt.s32.totalorder %s503, 8
        %s507 = scalar_select %p506, %s503, 8
        %s508 = smul.addr %s507, 2
        %s509 = smul.addr %s505, 18
        %s510 = sadd.s32 %s508, %s509
        %s511 = smul.addr %s510, 4
        %s512 = scalar_lea.vmem %s4, %s511
        %p513 = pneg %p173
        %p514 = pneg %p170
        %s515 = sadd.s32 %s29, 1
        %p516 = scmp.lt.s32.totalorder %s28, 1
        %s517 = scalar_select %p516, %s28, 1
        %p518 = scmp.lt.s32.totalorder %s515, 8
        %s519 = scalar_select %p518, %s515, 8
        %s520 = smul.addr %s519, 2
        %s521 = smul.addr %s517, 18
        %s522 = sadd.s32 %s520, %s521
        %s523 = smul.addr %s522, 4
        %s524 = scalar_lea.vmem %s5, %s523
        %p525 = pneg %p203
        %p526 = pneg %p200
        %p527 = pneg %p224
        %p528 = pneg %p221
        %p529 = pneg %p245
        %p530 = pneg %p242
        %p531 = scmp.lt.s32.totalorder %s28, 1
        %s532 = scalar_select %p531, %s28, 1
        %p533 = scmp.lt.s32.totalorder %s29, 7
        %s534 = scalar_select %p533, %s29, 7
        %s535 = smul.addr %s532, 8
        %s536 = sadd.s32 %s534, %s535
        %s537 = smul.addr %s536, 8
        %s538 = scalar_lea.vmem %s8, %s537
        %p539 = pneg %p273
        %p540 = pneg %p270
        %p541 = scmp.lt.s32.totalorder %s28, 1
        %s542 = scalar_select %p541, %s28, 1
        %p543 = scmp.lt.s32.totalorder %s29, 7
        %s544 = scalar_select %p543, %s29, 7
        %s545 = smul.addr %s542, 8
        %s546 = sadd.s32 %s544, %s545
        %s547 = smul.addr %s546, 8
        %s548 = scalar_lea.vmem %s9, %s547
        %p549 = pneg %p301
        %p550 = pneg %p298
        %p551 = pneg %p329
        %p552 = pneg %p326
        %s553 = sand.u32 %s316, 1
        %s554 = scalar_lea.sflag [#allocation3], %s553
        %s555 = sand.u32 %s316, 1
        %s556 = smul.addr %s555, 8
        %s557 = scalar_lea.vmem [#allocation2], %s556
        %p558 = scmp.lt.s32.totalorder %s28, 1
        %s559 = scalar_select %p558, %s28, 1
        %p560 = scmp.lt.s32.totalorder %s29, 8
        %s561 = scalar_select %p560, %s29, 8
        %s562 = smul.addr %s561, 2
        %s563 = smul.addr %s559, 18
        %s564 = sadd.s32 %s562, %s563
        %s565 = smul.addr %s564, 4
        %s566 = scalar_lea.vmem %s0, %s565
        %p567 = scmp.lt.s32.totalorder %s28, 1
        %s568 = scalar_select %p567, %s28, 1
        %p569 = scmp.lt.s32.totalorder %s29, 8
        %s570 = scalar_select %p569, %s29, 8
        %s571 = smul.addr %s570, 2
        %s572 = smul.addr %s568, 18
        %s573 = sadd.s32 %s571, %s572
        %s574 = smul.addr %s573, 4
        %s575 = scalar_lea.vmem %s1, %s574
        %p576 = scmp.lt.s32.totalorder %s28, 1
        %s577 = scalar_select %p576, %s28, 1
        %p578 = scmp.lt.s32.totalorder %s29, 8
        %s579 = scalar_select %p578, %s29, 8
        %s580 = smul.addr %s579, 2
        %s581 = smul.addr %s577, 18
        %s582 = sadd.s32 %s580, %s581
        %s583 = smul.addr %s582, 4
        %s584 = scalar_lea.vmem %s2, %s583
        %p585 = scmp.lt.s32.totalorder %s28, 1
        %s586 = scalar_select %p585, %s28, 1
        %p587 = scmp.lt.s32.totalorder %s29, 8
        %s588 = scalar_select %p587, %s29, 8
        %s589 = smul.addr %s588, 2
        %s590 = smul.addr %s586, 18
        %s591 = sadd.s32 %s589, %s590
        %s592 = smul.addr %s591, 4
        %s593 = scalar_lea.vmem %s3, %s592
        %s594 = sadd.s32 %s29, 1
        %p595 = scmp.lt.s32.totalorder %s28, 1
        %s596 = scalar_select %p595, %s28, 1
        %p597 = scmp.lt.s32.totalorder %s594, 8
        %s598 = scalar_select %p597, %s594, 8
        %s599 = smul.addr %s598, 2
        %s600 = smul.addr %s596, 18
        %s601 = sadd.s32 %s599, %s600
        %s602 = smul.addr %s601, 4
        %s603 = scalar_lea.vmem %s4, %s602
        %s604 = sadd.s32 %s29, 1
        %s605 = sadd.s32 %s29, 1
        %p606 = scmp.lt.s32.totalorder %s28, 1
        %s607 = scalar_select %p606, %s28, 1
        %p608 = scmp.lt.s32.totalorder %s605, 8
        %s609 = scalar_select %p608, %s605, 8
        %s610 = smul.addr %s609, 2
        %s611 = smul.addr %s607, 18
        %s612 = sadd.s32 %s610, %s611
        %s613 = smul.addr %s612, 4
        %s614 = scalar_lea.vmem %s5, %s613
        %s615 = sadd.s32 %s29, 1
        %p616 = scmp.lt.s32.totalorder %s28, 1
        %s617 = scalar_select %p616, %s28, 1
        %p618 = scmp.lt.s32.totalorder %s29, 7
        %s619 = scalar_select %p618, %s29, 7
        %s620 = smul.addr %s617, 8
        %s621 = sadd.s32 %s619, %s620
        %s622 = smul.addr %s621, 8
        %s623 = scalar_lea.vmem %s8, %s622
        %p624 = scmp.lt.s32.totalorder %s28, 1
        %s625 = scalar_select %p624, %s28, 1
        %p626 = scmp.lt.s32.totalorder %s29, 7
        %s627 = scalar_select %p626, %s29, 7
        %s628 = smul.addr %s625, 8
        %s629 = sadd.s32 %s627, %s628
        %s630 = smul.addr %s629, 8
        %s631 = scalar_lea.vmem %s9, %s630
        %v633 = vld [vmem:[%s566] sm:$0xf]
        %v634 = vld [vmem:[%s6] sm:$0xf]
        %v635 = vld [vmem:[%s6 + $0x4] sm:$0xf]
        %v636 = vld [vmem:[%s6 + $0x8] sm:$0xf]
        %v637 = vld [vmem:[%s6 + $0xc] sm:$0xf]
        %v638 = vld [vmem:[%s6 + $0x10] sm:$0xf]
        %v639 = vld [vmem:[%s6 + $0x14] sm:$0xf]
        %v640 = vld [vmem:[%s575] sm:$0xf]
        %s641 = scalar_lea.vmem %s6, 24
        %v642 = vld [vmem:[%s641] sm:$0xf]
        %v643 = vld [vmem:[%s641 + $0x4] sm:$0xf]
        %v644 = vld [vmem:[%s641 + $0x8] sm:$0xf]
        %v645 = vld [vmem:[%s641 + $0xc] sm:$0xf]
        %v646 = vld [vmem:[%s641 + $0x10] sm:$0xf]
        %v647 = vld [vmem:[%s641 + $0x14] sm:$0xf]
        %v654 = vunpack.c.l.b16 %v642
        %v655 = vunpack.c.l.b16 %v643
        %v656 = vunpack.c.l.b16 %v644
        %v657 = vunpack.c.l.b16 %v645
        %v658 = vunpack.c.l.b16 %v646
        %v659 = vunpack.c.l.b16 %v647
        %v660 = vpack.c.b16 %v655, %v654
        %v661 = vpack.c.b16 %v657, %v656
        %v662 = vpack.c.b16 %v659, %v658
        %vm666 = vcmask 392192
        %v668 = vsel %vm666, %v640, 0
        %670 = vmatpush.bf16.msra.mxu0 0
        %671 = vmatpush.bf16.msra.mxu0 0
        %672 = vmatpush.bf16.msra.mxu0 0
        %673 = vmatpush.bf16.msra.mxu0 0
        %674 = vmatpush.bf16.msra.mxu0 0
        %675 = vmatpush.bf16.msra.mxu0 %v662
        %676 = vmatpush.bf16.msra.mxu0 %v661
        %677 = vmatpush.bf16.msra.mxu0 %v660
        %678 = vmatmul.bf16.gmra.mxu0 %v668
        %v679 = vpop.f32.mrf.mxu0
        %v680 = vadd.f32 0.0, %v679
        %v681 = vpop.f32.mrf.mxu0
        %682 = vdwg.mxu0
        %v689 = vunpack.c.l.b16 %v634
        %v690 = vunpack.c.l.b16 %v635
        %v691 = vunpack.c.l.b16 %v636
        %v692 = vunpack.c.l.b16 %v637
        %v693 = vunpack.c.l.b16 %v638
        %v694 = vunpack.c.l.b16 %v639
        %v695 = vpack.c.b16 %v690, %v689
        %v696 = vpack.c.b16 %v692, %v691
        %v697 = vpack.c.b16 %v694, %v693
        %v702 = vsel %vm666, %v633, 0
        %704 = vmatpush.bf16.msra.mxu0 0
        %705 = vmatpush.bf16.msra.mxu0 0
        %706 = vmatpush.bf16.msra.mxu0 0
        %707 = vmatpush.bf16.msra.mxu0 0
        %708 = vmatpush.bf16.msra.mxu0 0
        %709 = vmatpush.bf16.msra.mxu0 %v697
        %710 = vmatpush.bf16.msra.mxu0 %v696
        %711 = vmatpush.bf16.msra.mxu0 %v695
        %712 = vmatmul.bf16.gmra.mxu0 %v702
        %v713 = vpop.f32.mrf.mxu0
        %v714 = vadd.f32 %v680, %v713
        %v715 = vpop.f32.mrf.mxu0
        %716 = vdwg.mxu0
        %v717 = vld [vmem:[%s566] sm:$0xf]
        %v718 = vld [vmem:[%s566 + $0x4] sm:$0x1]
        %s719 = scalar_lea.vmem %s6, 48
        %v720 = vld [vmem:[%s719] sm:$0xf]
        %v721 = vld [vmem:[%s719 + $0x4] sm:$0xf]
        %v722 = vld [vmem:[%s719 + $0x8] sm:$0xf]
        %v723 = vld [vmem:[%s719 + $0xc] sm:$0xf]
        %v724 = vld [vmem:[%s719 + $0x10] sm:$0xf]
        %v725 = vld [vmem:[%s719 + $0x14] sm:$0xf]
        %v728 = vunpack.c.l.b16 %v717
        %v729 = vunpack.c.l.b16 %v718
        %v730 = vpack.c.b16 %v729, %v728
        %v732 = vshrl.u32 %v730, 16
        %v734 = vshll.u32 %v730, 16
        %v736 = vrot.slane %v734, 1
        %v737 = vor.u32 %v732, %v736
        %v744 = vunpack.c.l.b16 %v720
        %v745 = vunpack.c.l.b16 %v721
        %v746 = vunpack.c.l.b16 %v722
        %v747 = vunpack.c.l.b16 %v723
        %v748 = vunpack.c.l.b16 %v724
        %v749 = vunpack.c.l.b16 %v725
        %v750 = vpack.c.b16 %v745, %v744
        %v751 = vpack.c.b16 %v747, %v746
        %v752 = vpack.c.b16 %v749, %v748
        %v757 = vsel %vm666, %v737, 0
        %759 = vmatpush.bf16.msra.mxu0 0
        %760 = vmatpush.bf16.msra.mxu0 0
        %761 = vmatpush.bf16.msra.mxu0 0
        %762 = vmatpush.bf16.msra.mxu0 0
        %763 = vmatpush.bf16.msra.mxu0 0
        %764 = vmatpush.bf16.msra.mxu0 %v752
        %765 = vmatpush.bf16.msra.mxu0 %v751
        %766 = vmatpush.bf16.msra.mxu0 %v750
        %767 = vmatmul.bf16.gmra.mxu0 %v757
        %v768 = vpop.f32.mrf.mxu0
        %v769 = vadd.f32 0.0, %v768
        %v770 = vpop.f32.mrf.mxu0
        %771 = vdwg.mxu0
        %v772 = vadd.f32 %v714, %v769
        %v773 = vld [vmem:[%s584] sm:$0xf]
        %s774 = scalar_lea.vmem %s6, 72
        %v775 = vld [vmem:[%s774] sm:$0xf]
        %v776 = vld [vmem:[%s774 + $0x4] sm:$0xf]
        %v777 = vld [vmem:[%s774 + $0x8] sm:$0xf]
        %v778 = vld [vmem:[%s774 + $0xc] sm:$0xf]
        %v779 = vld [vmem:[%s774 + $0x10] sm:$0xf]
        %v780 = vld [vmem:[%s774 + $0x14] sm:$0xf]
        %v787 = vunpack.c.l.b16 %v775
        %v788 = vunpack.c.l.b16 %v776
        %v789 = vunpack.c.l.b16 %v777
        %v790 = vunpack.c.l.b16 %v778
        %v791 = vunpack.c.l.b16 %v779
        %v792 = vunpack.c.l.b16 %v780
        %v793 = vpack.c.b16 %v788, %v787
        %v794 = vpack.c.b16 %v790, %v789
        %v795 = vpack.c.b16 %v792, %v791
        %v800 = vsel %vm666, %v773, 0
        %802 = vmatpush.bf16.msra.mxu0 0
        %803 = vmatpush.bf16.msra.mxu0 0
        %804 = vmatpush.bf16.msra.mxu0 0
        %805 = vmatpush.bf16.msra.mxu0 0
        %806 = vmatpush.bf16.msra.mxu0 0
        %807 = vmatpush.bf16.msra.mxu0 %v795
        %808 = vmatpush.bf16.msra.mxu0 %v794
        %809 = vmatpush.bf16.msra.mxu0 %v793
        %810 = vmatmul.bf16.gmra.mxu0 %v800
        %v811 = vpop.f32.mrf.mxu0
        %v812 = vadd.f32 0.0, %v811
        %v813 = vpop.f32.mrf.mxu0
        %814 = vdwg.mxu0
        %v815 = vadd.f32 %v772, %v812
        %v816 = vld [vmem:[%s593] sm:$0xf]
        %s817 = scalar_lea.vmem %s6, 96
        %v818 = vld [vmem:[%s817] sm:$0xf]
        %v819 = vld [vmem:[%s817 + $0x4] sm:$0xf]
        %v820 = vld [vmem:[%s817 + $0x8] sm:$0xf]
        %v821 = vld [vmem:[%s817 + $0xc] sm:$0xf]
        %v822 = vld [vmem:[%s817 + $0x10] sm:$0xf]
        %v823 = vld [vmem:[%s817 + $0x14] sm:$0xf]
        %v830 = vunpack.c.l.b16 %v818
        %v831 = vunpack.c.l.b16 %v819
        %v832 = vunpack.c.l.b16 %v820
        %v833 = vunpack.c.l.b16 %v821
        %v834 = vunpack.c.l.b16 %v822
        %v835 = vunpack.c.l.b16 %v823
        %v836 = vpack.c.b16 %v831, %v830
        %v837 = vpack.c.b16 %v833, %v832
        %v838 = vpack.c.b16 %v835, %v834
        %v843 = vsel %vm666, %v816, 0
        %845 = vmatpush.bf16.msra.mxu0 0
        %846 = vmatpush.bf16.msra.mxu0 0
        %847 = vmatpush.bf16.msra.mxu0 0
        %848 = vmatpush.bf16.msra.mxu0 0
        %849 = vmatpush.bf16.msra.mxu0 0
        %850 = vmatpush.bf16.msra.mxu0 %v838
        %851 = vmatpush.bf16.msra.mxu0 %v837
        %852 = vmatpush.bf16.msra.mxu0 %v836
        %853 = vmatmul.bf16.gmra.mxu0 %v843
        %v854 = vpop.f32.mrf.mxu0
        %v855 = vadd.f32 0.0, %v854
        %v856 = vpop.f32.mrf.mxu0
        %857 = vdwg.mxu0
        %v858 = vadd.f32 %v815, %v855
        %v859 = vld [vmem:[%s584] sm:$0xf]
        %v860 = vld [vmem:[%s584 + $0x4] sm:$0x1]
        %s861 = scalar_lea.vmem %s6, 120
        %v862 = vld [vmem:[%s861] sm:$0xf]
        %v863 = vld [vmem:[%s861 + $0x4] sm:$0xf]
        %v864 = vld [vmem:[%s861 + $0x8] sm:$0xf]
        %v865 = vld [vmem:[%s861 + $0xc] sm:$0xf]
        %v866 = vld [vmem:[%s861 + $0x10] sm:$0xf]
        %v867 = vld [vmem:[%s861 + $0x14] sm:$0xf]
        %v870 = vunpack.c.l.b16 %v859
        %v871 = vunpack.c.l.b16 %v860
        %v872 = vpack.c.b16 %v871, %v870
        %v874 = vshrl.u32 %v872, 16
        %v876 = vshll.u32 %v872, 16
        %v878 = vrot.slane %v876, 1
        %v879 = vor.u32 %v874, %v878
        %v886 = vunpack.c.l.b16 %v862
        %v887 = vunpack.c.l.b16 %v863
        %v888 = vunpack.c.l.b16 %v864
        %v889 = vunpack.c.l.b16 %v865
        %v890 = vunpack.c.l.b16 %v866
        %v891 = vunpack.c.l.b16 %v867
        %v892 = vpack.c.b16 %v887, %v886
        %v893 = vpack.c.b16 %v889, %v888
        %v894 = vpack.c.b16 %v891, %v890
        %v899 = vsel %vm666, %v879, 0
        %901 = vmatpush.bf16.msra.mxu0 0
        %902 = vmatpush.bf16.msra.mxu0 0
        %903 = vmatpush.bf16.msra.mxu0 0
        %904 = vmatpush.bf16.msra.mxu0 0
        %905 = vmatpush.bf16.msra.mxu0 0
        %906 = vmatpush.bf16.msra.mxu0 %v894
        %907 = vmatpush.bf16.msra.mxu0 %v893
        %908 = vmatpush.bf16.msra.mxu0 %v892
        %909 = vmatmul.bf16.gmra.mxu0 %v899
        %v910 = vpop.f32.mrf.mxu0
        %v911 = vadd.f32 0.0, %v910
        %v912 = vpop.f32.mrf.mxu0
        %913 = vdwg.mxu0
        %v914 = vadd.f32 %v858, %v911
        %v915 = vld [vmem:[%s603] sm:$0xf]
        %s916 = scalar_lea.vmem %s6, 144
        %v917 = vld [vmem:[%s916] sm:$0xf]
        %v918 = vld [vmem:[%s916 + $0x4] sm:$0xf]
        %v919 = vld [vmem:[%s916 + $0x8] sm:$0xf]
        %v920 = vld [vmem:[%s916 + $0xc] sm:$0xf]
        %v921 = vld [vmem:[%s916 + $0x10] sm:$0xf]
        %v922 = vld [vmem:[%s916 + $0x14] sm:$0xf]
        %v929 = vunpack.c.l.b16 %v917
        %v930 = vunpack.c.l.b16 %v918
        %v931 = vunpack.c.l.b16 %v919
        %v932 = vunpack.c.l.b16 %v920
        %v933 = vunpack.c.l.b16 %v921
        %v934 = vunpack.c.l.b16 %v922
        %v935 = vpack.c.b16 %v930, %v929
        %v936 = vpack.c.b16 %v932, %v931
        %v937 = vpack.c.b16 %v934, %v933
        %v942 = vsel %vm666, %v915, 0
        %944 = vmatpush.bf16.msra.mxu0 0
        %945 = vmatpush.bf16.msra.mxu0 0
        %946 = vmatpush.bf16.msra.mxu0 0
        %947 = vmatpush.bf16.msra.mxu0 0
        %948 = vmatpush.bf16.msra.mxu0 0
        %949 = vmatpush.bf16.msra.mxu0 %v937
        %950 = vmatpush.bf16.msra.mxu0 %v936
        %951 = vmatpush.bf16.msra.mxu0 %v935
        %952 = vmatmul.bf16.gmra.mxu0 %v942
        %v953 = vpop.f32.mrf.mxu0
        %v954 = vadd.f32 0.0, %v953
        %v955 = vpop.f32.mrf.mxu0
        %956 = vdwg.mxu0
        %v957 = vadd.f32 %v914, %v954
        %v958 = vld [vmem:[%s614] sm:$0xf]
        %s959 = scalar_lea.vmem %s6, 168
        %v960 = vld [vmem:[%s959] sm:$0xf]
        %v961 = vld [vmem:[%s959 + $0x4] sm:$0xf]
        %v962 = vld [vmem:[%s959 + $0x8] sm:$0xf]
        %v963 = vld [vmem:[%s959 + $0xc] sm:$0xf]
        %v964 = vld [vmem:[%s959 + $0x10] sm:$0xf]
        %v965 = vld [vmem:[%s959 + $0x14] sm:$0xf]
        %v972 = vunpack.c.l.b16 %v960
        %v973 = vunpack.c.l.b16 %v961
        %v974 = vunpack.c.l.b16 %v962
        %v975 = vunpack.c.l.b16 %v963
        %v976 = vunpack.c.l.b16 %v964
        %v977 = vunpack.c.l.b16 %v965
        %v978 = vpack.c.b16 %v973, %v972
        %v979 = vpack.c.b16 %v975, %v974
        %v980 = vpack.c.b16 %v977, %v976
        %v985 = vsel %vm666, %v958, 0
        %987 = vmatpush.bf16.msra.mxu0 0
        %988 = vmatpush.bf16.msra.mxu0 0
        %989 = vmatpush.bf16.msra.mxu0 0
        %990 = vmatpush.bf16.msra.mxu0 0
        %991 = vmatpush.bf16.msra.mxu0 0
        %992 = vmatpush.bf16.msra.mxu0 %v980
        %993 = vmatpush.bf16.msra.mxu0 %v979
        %994 = vmatpush.bf16.msra.mxu0 %v978
        %995 = vmatmul.bf16.gmra.mxu0 %v985
        %v996 = vpop.f32.mrf.mxu0
        %v997 = vadd.f32 0.0, %v996
        %v998 = vpop.f32.mrf.mxu0
        %999 = vdwg.mxu0
        %v1000 = vadd.f32 %v957, %v997
        %v1001 = vld [vmem:[%s603] sm:$0xf]
        %v1002 = vld [vmem:[%s603 + $0x4] sm:$0x1]
        %s1003 = scalar_lea.vmem %s6, 192
        %v1004 = vld [vmem:[%s1003] sm:$0xf]
        %v1005 = vld [vmem:[%s1003 + $0x4] sm:$0xf]
        %v1006 = vld [vmem:[%s1003 + $0x8] sm:$0xf]
        %v1007 = vld [vmem:[%s1003 + $0xc] sm:$0xf]
        %v1008 = vld [vmem:[%s1003 + $0x10] sm:$0xf]
        %v1009 = vld [vmem:[%s1003 + $0x14] sm:$0xf]
        %v1012 = vunpack.c.l.b16 %v1001
        %v1013 = vunpack.c.l.b16 %v1002
        %v1014 = vpack.c.b16 %v1013, %v1012
        %v1016 = vshrl.u32 %v1014, 16
        %v1018 = vshll.u32 %v1014, 16
        %v1020 = vrot.slane %v1018, 1
        %v1021 = vor.u32 %v1016, %v1020
        %v1028 = vunpack.c.l.b16 %v1004
        %v1029 = vunpack.c.l.b16 %v1005
        %v1030 = vunpack.c.l.b16 %v1006
        %v1031 = vunpack.c.l.b16 %v1007
        %v1032 = vunpack.c.l.b16 %v1008
        %v1033 = vunpack.c.l.b16 %v1009
        %v1034 = vpack.c.b16 %v1029, %v1028
        %v1035 = vpack.c.b16 %v1031, %v1030
        %v1036 = vpack.c.b16 %v1033, %v1032
        %v1041 = vsel %vm666, %v1021, 0
        %1043 = vmatpush.bf16.msra.mxu0 0
        %1044 = vmatpush.bf16.msra.mxu0 0
        %1045 = vmatpush.bf16.msra.mxu0 0
        %1046 = vmatpush.bf16.msra.mxu0 0
        %1047 = vmatpush.bf16.msra.mxu0 0
        %1048 = vmatpush.bf16.msra.mxu0 %v1036
        %1049 = vmatpush.bf16.msra.mxu0 %v1035
        %1050 = vmatpush.bf16.msra.mxu0 %v1034
        %1051 = vmatmul.bf16.gmra.mxu0 %v1041
        %v1052 = vpop.f32.mrf.mxu0
        %v1053 = vadd.f32 0.0, %v1052
        %v1054 = vpop.f32.mrf.mxu0
        %1055 = vdwg.mxu0
        %v1056 = vadd.f32 %v1000, %v1053
        %v1057 = vld [vmem:[%s7] sm:$0x1]
        %v1059 = vperm.slane %v1057, 0
        %v1061 = vadd.f32 %v1056, %v1059
        %v1062 = vld [vmem:[%s623] sm:$0xff]
        %v1063 = vadd.f32 %v1061, %v1062
        %v1064 = vld [vmem:[%s631] sm:$0xff]
        %v1065 = vadd.f32 %v1063, %v1064
        %v1066 = vmax.f32 %v1065, 0.0
        %vm1067 = vcmask 785408
        %1068 = vst.msk [vmem:[%s557] sm:$0xff] %vm1067, %v1066
        %s1069 = sand.u32 %s316, 1
        %s1070 = scalar_lea.sflag [#allocation3], %s1069
        %s1071 = sand.u32 %s316, 1
        %s1072 = smul.addr %s1071, 8
        %s1073 = scalar_lea.vmem [#allocation2], %s1072
        // Predicated region
        $region61: #{stage03_fuse_forward.11} parent=59 // pred_check
          %p1074 = pneg %p326
        $region62: #{stage03_fuse_forward.11} parent=59 // pred_check_branch
          %1076 = sbr.rel (%p1074) target = $region64
        $region63: #{stage03_fuse_forward.11} parent=59 // pred_region
          %1078 = vsyncadd %s1070, 0
          %s1079 = smul.addr %s28, 8
          %s1080 = sadd.s32 %s29, %s1079
          %s1081 = smul.addr %s1080, 8
          %s1082 = scalar_lea.hbm %s10, %s1081
          %s1084 = sshll.u32 %s1073, 4
          %s1085 = int_to_ptr.vmem [resolvable:$true] %s1084
          %s1086 = sshll.u32 %s1082, 4
          %s1087 = int_to_ptr.hbm [resolvable:$true] %s1086
          %1089 = dma.vmem_to_hbm [thread:$0]  %s1085, 128, %s1087, %s1070
        $region64: #{stage03_fuse_forward.11} parent=59 // pred_fallthru
          _
      $region60: #{stage03_fuse_forward.11} parent=5 // pred_fallthru
        _
      %p1090 = scmp.le.s32.totalorder 2, %s19
      // Predicated region
      $region65: #{stage03_fuse_forward.11} parent=5 // pred_check
        %p1091 = pneg %p1090
      $region66: #{stage03_fuse_forward.11} parent=5 // pred_check_branch
        %1093 = sbr.rel (%p1091) target = $region68
      $region67: #{stage03_fuse_forward.11} parent=5 // pred_region
        %s1094 = ssub.s32 %s19, 2
        // Predicated region
        $region69: #{stage03_fuse_forward.11} parent=67 // pred_check
          %p1095 = pneg %p332
        $region70: #{stage03_fuse_forward.11} parent=67 // pred_check_branch
          %1097 = sbr.rel (%p1095) target = $region72
        $region71: #{stage03_fuse_forward.11} parent=67 // pred_region
          %s1098 = sand.u32 %s317, 1
          %s1099 = scalar_lea.sflag [#allocation3], %s1098
          %s1100 = sand.u32 %s317, 1
          %s1101 = smul.addr %s1100, 8
          %s1102 = scalar_lea.vmem [#allocation2], %s1101
          %1104 = dma.done %s1099, 128
        $region72: #{stage03_fuse_forward.11} parent=67 // pred_fallthru
          _
      $region68: #{stage03_fuse_forward.11} parent=5 // pred_fallthru
        _
    $region6: #{stage03_fuse_forward.11} parent=1 // loop_footer
      %s23 = sadd.s32 1, %s19
    $region7: #{stage03_fuse_forward.11} parent=1 // loop_footer_branch
      %18 = sbr.rel target = $region3
    $region8: #{stage03_fuse_forward.11} parent=1 // loop_exit
      _
    %1105 = vsyncpa [#allocation3], 1
    %s1106 = scalar_lea.sflag [#allocation3], 1
    %1107 = vsyncpa %s1106, 1

// kernel: stage03_fuse_forward.13
$region0: #{stage03_fuse_forward.13}
  #allocation0 [shape = 'u32[]', space=smem, size = 0x4, offset = 0x4, fixed_abs, tag = 'smem constant byte address 0x4 - core index']
  #allocation1 [shape = 'u32[72,128]{1,0:T(1,128)}', space=vmem, size = 0x9000, scoped, tag = 'internal scratch']
  %s0 = inlined_call_operand.vmem [shape: f32[192,128], index: 0, kind: input, shape index: {}]
  %s1 = inlined_call_operand.vmem [shape: f32[192,128], index: 1, kind: input, shape index: {}]
  %s2 = inlined_call_operand.vmem [shape: f32[192,128], index: 2, kind: input, shape index: {}]
  %s3 = inlined_call_operand.vmem [shape: f32[192,128], index: 3, kind: output, shape index: {}]
  %s4 = sld [smem:[#allocation0]]
  $region45: #{stage03_fuse_forward.13} parent=0
    _
  %s6 = ssub.s32 1, %s4
  %s7 = scalar_select 0, %s6, %s4
  loop: start=0, step=1, limit=5
  $region2: #{stage03_fuse_forward.13} parent=0 // loop_pre_header
    _
  $region3: #{stage03_fuse_forward.13} parent=0 // loop_header
    %s9 = sphi 0, %s13
    %p10 = scmp.ge.s32.totalorder %s9, 5
    %s19 = sphi 0, %s21
    %s22 = sphi 0, %s19
    %s23 = sphi 0, %s22
    %s39 = sphi 0, %s23
    %s45 = sphi 0, %s47
    %s48 = sphi 0, %s45
    %s49 = sphi 0, %s48
    %s65 = sphi 0, %s49
    %s71 = sphi 0, %s73
    %s74 = sphi 0, %s71
    %s75 = sphi 0, %s74
    %s91 = sphi 0, %s75
    %s97 = sphi 0, %s99
    %s100 = sphi 0, %s97
    %s101 = sphi 0, %s100
    %s117 = sphi 0, %s101
  $region4: #{stage03_fuse_forward.13} parent=0 // loop_header_branch
    %12 = sbr.rel (%p10) target = $region8
  $region5: #{stage03_fuse_forward.13} parent=0 // loop_body
    %s14 = ssub.s32 %s9, 1
    %s15 = ssub.s32 %s9, 2
    %s16 = sadd.s32 %s9, 1
    %s17 = ssub.s32 %s9, %s16
    %p18 = scmp.eq.s32.totalorder %s17, 0
    %s20 = sadd.s32 %s19, 1
    %s21 = scalar_select %p18, %s19, %s20
    %p24 = pneg %p18
    %p25 = scmp.eq.s32.totalorder %s9, 2
    %p26 = por %p24, %p25
    %p27 = scmp.ne.s32.totalorder %s19, %s22
    %p28 = scmp.eq.s32.totalorder %s9, 0
    %p29 = por %p27, %p28
    %p30 = scmp.ne.s32.totalorder %s19, %s22
    %p31 = scmp.eq.s32.totalorder %s14, 2
    %p32 = por %p30, %p31
    %p33 = scmp.ne.s32.totalorder %s22, %s23
    %p34 = scmp.eq.s32.totalorder %s14, 0
    %p35 = por %p33, %p34
    %p36 = scmp.ne.s32.totalorder %s22, %s23
    %p37 = scmp.eq.s32.totalorder %s15, 2
    %p38 = por %p36, %p37
    %p40 = scmp.ne.s32.totalorder %s23, %s39
    %p41 = scmp.eq.s32.totalorder %s15, 0
    %p42 = por %p40, %p41
    %s43 = ssub.s32 %s9, %s16
    %p44 = scmp.eq.s32.totalorder %s43, 0
    %s46 = sadd.s32 %s45, 1
    %s47 = scalar_select %p44, %s45, %s46
    %p50 = pneg %p44
    %p51 = scmp.eq.s32.totalorder %s9, 2
    %p52 = por %p50, %p51
    %p53 = scmp.ne.s32.totalorder %s45, %s48
    %p54 = scmp.eq.s32.totalorder %s9, 0
    %p55 = por %p53, %p54
    %p56 = scmp.ne.s32.totalorder %s45, %s48
    %p57 = scmp.eq.s32.totalorder %s14, 2
    %p58 = por %p56, %p57
    %p59 = scmp.ne.s32.totalorder %s48, %s49
    %p60 = scmp.eq.s32.totalorder %s14, 0
    %p61 = por %p59, %p60
    %p62 = scmp.ne.s32.totalorder %s48, %s49
    %p63 = scmp.eq.s32.totalorder %s15, 2
    %p64 = por %p62, %p63
    %p66 = scmp.ne.s32.totalorder %s49, %s65
    %p67 = scmp.eq.s32.totalorder %s15, 0
    %p68 = por %p66, %p67
    %s69 = ssub.s32 %s9, %s16
    %p70 = scmp.eq.s32.totalorder %s69, 0
    %s72 = sadd.s32 %s71, 1
    %s73 = scalar_select %p70, %s71, %s72
    %p76 = pneg %p70
    %p77 = scmp.eq.s32.totalorder %s9, 2
    %p78 = por %p76, %p77
    %p79 = scmp.ne.s32.totalorder %s71, %s74
    %p80 = scmp.eq.s32.totalorder %s9, 0
    %p81 = por %p79, %p80
    %p82 = scmp.ne.s32.totalorder %s71, %s74
    %p83 = scmp.eq.s32.totalorder %s14, 2
    %p84 = por %p82, %p83
    %p85 = scmp.ne.s32.totalorder %s74, %s75
    %p86 = scmp.eq.s32.totalorder %s14, 0
    %p87 = por %p85, %p86
    %p88 = scmp.ne.s32.totalorder %s74, %s75
    %p89 = scmp.eq.s32.totalorder %s15, 2
    %p90 = por %p88, %p89
    %p92 = scmp.ne.s32.totalorder %s75, %s91
    %p93 = scmp.eq.s32.totalorder %s15, 0
    %p94 = por %p92, %p93
    %s95 = ssub.s32 %s9, %s16
    %p96 = scmp.eq.s32.totalorder %s95, 0
    %s98 = sadd.s32 %s97, 1
    %s99 = scalar_select %p96, %s97, %s98
    %p102 = pneg %p96
    %p103 = scmp.eq.s32.totalorder %s9, 2
    %p104 = por %p102, %p103
    %p105 = scmp.ne.s32.totalorder %s97, %s100
    %p106 = scmp.eq.s32.totalorder %s9, 0
    %p107 = por %p105, %p106
    %p108 = scmp.ne.s32.totalorder %s97, %s100
    %p109 = scmp.eq.s32.totalorder %s14, 2
    %p110 = por %p108, %p109
    %p111 = scmp.ne.s32.totalorder %s100, %s101
    %p112 = scmp.eq.s32.totalorder %s14, 0
    %p113 = por %p111, %p112
    %p114 = scmp.ne.s32.totalorder %s100, %s101
    %p115 = scmp.eq.s32.totalorder %s15, 2
    %p116 = por %p114, %p115
    %p118 = scmp.ne.s32.totalorder %s101, %s117
    %p119 = scmp.eq.s32.totalorder %s15, 0
    %p120 = por %p118, %p119
    %p121 = scmp.le.s32.totalorder 1, %s9
    %p122 = scmp.lt.s32.totalorder %s9, 4
    %p123 = pnand %p121, %p122
    %p124 = pneg %p123
    // Predicated region
    $region9: #{stage03_fuse_forward.13} parent=5 // pred_check
      _
    $region10: #{stage03_fuse_forward.13} parent=5 // pred_check_branch
      %126 = sbr.rel (%p123) target = $region12
    $region11: #{stage03_fuse_forward.13} parent=5 // pred_region
      %s127 = ssub.s32 %s9, 1
    $region12: #{stage03_fuse_forward.13} parent=5 // pred_fallthru
      _
    %p128 = scmp.lt.s32.totalorder %s9, 3
    // Predicated region
    $region13: #{stage03_fuse_forward.13} parent=5 // pred_check
      %p129 = pneg %p128
    $region14: #{stage03_fuse_forward.13} parent=5 // pred_check_branch
      %131 = sbr.rel (%p129) target = $region16
    $region15: #{stage03_fuse_forward.13} parent=5 // pred_region
      // Predicated region
      $region17: #{stage03_fuse_forward.13} parent=15 // pred_check
        %p132 = pneg %p29
      $region18: #{stage03_fuse_forward.13} parent=15 // pred_check_branch
        %134 = sbr.rel (%p132) target = $region20
      $region19: #{stage03_fuse_forward.13} parent=15 // pred_region
        %s135 = smul.u32 8, %s9
        %p136 = scmp.lt.s32.totalorder %s135, 23
        %s137 = scalar_select %p136, %s135, 23
        %s138 = smul.addr %s137, 8
        %s139 = scalar_lea.vmem %s0, %s138
        %s140 = smul.u32 8, %s9
      $region20: #{stage03_fuse_forward.13} parent=15 // pred_fallthru
        _
      // Predicated region
      $region21: #{stage03_fuse_forward.13} parent=15 // pred_check
        %p141 = pneg %p55
      $region22: #{stage03_fuse_forward.13} parent=15 // pred_check_branch
        %143 = sbr.rel (%p141) target = $region24
      $region23: #{stage03_fuse_forward.13} parent=15 // pred_region
        %s144 = smul.u32 8, %s9
        %p145 = scmp.lt.s32.totalorder %s144, 23
        %s146 = scalar_select %p145, %s144, 23
        %s147 = smul.addr %s146, 8
        %s148 = scalar_lea.vmem %s1, %s147
        %s149 = smul.u32 8, %s9
      $region24: #{stage03_fuse_forward.13} parent=15 // pred_fallthru
        _
      // Predicated region
      $region25: #{stage03_fuse_forward.13} parent=15 // pred_check
        %p150 = pneg %p81
      $region26: #{stage03_fuse_forward.13} parent=15 // pred_check_branch
        %152 = sbr.rel (%p150) target = $region28
      $region27: #{stage03_fuse_forward.13} parent=15 // pred_region
        %s153 = smul.u32 8, %s9
        %p154 = scmp.lt.s32.totalorder %s153, 23
        %s155 = scalar_select %p154, %s153, 23
        %s156 = smul.addr %s155, 8
        %s157 = scalar_lea.vmem %s2, %s156
        %s158 = smul.u32 8, %s9
      $region28: #{stage03_fuse_forward.13} parent=15 // pred_fallthru
        _
    $region16: #{stage03_fuse_forward.13} parent=5 // pred_fallthru
      _
    %p159 = scmp.le.s32.totalorder 1, %s9
    %p160 = scmp.lt.s32.totalorder %s9, 4
    %p161 = pnand %p159, %p160
    %p162 = pneg %p161
    // Predicated region
    $region29: #{stage03_fuse_forward.13} parent=5 // pred_check
      _
    $region30: #{stage03_fuse_forward.13} parent=5 // pred_check_branch
      %164 = sbr.rel (%p161) target = $region32
    $region31: #{stage03_fuse_forward.13} parent=5 // pred_region
      %s165 = ssub.s32 %s9, 1
      %s166 = smul.u32 8, %s14
      %p167 = scmp.lt.s32.totalorder %s166, 23
      %s168 = scalar_select %p167, %s166, 23
      %s169 = smul.addr %s168, 8
      %s170 = scalar_lea.vmem %s0, %s169
      %p171 = pneg %p35
      %p172 = pneg %p32
      %s173 = smul.u32 8, %s14
      %p174 = scmp.lt.s32.totalorder %s173, 23
      %s175 = scalar_select %p174, %s173, 23
      %s176 = smul.addr %s175, 8
      %s177 = scalar_lea.vmem %s1, %s176
      %p178 = pneg %p61
      %p179 = pneg %p58
      %s180 = smul.u32 8, %s14
      %p181 = scmp.lt.s32.totalorder %s180, 23
      %s182 = scalar_select %p181, %s180, 23
      %s183 = smul.addr %s182, 8
      %s184 = scalar_lea.vmem %s2, %s183
      %p185 = pneg %p87
      %p186 = pneg %p84
      %p187 = pneg %p113
      %p188 = pneg %p110
      %s189 = smul.u32 8, %s14
      %p190 = scmp.lt.s32.totalorder %s189, 23
      %s191 = scalar_select %p190, %s189, 23
      %s192 = smul.addr %s191, 8
      %s193 = scalar_lea.vmem %s3, %s192
      %s194 = smul.u32 8, %s14
      %p195 = scmp.lt.s32.totalorder %s194, 23
      %s196 = scalar_select %p195, %s194, 23
      %s197 = smul.addr %s196, 8
      %s198 = scalar_lea.vmem %s0, %s197
      %s199 = smul.u32 8, %s14
      %s200 = smul.u32 8, %s14
      %p201 = scmp.lt.s32.totalorder %s200, 23
      %s202 = scalar_select %p201, %s200, 23
      %s203 = smul.addr %s202, 8
      %s204 = scalar_lea.vmem %s1, %s203
      %s205 = smul.u32 8, %s14
      %s206 = smul.u32 8, %s14
      %p207 = scmp.lt.s32.totalorder %s206, 23
      %s208 = scalar_select %p207, %s206, 23
      %s209 = smul.addr %s208, 8
      %s210 = scalar_lea.vmem %s2, %s209
      %s211 = smul.u32 8, %s14
      %s212 = smul.u32 8, %s14
      %p213 = scmp.lt.s32.totalorder %s212, 23
      %s214 = scalar_select %p213, %s212, 23
      %s215 = smul.addr %s214, 8
      %s216 = scalar_lea.vmem %s3, %s215
      %s217 = smul.u32 8, %s14
      %v218 = vld [vmem:[%s198] sm:$0xff]
      %v219 = vld [vmem:[%s198 + $0x8] sm:$0xff]
      %v220 = vld [vmem:[%s198 + $0x10] sm:$0xff]
      %v221 = vld [vmem:[%s198 + $0x18] sm:$0xff]
      %v222 = vld [vmem:[%s198 + $0x20] sm:$0xff]
      %v223 = vld [vmem:[%s198 + $0x28] sm:$0xff]
      %v224 = vld [vmem:[%s198 + $0x30] sm:$0xff]
      %v225 = vld [vmem:[%s198 + $0x38] sm:$0xff]
      %v226 = vld [vmem:[%s204] sm:$0xff]
      %v227 = vld [vmem:[%s204 + $0x8] sm:$0xff]
      %v228 = vld [vmem:[%s204 + $0x10] sm:$0xff]
      %v229 = vld [vmem:[%s204 + $0x18] sm:$0xff]
      %v230 = vld [vmem:[%s204 + $0x20] sm:$0xff]
      %v231 = vld [vmem:[%s204 + $0x28] sm:$0xff]
      %v232 = vld [vmem:[%s204 + $0x30] sm:$0xff]
      %v233 = vld [vmem:[%s204 + $0x38] sm:$0xff]
      %v234 = vadd.f32 %v218, %v226
      %v235 = vadd.f32 %v219, %v227
      %v236 = vadd.f32 %v220, %v228
      %v237 = vadd.f32 %v221, %v229
      %v238 = vadd.f32 %v222, %v230
      %v239 = vadd.f32 %v223, %v231
      %v240 = vadd.f32 %v224, %v232
      %v241 = vadd.f32 %v225, %v233
      %v242 = vld [vmem:[%s210] sm:$0xff]
      %v243 = vld [vmem:[%s210 + $0x8] sm:$0xff]
      %v244 = vld [vmem:[%s210 + $0x10] sm:$0xff]
      %v245 = vld [vmem:[%s210 + $0x18] sm:$0xff]
      %v246 = vld [vmem:[%s210 + $0x20] sm:$0xff]
      %v247 = vld [vmem:[%s210 + $0x28] sm:$0xff]
      %v248 = vld [vmem:[%s210 + $0x30] sm:$0xff]
      %v249 = vld [vmem:[%s210 + $0x38] sm:$0xff]
      %v250 = vadd.f32 %v234, %v242
      %v251 = vadd.f32 %v235, %v243
      %v252 = vadd.f32 %v236, %v244
      %v253 = vadd.f32 %v237, %v245
      %v254 = vadd.f32 %v238, %v246
      %v255 = vadd.f32 %v239, %v247
      %v256 = vadd.f32 %v240, %v248
      %v257 = vadd.f32 %v241, %v249
      %v258 = vmax.f32 %v250, 0.0
      %v259 = vmax.f32 %v251, 0.0
      %v260 = vmax.f32 %v252, 0.0
      %v261 = vmax.f32 %v253, 0.0
      %v262 = vmax.f32 %v254, 0.0
      %v263 = vmax.f32 %v255, 0.0
      %v264 = vmax.f32 %v256, 0.0
      %v265 = vmax.f32 %v257, 0.0
      %266 = vst [vmem:[%s216] sm:$0xff] %v258
      %267 = vst [vmem:[%s216 + $0x8] sm:$0xff] %v259
      %268 = vst [vmem:[%s216 + $0x10] sm:$0xff] %v260
      %269 = vst [vmem:[%s216 + $0x18] sm:$0xff] %v261
      %270 = vst [vmem:[%s216 + $0x20] sm:$0xff] %v262
      %271 = vst [vmem:[%s216 + $0x28] sm:$0xff] %v263
      %272 = vst [vmem:[%s216 + $0x30] sm:$0xff] %v264
      %273 = vst [vmem:[%s216 + $0x38] sm:$0xff] %v265
      %s274 = smul.u32 8, %s14
      %p275 = scmp.lt.s32.totalorder %s274, 23
      %s276 = scalar_select %p275, %s274, 23
      %s277 = smul.addr %s276, 8
      %s278 = scalar_lea.vmem %s3, %s277
      // Predicated region
      $region33: #{stage03_fuse_forward.13} parent=31 // pred_check
        %p279 = pneg %p110
      $region34: #{stage03_fuse_forward.13} parent=31 // pred_check_branch
        %281 = sbr.rel (%p279) target = $region36
      $region35: #{stage03_fuse_forward.13} parent=31 // pred_region
        %s282 = smul.u32 8, %s14
      $region36: #{stage03_fuse_forward.13} parent=31 // pred_fallthru
        _
    $region32: #{stage03_fuse_forward.13} parent=5 // pred_fallthru
      _
    %p283 = scmp.le.s32.totalorder 2, %s9
    // Predicated region
    $region37: #{stage03_fuse_forward.13} parent=5 // pred_check
      %p284 = pneg %p283
    $region38: #{stage03_fuse_forward.13} parent=5 // pred_check_branch
      %286 = sbr.rel (%p284) target = $region40
    $region39: #{stage03_fuse_forward.13} parent=5 // pred_region
      %s287 = ssub.s32 %s9, 2
      // Predicated region
      $region41: #{stage03_fuse_forward.13} parent=39 // pred_check
        %p288 = pneg %p116
      $region42: #{stage03_fuse_forward.13} parent=39 // pred_check_branch
        %290 = sbr.rel (%p288) target = $region44
      $region43: #{stage03_fuse_forward.13} parent=39 // pred_region
        %s291 = smul.u32 8, %s15
        %p292 = scmp.lt.s32.totalorder %s291, 23
        %s293 = scalar_select %p292, %s291, 23
        %s294 = smul.addr %s293, 8
        %s295 = scalar_lea.vmem %s3, %s294
      $region44: #{stage03_fuse_forward.13} parent=39 // pred_fallthru
        _
    $region40: #{stage03_fuse_forward.13} parent=5 // pred_fallthru
      _
  $region6: #{stage03_fuse_forward.13} parent=0 // loop_footer
    %s13 = sadd.s32 1, %s9
  $region7: #{stage03_fuse_forward.13} parent=0 // loop_footer_branch
    %8 = sbr.rel target = $region3
  $region8: #{stage03_fuse_forward.13} parent=0 // loop_exit
    _

</llo_original>
